<compile_context>
chip_gen: v7x
topology: tpu7x:2x2x1
jax: 0.10.0
libtpu: 0.0.40
codegen_flags: <defaults>
</compile_context>

<pallas_src>
import functools

import jax
import jax.numpy as jnp
from jax.experimental import pallas as pl
from jax.experimental.pallas import tpu as pltpu

_VMEM_LIMIT = 32 * 1024 * 1024
_BN_EPS = 1e-5


# --------------------------------------------------------------------------- #
# small helpers                                                                #
# --------------------------------------------------------------------------- #
def _round_up(n, m):
    return ((n + m - 1) // m) * m


def _pick_tile(dim, cap, multiple):
    """Largest tile <= cap that is a multiple of `multiple` and divides `dim`;
    falls back to the full dim (always legal for a BlockSpec)."""
    t = min(cap, dim)
    t -= t % multiple
    while t >= multiple:
        if dim % t == 0:
            return t
        t -= multiple
    return dim


def _apply_pre_act(x, pre_act):
    # Applied once to the activation (not to the 16x/4x redundant im2col patches).
    if pre_act == "leaky_relu":
        return jnp.where(x >= 0, x, 0.2 * x)
    if pre_act == "relu":
        return jnp.maximum(x, 0.0)
    return x


# --------------------------------------------------------------------------- #
# Pallas kernels                                                               #
# --------------------------------------------------------------------------- #
def _gemm_kernel(p_ref, w_ref, b_ref, o_ref, acc_ref, *, post_act):
    """Tiled GEMM with f32 accumulator; bias (+ optional activation) on finalize."""
    k = pl.program_id(2)

    @pl.when(k == 0)
    def _init():
        acc_ref[...] = jnp.zeros_like(acc_ref)

    acc_ref[...] += jnp.dot(p_ref[0], w_ref[0],
                            preferred_element_type=jnp.float32)

    @pl.when(k == pl.num_programs(2) - 1)
    def _finalize():
        y = acc_ref[...] + b_ref[...]
        if post_act == "tanh":
            y = jnp.tanh(y)
        elif post_act == "sigmoid":
            y = jax.nn.sigmoid(y)
        o_ref[0] = y.astype(o_ref.dtype)


def _bn_stats_kernel(y_ref, sum_ref, sq_ref):
    """Pass 1: per-channel sum / sum-of-squares accumulated across all M tiles."""
    y = y_ref[...]

    @pl.when(pl.program_id(0) == 0)
    def _init():
        sum_ref[...] = jnp.zeros_like(sum_ref)
        sq_ref[...] = jnp.zeros_like(sq_ref)

    sum_ref[...] += jnp.sum(y, axis=0, keepdims=True)
    sq_ref[...] += jnp.sum(y * y, axis=0, keepdims=True)


def _bn_norm_kernel(y_ref, sum_ref, sq_ref, g_ref, beta_ref, o_ref,
                    *, count, eps, post_act):
    """Pass 2: normalize with batch stats, affine, optional activation."""
    inv_n = 1.0 / count
    mean = sum_ref[...] * inv_n
    var = jnp.maximum(sq_ref[...] * inv_n - mean * mean, 0.0)   # biased var (PyTorch)
    scale = jax.lax.rsqrt(var + eps) * g_ref[...]
    y = (y_ref[...] - mean) * scale + beta_ref[...]
    if post_act == "tanh":
        y = jnp.tanh(y)
    elif post_act == "sigmoid":
        y = jax.nn.sigmoid(y)
    o_ref[...] = y


# --------------------------------------------------------------------------- #
# fused conv-as-GEMM wrapper (tiling, channel padding, bf16, BN passes)        #
# --------------------------------------------------------------------------- #
def fused_conv_gemm(patches, wms, bias, gamma, beta, *, use_bn, post_act):
    """patches: (B, M, K) f32, wms: (B, K, N) f32, bias/gamma/beta: (1, N).
    Returns (B, M, N) f32 = post_act( BN( patches @ wms + bias ) )."""
    B, M, K = patches.shape
    N = wms.shape[2]
    Np = _round_up(N, 128)                        # lane-dense output channels

    wms_p = jnp.pad(wms, ((0, 0), (0, 0), (0, Np - N)))
    bias_p = jnp.pad(bias, ((0, 0), (0, Np - N)))

    p_bf = patches.astype(jnp.bfloat16)           # bf16 MXU inputs
    w_bf = wms_p.astype(jnp.bfloat16)

    tm = _pick_tile(M, 512, 8)
    tk = _pick_tile(K, 512, 128)
    mt, kt = M // tm, K // tk

    gemm_post = None if use_bn else post_act
    gemm = functools.partial(_gemm_kernel, post_act=gemm_post)
    y = pl.pallas_call(
        gemm,
        out_shape=jax.ShapeDtypeStruct((B, M, Np), jnp.float32),
        grid_spec=pltpu.PrefetchScalarGridSpec(
            num_scalar_prefetch=0,
            grid=(B, mt, kt),
            in_specs=[
                pl.BlockSpec((1, tm, tk), lambda b, i, k: (b, i, k)),
                pl.BlockSpec((1, tk, Np), lambda b, i, k: (b, k, 0)),
                pl.BlockSpec((1, Np), lambda b, i, k: (0, 0)),
            ],
            out_specs=pl.BlockSpec((1, tm, Np), lambda b, i, k: (b, i, 0)),
            scratch_shapes=[pltpu.VMEM((tm, Np), jnp.float32)],
        ),
        compiler_params=pltpu.CompilerParams(
            dimension_semantics=("parallel", "parallel", "arbitrary"),
            vmem_limit_bytes=_VMEM_LIMIT),
        cost_estimate=pl.CostEstimate(
            flops=2 * B * M * K * Np,
            transcendentals=(B * M * Np) if gemm_post else 0,
            bytes_accessed=(p_bf.size + w_bf.size) * 2 + B * M * Np * 4),
    )(p_bf, w_bf, bias_p)

    if use_bn:
        g_p = jnp.pad(gamma, ((0, 0), (0, Np - N)))
        be_p = jnp.pad(beta, ((0, 0), (0, Np - N)))
        Mtot = B * M
        y2 = y.reshape(Mtot, Np)                  # leading-dim reshape (free)
        tms = _pick_tile(Mtot, 512, 8)

        s, ss = pl.pallas_call(
            _bn_stats_kernel,
            out_shape=(jax.ShapeDtypeStruct((1, Np), jnp.float32),
                       jax.ShapeDtypeStruct((1, Np), jnp.float32)),
            grid=(Mtot // tms,),
            in_specs=[pl.BlockSpec((tms, Np), lambda i: (i, 0))],
            out_specs=(pl.BlockSpec((1, Np), lambda i: (0, 0)),
                       pl.BlockSpec((1, Np), lambda i: (0, 0))),
            compiler_params=pltpu.CompilerParams(
                dimension_semantics=("arbitrary",),
                vmem_limit_bytes=_VMEM_LIMIT),
        )(y2)

        norm = functools.partial(_bn_norm_kernel, count=Mtot, eps=_BN_EPS,
                                 post_act=post_act)
        y2 = pl.pallas_call(
            norm,
            out_shape=jax.ShapeDtypeStruct((Mtot, Np), jnp.float32),
            grid=(Mtot // tms,),
            in_specs=[pl.BlockSpec((tms, Np), lambda i: (i, 0)),
                      pl.BlockSpec((1, Np), lambda i: (0, 0)),
                      pl.BlockSpec((1, Np), lambda i: (0, 0)),
                      pl.BlockSpec((1, Np), lambda i: (0, 0)),
                      pl.BlockSpec((1, Np), lambda i: (0, 0))],
            out_specs=pl.BlockSpec((tms, Np), lambda i: (i, 0)),
            compiler_params=pltpu.CompilerParams(
                dimension_semantics=("parallel",),
                vmem_limit_bytes=_VMEM_LIMIT),
        )(y2, s, ss, g_p, be_p)
        y = y2.reshape(B, M, Np)

    return y[..., :N]


# --------------------------------------------------------------------------- #
# im2col glue (plain JAX)                                                      #
# --------------------------------------------------------------------------- #
def _extract_patches(xp, stride):
    """xp: padded NHWC input.  Returns ((N*ho*wo, 16*C), ho, wo); column order is
    (ky, kx, ci) to match the reshaped Conv2d weight."""
    N, Hp, Wp, C = xp.shape
    ho = (Hp - 4) // stride + 1
    wo = (Wp - 4) // stride + 1
    cols = []
    for ky in range(4):
        for kx in range(4):
            cols.append(xp[:, ky:ky + stride * (ho - 1) + 1:stride,
                           kx:kx + stride * (wo - 1) + 1:stride, :])
    p = jnp.stack(cols, axis=3)                  # (N, ho, wo, 16, C)
    return p.reshape(N * ho * wo, 16 * C), ho, wo


def conv4x4_s2_down(x, w, b, gamma, beta, *, pre_act, use_bn):
    """Conv2d(Cin, Cout, k=4, s=2, p=1).  x: NHWC, w: (Cout, Cin, 4, 4) torch layout."""
    nb, H, W, C = x.shape
    cout = w.shape[0]
    xa = _apply_pre_act(x, pre_act)
    xp = jnp.pad(xa, ((0, 0), (1, 1), (1, 1), (0, 0)))
    patches, ho, wo = _extract_patches(xp, stride=2)              # (M, 16C)
    wm = jnp.transpose(w, (2, 3, 1, 0)).reshape(16 * C, cout)     # (ky,kx,ci) x co
    y = fused_conv_gemm(patches[None], wm[None], b, gamma, beta,
                        use_bn=use_bn, post_act=None)             # (1, M, cout)
    return y[0].reshape(nb, ho, wo, cout)


def convT4x4_s2_up(x, wt, b, gamma, beta, *, pre_act, use_bn, post_act):
    """ConvTranspose2d(Cin, Cout, k=4, s=2, p=1) via sub-pixel decomposition:
    4 output phases (oy%2, ox%2), each a stride-1 conv with a 2x2 tap subset.
    wt: (Cin, Cout, 4, 4) torch layout."""
    nb, H, W, C = x.shape
    cout = wt.shape[1]
    xa = _apply_pre_act(x, pre_act)
    xp = jnp.pad(xa, ((0, 0), (1, 1), (1, 1), (0, 0)))            # (nb, H+2, W+2, C)

    phase_patches, phase_w = [], []
    for dy in (0, 1):
        for dx in (0, 1):
            cols, taps = [], []
            for j in (0, 1):
                for i in (0, 1):
                    cols.append(xp[:, dy + j:dy + j + H, dx + i:dx + i + W, :])
                    ky = (3 - 2 * j) if dy == 0 else (2 - 2 * j)
                    kx = (3 - 2 * i) if dx == 0 else (2 - 2 * i)
                    taps.append(wt[:, :, ky, kx])                 # (Cin, Cout)
            phase_patches.append(jnp.stack(cols, axis=3).reshape(nb * H * W, 4 * C))
            phase_w.append(jnp.stack(taps, axis=0).reshape(4 * C, cout))

    patches = jnp.stack(phase_patches, axis=0)                    # (4, M, 4C)
    wms = jnp.stack(phase_w, axis=0)                              # (4, 4C, Cout)
    y = fused_conv_gemm(patches, wms, b, gamma, beta,
                        use_bn=use_bn, post_act=post_act)         # (4, M, Cout)

    # interleave the 4 phases: (dy, dx, nb, H, W, C) -> (nb, 2H, 2W, C)
    y = y.reshape(2, 2, nb, H, W, cout)
    y = jnp.transpose(y, (2, 3, 0, 4, 1, 5))
    return y.reshape(nb, 2 * H, 2 * W, cout)


# --------------------------------------------------------------------------- #
# U-Net construction (parameters + recursive forward)                          #
# --------------------------------------------------------------------------- #
def _zeros(n):
    return jnp.zeros((1, n), jnp.float32)


def _ones(n):
    return jnp.ones((1, n), jnp.float32)


def build_unet_params(key, input_nc, output_nc, num_downs, ngf):
    keys = iter(jax.random.split(key, 8 * num_downs + 8))

    def nk():
        return next(keys)

    def init_conv(cout, cin):        # Conv2d weight layout (Cout, Cin, 4, 4)
        return 0.05 * jax.random.normal(nk(), (cout, cin, 4, 4), jnp.float32)

    def init_convT(cin, cout):       # ConvTranspose2d weight layout (Cin, Cout, 4, 4)
        return 0.05 * jax.random.normal(nk(), (cin, cout, 4, 4), jnp.float32)

    # innermost: Conv(ngf*8 -> ngf*8), ConvT(ngf*8 -> ngf*8), upnorm(ngf*8)
    blk = {
        "kind": "innermost",
        "dw": init_conv(ngf * 8, ngf * 8), "db": _zeros(ngf * 8),
        "uw": init_convT(ngf * 8, ngf * 8), "ub": _zeros(ngf * 8),
        "ug": _ones(ngf * 8), "ubeta": _zeros(ngf * 8),
    }

    # intermediate blocks, built innermost -> outermost
    sizes = [(ngf * 8, ngf * 8)] * (num_downs - 5) + \
            [(ngf * 4, ngf * 8), (ngf * 2, ngf * 4), (ngf, ngf * 2)]
    for outer_nc, inner_nc in sizes:
        blk = {
            "kind": "mid",
            "dw": init_conv(inner_nc, outer_nc), "db": _zeros(inner_nc),
            "dg": _ones(inner_nc), "dbeta": _zeros(inner_nc),
            "uw": init_convT(inner_nc * 2, outer_nc), "ub": _zeros(outer_nc),
            "ug": _ones(outer_nc), "ubeta": _zeros(outer_nc),
            "sub": blk,
        }

    # outermost: Conv(input_nc -> ngf), ConvT(ngf*2 -> output_nc, bias=True), Tanh
    blk = {
        "kind": "outermost",
        "dw": init_conv(ngf, input_nc), "db": _zeros(ngf),
        "uw": init_convT(ngf * 2, output_nc),
        "ub": 0.05 * jax.random.normal(nk(), (1, output_nc), jnp.float32),
        "sub": blk,
    }
    return blk


def block_forward(x, blk):
    kind = blk["kind"]
    if kind == "outermost":
        d = conv4x4_s2_down(x, blk["dw"], blk["db"], None, None,
                            pre_act=None, use_bn=False)
        s = block_forward(d, blk["sub"])
        return convT4x4_s2_up(s, blk["uw"], blk["ub"], None, None,
                              pre_act="relu", use_bn=False, post_act="tanh")
    if kind == "innermost":
        d = conv4x4_s2_down(x, blk["dw"], blk["db"], None, None,
                            pre_act="leaky_relu", use_bn=False)
        u = convT4x4_s2_up(d, blk["uw"], blk["ub"], blk["ug"], blk["ubeta"],
                           pre_act="relu", use_bn=True, post_act=None)
        return jnp.concatenate([x, u], axis=-1)
    # middle block (use_dropout=False default -> no Dropout layer)
    d = conv4x4_s2_down(x, blk["dw"], blk["db"], blk["dg"], blk["dbeta"],
                        pre_act="leaky_relu", use_bn=True)
    s = block_forward(d, blk["sub"])
    u = convT4x4_s2_up(s, blk["uw"], blk["ub"], blk["ug"], blk["ubeta"],
                       pre_act="relu", use_bn=True, post_act=None)
    return jnp.concatenate([x, u], axis=-1)


def unet_forward(x_nchw, params):
    x = jnp.transpose(x_nchw, (0, 2, 3, 1))     # NCHW -> NHWC for the kernels
    y = block_forward(x, params)
    return jnp.transpose(y, (0, 3, 1, 2))       # NHWC -> NCHW


# --------------------------------------------------------------------------- #
if __name__ == "__main__":
    # Small config: input_nc=4, output_nc=3, num_downs=5, ngf=8, spatial 32x32
    # (32 = 2**5, so the bottleneck reaches 1x1 as in the reference module).
    key = jax.random.PRNGKey(0)
    pkey, xkey = jax.random.split(key)
    params = build_unet_params(pkey, input_nc=4, output_nc=3, num_downs=5, ngf=8)
    x = jax.random.normal(xkey, (2, 4, 32, 32), jnp.float32)

    fwd = jax.jit(lambda inp: unet_forward(inp, params))
    out = jax.block_until_ready(fwd(x))
    assert out.shape == (2, 3, 32, 32), out.shape
    assert bool(jnp.all(jnp.isfinite(out)))
    print("KERNEL_OK")
</pallas_src>

<mosaic_0001>
module attributes {stable_mosaic.version = 11 : i64} {
  func.func @_gemm_kernel(%arg0: i32, %arg1: i32, %arg2: i32, %arg3: memref<1x512x64xbf16, #tpu.memory_space<vmem>>, %arg4: memref<1x64x128xbf16, #tpu.memory_space<vmem>>, %arg5: memref<1x128xf32, #tpu.memory_space<vmem>>, %arg6: memref<1x512x128xf32, #tpu.memory_space<vmem>>, %arg7: memref<512x128xf32, #tpu.memory_space<vmem>>) attributes {dimension_semantics = [#tpu.dimension_semantics<parallel>, #tpu.dimension_semantics<parallel>, #tpu.dimension_semantics<arbitrary>], iteration_bounds = array<i64: 1, 1, 1>, scalar_prefetch = 0 : i64, scratch_operands = 1 : i64, tpu.core_type = #tpu.core_type<tc>, window_params = [{transform_indices = @transform_0, window_bounds = array<i64: 1, 512, 64>}, {transform_indices = @transform_1, window_bounds = array<i64: 1, 64, 128>}, {pipeline_mode = #tpu.pipeline_mode<synchronous>, transform_indices = @transform_2, window_bounds = array<i64: 1, 128>}, {transform_indices = @transform_3, window_bounds = array<i64: 1, 512, 128>}]} {
    %c0_i32 = arith.constant 0 : i32
    %0 = arith.cmpi eq, %arg2, %c0_i32 : i32
    %1 = arith.extui %0 : i1 to i32
    %c0_i32_0 = arith.constant 0 : i32
    %2 = arith.cmpi ne, %1, %c0_i32_0 : i32
    scf.if %2 {
      %cst_12 = arith.constant 0.000000e+00 : f32
      %14 = vector.broadcast %cst_12 : f32 to vector<512x128xf32>
      %c0_13 = arith.constant 0 : index
      %c0_14 = arith.constant 0 : index
      %15 = vector.load %arg7[%c0_13, %c0_14] : memref<512x128xf32, #tpu.memory_space<vmem>>, vector<512x128xf32>
      tpu.vector_store %arg7[%c0_13, %c0_14], %14 {strides = array<i32>} : memref<512x128xf32, #tpu.memory_space<vmem>>, vector<512x128xf32>,
    } else {
    }
    %c0 = arith.constant 0 : index
    %c0_1 = arith.constant 0 : index
    %3 = vector.load %arg7[%c0, %c0_1] : memref<512x128xf32, #tpu.memory_space<vmem>>, vector<512x128xf32>
    %c0_2 = arith.constant 0 : index
    %c0_3 = arith.constant 0 : index
    %c0_4 = arith.constant 0 : index
    %4 = vector.load %arg3[%c0_2, %c0_3, %c0_4] : memref<1x512x64xbf16, #tpu.memory_space<vmem>>, vector<1x512x64xbf16>
    %5 = vector.shape_cast %4 : vector<1x512x64xbf16> to vector<512x64xbf16>
    %c0_5 = arith.constant 0 : index
    %c0_6 = arith.constant 0 : index
    %c0_7 = arith.constant 0 : index
    %6 = vector.load %arg4[%c0_5, %c0_6, %c0_7] : memref<1x64x128xbf16, #tpu.memory_space<vmem>>, vector<1x64x128xbf16>
    %7 = vector.shape_cast %6 : vector<1x64x128xbf16> to vector<64x128xbf16>
    %cst = arith.constant dense<0.000000e+00> : vector<512x128xf32>
    %8 = tpu.matmul %5, %7, %cst {dimension_numbers = #tpu.dot_dimension_numbers<[1], [0], [0], [1], [0, 0, 1, 1], [], []>} : vector<512x64xbf16>, vector<64x128xbf16>, vector<512x128xf32> -> vector<512x128xf32>
    %9 = arith.addf %3, %8 : vector<512x128xf32>
    %c0_8 = arith.constant 0 : index
    %c0_9 = arith.constant 0 : index
    %10 = vector.load %arg7[%c0_8, %c0_9] : memref<512x128xf32, #tpu.memory_space<vmem>>, vector<512x128xf32>
    tpu.vector_store %arg7[%c0_8, %c0_9], %9 {strides = array<i32>} : memref<512x128xf32, #tpu.memory_space<vmem>>, vector<512x128xf32>,
    %c0_i32_10 = arith.constant 0 : i32
    %11 = arith.cmpi eq, %arg2, %c0_i32_10 : i32
    %12 = arith.extui %11 : i1 to i32
    %c0_i32_11 = arith.constant 0 : i32
    %13 = arith.cmpi ne, %12, %c0_i32_11 : i32
    scf.if %13 {
      %c0_12 = arith.constant 0 : index
      %c0_13 = arith.constant 0 : index
      %14 = vector.load %arg7[%c0_12, %c0_13] : memref<512x128xf32, #tpu.memory_space<vmem>>, vector<512x128xf32>
      %c0_14 = arith.constant 0 : index
      %c0_15 = arith.constant 0 : index
      %15 = vector.load %arg5[%c0_14, %c0_15] : memref<1x128xf32, #tpu.memory_space<vmem>>, vector<1x128xf32>
      %16 = vector.broadcast %15 : vector<1x128xf32> to vector<512x128xf32>
      %17 = arith.addf %14, %16 : vector<512x128xf32>
      %c0_16 = arith.constant 0 : index
      %c0_17 = arith.constant 0 : index
      %c0_18 = arith.constant 0 : index
      %18 = vector.load %arg6[%c0_16, %c0_17, %c0_18] : memref<1x512x128xf32, #tpu.memory_space<vmem>>, vector<1x512x128xf32>
      %19 = vector.shape_cast %18 : vector<1x512x128xf32> to vector<512x128xf32>
      %20 = vector.shape_cast %17 : vector<512x128xf32> to vector<1x512x128xf32>
      tpu.vector_store %arg6[%c0_16, %c0_17, %c0_18], %20 {strides = array<i32>} : memref<1x512x128xf32, #tpu.memory_space<vmem>>, vector<1x512x128xf32>,
    } else {
    }
    return
  }
  func.func @transform_0(%arg0: i32, %arg1: i32, %arg2: i32) -> (i32, i32, i32) {
    %c0_i32 = arith.constant 0 : i32
    return %arg0, %arg1, %arg2 : i32, i32, i32
  }
  func.func @transform_1(%arg0: i32, %arg1: i32, %arg2: i32) -> (i32, i32, i32) {
    %c0_i32 = arith.constant 0 : i32
    %c0_i32_0 = arith.constant 0 : i32
    return %arg0, %arg2, %c0_i32 : i32, i32, i32
  }
  func.func @transform_2(%arg0: i32, %arg1: i32, %arg2: i32) -> (i32, i32) {
    %c0_i32 = arith.constant 0 : i32
    %c0_i32_0 = arith.constant 0 : i32
    %c0_i32_1 = arith.constant 0 : i32
    return %c0_i32, %c0_i32_0 : i32, i32
  }
  func.func @transform_3(%arg0: i32, %arg1: i32, %arg2: i32) -> (i32, i32, i32) {
    %c0_i32 = arith.constant 0 : i32
    %c0_i32_0 = arith.constant 0 : i32
    return %arg0, %arg1, %c0_i32 : i32, i32, i32
  }
}

module attributes {stable_mosaic.version = 11 : i64} {
  func.func @_gemm_kernel(%arg0: i32, %arg1: i32, %arg2: i32, %arg3: memref<1x128x128xbf16, #tpu.memory_space<vmem>>, %arg4: memref<1x128x128xbf16, #tpu.memory_space<vmem>>, %arg5: memref<1x128xf32, #tpu.memory_space<vmem>>, %arg6: memref<1x128x128xf32, #tpu.memory_space<vmem>>, %arg7: memref<128x128xf32, #tpu.memory_space<vmem>>) attributes {dimension_semantics = [#tpu.dimension_semantics<parallel>, #tpu.dimension_semantics<parallel>, #tpu.dimension_semantics<arbitrary>], iteration_bounds = array<i64: 1, 1, 1>, scalar_prefetch = 0 : i64, scratch_operands = 1 : i64, tpu.core_type = #tpu.core_type<tc>, window_params = [{transform_indices = @transform_0, window_bounds = array<i64: 1, 128, 128>}, {transform_indices = @transform_1, window_bounds = array<i64: 1, 128, 128>}, {pipeline_mode = #tpu.pipeline_mode<synchronous>, transform_indices = @transform_2, window_bounds = array<i64: 1, 128>}, {transform_indices = @transform_3, window_bounds = array<i64: 1, 128, 128>}]} {
    %c0_i32 = arith.constant 0 : i32
    %0 = arith.cmpi eq, %arg2, %c0_i32 : i32
    %1 = arith.extui %0 : i1 to i32
    %c0_i32_0 = arith.constant 0 : i32
    %2 = arith.cmpi ne, %1, %c0_i32_0 : i32
    scf.if %2 {
      %cst_12 = arith.constant 0.000000e+00 : f32
      %14 = vector.broadcast %cst_12 : f32 to vector<128x128xf32>
      %c0_13 = arith.constant 0 : index
      %c0_14 = arith.constant 0 : index
      %15 = vector.load %arg7[%c0_13, %c0_14] : memref<128x128xf32, #tpu.memory_space<vmem>>, vector<128x128xf32>
      tpu.vector_store %arg7[%c0_13, %c0_14], %14 {strides = array<i32>} : memref<128x128xf32, #tpu.memory_space<vmem>>, vector<128x128xf32>,
    } else {
    }
    %c0 = arith.constant 0 : index
    %c0_1 = arith.constant 0 : index
    %3 = vector.load %arg7[%c0, %c0_1] : memref<128x128xf32, #tpu.memory_space<vmem>>, vector<128x128xf32>
    %c0_2 = arith.constant 0 : index
    %c0_3 = arith.constant 0 : index
    %c0_4 = arith.constant 0 : index
    %4 = vector.load %arg3[%c0_2, %c0_3, %c0_4] : memref<1x128x128xbf16, #tpu.memory_space<vmem>>, vector<1x128x128xbf16>
    %5 = vector.shape_cast %4 : vector<1x128x128xbf16> to vector<128x128xbf16>
    %c0_5 = arith.constant 0 : index
    %c0_6 = arith.constant 0 : index
    %c0_7 = arith.constant 0 : index
    %6 = vector.load %arg4[%c0_5, %c0_6, %c0_7] : memref<1x128x128xbf16, #tpu.memory_space<vmem>>, vector<1x128x128xbf16>
    %7 = vector.shape_cast %6 : vector<1x128x128xbf16> to vector<128x128xbf16>
    %cst = arith.constant dense<0.000000e+00> : vector<128x128xf32>
    %8 = tpu.matmul %5, %7, %cst {dimension_numbers = #tpu.dot_dimension_numbers<[1], [0], [0], [1], [0, 0, 1, 1], [], []>} : vector<128x128xbf16>, vector<128x128xbf16>, vector<128x128xf32> -> vector<128x128xf32>
    %9 = arith.addf %3, %8 : vector<128x128xf32>
    %c0_8 = arith.constant 0 : index
    %c0_9 = arith.constant 0 : index
    %10 = vector.load %arg7[%c0_8, %c0_9] : memref<128x128xf32, #tpu.memory_space<vmem>>, vector<128x128xf32>
    tpu.vector_store %arg7[%c0_8, %c0_9], %9 {strides = array<i32>} : memref<128x128xf32, #tpu.memory_space<vmem>>, vector<128x128xf32>,
    %c0_i32_10 = arith.constant 0 : i32
    %11 = arith.cmpi eq, %arg2, %c0_i32_10 : i32
    %12 = arith.extui %11 : i1 to i32
    %c0_i32_11 = arith.constant 0 : i32
    %13 = arith.cmpi ne, %12, %c0_i32_11 : i32
    scf.if %13 {
      %c0_12 = arith.constant 0 : index
      %c0_13 = arith.constant 0 : index
      %14 = vector.load %arg7[%c0_12, %c0_13] : memref<128x128xf32, #tpu.memory_space<vmem>>, vector<128x128xf32>
      %c0_14 = arith.constant 0 : index
      %c0_15 = arith.constant 0 : index
      %15 = vector.load %arg5[%c0_14, %c0_15] : memref<1x128xf32, #tpu.memory_space<vmem>>, vector<1x128xf32>
      %16 = vector.broadcast %15 : vector<1x128xf32> to vector<128x128xf32>
      %17 = arith.addf %14, %16 : vector<128x128xf32>
      %c0_16 = arith.constant 0 : index
      %c0_17 = arith.constant 0 : index
      %c0_18 = arith.constant 0 : index
      %18 = vector.load %arg6[%c0_16, %c0_17, %c0_18] : memref<1x128x128xf32, #tpu.memory_space<vmem>>, vector<1x128x128xf32>
      %19 = vector.shape_cast %18 : vector<1x128x128xf32> to vector<128x128xf32>
      %20 = vector.shape_cast %17 : vector<128x128xf32> to vector<1x128x128xf32>
      tpu.vector_store %arg6[%c0_16, %c0_17, %c0_18], %20 {strides = array<i32>} : memref<1x128x128xf32, #tpu.memory_space<vmem>>, vector<1x128x128xf32>,
    } else {
    }
    return
  }
  func.func @transform_0(%arg0: i32, %arg1: i32, %arg2: i32) -> (i32, i32, i32) {
    %c0_i32 = arith.constant 0 : i32
    return %arg0, %arg1, %arg2 : i32, i32, i32
  }
  func.func @transform_1(%arg0: i32, %arg1: i32, %arg2: i32) -> (i32, i32, i32) {
    %c0_i32 = arith.constant 0 : i32
    %c0_i32_0 = arith.constant 0 : i32
    return %arg0, %arg2, %c0_i32 : i32, i32, i32
  }
  func.func @transform_2(%arg0: i32, %arg1: i32, %arg2: i32) -> (i32, i32) {
    %c0_i32 = arith.constant 0 : i32
    %c0_i32_0 = arith.constant 0 : i32
    %c0_i32_1 = arith.constant 0 : i32
    return %c0_i32, %c0_i32_0 : i32, i32
  }
  func.func @transform_3(%arg0: i32, %arg1: i32, %arg2: i32) -> (i32, i32, i32) {
    %c0_i32 = arith.constant 0 : i32
    %c0_i32_0 = arith.constant 0 : i32
    return %arg0, %arg1, %c0_i32 : i32, i32, i32
  }
}

module attributes {stable_mosaic.version = 11 : i64} {
  func.func @_bn_stats_kernel(%arg0: i32, %arg1: memref<128x128xf32, #tpu.memory_space<vmem>>, %arg2: memref<1x128xf32, #tpu.memory_space<vmem>>, %arg3: memref<1x128xf32, #tpu.memory_space<vmem>>) attributes {dimension_semantics = [#tpu.dimension_semantics<arbitrary>], iteration_bounds = array<i64: 1>, scalar_prefetch = 0 : i64, scratch_operands = 0 : i64, tpu.core_type = #tpu.core_type<tc>, window_params = [{transform_indices = @transform_0, window_bounds = array<i64: 128, 128>}, {pipeline_mode = #tpu.pipeline_mode<synchronous>, transform_indices = @transform_1, window_bounds = array<i64: 1, 128>}, {pipeline_mode = #tpu.pipeline_mode<synchronous>, transform_indices = @transform_2, window_bounds = array<i64: 1, 128>}]} {
    %c0 = arith.constant 0 : index
    %c0_0 = arith.constant 0 : index
    %0 = vector.load %arg1[%c0, %c0_0] : memref<128x128xf32, #tpu.memory_space<vmem>>, vector<128x128xf32>
    %c0_i32 = arith.constant 0 : i32
    %1 = arith.cmpi eq, %arg0, %c0_i32 : i32
    %2 = arith.extui %1 : i1 to i32
    %c0_i32_1 = arith.constant 0 : i32
    %3 = arith.cmpi ne, %2, %c0_i32_1 : i32
    scf.if %3 {
      %cst_11 = arith.constant 0.000000e+00 : f32
      %15 = vector.broadcast %cst_11 : f32 to vector<1x128xf32>
      %c0_12 = arith.constant 0 : index
      %c0_13 = arith.constant 0 : index
      %16 = vector.load %arg2[%c0_12, %c0_13] : memref<1x128xf32, #tpu.memory_space<vmem>>, vector<1x128xf32>
      tpu.vector_store %arg2[%c0_12, %c0_13], %15 {strides = array<i32>} : memref<1x128xf32, #tpu.memory_space<vmem>>, vector<1x128xf32>,
      %cst_14 = arith.constant 0.000000e+00 : f32
      %17 = vector.broadcast %cst_14 : f32 to vector<1x128xf32>
      %c0_15 = arith.constant 0 : index
      %c0_16 = arith.constant 0 : index
      %18 = vector.load %arg3[%c0_15, %c0_16] : memref<1x128xf32, #tpu.memory_space<vmem>>, vector<1x128xf32>
      tpu.vector_store %arg3[%c0_15, %c0_16], %17 {strides = array<i32>} : memref<1x128xf32, #tpu.memory_space<vmem>>, vector<1x128xf32>,
    } else {
    }
    %c0_2 = arith.constant 0 : index
    %c0_3 = arith.constant 0 : index
    %4 = vector.load %arg2[%c0_2, %c0_3] : memref<1x128xf32, #tpu.memory_space<vmem>>, vector<1x128xf32>
    %cst = arith.constant dense<0.000000e+00> : vector<128xf32>
    %5 = vector.multi_reduction <add>, %0, %cst [0] : vector<128x128xf32> to vector<128xf32>
    %6 = vector.shape_cast %5 : vector<128xf32> to vector<1x128xf32>
    %7 = arith.addf %4, %6 : vector<1x128xf32>
    %c0_4 = arith.constant 0 : index
    %c0_5 = arith.constant 0 : index
    %8 = vector.load %arg2[%c0_4, %c0_5] : memref<1x128xf32, #tpu.memory_space<vmem>>, vector<1x128xf32>
    tpu.vector_store %arg2[%c0_4, %c0_5], %7 {strides = array<i32>} : memref<1x128xf32, #tpu.memory_space<vmem>>, vector<1x128xf32>,
    %c0_6 = arith.constant 0 : index
    %c0_7 = arith.constant 0 : index
    %9 = vector.load %arg3[%c0_6, %c0_7] : memref<1x128xf32, #tpu.memory_space<vmem>>, vector<1x128xf32>
    %10 = arith.mulf %0, %0 : vector<128x128xf32>
    %cst_8 = arith.constant dense<0.000000e+00> : vector<128xf32>
    %11 = vector.multi_reduction <add>, %10, %cst_8 [0] : vector<128x128xf32> to vector<128xf32>
    %12 = vector.shape_cast %11 : vector<128xf32> to vector<1x128xf32>
    %13 = arith.addf %9, %12 : vector<1x128xf32>
    %c0_9 = arith.constant 0 : index
    %c0_10 = arith.constant 0 : index
    %14 = vector.load %arg3[%c0_9, %c0_10] : memref<1x128xf32, #tpu.memory_space<vmem>>, vector<1x128xf32>
    tpu.vector_store %arg3[%c0_9, %c0_10], %13 {strides = array<i32>} : memref<1x128xf32, #tpu.memory_space<vmem>>, vector<1x128xf32>,
    return
  }
  func.func @transform_0(%arg0: i32) -> (i32, i32) {
    %c0_i32 = arith.constant 0 : i32
    %c0_i32_0 = arith.constant 0 : i32
    return %arg0, %c0_i32 : i32, i32
  }
  func.func @transform_1(%arg0: i32) -> (i32, i32) {
    %c0_i32 = arith.constant 0 : i32
    %c0_i32_0 = arith.constant 0 : i32
    %c0_i32_1 = arith.constant 0 : i32
    return %c0_i32, %c0_i32_0 : i32, i32
  }
  func.func @transform_2(%arg0: i32) -> (i32, i32) {
    %c0_i32 = arith.constant 0 : i32
    %c0_i32_0 = arith.constant 0 : i32
    %c0_i32_1 = arith.constant 0 : i32
    return %c0_i32, %c0_i32_0 : i32, i32
  }
}

module attributes {stable_mosaic.version = 11 : i64} {
  func.func @_bn_norm_kernel(%arg0: i32, %arg1: memref<128x128xf32, #tpu.memory_space<vmem>>, %arg2: memref<1x128xf32, #tpu.memory_space<vmem>>, %arg3: memref<1x128xf32, #tpu.memory_space<vmem>>, %arg4: memref<1x128xf32, #tpu.memory_space<vmem>>, %arg5: memref<1x128xf32, #tpu.memory_space<vmem>>, %arg6: memref<128x128xf32, #tpu.memory_space<vmem>>) attributes {dimension_semantics = [#tpu.dimension_semantics<parallel>], iteration_bounds = array<i64: 1>, scalar_prefetch = 0 : i64, scratch_operands = 0 : i64, tpu.core_type = #tpu.core_type<tc>, window_params = [{transform_indices = @transform_0, window_bounds = array<i64: 128, 128>}, {pipeline_mode = #tpu.pipeline_mode<synchronous>, transform_indices = @transform_1, window_bounds = array<i64: 1, 128>}, {pipeline_mode = #tpu.pipeline_mode<synchronous>, transform_indices = @transform_2, window_bounds = array<i64: 1, 128>}, {pipeline_mode = #tpu.pipeline_mode<synchronous>, transform_indices = @transform_3, window_bounds = array<i64: 1, 128>}, {pipeline_mode = #tpu.pipeline_mode<synchronous>, transform_indices = @transform_4, window_bounds = array<i64: 1, 128>}, {transform_indices = @transform_5, window_bounds = array<i64: 128, 128>}]} {
    %c0 = arith.constant 0 : index
    %c0_0 = arith.constant 0 : index
    %0 = vector.load %arg2[%c0, %c0_0] : memref<1x128xf32, #tpu.memory_space<vmem>>, vector<1x128xf32>
    %cst = arith.constant 7.812500e-03 : f32
    %1 = vector.broadcast %cst : f32 to vector<1x128xf32>
    %2 = arith.mulf %0, %1 : vector<1x128xf32>
    %c0_1 = arith.constant 0 : index
    %c0_2 = arith.constant 0 : index
    %3 = vector.load %arg3[%c0_1, %c0_2] : memref<1x128xf32, #tpu.memory_space<vmem>>, vector<1x128xf32>
    %cst_3 = arith.constant 7.812500e-03 : f32
    %4 = vector.broadcast %cst_3 : f32 to vector<1x128xf32>
    %5 = arith.mulf %3, %4 : vector<1x128xf32>
    %6 = arith.mulf %2, %2 : vector<1x128xf32>
    %7 = arith.subf %5, %6 : vector<1x128xf32>
    %cst_4 = arith.constant 0.000000e+00 : f32
    %8 = vector.broadcast %cst_4 : f32 to vector<1x128xf32>
    %9 = arith.maximumf %7, %8 : vector<1x128xf32>
    %cst_5 = arith.constant 9.99999974E-6 : f32
    %10 = vector.broadcast %cst_5 : f32 to vector<1x128xf32>
    %11 = arith.addf %9, %10 : vector<1x128xf32>
    %12 = math.rsqrt %11 : vector<1x128xf32>
    %c0_6 = arith.constant 0 : index
    %c0_7 = arith.constant 0 : index
    %13 = vector.load %arg4[%c0_6, %c0_7] : memref<1x128xf32, #tpu.memory_space<vmem>>, vector<1x128xf32>
    %14 = arith.mulf %12, %13 : vector<1x128xf32>
    %c0_8 = arith.constant 0 : index
    %c0_9 = arith.constant 0 : index
    %15 = vector.load %arg1[%c0_8, %c0_9] : memref<128x128xf32, #tpu.memory_space<vmem>>, vector<128x128xf32>
    %16 = vector.broadcast %2 : vector<1x128xf32> to vector<128x128xf32>
    %17 = arith.subf %15, %16 : vector<128x128xf32>
    %18 = vector.broadcast %14 : vector<1x128xf32> to vector<128x128xf32>
    %19 = arith.mulf %17, %18 : vector<128x128xf32>
    %c0_10 = arith.constant 0 : index
    %c0_11 = arith.constant 0 : index
    %20 = vector.load %arg5[%c0_10, %c0_11] : memref<1x128xf32, #tpu.memory_space<vmem>>, vector<1x128xf32>
    %21 = vector.broadcast %20 : vector<1x128xf32> to vector<128x128xf32>
    %22 = arith.addf %19, %21 : vector<128x128xf32>
    %c0_12 = arith.constant 0 : index
    %c0_13 = arith.constant 0 : index
    %23 = vector.load %arg6[%c0_12, %c0_13] : memref<128x128xf32, #tpu.memory_space<vmem>>, vector<128x128xf32>
    tpu.vector_store %arg6[%c0_12, %c0_13], %22 {strides = array<i32>} : memref<128x128xf32, #tpu.memory_space<vmem>>, vector<128x128xf32>,
    return
  }
  func.func @transform_0(%arg0: i32) -> (i32, i32) {
    %c0_i32 = arith.constant 0 : i32
    %c0_i32_0 = arith.constant 0 : i32
    return %arg0, %c0_i32 : i32, i32
  }
  func.func @transform_1(%arg0: i32) -> (i32, i32) {
    %c0_i32 = arith.constant 0 : i32
    %c0_i32_0 = arith.constant 0 : i32
    %c0_i32_1 = arith.constant 0 : i32
    return %c0_i32, %c0_i32_0 : i32, i32
  }
  func.func @transform_2(%arg0: i32) -> (i32, i32) {
    %c0_i32 = arith.constant 0 : i32
    %c0_i32_0 = arith.constant 0 : i32
    %c0_i32_1 = arith.constant 0 : i32
    return %c0_i32, %c0_i32_0 : i32, i32
  }
  func.func @transform_3(%arg0: i32) -> (i32, i32) {
    %c0_i32 = arith.constant 0 : i32
    %c0_i32_0 = arith.constant 0 : i32
    %c0_i32_1 = arith.constant 0 : i32
    return %c0_i32, %c0_i32_0 : i32, i32
  }
  func.func @transform_4(%arg0: i32) -> (i32, i32) {
    %c0_i32 = arith.constant 0 : i32
    %c0_i32_0 = arith.constant 0 : i32
    %c0_i32_1 = arith.constant 0 : i32
    return %c0_i32, %c0_i32_0 : i32, i32
  }
  func.func @transform_5(%arg0: i32) -> (i32, i32) {
    %c0_i32 = arith.constant 0 : i32
    %c0_i32_0 = arith.constant 0 : i32
    return %arg0, %c0_i32 : i32, i32
  }
}

module attributes {stable_mosaic.version = 11 : i64} {
  func.func @_gemm_kernel(%arg0: i32, %arg1: i32, %arg2: i32, %arg3: memref<1x32x256xbf16, #tpu.memory_space<vmem>>, %arg4: memref<1x256x128xbf16, #tpu.memory_space<vmem>>, %arg5: memref<1x128xf32, #tpu.memory_space<vmem>>, %arg6: memref<1x32x128xf32, #tpu.memory_space<vmem>>, %arg7: memref<32x128xf32, #tpu.memory_space<vmem>>) attributes {dimension_semantics = [#tpu.dimension_semantics<parallel>, #tpu.dimension_semantics<parallel>, #tpu.dimension_semantics<arbitrary>], iteration_bounds = array<i64: 1, 1, 1>, scalar_prefetch = 0 : i64, scratch_operands = 1 : i64, tpu.core_type = #tpu.core_type<tc>, window_params = [{transform_indices = @transform_0, window_bounds = array<i64: 1, 32, 256>}, {transform_indices = @transform_1, window_bounds = array<i64: 1, 256, 128>}, {pipeline_mode = #tpu.pipeline_mode<synchronous>, transform_indices = @transform_2, window_bounds = array<i64: 1, 128>}, {transform_indices = @transform_3, window_bounds = array<i64: 1, 32, 128>}]} {
    %c0_i32 = arith.constant 0 : i32
    %0 = arith.cmpi eq, %arg2, %c0_i32 : i32
    %1 = arith.extui %0 : i1 to i32
    %c0_i32_0 = arith.constant 0 : i32
    %2 = arith.cmpi ne, %1, %c0_i32_0 : i32
    scf.if %2 {
      %cst_12 = arith.constant 0.000000e+00 : f32
      %14 = vector.broadcast %cst_12 : f32 to vector<32x128xf32>
      %c0_13 = arith.constant 0 : index
      %c0_14 = arith.constant 0 : index
      %15 = vector.load %arg7[%c0_13, %c0_14] : memref<32x128xf32, #tpu.memory_space<vmem>>, vector<32x128xf32>
      tpu.vector_store %arg7[%c0_13, %c0_14], %14 {strides = array<i32>} : memref<32x128xf32, #tpu.memory_space<vmem>>, vector<32x128xf32>,
    } else {
    }
    %c0 = arith.constant 0 : index
    %c0_1 = arith.constant 0 : index
    %3 = vector.load %arg7[%c0, %c0_1] : memref<32x128xf32, #tpu.memory_space<vmem>>, vector<32x128xf32>
    %c0_2 = arith.constant 0 : index
    %c0_3 = arith.constant 0 : index
    %c0_4 = arith.constant 0 : index
    %4 = vector.load %arg3[%c0_2, %c0_3, %c0_4] : memref<1x32x256xbf16, #tpu.memory_space<vmem>>, vector<1x32x256xbf16>
    %5 = vector.shape_cast %4 : vector<1x32x256xbf16> to vector<32x256xbf16>
    %c0_5 = arith.constant 0 : index
    %c0_6 = arith.constant 0 : index
    %c0_7 = arith.constant 0 : index
    %6 = vector.load %arg4[%c0_5, %c0_6, %c0_7] : memref<1x256x128xbf16, #tpu.memory_space<vmem>>, vector<1x256x128xbf16>
    %7 = vector.shape_cast %6 : vector<1x256x128xbf16> to vector<256x128xbf16>
    %cst = arith.constant dense<0.000000e+00> : vector<32x128xf32>
    %8 = tpu.matmul %5, %7, %cst {dimension_numbers = #tpu.dot_dimension_numbers<[1], [0], [0], [1], [0, 0, 1, 1], [], []>} : vector<32x256xbf16>, vector<256x128xbf16>, vector<32x128xf32> -> vector<32x128xf32>
    %9 = arith.addf %3, %8 : vector<32x128xf32>
    %c0_8 = arith.constant 0 : index
    %c0_9 = arith.constant 0 : index
    %10 = vector.load %arg7[%c0_8, %c0_9] : memref<32x128xf32, #tpu.memory_space<vmem>>, vector<32x128xf32>
    tpu.vector_store %arg7[%c0_8, %c0_9], %9 {strides = array<i32>} : memref<32x128xf32, #tpu.memory_space<vmem>>, vector<32x128xf32>,
    %c0_i32_10 = arith.constant 0 : i32
    %11 = arith.cmpi eq, %arg2, %c0_i32_10 : i32
    %12 = arith.extui %11 : i1 to i32
    %c0_i32_11 = arith.constant 0 : i32
    %13 = arith.cmpi ne, %12, %c0_i32_11 : i32
    scf.if %13 {
      %c0_12 = arith.constant 0 : index
      %c0_13 = arith.constant 0 : index
      %14 = vector.load %arg7[%c0_12, %c0_13] : memref<32x128xf32, #tpu.memory_space<vmem>>, vector<32x128xf32>
      %c0_14 = arith.constant 0 : index
      %c0_15 = arith.constant 0 : index
      %15 = vector.load %arg5[%c0_14, %c0_15] : memref<1x128xf32, #tpu.memory_space<vmem>>, vector<1x128xf32>
      %16 = vector.broadcast %15 : vector<1x128xf32> to vector<32x128xf32>
      %17 = arith.addf %14, %16 : vector<32x128xf32>
      %c0_16 = arith.constant 0 : index
      %c0_17 = arith.constant 0 : index
      %c0_18 = arith.constant 0 : index
      %18 = vector.load %arg6[%c0_16, %c0_17, %c0_18] : memref<1x32x128xf32, #tpu.memory_space<vmem>>, vector<1x32x128xf32>
      %19 = vector.shape_cast %18 : vector<1x32x128xf32> to vector<32x128xf32>
      %20 = vector.shape_cast %17 : vector<32x128xf32> to vector<1x32x128xf32>
      tpu.vector_store %arg6[%c0_16, %c0_17, %c0_18], %20 {strides = array<i32>} : memref<1x32x128xf32, #tpu.memory_space<vmem>>, vector<1x32x128xf32>,
    } else {
    }
    return
  }
  func.func @transform_0(%arg0: i32, %arg1: i32, %arg2: i32) -> (i32, i32, i32) {
    %c0_i32 = arith.constant 0 : i32
    return %arg0, %arg1, %arg2 : i32, i32, i32
  }
  func.func @transform_1(%arg0: i32, %arg1: i32, %arg2: i32) -> (i32, i32, i32) {
    %c0_i32 = arith.constant 0 : i32
    %c0_i32_0 = arith.constant 0 : i32
    return %arg0, %arg2, %c0_i32 : i32, i32, i32
  }
  func.func @transform_2(%arg0: i32, %arg1: i32, %arg2: i32) -> (i32, i32) {
    %c0_i32 = arith.constant 0 : i32
    %c0_i32_0 = arith.constant 0 : i32
    %c0_i32_1 = arith.constant 0 : i32
    return %c0_i32, %c0_i32_0 : i32, i32
  }
  func.func @transform_3(%arg0: i32, %arg1: i32, %arg2: i32) -> (i32, i32, i32) {
    %c0_i32 = arith.constant 0 : i32
    %c0_i32_0 = arith.constant 0 : i32
    return %arg0, %arg1, %c0_i32 : i32, i32, i32
  }
}

module attributes {stable_mosaic.version = 11 : i64} {
  func.func @_bn_stats_kernel(%arg0: i32, %arg1: memref<32x128xf32, #tpu.memory_space<vmem>>, %arg2: memref<1x128xf32, #tpu.memory_space<vmem>>, %arg3: memref<1x128xf32, #tpu.memory_space<vmem>>) attributes {dimension_semantics = [#tpu.dimension_semantics<arbitrary>], iteration_bounds = array<i64: 1>, scalar_prefetch = 0 : i64, scratch_operands = 0 : i64, tpu.core_type = #tpu.core_type<tc>, window_params = [{transform_indices = @transform_0, window_bounds = array<i64: 32, 128>}, {pipeline_mode = #tpu.pipeline_mode<synchronous>, transform_indices = @transform_1, window_bounds = array<i64: 1, 128>}, {pipeline_mode = #tpu.pipeline_mode<synchronous>, transform_indices = @transform_2, window_bounds = array<i64: 1, 128>}]} {
    %c0 = arith.constant 0 : index
    %c0_0 = arith.constant 0 : index
    %0 = vector.load %arg1[%c0, %c0_0] : memref<32x128xf32, #tpu.memory_space<vmem>>, vector<32x128xf32>
    %c0_i32 = arith.constant 0 : i32
    %1 = arith.cmpi eq, %arg0, %c0_i32 : i32
    %2 = arith.extui %1 : i1 to i32
    %c0_i32_1 = arith.constant 0 : i32
    %3 = arith.cmpi ne, %2, %c0_i32_1 : i32
    scf.if %3 {
      %cst_11 = arith.constant 0.000000e+00 : f32
      %15 = vector.broadcast %cst_11 : f32 to vector<1x128xf32>
      %c0_12 = arith.constant 0 : index
      %c0_13 = arith.constant 0 : index
      %16 = vector.load %arg2[%c0_12, %c0_13] : memref<1x128xf32, #tpu.memory_space<vmem>>, vector<1x128xf32>
      tpu.vector_store %arg2[%c0_12, %c0_13], %15 {strides = array<i32>} : memref<1x128xf32, #tpu.memory_space<vmem>>, vector<1x128xf32>,
      %cst_14 = arith.constant 0.000000e+00 : f32
      %17 = vector.broadcast %cst_14 : f32 to vector<1x128xf32>
      %c0_15 = arith.constant 0 : index
      %c0_16 = arith.constant 0 : index
      %18 = vector.load %arg3[%c0_15, %c0_16] : memref<1x128xf32, #tpu.memory_space<vmem>>, vector<1x128xf32>
      tpu.vector_store %arg3[%c0_15, %c0_16], %17 {strides = array<i32>} : memref<1x128xf32, #tpu.memory_space<vmem>>, vector<1x128xf32>,
    } else {
    }
    %c0_2 = arith.constant 0 : index
    %c0_3 = arith.constant 0 : index
    %4 = vector.load %arg2[%c0_2, %c0_3] : memref<1x128xf32, #tpu.memory_space<vmem>>, vector<1x128xf32>
    %cst = arith.constant dense<0.000000e+00> : vector<128xf32>
    %5 = vector.multi_reduction <add>, %0, %cst [0] : vector<32x128xf32> to vector<128xf32>
    %6 = vector.shape_cast %5 : vector<128xf32> to vector<1x128xf32>
    %7 = arith.addf %4, %6 : vector<1x128xf32>
    %c0_4 = arith.constant 0 : index
    %c0_5 = arith.constant 0 : index
    %8 = vector.load %arg2[%c0_4, %c0_5] : memref<1x128xf32, #tpu.memory_space<vmem>>, vector<1x128xf32>
    tpu.vector_store %arg2[%c0_4, %c0_5], %7 {strides = array<i32>} : memref<1x128xf32, #tpu.memory_space<vmem>>, vector<1x128xf32>,
    %c0_6 = arith.constant 0 : index
    %c0_7 = arith.constant 0 : index
    %9 = vector.load %arg3[%c0_6, %c0_7] : memref<1x128xf32, #tpu.memory_space<vmem>>, vector<1x128xf32>
    %10 = arith.mulf %0, %0 : vector<32x128xf32>
    %cst_8 = arith.constant dense<0.000000e+00> : vector<128xf32>
    %11 = vector.multi_reduction <add>, %10, %cst_8 [0] : vector<32x128xf32> to vector<128xf32>
    %12 = vector.shape_cast %11 : vector<128xf32> to vector<1x128xf32>
    %13 = arith.addf %9, %12 : vector<1x128xf32>
    %c0_9 = arith.constant 0 : index
    %c0_10 = arith.constant 0 : index
    %14 = vector.load %arg3[%c0_9, %c0_10] : memref<1x128xf32, #tpu.memory_space<vmem>>, vector<1x128xf32>
    tpu.vector_store %arg3[%c0_9, %c0_10], %13 {strides = array<i32>} : memref<1x128xf32, #tpu.memory_space<vmem>>, vector<1x128xf32>,
    return
  }
  func.func @transform_0(%arg0: i32) -> (i32, i32) {
    %c0_i32 = arith.constant 0 : i32
    %c0_i32_0 = arith.constant 0 : i32
    return %arg0, %c0_i32 : i32, i32
  }
  func.func @transform_1(%arg0: i32) -> (i32, i32) {
    %c0_i32 = arith.constant 0 : i32
    %c0_i32_0 = arith.constant 0 : i32
    %c0_i32_1 = arith.constant 0 : i32
    return %c0_i32, %c0_i32_0 : i32, i32
  }
  func.func @transform_2(%arg0: i32) -> (i32, i32) {
    %c0_i32 = arith.constant 0 : i32
    %c0_i32_0 = arith.constant 0 : i32
    %c0_i32_1 = arith.constant 0 : i32
    return %c0_i32, %c0_i32_0 : i32, i32
  }
}

module attributes {stable_mosaic.version = 11 : i64} {
  func.func @_bn_norm_kernel(%arg0: i32, %arg1: memref<32x128xf32, #tpu.memory_space<vmem>>, %arg2: memref<1x128xf32, #tpu.memory_space<vmem>>, %arg3: memref<1x128xf32, #tpu.memory_space<vmem>>, %arg4: memref<1x128xf32, #tpu.memory_space<vmem>>, %arg5: memref<1x128xf32, #tpu.memory_space<vmem>>, %arg6: memref<32x128xf32, #tpu.memory_space<vmem>>) attributes {dimension_semantics = [#tpu.dimension_semantics<parallel>], iteration_bounds = array<i64: 1>, scalar_prefetch = 0 : i64, scratch_operands = 0 : i64, tpu.core_type = #tpu.core_type<tc>, window_params = [{transform_indices = @transform_0, window_bounds = array<i64: 32, 128>}, {pipeline_mode = #tpu.pipeline_mode<synchronous>, transform_indices = @transform_1, window_bounds = array<i64: 1, 128>}, {pipeline_mode = #tpu.pipeline_mode<synchronous>, transform_indices = @transform_2, window_bounds = array<i64: 1, 128>}, {pipeline_mode = #tpu.pipeline_mode<synchronous>, transform_indices = @transform_3, window_bounds = array<i64: 1, 128>}, {pipeline_mode = #tpu.pipeline_mode<synchronous>, transform_indices = @transform_4, window_bounds = array<i64: 1, 128>}, {transform_indices = @transform_5, window_bounds = array<i64: 32, 128>}]} {
    %c0 = arith.constant 0 : index
    %c0_0 = arith.constant 0 : index
    %0 = vector.load %arg2[%c0, %c0_0] : memref<1x128xf32, #tpu.memory_space<vmem>>, vector<1x128xf32>
    %cst = arith.constant 3.125000e-02 : f32
    %1 = vector.broadcast %cst : f32 to vector<1x128xf32>
    %2 = arith.mulf %0, %1 : vector<1x128xf32>
    %c0_1 = arith.constant 0 : index
    %c0_2 = arith.constant 0 : index
    %3 = vector.load %arg3[%c0_1, %c0_2] : memref<1x128xf32, #tpu.memory_space<vmem>>, vector<1x128xf32>
    %cst_3 = arith.constant 3.125000e-02 : f32
    %4 = vector.broadcast %cst_3 : f32 to vector<1x128xf32>
    %5 = arith.mulf %3, %4 : vector<1x128xf32>
    %6 = arith.mulf %2, %2 : vector<1x128xf32>
    %7 = arith.subf %5, %6 : vector<1x128xf32>
    %cst_4 = arith.constant 0.000000e+00 : f32
    %8 = vector.broadcast %cst_4 : f32 to vector<1x128xf32>
    %9 = arith.maximumf %7, %8 : vector<1x128xf32>
    %cst_5 = arith.constant 9.99999974E-6 : f32
    %10 = vector.broadcast %cst_5 : f32 to vector<1x128xf32>
    %11 = arith.addf %9, %10 : vector<1x128xf32>
    %12 = math.rsqrt %11 : vector<1x128xf32>
    %c0_6 = arith.constant 0 : index
    %c0_7 = arith.constant 0 : index
    %13 = vector.load %arg4[%c0_6, %c0_7] : memref<1x128xf32, #tpu.memory_space<vmem>>, vector<1x128xf32>
    %14 = arith.mulf %12, %13 : vector<1x128xf32>
    %c0_8 = arith.constant 0 : index
    %c0_9 = arith.constant 0 : index
    %15 = vector.load %arg1[%c0_8, %c0_9] : memref<32x128xf32, #tpu.memory_space<vmem>>, vector<32x128xf32>
    %16 = vector.broadcast %2 : vector<1x128xf32> to vector<32x128xf32>
    %17 = arith.subf %15, %16 : vector<32x128xf32>
    %18 = vector.broadcast %14 : vector<1x128xf32> to vector<32x128xf32>
    %19 = arith.mulf %17, %18 : vector<32x128xf32>
    %c0_10 = arith.constant 0 : index
    %c0_11 = arith.constant 0 : index
    %20 = vector.load %arg5[%c0_10, %c0_11] : memref<1x128xf32, #tpu.memory_space<vmem>>, vector<1x128xf32>
    %21 = vector.broadcast %20 : vector<1x128xf32> to vector<32x128xf32>
    %22 = arith.addf %19, %21 : vector<32x128xf32>
    %c0_12 = arith.constant 0 : index
    %c0_13 = arith.constant 0 : index
    %23 = vector.load %arg6[%c0_12, %c0_13] : memref<32x128xf32, #tpu.memory_space<vmem>>, vector<32x128xf32>
    tpu.vector_store %arg6[%c0_12, %c0_13], %22 {strides = array<i32>} : memref<32x128xf32, #tpu.memory_space<vmem>>, vector<32x128xf32>,
    return
  }
  func.func @transform_0(%arg0: i32) -> (i32, i32) {
    %c0_i32 = arith.constant 0 : i32
    %c0_i32_0 = arith.constant 0 : i32
    return %arg0, %c0_i32 : i32, i32
  }
  func.func @transform_1(%arg0: i32) -> (i32, i32) {
    %c0_i32 = arith.constant 0 : i32
    %c0_i32_0 = arith.constant 0 : i32
    %c0_i32_1 = arith.constant 0 : i32
    return %c0_i32, %c0_i32_0 : i32, i32
  }
  func.func @transform_2(%arg0: i32) -> (i32, i32) {
    %c0_i32 = arith.constant 0 : i32
    %c0_i32_0 = arith.constant 0 : i32
    %c0_i32_1 = arith.constant 0 : i32
    return %c0_i32, %c0_i32_0 : i32, i32
  }
  func.func @transform_3(%arg0: i32) -> (i32, i32) {
    %c0_i32 = arith.constant 0 : i32
    %c0_i32_0 = arith.constant 0 : i32
    %c0_i32_1 = arith.constant 0 : i32
    return %c0_i32, %c0_i32_0 : i32, i32
  }
  func.func @transform_4(%arg0: i32) -> (i32, i32) {
    %c0_i32 = arith.constant 0 : i32
    %c0_i32_0 = arith.constant 0 : i32
    %c0_i32_1 = arith.constant 0 : i32
    return %c0_i32, %c0_i32_0 : i32, i32
  }
  func.func @transform_5(%arg0: i32) -> (i32, i32) {
    %c0_i32 = arith.constant 0 : i32
    %c0_i32_0 = arith.constant 0 : i32
    return %arg0, %c0_i32 : i32, i32
  }
}

module attributes {stable_mosaic.version = 11 : i64} {
  func.func @_gemm_kernel(%arg0: i32, %arg1: i32, %arg2: i32, %arg3: memref<1x8x512xbf16, #tpu.memory_space<vmem>>, %arg4: memref<1x512x128xbf16, #tpu.memory_space<vmem>>, %arg5: memref<1x128xf32, #tpu.memory_space<vmem>>, %arg6: memref<1x8x128xf32, #tpu.memory_space<vmem>>, %arg7: memref<8x128xf32, #tpu.memory_space<vmem>>) attributes {dimension_semantics = [#tpu.dimension_semantics<parallel>, #tpu.dimension_semantics<parallel>, #tpu.dimension_semantics<arbitrary>], iteration_bounds = array<i64: 1, 1, 1>, scalar_prefetch = 0 : i64, scratch_operands = 1 : i64, tpu.core_type = #tpu.core_type<tc>, window_params = [{transform_indices = @transform_0, window_bounds = array<i64: 1, 8, 512>}, {transform_indices = @transform_1, window_bounds = array<i64: 1, 512, 128>}, {pipeline_mode = #tpu.pipeline_mode<synchronous>, transform_indices = @transform_2, window_bounds = array<i64: 1, 128>}, {transform_indices = @transform_3, window_bounds = array<i64: 1, 8, 128>}]} {
    %c0_i32 = arith.constant 0 : i32
    %0 = arith.cmpi eq, %arg2, %c0_i32 : i32
    %1 = arith.extui %0 : i1 to i32
    %c0_i32_0 = arith.constant 0 : i32
    %2 = arith.cmpi ne, %1, %c0_i32_0 : i32
    scf.if %2 {
      %cst_12 = arith.constant 0.000000e+00 : f32
      %14 = vector.broadcast %cst_12 : f32 to vector<8x128xf32>
      %c0_13 = arith.constant 0 : index
      %c0_14 = arith.constant 0 : index
      %15 = vector.load %arg7[%c0_13, %c0_14] : memref<8x128xf32, #tpu.memory_space<vmem>>, vector<8x128xf32>
      tpu.vector_store %arg7[%c0_13, %c0_14], %14 {strides = array<i32>} : memref<8x128xf32, #tpu.memory_space<vmem>>, vector<8x128xf32>,
    } else {
    }
    %c0 = arith.constant 0 : index
    %c0_1 = arith.constant 0 : index
    %3 = vector.load %arg7[%c0, %c0_1] : memref<8x128xf32, #tpu.memory_space<vmem>>, vector<8x128xf32>
    %c0_2 = arith.constant 0 : index
    %c0_3 = arith.constant 0 : index
    %c0_4 = arith.constant 0 : index
    %4 = vector.load %arg3[%c0_2, %c0_3, %c0_4] : memref<1x8x512xbf16, #tpu.memory_space<vmem>>, vector<1x8x512xbf16>
    %5 = vector.shape_cast %4 : vector<1x8x512xbf16> to vector<8x512xbf16>
    %c0_5 = arith.constant 0 : index
    %c0_6 = arith.constant 0 : index
    %c0_7 = arith.constant 0 : index
    %6 = vector.load %arg4[%c0_5, %c0_6, %c0_7] : memref<1x512x128xbf16, #tpu.memory_space<vmem>>, vector<1x512x128xbf16>
    %7 = vector.shape_cast %6 : vector<1x512x128xbf16> to vector<512x128xbf16>
    %cst = arith.constant dense<0.000000e+00> : vector<8x128xf32>
    %8 = tpu.matmul %5, %7, %cst {dimension_numbers = #tpu.dot_dimension_numbers<[1], [0], [0], [1], [0, 0, 1, 1], [], []>} : vector<8x512xbf16>, vector<512x128xbf16>, vector<8x128xf32> -> vector<8x128xf32>
    %9 = arith.addf %3, %8 : vector<8x128xf32>
    %c0_8 = arith.constant 0 : index
    %c0_9 = arith.constant 0 : index
    %10 = vector.load %arg7[%c0_8, %c0_9] : memref<8x128xf32, #tpu.memory_space<vmem>>, vector<8x128xf32>
    tpu.vector_store %arg7[%c0_8, %c0_9], %9 {strides = array<i32>} : memref<8x128xf32, #tpu.memory_space<vmem>>, vector<8x128xf32>,
    %c0_i32_10 = arith.constant 0 : i32
    %11 = arith.cmpi eq, %arg2, %c0_i32_10 : i32
    %12 = arith.extui %11 : i1 to i32
    %c0_i32_11 = arith.constant 0 : i32
    %13 = arith.cmpi ne, %12, %c0_i32_11 : i32
    scf.if %13 {
      %c0_12 = arith.constant 0 : index
      %c0_13 = arith.constant 0 : index
      %14 = vector.load %arg7[%c0_12, %c0_13] : memref<8x128xf32, #tpu.memory_space<vmem>>, vector<8x128xf32>
      %c0_14 = arith.constant 0 : index
      %c0_15 = arith.constant 0 : index
      %15 = vector.load %arg5[%c0_14, %c0_15] : memref<1x128xf32, #tpu.memory_space<vmem>>, vector<1x128xf32>
      %16 = vector.broadcast %15 : vector<1x128xf32> to vector<8x128xf32>
      %17 = arith.addf %14, %16 : vector<8x128xf32>
      %c0_16 = arith.constant 0 : index
      %c0_17 = arith.constant 0 : index
      %c0_18 = arith.constant 0 : index
      %18 = vector.load %arg6[%c0_16, %c0_17, %c0_18] : memref<1x8x128xf32, #tpu.memory_space<vmem>>, vector<1x8x128xf32>
      %19 = vector.shape_cast %18 : vector<1x8x128xf32> to vector<8x128xf32>
      %20 = vector.shape_cast %17 : vector<8x128xf32> to vector<1x8x128xf32>
      tpu.vector_store %arg6[%c0_16, %c0_17, %c0_18], %20 {strides = array<i32>} : memref<1x8x128xf32, #tpu.memory_space<vmem>>, vector<1x8x128xf32>,
    } else {
    }
    return
  }
  func.func @transform_0(%arg0: i32, %arg1: i32, %arg2: i32) -> (i32, i32, i32) {
    %c0_i32 = arith.constant 0 : i32
    return %arg0, %arg1, %arg2 : i32, i32, i32
  }
  func.func @transform_1(%arg0: i32, %arg1: i32, %arg2: i32) -> (i32, i32, i32) {
    %c0_i32 = arith.constant 0 : i32
    %c0_i32_0 = arith.constant 0 : i32
    return %arg0, %arg2, %c0_i32 : i32, i32, i32
  }
  func.func @transform_2(%arg0: i32, %arg1: i32, %arg2: i32) -> (i32, i32) {
    %c0_i32 = arith.constant 0 : i32
    %c0_i32_0 = arith.constant 0 : i32
    %c0_i32_1 = arith.constant 0 : i32
    return %c0_i32, %c0_i32_0 : i32, i32
  }
  func.func @transform_3(%arg0: i32, %arg1: i32, %arg2: i32) -> (i32, i32, i32) {
    %c0_i32 = arith.constant 0 : i32
    %c0_i32_0 = arith.constant 0 : i32
    return %arg0, %arg1, %c0_i32 : i32, i32, i32
  }
}

module attributes {stable_mosaic.version = 11 : i64} {
  func.func @_bn_norm_kernel(%arg0: i32, %arg1: memref<8x128xf32, #tpu.memory_space<vmem>>, %arg2: memref<1x128xf32, #tpu.memory_space<vmem>>, %arg3: memref<1x128xf32, #tpu.memory_space<vmem>>, %arg4: memref<1x128xf32, #tpu.memory_space<vmem>>, %arg5: memref<1x128xf32, #tpu.memory_space<vmem>>, %arg6: memref<8x128xf32, #tpu.memory_space<vmem>>) attributes {dimension_semantics = [#tpu.dimension_semantics<parallel>], iteration_bounds = array<i64: 1>, scalar_prefetch = 0 : i64, scratch_operands = 0 : i64, tpu.core_type = #tpu.core_type<tc>, window_params = [{transform_indices = @transform_0, window_bounds = array<i64: 8, 128>}, {pipeline_mode = #tpu.pipeline_mode<synchronous>, transform_indices = @transform_1, window_bounds = array<i64: 1, 128>}, {pipeline_mode = #tpu.pipeline_mode<synchronous>, transform_indices = @transform_2, window_bounds = array<i64: 1, 128>}, {pipeline_mode = #tpu.pipeline_mode<synchronous>, transform_indices = @transform_3, window_bounds = array<i64: 1, 128>}, {pipeline_mode = #tpu.pipeline_mode<synchronous>, transform_indices = @transform_4, window_bounds = array<i64: 1, 128>}, {transform_indices = @transform_5, window_bounds = array<i64: 8, 128>}]} {
    %c0 = arith.constant 0 : index
    %c0_0 = arith.constant 0 : index
    %0 = vector.load %arg2[%c0, %c0_0] : memref<1x128xf32, #tpu.memory_space<vmem>>, vector<1x128xf32>
    %cst = arith.constant 1.250000e-01 : f32
    %1 = vector.broadcast %cst : f32 to vector<1x128xf32>
    %2 = arith.mulf %0, %1 : vector<1x128xf32>
    %c0_1 = arith.constant 0 : index
    %c0_2 = arith.constant 0 : index
    %3 = vector.load %arg3[%c0_1, %c0_2] : memref<1x128xf32, #tpu.memory_space<vmem>>, vector<1x128xf32>
    %cst_3 = arith.constant 1.250000e-01 : f32
    %4 = vector.broadcast %cst_3 : f32 to vector<1x128xf32>
    %5 = arith.mulf %3, %4 : vector<1x128xf32>
    %6 = arith.mulf %2, %2 : vector<1x128xf32>
    %7 = arith.subf %5, %6 : vector<1x128xf32>
    %cst_4 = arith.constant 0.000000e+00 : f32
    %8 = vector.broadcast %cst_4 : f32 to vector<1x128xf32>
    %9 = arith.maximumf %7, %8 : vector<1x128xf32>
    %cst_5 = arith.constant 9.99999974E-6 : f32
    %10 = vector.broadcast %cst_5 : f32 to vector<1x128xf32>
    %11 = arith.addf %9, %10 : vector<1x128xf32>
    %12 = math.rsqrt %11 : vector<1x128xf32>
    %c0_6 = arith.constant 0 : index
    %c0_7 = arith.constant 0 : index
    %13 = vector.load %arg4[%c0_6, %c0_7] : memref<1x128xf32, #tpu.memory_space<vmem>>, vector<1x128xf32>
    %14 = arith.mulf %12, %13 : vector<1x128xf32>
    %c0_8 = arith.constant 0 : index
    %c0_9 = arith.constant 0 : index
    %15 = vector.load %arg1[%c0_8, %c0_9] : memref<8x128xf32, #tpu.memory_space<vmem>>, vector<8x128xf32>
    %16 = vector.broadcast %2 : vector<1x128xf32> to vector<8x128xf32>
    %17 = arith.subf %15, %16 : vector<8x128xf32>
    %18 = vector.broadcast %14 : vector<1x128xf32> to vector<8x128xf32>
    %19 = arith.mulf %17, %18 : vector<8x128xf32>
    %c0_10 = arith.constant 0 : index
    %c0_11 = arith.constant 0 : index
    %20 = vector.load %arg5[%c0_10, %c0_11] : memref<1x128xf32, #tpu.memory_space<vmem>>, vector<1x128xf32>
    %21 = vector.broadcast %20 : vector<1x128xf32> to vector<8x128xf32>
    %22 = arith.addf %19, %21 : vector<8x128xf32>
    %c0_12 = arith.constant 0 : index
    %c0_13 = arith.constant 0 : index
    %23 = vector.load %arg6[%c0_12, %c0_13] : memref<8x128xf32, #tpu.memory_space<vmem>>, vector<8x128xf32>
    tpu.vector_store %arg6[%c0_12, %c0_13], %22 {strides = array<i32>} : memref<8x128xf32, #tpu.memory_space<vmem>>, vector<8x128xf32>,
    return
  }
  func.func @transform_0(%arg0: i32) -> (i32, i32) {
    %c0_i32 = arith.constant 0 : i32
    %c0_i32_0 = arith.constant 0 : i32
    return %arg0, %c0_i32 : i32, i32
  }
  func.func @transform_1(%arg0: i32) -> (i32, i32) {
    %c0_i32 = arith.constant 0 : i32
    %c0_i32_0 = arith.constant 0 : i32
    %c0_i32_1 = arith.constant 0 : i32
    return %c0_i32, %c0_i32_0 : i32, i32
  }
  func.func @transform_2(%arg0: i32) -> (i32, i32) {
    %c0_i32 = arith.constant 0 : i32
    %c0_i32_0 = arith.constant 0 : i32
    %c0_i32_1 = arith.constant 0 : i32
    return %c0_i32, %c0_i32_0 : i32, i32
  }
  func.func @transform_3(%arg0: i32) -> (i32, i32) {
    %c0_i32 = arith.constant 0 : i32
    %c0_i32_0 = arith.constant 0 : i32
    %c0_i32_1 = arith.constant 0 : i32
    return %c0_i32, %c0_i32_0 : i32, i32
  }
  func.func @transform_4(%arg0: i32) -> (i32, i32) {
    %c0_i32 = arith.constant 0 : i32
    %c0_i32_0 = arith.constant 0 : i32
    %c0_i32_1 = arith.constant 0 : i32
    return %c0_i32, %c0_i32_0 : i32, i32
  }
  func.func @transform_5(%arg0: i32) -> (i32, i32) {
    %c0_i32 = arith.constant 0 : i32
    %c0_i32_0 = arith.constant 0 : i32
    return %arg0, %c0_i32 : i32, i32
  }
}

module attributes {stable_mosaic.version = 11 : i64} {
  func.func @_gemm_kernel(%arg0: i32, %arg1: i32, %arg2: i32, %arg3: memref<1x2x256xbf16, #tpu.memory_space<vmem>>, %arg4: memref<1x256x128xbf16, #tpu.memory_space<vmem>>, %arg5: memref<1x128xf32, #tpu.memory_space<vmem>>, %arg6: memref<1x2x128xf32, #tpu.memory_space<vmem>>, %arg7: memref<2x128xf32, #tpu.memory_space<vmem>>) attributes {dimension_semantics = [#tpu.dimension_semantics<parallel>, #tpu.dimension_semantics<parallel>, #tpu.dimension_semantics<arbitrary>], iteration_bounds = array<i64: 4, 1, 1>, scalar_prefetch = 0 : i64, scratch_operands = 1 : i64, tpu.core_type = #tpu.core_type<tc>, window_params = [{transform_indices = @transform_0, window_bounds = array<i64: 1, 2, 256>}, {transform_indices = @transform_1, window_bounds = array<i64: 1, 256, 128>}, {pipeline_mode = #tpu.pipeline_mode<synchronous>, transform_indices = @transform_2, window_bounds = array<i64: 1, 128>}, {transform_indices = @transform_3, window_bounds = array<i64: 1, 2, 128>}]} {
    %c0_i32 = arith.constant 0 : i32
    %0 = arith.cmpi eq, %arg2, %c0_i32 : i32
    %1 = arith.extui %0 : i1 to i32
    %c0_i32_0 = arith.constant 0 : i32
    %2 = arith.cmpi ne, %1, %c0_i32_0 : i32
    scf.if %2 {
      %cst_12 = arith.constant 0.000000e+00 : f32
      %14 = vector.broadcast %cst_12 : f32 to vector<2x128xf32>
      %c0_13 = arith.constant 0 : index
      %c0_14 = arith.constant 0 : index
      %15 = vector.load %arg7[%c0_13, %c0_14] : memref<2x128xf32, #tpu.memory_space<vmem>>, vector<2x128xf32>
      tpu.vector_store %arg7[%c0_13, %c0_14], %14 {strides = array<i32>} : memref<2x128xf32, #tpu.memory_space<vmem>>, vector<2x128xf32>,
    } else {
    }
    %c0 = arith.constant 0 : index
    %c0_1 = arith.constant 0 : index
    %3 = vector.load %arg7[%c0, %c0_1] : memref<2x128xf32, #tpu.memory_space<vmem>>, vector<2x128xf32>
    %c0_2 = arith.constant 0 : index
    %c0_3 = arith.constant 0 : index
    %c0_4 = arith.constant 0 : index
    %4 = vector.load %arg3[%c0_2, %c0_3, %c0_4] : memref<1x2x256xbf16, #tpu.memory_space<vmem>>, vector<1x2x256xbf16>
    %5 = vector.shape_cast %4 : vector<1x2x256xbf16> to vector<2x256xbf16>
    %c0_5 = arith.constant 0 : index
    %c0_6 = arith.constant 0 : index
    %c0_7 = arith.constant 0 : index
    %6 = vector.load %arg4[%c0_5, %c0_6, %c0_7] : memref<1x256x128xbf16, #tpu.memory_space<vmem>>, vector<1x256x128xbf16>
    %7 = vector.shape_cast %6 : vector<1x256x128xbf16> to vector<256x128xbf16>
    %cst = arith.constant dense<0.000000e+00> : vector<2x128xf32>
    %8 = tpu.matmul %5, %7, %cst {dimension_numbers = #tpu.dot_dimension_numbers<[1], [0], [0], [1], [0, 0, 1, 1], [], []>} : vector<2x256xbf16>, vector<256x128xbf16>, vector<2x128xf32> -> vector<2x128xf32>
    %9 = arith.addf %3, %8 : vector<2x128xf32>
    %c0_8 = arith.constant 0 : index
    %c0_9 = arith.constant 0 : index
    %10 = vector.load %arg7[%c0_8, %c0_9] : memref<2x128xf32, #tpu.memory_space<vmem>>, vector<2x128xf32>
    tpu.vector_store %arg7[%c0_8, %c0_9], %9 {strides = array<i32>} : memref<2x128xf32, #tpu.memory_space<vmem>>, vector<2x128xf32>,
    %c0_i32_10 = arith.constant 0 : i32
    %11 = arith.cmpi eq, %arg2, %c0_i32_10 : i32
    %12 = arith.extui %11 : i1 to i32
    %c0_i32_11 = arith.constant 0 : i32
    %13 = arith.cmpi ne, %12, %c0_i32_11 : i32
    scf.if %13 {
      %c0_12 = arith.constant 0 : index
      %c0_13 = arith.constant 0 : index
      %14 = vector.load %arg7[%c0_12, %c0_13] : memref<2x128xf32, #tpu.memory_space<vmem>>, vector<2x128xf32>
      %c0_14 = arith.constant 0 : index
      %c0_15 = arith.constant 0 : index
      %15 = vector.load %arg5[%c0_14, %c0_15] : memref<1x128xf32, #tpu.memory_space<vmem>>, vector<1x128xf32>
      %16 = vector.broadcast %15 : vector<1x128xf32> to vector<2x128xf32>
      %17 = arith.addf %14, %16 : vector<2x128xf32>
      %c0_16 = arith.constant 0 : index
      %c0_17 = arith.constant 0 : index
      %c0_18 = arith.constant 0 : index
      %18 = vector.load %arg6[%c0_16, %c0_17, %c0_18] : memref<1x2x128xf32, #tpu.memory_space<vmem>>, vector<1x2x128xf32>
      %19 = vector.shape_cast %18 : vector<1x2x128xf32> to vector<2x128xf32>
      %20 = vector.shape_cast %17 : vector<2x128xf32> to vector<1x2x128xf32>
      tpu.vector_store %arg6[%c0_16, %c0_17, %c0_18], %20 {strides = array<i32>} : memref<1x2x128xf32, #tpu.memory_space<vmem>>, vector<1x2x128xf32>,
    } else {
    }
    return
  }
  func.func @transform_0(%arg0: i32, %arg1: i32, %arg2: i32) -> (i32, i32, i32) {
    %c0_i32 = arith.constant 0 : i32
    return %arg0, %arg1, %arg2 : i32, i32, i32
  }
  func.func @transform_1(%arg0: i32, %arg1: i32, %arg2: i32) -> (i32, i32, i32) {
    %c0_i32 = arith.constant 0 : i32
    %c0_i32_0 = arith.constant 0 : i32
    return %arg0, %arg2, %c0_i32 : i32, i32, i32
  }
  func.func @transform_2(%arg0: i32, %arg1: i32, %arg2: i32) -> (i32, i32) {
    %c0_i32 = arith.constant 0 : i32
    %c0_i32_0 = arith.constant 0 : i32
    %c0_i32_1 = arith.constant 0 : i32
    return %c0_i32, %c0_i32_0 : i32, i32
  }
  func.func @transform_3(%arg0: i32, %arg1: i32, %arg2: i32) -> (i32, i32, i32) {
    %c0_i32 = arith.constant 0 : i32
    %c0_i32_0 = arith.constant 0 : i32
    return %arg0, %arg1, %c0_i32 : i32, i32, i32
  }
}

module attributes {stable_mosaic.version = 11 : i64} {
  func.func @_bn_stats_kernel(%arg0: i32, %arg1: memref<8x128xf32, #tpu.memory_space<vmem>>, %arg2: memref<1x128xf32, #tpu.memory_space<vmem>>, %arg3: memref<1x128xf32, #tpu.memory_space<vmem>>) attributes {dimension_semantics = [#tpu.dimension_semantics<arbitrary>], iteration_bounds = array<i64: 1>, scalar_prefetch = 0 : i64, scratch_operands = 0 : i64, tpu.core_type = #tpu.core_type<tc>, window_params = [{transform_indices = @transform_0, window_bounds = array<i64: 8, 128>}, {pipeline_mode = #tpu.pipeline_mode<synchronous>, transform_indices = @transform_1, window_bounds = array<i64: 1, 128>}, {pipeline_mode = #tpu.pipeline_mode<synchronous>, transform_indices = @transform_2, window_bounds = array<i64: 1, 128>}]} {
    %c0 = arith.constant 0 : index
    %c0_0 = arith.constant 0 : index
    %0 = vector.load %arg1[%c0, %c0_0] : memref<8x128xf32, #tpu.memory_space<vmem>>, vector<8x128xf32>
    %c0_i32 = arith.constant 0 : i32
    %1 = arith.cmpi eq, %arg0, %c0_i32 : i32
    %2 = arith.extui %1 : i1 to i32
    %c0_i32_1 = arith.constant 0 : i32
    %3 = arith.cmpi ne, %2, %c0_i32_1 : i32
    scf.if %3 {
      %cst_11 = arith.constant 0.000000e+00 : f32
      %15 = vector.broadcast %cst_11 : f32 to vector<1x128xf32>
      %c0_12 = arith.constant 0 : index
      %c0_13 = arith.constant 0 : index
      %16 = vector.load %arg2[%c0_12, %c0_13] : memref<1x128xf32, #tpu.memory_space<vmem>>, vector<1x128xf32>
      tpu.vector_store %arg2[%c0_12, %c0_13], %15 {strides = array<i32>} : memref<1x128xf32, #tpu.memory_space<vmem>>, vector<1x128xf32>,
      %cst_14 = arith.constant 0.000000e+00 : f32
      %17 = vector.broadcast %cst_14 : f32 to vector<1x128xf32>
      %c0_15 = arith.constant 0 : index
      %c0_16 = arith.constant 0 : index
      %18 = vector.load %arg3[%c0_15, %c0_16] : memref<1x128xf32, #tpu.memory_space<vmem>>, vector<1x128xf32>
      tpu.vector_store %arg3[%c0_15, %c0_16], %17 {strides = array<i32>} : memref<1x128xf32, #tpu.memory_space<vmem>>, vector<1x128xf32>,
    } else {
    }
    %c0_2 = arith.constant 0 : index
    %c0_3 = arith.constant 0 : index
    %4 = vector.load %arg2[%c0_2, %c0_3] : memref<1x128xf32, #tpu.memory_space<vmem>>, vector<1x128xf32>
    %cst = arith.constant dense<0.000000e+00> : vector<128xf32>
    %5 = vector.multi_reduction <add>, %0, %cst [0] : vector<8x128xf32> to vector<128xf32>
    %6 = vector.shape_cast %5 : vector<128xf32> to vector<1x128xf32>
    %7 = arith.addf %4, %6 : vector<1x128xf32>
    %c0_4 = arith.constant 0 : index
    %c0_5 = arith.constant 0 : index
    %8 = vector.load %arg2[%c0_4, %c0_5] : memref<1x128xf32, #tpu.memory_space<vmem>>, vector<1x128xf32>
    tpu.vector_store %arg2[%c0_4, %c0_5], %7 {strides = array<i32>} : memref<1x128xf32, #tpu.memory_space<vmem>>, vector<1x128xf32>,
    %c0_6 = arith.constant 0 : index
    %c0_7 = arith.constant 0 : index
    %9 = vector.load %arg3[%c0_6, %c0_7] : memref<1x128xf32, #tpu.memory_space<vmem>>, vector<1x128xf32>
    %10 = arith.mulf %0, %0 : vector<8x128xf32>
    %cst_8 = arith.constant dense<0.000000e+00> : vector<128xf32>
    %11 = vector.multi_reduction <add>, %10, %cst_8 [0] : vector<8x128xf32> to vector<128xf32>
    %12 = vector.shape_cast %11 : vector<128xf32> to vector<1x128xf32>
    %13 = arith.addf %9, %12 : vector<1x128xf32>
    %c0_9 = arith.constant 0 : index
    %c0_10 = arith.constant 0 : index
    %14 = vector.load %arg3[%c0_9, %c0_10] : memref<1x128xf32, #tpu.memory_space<vmem>>, vector<1x128xf32>
    tpu.vector_store %arg3[%c0_9, %c0_10], %13 {strides = array<i32>} : memref<1x128xf32, #tpu.memory_space<vmem>>, vector<1x128xf32>,
    return
  }
  func.func @transform_0(%arg0: i32) -> (i32, i32) {
    %c0_i32 = arith.constant 0 : i32
    %c0_i32_0 = arith.constant 0 : i32
    return %arg0, %c0_i32 : i32, i32
  }
  func.func @transform_1(%arg0: i32) -> (i32, i32) {
    %c0_i32 = arith.constant 0 : i32
    %c0_i32_0 = arith.constant 0 : i32
    %c0_i32_1 = arith.constant 0 : i32
    return %c0_i32, %c0_i32_0 : i32, i32
  }
  func.func @transform_2(%arg0: i32) -> (i32, i32) {
    %c0_i32 = arith.constant 0 : i32
    %c0_i32_0 = arith.constant 0 : i32
    %c0_i32_1 = arith.constant 0 : i32
    return %c0_i32, %c0_i32_0 : i32, i32
  }
}

module attributes {stable_mosaic.version = 11 : i64} {
  func.func @_gemm_kernel(%arg0: i32, %arg1: i32, %arg2: i32, %arg3: memref<1x2x512xbf16, #tpu.memory_space<vmem>>, %arg4: memref<1x512x128xbf16, #tpu.memory_space<vmem>>, %arg5: memref<1x128xf32, #tpu.memory_space<vmem>>, %arg6: memref<1x2x128xf32, #tpu.memory_space<vmem>>, %arg7: memref<2x128xf32, #tpu.memory_space<vmem>>) attributes {dimension_semantics = [#tpu.dimension_semantics<parallel>, #tpu.dimension_semantics<parallel>, #tpu.dimension_semantics<arbitrary>], iteration_bounds = array<i64: 1, 1, 2>, scalar_prefetch = 0 : i64, scratch_operands = 1 : i64, tpu.core_type = #tpu.core_type<tc>, window_params = [{transform_indices = @transform_0, window_bounds = array<i64: 1, 2, 512>}, {transform_indices = @transform_1, window_bounds = array<i64: 1, 512, 128>}, {pipeline_mode = #tpu.pipeline_mode<synchronous>, transform_indices = @transform_2, window_bounds = array<i64: 1, 128>}, {transform_indices = @transform_3, window_bounds = array<i64: 1, 2, 128>}]} {
    %c0_i32 = arith.constant 0 : i32
    %0 = arith.cmpi eq, %arg2, %c0_i32 : i32
    %1 = arith.extui %0 : i1 to i32
    %c0_i32_0 = arith.constant 0 : i32
    %2 = arith.cmpi ne, %1, %c0_i32_0 : i32
    scf.if %2 {
      %cst_11 = arith.constant 0.000000e+00 : f32
      %14 = vector.broadcast %cst_11 : f32 to vector<2x128xf32>
      %c0_12 = arith.constant 0 : index
      %c0_13 = arith.constant 0 : index
      %15 = vector.load %arg7[%c0_12, %c0_13] : memref<2x128xf32, #tpu.memory_space<vmem>>, vector<2x128xf32>
      tpu.vector_store %arg7[%c0_12, %c0_13], %14 {strides = array<i32>} : memref<2x128xf32, #tpu.memory_space<vmem>>, vector<2x128xf32>,
    } else {
    }
    %c0 = arith.constant 0 : index
    %c0_1 = arith.constant 0 : index
    %3 = vector.load %arg7[%c0, %c0_1] : memref<2x128xf32, #tpu.memory_space<vmem>>, vector<2x128xf32>
    %c0_2 = arith.constant 0 : index
    %c0_3 = arith.constant 0 : index
    %c0_4 = arith.constant 0 : index
    %4 = vector.load %arg3[%c0_2, %c0_3, %c0_4] : memref<1x2x512xbf16, #tpu.memory_space<vmem>>, vector<1x2x512xbf16>
    %5 = vector.shape_cast %4 : vector<1x2x512xbf16> to vector<2x512xbf16>
    %c0_5 = arith.constant 0 : index
    %c0_6 = arith.constant 0 : index
    %c0_7 = arith.constant 0 : index
    %6 = vector.load %arg4[%c0_5, %c0_6, %c0_7] : memref<1x512x128xbf16, #tpu.memory_space<vmem>>, vector<1x512x128xbf16>
    %7 = vector.shape_cast %6 : vector<1x512x128xbf16> to vector<512x128xbf16>
    %cst = arith.constant dense<0.000000e+00> : vector<2x128xf32>
    %8 = tpu.matmul %5, %7, %cst {dimension_numbers = #tpu.dot_dimension_numbers<[1], [0], [0], [1], [0, 0, 1, 1], [], []>} : vector<2x512xbf16>, vector<512x128xbf16>, vector<2x128xf32> -> vector<2x128xf32>
    %9 = arith.addf %3, %8 : vector<2x128xf32>
    %c0_8 = arith.constant 0 : index
    %c0_9 = arith.constant 0 : index
    %10 = vector.load %arg7[%c0_8, %c0_9] : memref<2x128xf32, #tpu.memory_space<vmem>>, vector<2x128xf32>
    tpu.vector_store %arg7[%c0_8, %c0_9], %9 {strides = array<i32>} : memref<2x128xf32, #tpu.memory_space<vmem>>, vector<2x128xf32>,
    %c1_i32 = arith.constant 1 : i32
    %11 = arith.cmpi eq, %arg2, %c1_i32 : i32
    %12 = arith.extui %11 : i1 to i32
    %c0_i32_10 = arith.constant 0 : i32
    %13 = arith.cmpi ne, %12, %c0_i32_10 : i32
    scf.if %13 {
      %c0_11 = arith.constant 0 : index
      %c0_12 = arith.constant 0 : index
      %14 = vector.load %arg7[%c0_11, %c0_12] : memref<2x128xf32, #tpu.memory_space<vmem>>, vector<2x128xf32>
      %c0_13 = arith.constant 0 : index
      %c0_14 = arith.constant 0 : index
      %15 = vector.load %arg5[%c0_13, %c0_14] : memref<1x128xf32, #tpu.memory_space<vmem>>, vector<1x128xf32>
      %16 = vector.broadcast %15 : vector<1x128xf32> to vector<2x128xf32>
      %17 = arith.addf %14, %16 : vector<2x128xf32>
      %c0_15 = arith.constant 0 : index
      %c0_16 = arith.constant 0 : index
      %c0_17 = arith.constant 0 : index
      %18 = vector.load %arg6[%c0_15, %c0_16, %c0_17] : memref<1x2x128xf32, #tpu.memory_space<vmem>>, vector<1x2x128xf32>
      %19 = vector.shape_cast %18 : vector<1x2x128xf32> to vector<2x128xf32>
      %20 = vector.shape_cast %17 : vector<2x128xf32> to vector<1x2x128xf32>
      tpu.vector_store %arg6[%c0_15, %c0_16, %c0_17], %20 {strides = array<i32>} : memref<1x2x128xf32, #tpu.memory_space<vmem>>, vector<1x2x128xf32>,
    } else {
    }
    return
  }
  func.func @transform_0(%arg0: i32, %arg1: i32, %arg2: i32) -> (i32, i32, i32) {
    %c0_i32 = arith.constant 0 : i32
    return %arg0, %arg1, %arg2 : i32, i32, i32
  }
  func.func @transform_1(%arg0: i32, %arg1: i32, %arg2: i32) -> (i32, i32, i32) {
    %c0_i32 = arith.constant 0 : i32
    %c0_i32_0 = arith.constant 0 : i32
    return %arg0, %arg2, %c0_i32 : i32, i32, i32
  }
  func.func @transform_2(%arg0: i32, %arg1: i32, %arg2: i32) -> (i32, i32) {
    %c0_i32 = arith.constant 0 : i32
    %c0_i32_0 = arith.constant 0 : i32
    %c0_i32_1 = arith.constant 0 : i32
    return %c0_i32, %c0_i32_0 : i32, i32
  }
  func.func @transform_3(%arg0: i32, %arg1: i32, %arg2: i32) -> (i32, i32, i32) {
    %c0_i32 = arith.constant 0 : i32
    %c0_i32_0 = arith.constant 0 : i32
    return %arg0, %arg1, %c0_i32 : i32, i32, i32
  }
}

module attributes {stable_mosaic.version = 11 : i64} {
  func.func @_gemm_kernel(%arg0: i32, %arg1: i32, %arg2: i32, %arg3: memref<1x8x512xbf16, #tpu.memory_space<vmem>>, %arg4: memref<1x512x128xbf16, #tpu.memory_space<vmem>>, %arg5: memref<1x128xf32, #tpu.memory_space<vmem>>, %arg6: memref<1x8x128xf32, #tpu.memory_space<vmem>>, %arg7: memref<8x128xf32, #tpu.memory_space<vmem>>) attributes {dimension_semantics = [#tpu.dimension_semantics<parallel>, #tpu.dimension_semantics<parallel>, #tpu.dimension_semantics<arbitrary>], iteration_bounds = array<i64: 4, 1, 1>, scalar_prefetch = 0 : i64, scratch_operands = 1 : i64, tpu.core_type = #tpu.core_type<tc>, window_params = [{transform_indices = @transform_0, window_bounds = array<i64: 1, 8, 512>}, {transform_indices = @transform_1, window_bounds = array<i64: 1, 512, 128>}, {pipeline_mode = #tpu.pipeline_mode<synchronous>, transform_indices = @transform_2, window_bounds = array<i64: 1, 128>}, {transform_indices = @transform_3, window_bounds = array<i64: 1, 8, 128>}]} {
    %c0_i32 = arith.constant 0 : i32
    %0 = arith.cmpi eq, %arg2, %c0_i32 : i32
    %1 = arith.extui %0 : i1 to i32
    %c0_i32_0 = arith.constant 0 : i32
    %2 = arith.cmpi ne, %1, %c0_i32_0 : i32
    scf.if %2 {
      %cst_12 = arith.constant 0.000000e+00 : f32
      %14 = vector.broadcast %cst_12 : f32 to vector<8x128xf32>
      %c0_13 = arith.constant 0 : index
      %c0_14 = arith.constant 0 : index
      %15 = vector.load %arg7[%c0_13, %c0_14] : memref<8x128xf32, #tpu.memory_space<vmem>>, vector<8x128xf32>
      tpu.vector_store %arg7[%c0_13, %c0_14], %14 {strides = array<i32>} : memref<8x128xf32, #tpu.memory_space<vmem>>, vector<8x128xf32>,
    } else {
    }
    %c0 = arith.constant 0 : index
    %c0_1 = arith.constant 0 : index
    %3 = vector.load %arg7[%c0, %c0_1] : memref<8x128xf32, #tpu.memory_space<vmem>>, vector<8x128xf32>
    %c0_2 = arith.constant 0 : index
    %c0_3 = arith.constant 0 : index
    %c0_4 = arith.constant 0 : index
    %4 = vector.load %arg3[%c0_2, %c0_3, %c0_4] : memref<1x8x512xbf16, #tpu.memory_space<vmem>>, vector<1x8x512xbf16>
    %5 = vector.shape_cast %4 : vector<1x8x512xbf16> to vector<8x512xbf16>
    %c0_5 = arith.constant 0 : index
    %c0_6 = arith.constant 0 : index
    %c0_7 = arith.constant 0 : index
    %6 = vector.load %arg4[%c0_5, %c0_6, %c0_7] : memref<1x512x128xbf16, #tpu.memory_space<vmem>>, vector<1x512x128xbf16>
    %7 = vector.shape_cast %6 : vector<1x512x128xbf16> to vector<512x128xbf16>
    %cst = arith.constant dense<0.000000e+00> : vector<8x128xf32>
    %8 = tpu.matmul %5, %7, %cst {dimension_numbers = #tpu.dot_dimension_numbers<[1], [0], [0], [1], [0, 0, 1, 1], [], []>} : vector<8x512xbf16>, vector<512x128xbf16>, vector<8x128xf32> -> vector<8x128xf32>
    %9 = arith.addf %3, %8 : vector<8x128xf32>
    %c0_8 = arith.constant 0 : index
    %c0_9 = arith.constant 0 : index
    %10 = vector.load %arg7[%c0_8, %c0_9] : memref<8x128xf32, #tpu.memory_space<vmem>>, vector<8x128xf32>
    tpu.vector_store %arg7[%c0_8, %c0_9], %9 {strides = array<i32>} : memref<8x128xf32, #tpu.memory_space<vmem>>, vector<8x128xf32>,
    %c0_i32_10 = arith.constant 0 : i32
    %11 = arith.cmpi eq, %arg2, %c0_i32_10 : i32
    %12 = arith.extui %11 : i1 to i32
    %c0_i32_11 = arith.constant 0 : i32
    %13 = arith.cmpi ne, %12, %c0_i32_11 : i32
    scf.if %13 {
      %c0_12 = arith.constant 0 : index
      %c0_13 = arith.constant 0 : index
      %14 = vector.load %arg7[%c0_12, %c0_13] : memref<8x128xf32, #tpu.memory_space<vmem>>, vector<8x128xf32>
      %c0_14 = arith.constant 0 : index
      %c0_15 = arith.constant 0 : index
      %15 = vector.load %arg5[%c0_14, %c0_15] : memref<1x128xf32, #tpu.memory_space<vmem>>, vector<1x128xf32>
      %16 = vector.broadcast %15 : vector<1x128xf32> to vector<8x128xf32>
      %17 = arith.addf %14, %16 : vector<8x128xf32>
      %c0_16 = arith.constant 0 : index
      %c0_17 = arith.constant 0 : index
      %c0_18 = arith.constant 0 : index
      %18 = vector.load %arg6[%c0_16, %c0_17, %c0_18] : memref<1x8x128xf32, #tpu.memory_space<vmem>>, vector<1x8x128xf32>
      %19 = vector.shape_cast %18 : vector<1x8x128xf32> to vector<8x128xf32>
      %20 = vector.shape_cast %17 : vector<8x128xf32> to vector<1x8x128xf32>
      tpu.vector_store %arg6[%c0_16, %c0_17, %c0_18], %20 {strides = array<i32>} : memref<1x8x128xf32, #tpu.memory_space<vmem>>, vector<1x8x128xf32>,
    } else {
    }
    return
  }
  func.func @transform_0(%arg0: i32, %arg1: i32, %arg2: i32) -> (i32, i32, i32) {
    %c0_i32 = arith.constant 0 : i32
    return %arg0, %arg1, %arg2 : i32, i32, i32
  }
  func.func @transform_1(%arg0: i32, %arg1: i32, %arg2: i32) -> (i32, i32, i32) {
    %c0_i32 = arith.constant 0 : i32
    %c0_i32_0 = arith.constant 0 : i32
    return %arg0, %arg2, %c0_i32 : i32, i32, i32
  }
  func.func @transform_2(%arg0: i32, %arg1: i32, %arg2: i32) -> (i32, i32) {
    %c0_i32 = arith.constant 0 : i32
    %c0_i32_0 = arith.constant 0 : i32
    %c0_i32_1 = arith.constant 0 : i32
    return %c0_i32, %c0_i32_0 : i32, i32
  }
  func.func @transform_3(%arg0: i32, %arg1: i32, %arg2: i32) -> (i32, i32, i32) {
    %c0_i32 = arith.constant 0 : i32
    %c0_i32_0 = arith.constant 0 : i32
    return %arg0, %arg1, %c0_i32 : i32, i32, i32
  }
}

module attributes {stable_mosaic.version = 11 : i64} {
  func.func @_gemm_kernel(%arg0: i32, %arg1: i32, %arg2: i32, %arg3: memref<1x32x256xbf16, #tpu.memory_space<vmem>>, %arg4: memref<1x256x128xbf16, #tpu.memory_space<vmem>>, %arg5: memref<1x128xf32, #tpu.memory_space<vmem>>, %arg6: memref<1x32x128xf32, #tpu.memory_space<vmem>>, %arg7: memref<32x128xf32, #tpu.memory_space<vmem>>) attributes {dimension_semantics = [#tpu.dimension_semantics<parallel>, #tpu.dimension_semantics<parallel>, #tpu.dimension_semantics<arbitrary>], iteration_bounds = array<i64: 4, 1, 1>, scalar_prefetch = 0 : i64, scratch_operands = 1 : i64, tpu.core_type = #tpu.core_type<tc>, window_params = [{transform_indices = @transform_0, window_bounds = array<i64: 1, 32, 256>}, {transform_indices = @transform_1, window_bounds = array<i64: 1, 256, 128>}, {pipeline_mode = #tpu.pipeline_mode<synchronous>, transform_indices = @transform_2, window_bounds = array<i64: 1, 128>}, {transform_indices = @transform_3, window_bounds = array<i64: 1, 32, 128>}]} {
    %c0_i32 = arith.constant 0 : i32
    %0 = arith.cmpi eq, %arg2, %c0_i32 : i32
    %1 = arith.extui %0 : i1 to i32
    %c0_i32_0 = arith.constant 0 : i32
    %2 = arith.cmpi ne, %1, %c0_i32_0 : i32
    scf.if %2 {
      %cst_12 = arith.constant 0.000000e+00 : f32
      %14 = vector.broadcast %cst_12 : f32 to vector<32x128xf32>
      %c0_13 = arith.constant 0 : index
      %c0_14 = arith.constant 0 : index
      %15 = vector.load %arg7[%c0_13, %c0_14] : memref<32x128xf32, #tpu.memory_space<vmem>>, vector<32x128xf32>
      tpu.vector_store %arg7[%c0_13, %c0_14], %14 {strides = array<i32>} : memref<32x128xf32, #tpu.memory_space<vmem>>, vector<32x128xf32>,
    } else {
    }
    %c0 = arith.constant 0 : index
    %c0_1 = arith.constant 0 : index
    %3 = vector.load %arg7[%c0, %c0_1] : memref<32x128xf32, #tpu.memory_space<vmem>>, vector<32x128xf32>
    %c0_2 = arith.constant 0 : index
    %c0_3 = arith.constant 0 : index
    %c0_4 = arith.constant 0 : index
    %4 = vector.load %arg3[%c0_2, %c0_3, %c0_4] : memref<1x32x256xbf16, #tpu.memory_space<vmem>>, vector<1x32x256xbf16>
    %5 = vector.shape_cast %4 : vector<1x32x256xbf16> to vector<32x256xbf16>
    %c0_5 = arith.constant 0 : index
    %c0_6 = arith.constant 0 : index
    %c0_7 = arith.constant 0 : index
    %6 = vector.load %arg4[%c0_5, %c0_6, %c0_7] : memref<1x256x128xbf16, #tpu.memory_space<vmem>>, vector<1x256x128xbf16>
    %7 = vector.shape_cast %6 : vector<1x256x128xbf16> to vector<256x128xbf16>
    %cst = arith.constant dense<0.000000e+00> : vector<32x128xf32>
    %8 = tpu.matmul %5, %7, %cst {dimension_numbers = #tpu.dot_dimension_numbers<[1], [0], [0], [1], [0, 0, 1, 1], [], []>} : vector<32x256xbf16>, vector<256x128xbf16>, vector<32x128xf32> -> vector<32x128xf32>
    %9 = arith.addf %3, %8 : vector<32x128xf32>
    %c0_8 = arith.constant 0 : index
    %c0_9 = arith.constant 0 : index
    %10 = vector.load %arg7[%c0_8, %c0_9] : memref<32x128xf32, #tpu.memory_space<vmem>>, vector<32x128xf32>
    tpu.vector_store %arg7[%c0_8, %c0_9], %9 {strides = array<i32>} : memref<32x128xf32, #tpu.memory_space<vmem>>, vector<32x128xf32>,
    %c0_i32_10 = arith.constant 0 : i32
    %11 = arith.cmpi eq, %arg2, %c0_i32_10 : i32
    %12 = arith.extui %11 : i1 to i32
    %c0_i32_11 = arith.constant 0 : i32
    %13 = arith.cmpi ne, %12, %c0_i32_11 : i32
    scf.if %13 {
      %c0_12 = arith.constant 0 : index
      %c0_13 = arith.constant 0 : index
      %14 = vector.load %arg7[%c0_12, %c0_13] : memref<32x128xf32, #tpu.memory_space<vmem>>, vector<32x128xf32>
      %c0_14 = arith.constant 0 : index
      %c0_15 = arith.constant 0 : index
      %15 = vector.load %arg5[%c0_14, %c0_15] : memref<1x128xf32, #tpu.memory_space<vmem>>, vector<1x128xf32>
      %16 = vector.broadcast %15 : vector<1x128xf32> to vector<32x128xf32>
      %17 = arith.addf %14, %16 : vector<32x128xf32>
      %c0_16 = arith.constant 0 : index
      %c0_17 = arith.constant 0 : index
      %c0_18 = arith.constant 0 : index
      %18 = vector.load %arg6[%c0_16, %c0_17, %c0_18] : memref<1x32x128xf32, #tpu.memory_space<vmem>>, vector<1x32x128xf32>
      %19 = vector.shape_cast %18 : vector<1x32x128xf32> to vector<32x128xf32>
      %20 = vector.shape_cast %17 : vector<32x128xf32> to vector<1x32x128xf32>
      tpu.vector_store %arg6[%c0_16, %c0_17, %c0_18], %20 {strides = array<i32>} : memref<1x32x128xf32, #tpu.memory_space<vmem>>, vector<1x32x128xf32>,
    } else {
    }
    return
  }
  func.func @transform_0(%arg0: i32, %arg1: i32, %arg2: i32) -> (i32, i32, i32) {
    %c0_i32 = arith.constant 0 : i32
    return %arg0, %arg1, %arg2 : i32, i32, i32
  }
  func.func @transform_1(%arg0: i32, %arg1: i32, %arg2: i32) -> (i32, i32, i32) {
    %c0_i32 = arith.constant 0 : i32
    %c0_i32_0 = arith.constant 0 : i32
    return %arg0, %arg2, %c0_i32 : i32, i32, i32
  }
  func.func @transform_2(%arg0: i32, %arg1: i32, %arg2: i32) -> (i32, i32) {
    %c0_i32 = arith.constant 0 : i32
    %c0_i32_0 = arith.constant 0 : i32
    %c0_i32_1 = arith.constant 0 : i32
    return %c0_i32, %c0_i32_0 : i32, i32
  }
  func.func @transform_3(%arg0: i32, %arg1: i32, %arg2: i32) -> (i32, i32, i32) {
    %c0_i32 = arith.constant 0 : i32
    %c0_i32_0 = arith.constant 0 : i32
    return %arg0, %arg1, %c0_i32 : i32, i32, i32
  }
}

module attributes {stable_mosaic.version = 11 : i64} {
  func.func @_bn_stats_kernel(%arg0: i32, %arg1: memref<512x128xf32, #tpu.memory_space<vmem>>, %arg2: memref<1x128xf32, #tpu.memory_space<vmem>>, %arg3: memref<1x128xf32, #tpu.memory_space<vmem>>) attributes {dimension_semantics = [#tpu.dimension_semantics<arbitrary>], iteration_bounds = array<i64: 1>, scalar_prefetch = 0 : i64, scratch_operands = 0 : i64, tpu.core_type = #tpu.core_type<tc>, window_params = [{transform_indices = @transform_0, window_bounds = array<i64: 512, 128>}, {pipeline_mode = #tpu.pipeline_mode<synchronous>, transform_indices = @transform_1, window_bounds = array<i64: 1, 128>}, {pipeline_mode = #tpu.pipeline_mode<synchronous>, transform_indices = @transform_2, window_bounds = array<i64: 1, 128>}]} {
    %c0 = arith.constant 0 : index
    %c0_0 = arith.constant 0 : index
    %0 = vector.load %arg1[%c0, %c0_0] : memref<512x128xf32, #tpu.memory_space<vmem>>, vector<512x128xf32>
    %c0_i32 = arith.constant 0 : i32
    %1 = arith.cmpi eq, %arg0, %c0_i32 : i32
    %2 = arith.extui %1 : i1 to i32
    %c0_i32_1 = arith.constant 0 : i32
    %3 = arith.cmpi ne, %2, %c0_i32_1 : i32
    scf.if %3 {
      %cst_11 = arith.constant 0.000000e+00 : f32
      %15 = vector.broadcast %cst_11 : f32 to vector<1x128xf32>
      %c0_12 = arith.constant 0 : index
      %c0_13 = arith.constant 0 : index
      %16 = vector.load %arg2[%c0_12, %c0_13] : memref<1x128xf32, #tpu.memory_space<vmem>>, vector<1x128xf32>
      tpu.vector_store %arg2[%c0_12, %c0_13], %15 {strides = array<i32>} : memref<1x128xf32, #tpu.memory_space<vmem>>, vector<1x128xf32>,
      %cst_14 = arith.constant 0.000000e+00 : f32
      %17 = vector.broadcast %cst_14 : f32 to vector<1x128xf32>
      %c0_15 = arith.constant 0 : index
      %c0_16 = arith.constant 0 : index
      %18 = vector.load %arg3[%c0_15, %c0_16] : memref<1x128xf32, #tpu.memory_space<vmem>>, vector<1x128xf32>
      tpu.vector_store %arg3[%c0_15, %c0_16], %17 {strides = array<i32>} : memref<1x128xf32, #tpu.memory_space<vmem>>, vector<1x128xf32>,
    } else {
    }
    %c0_2 = arith.constant 0 : index
    %c0_3 = arith.constant 0 : index
    %4 = vector.load %arg2[%c0_2, %c0_3] : memref<1x128xf32, #tpu.memory_space<vmem>>, vector<1x128xf32>
    %cst = arith.constant dense<0.000000e+00> : vector<128xf32>
    %5 = vector.multi_reduction <add>, %0, %cst [0] : vector<512x128xf32> to vector<128xf32>
    %6 = vector.shape_cast %5 : vector<128xf32> to vector<1x128xf32>
    %7 = arith.addf %4, %6 : vector<1x128xf32>
    %c0_4 = arith.constant 0 : index
    %c0_5 = arith.constant 0 : index
    %8 = vector.load %arg2[%c0_4, %c0_5] : memref<1x128xf32, #tpu.memory_space<vmem>>, vector<1x128xf32>
    tpu.vector_store %arg2[%c0_4, %c0_5], %7 {strides = array<i32>} : memref<1x128xf32, #tpu.memory_space<vmem>>, vector<1x128xf32>,
    %c0_6 = arith.constant 0 : index
    %c0_7 = arith.constant 0 : index
    %9 = vector.load %arg3[%c0_6, %c0_7] : memref<1x128xf32, #tpu.memory_space<vmem>>, vector<1x128xf32>
    %10 = arith.mulf %0, %0 : vector<512x128xf32>
    %cst_8 = arith.constant dense<0.000000e+00> : vector<128xf32>
    %11 = vector.multi_reduction <add>, %10, %cst_8 [0] : vector<512x128xf32> to vector<128xf32>
    %12 = vector.shape_cast %11 : vector<128xf32> to vector<1x128xf32>
    %13 = arith.addf %9, %12 : vector<1x128xf32>
    %c0_9 = arith.constant 0 : index
    %c0_10 = arith.constant 0 : index
    %14 = vector.load %arg3[%c0_9, %c0_10] : memref<1x128xf32, #tpu.memory_space<vmem>>, vector<1x128xf32>
    tpu.vector_store %arg3[%c0_9, %c0_10], %13 {strides = array<i32>} : memref<1x128xf32, #tpu.memory_space<vmem>>, vector<1x128xf32>,
    return
  }
  func.func @transform_0(%arg0: i32) -> (i32, i32) {
    %c0_i32 = arith.constant 0 : i32
    %c0_i32_0 = arith.constant 0 : i32
    return %arg0, %c0_i32 : i32, i32
  }
  func.func @transform_1(%arg0: i32) -> (i32, i32) {
    %c0_i32 = arith.constant 0 : i32
    %c0_i32_0 = arith.constant 0 : i32
    %c0_i32_1 = arith.constant 0 : i32
    return %c0_i32, %c0_i32_0 : i32, i32
  }
  func.func @transform_2(%arg0: i32) -> (i32, i32) {
    %c0_i32 = arith.constant 0 : i32
    %c0_i32_0 = arith.constant 0 : i32
    %c0_i32_1 = arith.constant 0 : i32
    return %c0_i32, %c0_i32_0 : i32, i32
  }
}

module attributes {stable_mosaic.version = 11 : i64} {
  func.func @_gemm_kernel(%arg0: i32, %arg1: i32, %arg2: i32, %arg3: memref<1x128x128xbf16, #tpu.memory_space<vmem>>, %arg4: memref<1x128x128xbf16, #tpu.memory_space<vmem>>, %arg5: memref<1x128xf32, #tpu.memory_space<vmem>>, %arg6: memref<1x128x128xf32, #tpu.memory_space<vmem>>, %arg7: memref<128x128xf32, #tpu.memory_space<vmem>>) attributes {dimension_semantics = [#tpu.dimension_semantics<parallel>, #tpu.dimension_semantics<parallel>, #tpu.dimension_semantics<arbitrary>], iteration_bounds = array<i64: 4, 1, 1>, scalar_prefetch = 0 : i64, scratch_operands = 1 : i64, tpu.core_type = #tpu.core_type<tc>, window_params = [{transform_indices = @transform_0, window_bounds = array<i64: 1, 128, 128>}, {transform_indices = @transform_1, window_bounds = array<i64: 1, 128, 128>}, {pipeline_mode = #tpu.pipeline_mode<synchronous>, transform_indices = @transform_2, window_bounds = array<i64: 1, 128>}, {transform_indices = @transform_3, window_bounds = array<i64: 1, 128, 128>}]} {
    %c0_i32 = arith.constant 0 : i32
    %0 = arith.cmpi eq, %arg2, %c0_i32 : i32
    %1 = arith.extui %0 : i1 to i32
    %c0_i32_0 = arith.constant 0 : i32
    %2 = arith.cmpi ne, %1, %c0_i32_0 : i32
    scf.if %2 {
      %cst_12 = arith.constant 0.000000e+00 : f32
      %14 = vector.broadcast %cst_12 : f32 to vector<128x128xf32>
      %c0_13 = arith.constant 0 : index
      %c0_14 = arith.constant 0 : index
      %15 = vector.load %arg7[%c0_13, %c0_14] : memref<128x128xf32, #tpu.memory_space<vmem>>, vector<128x128xf32>
      tpu.vector_store %arg7[%c0_13, %c0_14], %14 {strides = array<i32>} : memref<128x128xf32, #tpu.memory_space<vmem>>, vector<128x128xf32>,
    } else {
    }
    %c0 = arith.constant 0 : index
    %c0_1 = arith.constant 0 : index
    %3 = vector.load %arg7[%c0, %c0_1] : memref<128x128xf32, #tpu.memory_space<vmem>>, vector<128x128xf32>
    %c0_2 = arith.constant 0 : index
    %c0_3 = arith.constant 0 : index
    %c0_4 = arith.constant 0 : index
    %4 = vector.load %arg3[%c0_2, %c0_3, %c0_4] : memref<1x128x128xbf16, #tpu.memory_space<vmem>>, vector<1x128x128xbf16>
    %5 = vector.shape_cast %4 : vector<1x128x128xbf16> to vector<128x128xbf16>
    %c0_5 = arith.constant 0 : index
    %c0_6 = arith.constant 0 : index
    %c0_7 = arith.constant 0 : index
    %6 = vector.load %arg4[%c0_5, %c0_6, %c0_7] : memref<1x128x128xbf16, #tpu.memory_space<vmem>>, vector<1x128x128xbf16>
    %7 = vector.shape_cast %6 : vector<1x128x128xbf16> to vector<128x128xbf16>
    %cst = arith.constant dense<0.000000e+00> : vector<128x128xf32>
    %8 = tpu.matmul %5, %7, %cst {dimension_numbers = #tpu.dot_dimension_numbers<[1], [0], [0], [1], [0, 0, 1, 1], [], []>} : vector<128x128xbf16>, vector<128x128xbf16>, vector<128x128xf32> -> vector<128x128xf32>
    %9 = arith.addf %3, %8 : vector<128x128xf32>
    %c0_8 = arith.constant 0 : index
    %c0_9 = arith.constant 0 : index
    %10 = vector.load %arg7[%c0_8, %c0_9] : memref<128x128xf32, #tpu.memory_space<vmem>>, vector<128x128xf32>
    tpu.vector_store %arg7[%c0_8, %c0_9], %9 {strides = array<i32>} : memref<128x128xf32, #tpu.memory_space<vmem>>, vector<128x128xf32>,
    %c0_i32_10 = arith.constant 0 : i32
    %11 = arith.cmpi eq, %arg2, %c0_i32_10 : i32
    %12 = arith.extui %11 : i1 to i32
    %c0_i32_11 = arith.constant 0 : i32
    %13 = arith.cmpi ne, %12, %c0_i32_11 : i32
    scf.if %13 {
      %c0_12 = arith.constant 0 : index
      %c0_13 = arith.constant 0 : index
      %14 = vector.load %arg7[%c0_12, %c0_13] : memref<128x128xf32, #tpu.memory_space<vmem>>, vector<128x128xf32>
      %c0_14 = arith.constant 0 : index
      %c0_15 = arith.constant 0 : index
      %15 = vector.load %arg5[%c0_14, %c0_15] : memref<1x128xf32, #tpu.memory_space<vmem>>, vector<1x128xf32>
      %16 = vector.broadcast %15 : vector<1x128xf32> to vector<128x128xf32>
      %17 = arith.addf %14, %16 : vector<128x128xf32>
      %c0_16 = arith.constant 0 : index
      %c0_17 = arith.constant 0 : index
      %c0_18 = arith.constant 0 : index
      %18 = vector.load %arg6[%c0_16, %c0_17, %c0_18] : memref<1x128x128xf32, #tpu.memory_space<vmem>>, vector<1x128x128xf32>
      %19 = vector.shape_cast %18 : vector<1x128x128xf32> to vector<128x128xf32>
      %20 = vector.shape_cast %17 : vector<128x128xf32> to vector<1x128x128xf32>
      tpu.vector_store %arg6[%c0_16, %c0_17, %c0_18], %20 {strides = array<i32>} : memref<1x128x128xf32, #tpu.memory_space<vmem>>, vector<1x128x128xf32>,
    } else {
    }
    return
  }
  func.func @transform_0(%arg0: i32, %arg1: i32, %arg2: i32) -> (i32, i32, i32) {
    %c0_i32 = arith.constant 0 : i32
    return %arg0, %arg1, %arg2 : i32, i32, i32
  }
  func.func @transform_1(%arg0: i32, %arg1: i32, %arg2: i32) -> (i32, i32, i32) {
    %c0_i32 = arith.constant 0 : i32
    %c0_i32_0 = arith.constant 0 : i32
    return %arg0, %arg2, %c0_i32 : i32, i32, i32
  }
  func.func @transform_2(%arg0: i32, %arg1: i32, %arg2: i32) -> (i32, i32) {
    %c0_i32 = arith.constant 0 : i32
    %c0_i32_0 = arith.constant 0 : i32
    %c0_i32_1 = arith.constant 0 : i32
    return %c0_i32, %c0_i32_0 : i32, i32
  }
  func.func @transform_3(%arg0: i32, %arg1: i32, %arg2: i32) -> (i32, i32, i32) {
    %c0_i32 = arith.constant 0 : i32
    %c0_i32_0 = arith.constant 0 : i32
    return %arg0, %arg1, %c0_i32 : i32, i32, i32
  }
}

module attributes {stable_mosaic.version = 11 : i64} {
  func.func @_bn_norm_kernel(%arg0: i32, %arg1: memref<512x128xf32, #tpu.memory_space<vmem>>, %arg2: memref<1x128xf32, #tpu.memory_space<vmem>>, %arg3: memref<1x128xf32, #tpu.memory_space<vmem>>, %arg4: memref<1x128xf32, #tpu.memory_space<vmem>>, %arg5: memref<1x128xf32, #tpu.memory_space<vmem>>, %arg6: memref<512x128xf32, #tpu.memory_space<vmem>>) attributes {dimension_semantics = [#tpu.dimension_semantics<parallel>], iteration_bounds = array<i64: 1>, scalar_prefetch = 0 : i64, scratch_operands = 0 : i64, tpu.core_type = #tpu.core_type<tc>, window_params = [{transform_indices = @transform_0, window_bounds = array<i64: 512, 128>}, {pipeline_mode = #tpu.pipeline_mode<synchronous>, transform_indices = @transform_1, window_bounds = array<i64: 1, 128>}, {pipeline_mode = #tpu.pipeline_mode<synchronous>, transform_indices = @transform_2, window_bounds = array<i64: 1, 128>}, {pipeline_mode = #tpu.pipeline_mode<synchronous>, transform_indices = @transform_3, window_bounds = array<i64: 1, 128>}, {pipeline_mode = #tpu.pipeline_mode<synchronous>, transform_indices = @transform_4, window_bounds = array<i64: 1, 128>}, {transform_indices = @transform_5, window_bounds = array<i64: 512, 128>}]} {
    %c0 = arith.constant 0 : index
    %c0_0 = arith.constant 0 : index
    %0 = vector.load %arg2[%c0, %c0_0] : memref<1x128xf32, #tpu.memory_space<vmem>>, vector<1x128xf32>
    %cst = arith.constant 0.001953125 : f32
    %1 = vector.broadcast %cst : f32 to vector<1x128xf32>
    %2 = arith.mulf %0, %1 : vector<1x128xf32>
    %c0_1 = arith.constant 0 : index
    %c0_2 = arith.constant 0 : index
    %3 = vector.load %arg3[%c0_1, %c0_2] : memref<1x128xf32, #tpu.memory_space<vmem>>, vector<1x128xf32>
    %cst_3 = arith.constant 0.001953125 : f32
    %4 = vector.broadcast %cst_3 : f32 to vector<1x128xf32>
    %5 = arith.mulf %3, %4 : vector<1x128xf32>
    %6 = arith.mulf %2, %2 : vector<1x128xf32>
    %7 = arith.subf %5, %6 : vector<1x128xf32>
    %cst_4 = arith.constant 0.000000e+00 : f32
    %8 = vector.broadcast %cst_4 : f32 to vector<1x128xf32>
    %9 = arith.maximumf %7, %8 : vector<1x128xf32>
    %cst_5 = arith.constant 9.99999974E-6 : f32
    %10 = vector.broadcast %cst_5 : f32 to vector<1x128xf32>
    %11 = arith.addf %9, %10 : vector<1x128xf32>
    %12 = math.rsqrt %11 : vector<1x128xf32>
    %c0_6 = arith.constant 0 : index
    %c0_7 = arith.constant 0 : index
    %13 = vector.load %arg4[%c0_6, %c0_7] : memref<1x128xf32, #tpu.memory_space<vmem>>, vector<1x128xf32>
    %14 = arith.mulf %12, %13 : vector<1x128xf32>
    %c0_8 = arith.constant 0 : index
    %c0_9 = arith.constant 0 : index
    %15 = vector.load %arg1[%c0_8, %c0_9] : memref<512x128xf32, #tpu.memory_space<vmem>>, vector<512x128xf32>
    %16 = vector.broadcast %2 : vector<1x128xf32> to vector<512x128xf32>
    %17 = arith.subf %15, %16 : vector<512x128xf32>
    %18 = vector.broadcast %14 : vector<1x128xf32> to vector<512x128xf32>
    %19 = arith.mulf %17, %18 : vector<512x128xf32>
    %c0_10 = arith.constant 0 : index
    %c0_11 = arith.constant 0 : index
    %20 = vector.load %arg5[%c0_10, %c0_11] : memref<1x128xf32, #tpu.memory_space<vmem>>, vector<1x128xf32>
    %21 = vector.broadcast %20 : vector<1x128xf32> to vector<512x128xf32>
    %22 = arith.addf %19, %21 : vector<512x128xf32>
    %c0_12 = arith.constant 0 : index
    %c0_13 = arith.constant 0 : index
    %23 = vector.load %arg6[%c0_12, %c0_13] : memref<512x128xf32, #tpu.memory_space<vmem>>, vector<512x128xf32>
    tpu.vector_store %arg6[%c0_12, %c0_13], %22 {strides = array<i32>} : memref<512x128xf32, #tpu.memory_space<vmem>>, vector<512x128xf32>,
    return
  }
  func.func @transform_0(%arg0: i32) -> (i32, i32) {
    %c0_i32 = arith.constant 0 : i32
    %c0_i32_0 = arith.constant 0 : i32
    return %arg0, %c0_i32 : i32, i32
  }
  func.func @transform_1(%arg0: i32) -> (i32, i32) {
    %c0_i32 = arith.constant 0 : i32
    %c0_i32_0 = arith.constant 0 : i32
    %c0_i32_1 = arith.constant 0 : i32
    return %c0_i32, %c0_i32_0 : i32, i32
  }
  func.func @transform_2(%arg0: i32) -> (i32, i32) {
    %c0_i32 = arith.constant 0 : i32
    %c0_i32_0 = arith.constant 0 : i32
    %c0_i32_1 = arith.constant 0 : i32
    return %c0_i32, %c0_i32_0 : i32, i32
  }
  func.func @transform_3(%arg0: i32) -> (i32, i32) {
    %c0_i32 = arith.constant 0 : i32
    %c0_i32_0 = arith.constant 0 : i32
    %c0_i32_1 = arith.constant 0 : i32
    return %c0_i32, %c0_i32_0 : i32, i32
  }
  func.func @transform_4(%arg0: i32) -> (i32, i32) {
    %c0_i32 = arith.constant 0 : i32
    %c0_i32_0 = arith.constant 0 : i32
    %c0_i32_1 = arith.constant 0 : i32
    return %c0_i32, %c0_i32_0 : i32, i32
  }
  func.func @transform_5(%arg0: i32) -> (i32, i32) {
    %c0_i32 = arith.constant 0 : i32
    %c0_i32_0 = arith.constant 0 : i32
    return %arg0, %c0_i32 : i32, i32
  }
}

module attributes {stable_mosaic.version = 11 : i64} {
  func.func @_gemm_kernel(%arg0: i32, %arg1: i32, %arg2: i32, %arg3: memref<1x512x64xbf16, #tpu.memory_space<vmem>>, %arg4: memref<1x64x128xbf16, #tpu.memory_space<vmem>>, %arg5: memref<1x128xf32, #tpu.memory_space<vmem>>, %arg6: memref<1x512x128xf32, #tpu.memory_space<vmem>>, %arg7: memref<512x128xf32, #tpu.memory_space<vmem>>) attributes {dimension_semantics = [#tpu.dimension_semantics<parallel>, #tpu.dimension_semantics<parallel>, #tpu.dimension_semantics<arbitrary>], iteration_bounds = array<i64: 4, 1, 1>, scalar_prefetch = 0 : i64, scratch_operands = 1 : i64, tpu.core_type = #tpu.core_type<tc>, window_params = [{transform_indices = @transform_0, window_bounds = array<i64: 1, 512, 64>}, {transform_indices = @transform_1, window_bounds = array<i64: 1, 64, 128>}, {pipeline_mode = #tpu.pipeline_mode<synchronous>, transform_indices = @transform_2, window_bounds = array<i64: 1, 128>}, {transform_indices = @transform_3, window_bounds = array<i64: 1, 512, 128>}]} {
    %c0_i32 = arith.constant 0 : i32
    %0 = arith.cmpi eq, %arg2, %c0_i32 : i32
    %1 = arith.extui %0 : i1 to i32
    %c0_i32_0 = arith.constant 0 : i32
    %2 = arith.cmpi ne, %1, %c0_i32_0 : i32
    scf.if %2 {
      %cst_12 = arith.constant 0.000000e+00 : f32
      %14 = vector.broadcast %cst_12 : f32 to vector<512x128xf32>
      %c0_13 = arith.constant 0 : index
      %c0_14 = arith.constant 0 : index
      %15 = vector.load %arg7[%c0_13, %c0_14] : memref<512x128xf32, #tpu.memory_space<vmem>>, vector<512x128xf32>
      tpu.vector_store %arg7[%c0_13, %c0_14], %14 {strides = array<i32>} : memref<512x128xf32, #tpu.memory_space<vmem>>, vector<512x128xf32>,
    } else {
    }
    %c0 = arith.constant 0 : index
    %c0_1 = arith.constant 0 : index
    %3 = vector.load %arg7[%c0, %c0_1] : memref<512x128xf32, #tpu.memory_space<vmem>>, vector<512x128xf32>
    %c0_2 = arith.constant 0 : index
    %c0_3 = arith.constant 0 : index
    %c0_4 = arith.constant 0 : index
    %4 = vector.load %arg3[%c0_2, %c0_3, %c0_4] : memref<1x512x64xbf16, #tpu.memory_space<vmem>>, vector<1x512x64xbf16>
    %5 = vector.shape_cast %4 : vector<1x512x64xbf16> to vector<512x64xbf16>
    %c0_5 = arith.constant 0 : index
    %c0_6 = arith.constant 0 : index
    %c0_7 = arith.constant 0 : index
    %6 = vector.load %arg4[%c0_5, %c0_6, %c0_7] : memref<1x64x128xbf16, #tpu.memory_space<vmem>>, vector<1x64x128xbf16>
    %7 = vector.shape_cast %6 : vector<1x64x128xbf16> to vector<64x128xbf16>
    %cst = arith.constant dense<0.000000e+00> : vector<512x128xf32>
    %8 = tpu.matmul %5, %7, %cst {dimension_numbers = #tpu.dot_dimension_numbers<[1], [0], [0], [1], [0, 0, 1, 1], [], []>} : vector<512x64xbf16>, vector<64x128xbf16>, vector<512x128xf32> -> vector<512x128xf32>
    %9 = arith.addf %3, %8 : vector<512x128xf32>
    %c0_8 = arith.constant 0 : index
    %c0_9 = arith.constant 0 : index
    %10 = vector.load %arg7[%c0_8, %c0_9] : memref<512x128xf32, #tpu.memory_space<vmem>>, vector<512x128xf32>
    tpu.vector_store %arg7[%c0_8, %c0_9], %9 {strides = array<i32>} : memref<512x128xf32, #tpu.memory_space<vmem>>, vector<512x128xf32>,
    %c0_i32_10 = arith.constant 0 : i32
    %11 = arith.cmpi eq, %arg2, %c0_i32_10 : i32
    %12 = arith.extui %11 : i1 to i32
    %c0_i32_11 = arith.constant 0 : i32
    %13 = arith.cmpi ne, %12, %c0_i32_11 : i32
    scf.if %13 {
      %c0_12 = arith.constant 0 : index
      %c0_13 = arith.constant 0 : index
      %14 = vector.load %arg7[%c0_12, %c0_13] : memref<512x128xf32, #tpu.memory_space<vmem>>, vector<512x128xf32>
      %c0_14 = arith.constant 0 : index
      %c0_15 = arith.constant 0 : index
      %15 = vector.load %arg5[%c0_14, %c0_15] : memref<1x128xf32, #tpu.memory_space<vmem>>, vector<1x128xf32>
      %16 = vector.broadcast %15 : vector<1x128xf32> to vector<512x128xf32>
      %17 = arith.addf %14, %16 : vector<512x128xf32>
      %18 = math.tanh %17 : vector<512x128xf32>
      %c0_16 = arith.constant 0 : index
      %c0_17 = arith.constant 0 : index
      %c0_18 = arith.constant 0 : index
      %19 = vector.load %arg6[%c0_16, %c0_17, %c0_18] : memref<1x512x128xf32, #tpu.memory_space<vmem>>, vector<1x512x128xf32>
      %20 = vector.shape_cast %19 : vector<1x512x128xf32> to vector<512x128xf32>
      %21 = vector.shape_cast %18 : vector<512x128xf32> to vector<1x512x128xf32>
      tpu.vector_store %arg6[%c0_16, %c0_17, %c0_18], %21 {strides = array<i32>} : memref<1x512x128xf32, #tpu.memory_space<vmem>>, vector<1x512x128xf32>,
    } else {
    }
    return
  }
  func.func @transform_0(%arg0: i32, %arg1: i32, %arg2: i32) -> (i32, i32, i32) {
    %c0_i32 = arith.constant 0 : i32
    return %arg0, %arg1, %arg2 : i32, i32, i32
  }
  func.func @transform_1(%arg0: i32, %arg1: i32, %arg2: i32) -> (i32, i32, i32) {
    %c0_i32 = arith.constant 0 : i32
    %c0_i32_0 = arith.constant 0 : i32
    return %arg0, %arg2, %c0_i32 : i32, i32, i32
  }
  func.func @transform_2(%arg0: i32, %arg1: i32, %arg2: i32) -> (i32, i32) {
    %c0_i32 = arith.constant 0 : i32
    %c0_i32_0 = arith.constant 0 : i32
    %c0_i32_1 = arith.constant 0 : i32
    return %c0_i32, %c0_i32_0 : i32, i32
  }
  func.func @transform_3(%arg0: i32, %arg1: i32, %arg2: i32) -> (i32, i32, i32) {
    %c0_i32 = arith.constant 0 : i32
    %c0_i32_0 = arith.constant 0 : i32
    return %arg0, %arg1, %c0_i32 : i32, i32, i32
  }
}

</mosaic_0001>

<llo_original>
// kernel: _lambda_.24
$region0: #{_lambda_.24}
  #allocation0 [shape = 'u32[]', space=smem, size = 0x4, offset = 0x4, fixed_abs, tag = 'smem constant byte address 0x4 - core index']
  #allocation1 [shape = 'u32[144,128]{1,0:T(1,128)}', space=vmem, size = 0x12000, scoped, tag = 'internal scratch']
  #allocation2 [shape = 'f32[512,128]{1,0:T(8,128)}', space=vmem, size = 0x40000, scoped, tag = 'scratch operand']
  %s0 = inlined_call_operand.vmem [shape: bf16[1,512,64], index: 0, kind: input, shape index: {}]
  %s1 = inlined_call_operand.vmem [shape: bf16[1,64,128], index: 1, kind: input, shape index: {}]
  %s2 = inlined_call_operand.vmem [shape: f32[1,128], index: 2, kind: input, shape index: {}]
  %s3 = inlined_call_operand.vmem [shape: f32[1,512,128], index: 3, kind: output, shape index: {}]
  %s4 = sld [smem:[#allocation0]]
  $region30: #{_lambda_.24} parent=0
    _
  %s6 = ssub.s32 1, %s4
  %s7 = scalar_select 0, %s6, %s4
  // Predicated region
  $region2: #{_lambda_.24} parent=0 // pred_check
    _
  $region3: #{_lambda_.24} parent=0 // pred_check_branch
    %9 = sbr.rel (0) target = $region5
  $region4: #{_lambda_.24} parent=0 // pred_region
    _
  $region5: #{_lambda_.24} parent=0 // pred_fallthru
    _
  // Predicated region
  $region6: #{_lambda_.24} parent=0 // pred_check
    _
  $region7: #{_lambda_.24} parent=0 // pred_check_branch
    %11 = sbr.rel (0) target = $region9
  $region8: #{_lambda_.24} parent=0 // pred_region
    _
  $region9: #{_lambda_.24} parent=0 // pred_fallthru
    _
  // Predicated region
  $region10: #{_lambda_.24} parent=0 // pred_check
    _
  $region11: #{_lambda_.24} parent=0 // pred_check_branch
    %13 = sbr.rel (0) target = $region13
  $region12: #{_lambda_.24} parent=0 // pred_region
    _
  $region13: #{_lambda_.24} parent=0 // pred_fallthru
    _
  %p15 = scmp.eq.s32.totalorder 0, 0
  // Predicated region
  $region14: #{_lambda_.24} parent=0 // pred_check
    %p16 = pneg %p15
  $region15: #{_lambda_.24} parent=0 // pred_check_branch
    %18 = sbr.rel (%p16) target = $region17
  $region16: #{_lambda_.24} parent=0 // pred_region
    %19 = vst [vmem:[#allocation2] sm:$0xff] 0.0
    %20 = vst [vmem:[#allocation2 + $0x8] sm:$0xff] 0.0
    %21 = vst [vmem:[#allocation2 + $0x10] sm:$0xff] 0.0
    %22 = vst [vmem:[#allocation2 + $0x18] sm:$0xff] 0.0
    %23 = vst [vmem:[#allocation2 + $0x20] sm:$0xff] 0.0
    %24 = vst [vmem:[#allocation2 + $0x28] sm:$0xff] 0.0
    %25 = vst [vmem:[#allocation2 + $0x30] sm:$0xff] 0.0
    %26 = vst [vmem:[#allocation2 + $0x38] sm:$0xff] 0.0
    %27 = vst [vmem:[#allocation2 + $0x40] sm:$0xff] 0.0
    %28 = vst [vmem:[#allocation2 + $0x48] sm:$0xff] 0.0
    %29 = vst [vmem:[#allocation2 + $0x50] sm:$0xff] 0.0
    %30 = vst [vmem:[#allocation2 + $0x58] sm:$0xff] 0.0
    %31 = vst [vmem:[#allocation2 + $0x60] sm:$0xff] 0.0
    %32 = vst [vmem:[#allocation2 + $0x68] sm:$0xff] 0.0
    %33 = vst [vmem:[#allocation2 + $0x70] sm:$0xff] 0.0
    %34 = vst [vmem:[#allocation2 + $0x78] sm:$0xff] 0.0
    %35 = vst [vmem:[#allocation2 + $0x80] sm:$0xff] 0.0
    %36 = vst [vmem:[#allocation2 + $0x88] sm:$0xff] 0.0
    %37 = vst [vmem:[#allocation2 + $0x90] sm:$0xff] 0.0
    %38 = vst [vmem:[#allocation2 + $0x98] sm:$0xff] 0.0
    %39 = vst [vmem:[#allocation2 + $0xa0] sm:$0xff] 0.0
    %40 = vst [vmem:[#allocation2 + $0xa8] sm:$0xff] 0.0
    %41 = vst [vmem:[#allocation2 + $0xb0] sm:$0xff] 0.0
    %42 = vst [vmem:[#allocation2 + $0xb8] sm:$0xff] 0.0
    %43 = vst [vmem:[#allocation2 + $0xc0] sm:$0xff] 0.0
    %44 = vst [vmem:[#allocation2 + $0xc8] sm:$0xff] 0.0
    %45 = vst [vmem:[#allocation2 + $0xd0] sm:$0xff] 0.0
    %46 = vst [vmem:[#allocation2 + $0xd8] sm:$0xff] 0.0
    %47 = vst [vmem:[#allocation2 + $0xe0] sm:$0xff] 0.0
    %48 = vst [vmem:[#allocation2 + $0xe8] sm:$0xff] 0.0
    %49 = vst [vmem:[#allocation2 + $0xf0] sm:$0xff] 0.0
    %50 = vst [vmem:[#allocation2 + $0xf8] sm:$0xff] 0.0
    %51 = vst [vmem:[#allocation2 + $0x100] sm:$0xff] 0.0
    %52 = vst [vmem:[#allocation2 + $0x108] sm:$0xff] 0.0
    %53 = vst [vmem:[#allocation2 + $0x110] sm:$0xff] 0.0
    %54 = vst [vmem:[#allocation2 + $0x118] sm:$0xff] 0.0
    %55 = vst [vmem:[#allocation2 + $0x120] sm:$0xff] 0.0
    %56 = vst [vmem:[#allocation2 + $0x128] sm:$0xff] 0.0
    %57 = vst [vmem:[#allocation2 + $0x130] sm:$0xff] 0.0
    %58 = vst [vmem:[#allocation2 + $0x138] sm:$0xff] 0.0
    %59 = vst [vmem:[#allocation2 + $0x140] sm:$0xff] 0.0
    %60 = vst [vmem:[#allocation2 + $0x148] sm:$0xff] 0.0
    %61 = vst [vmem:[#allocation2 + $0x150] sm:$0xff] 0.0
    %62 = vst [vmem:[#allocation2 + $0x158] sm:$0xff] 0.0
    %63 = vst [vmem:[#allocation2 + $0x160] sm:$0xff] 0.0
    %64 = vst [vmem:[#allocation2 + $0x168] sm:$0xff] 0.0
    %65 = vst [vmem:[#allocation2 + $0x170] sm:$0xff] 0.0
    %66 = vst [vmem:[#allocation2 + $0x178] sm:$0xff] 0.0
    %67 = vst [vmem:[#allocation2 + $0x180] sm:$0xff] 0.0
    %68 = vst [vmem:[#allocation2 + $0x188] sm:$0xff] 0.0
    %69 = vst [vmem:[#allocation2 + $0x190] sm:$0xff] 0.0
    %70 = vst [vmem:[#allocation2 + $0x198] sm:$0xff] 0.0
    %71 = vst [vmem:[#allocation2 + $0x1a0] sm:$0xff] 0.0
    %72 = vst [vmem:[#allocation2 + $0x1a8] sm:$0xff] 0.0
    %73 = vst [vmem:[#allocation2 + $0x1b0] sm:$0xff] 0.0
    %74 = vst [vmem:[#allocation2 + $0x1b8] sm:$0xff] 0.0
    %75 = vst [vmem:[#allocation2 + $0x1c0] sm:$0xff] 0.0
    %76 = vst [vmem:[#allocation2 + $0x1c8] sm:$0xff] 0.0
    %77 = vst [vmem:[#allocation2 + $0x1d0] sm:$0xff] 0.0
    %78 = vst [vmem:[#allocation2 + $0x1d8] sm:$0xff] 0.0
    %79 = vst [vmem:[#allocation2 + $0x1e0] sm:$0xff] 0.0
    %80 = vst [vmem:[#allocation2 + $0x1e8] sm:$0xff] 0.0
    %81 = vst [vmem:[#allocation2 + $0x1f0] sm:$0xff] 0.0
    %82 = vst [vmem:[#allocation2 + $0x1f8] sm:$0xff] 0.0
  $region17: #{_lambda_.24} parent=0 // pred_fallthru
    _
  %v83 = vld [vmem:[#allocation2] sm:$0xff]
  %v84 = vld [vmem:[#allocation2 + $0x8] sm:$0xff]
  %v85 = vld [vmem:[#allocation2 + $0x10] sm:$0xff]
  %v86 = vld [vmem:[#allocation2 + $0x18] sm:$0xff]
  %v87 = vld [vmem:[#allocation2 + $0x20] sm:$0xff]
  %v88 = vld [vmem:[#allocation2 + $0x28] sm:$0xff]
  %v89 = vld [vmem:[#allocation2 + $0x30] sm:$0xff]
  %v90 = vld [vmem:[#allocation2 + $0x38] sm:$0xff]
  %v91 = vld [vmem:[#allocation2 + $0x40] sm:$0xff]
  %v92 = vld [vmem:[#allocation2 + $0x48] sm:$0xff]
  %v93 = vld [vmem:[#allocation2 + $0x50] sm:$0xff]
  %v94 = vld [vmem:[#allocation2 + $0x58] sm:$0xff]
  %v95 = vld [vmem:[#allocation2 + $0x60] sm:$0xff]
  %v96 = vld [vmem:[#allocation2 + $0x68] sm:$0xff]
  %v97 = vld [vmem:[#allocation2 + $0x70] sm:$0xff]
  %v98 = vld [vmem:[#allocation2 + $0x78] sm:$0xff]
  %v99 = vld [vmem:[#allocation2 + $0x80] sm:$0xff]
  %v100 = vld [vmem:[#allocation2 + $0x88] sm:$0xff]
  %v101 = vld [vmem:[#allocation2 + $0x90] sm:$0xff]
  %v102 = vld [vmem:[#allocation2 + $0x98] sm:$0xff]
  %v103 = vld [vmem:[#allocation2 + $0xa0] sm:$0xff]
  %v104 = vld [vmem:[#allocation2 + $0xa8] sm:$0xff]
  %v105 = vld [vmem:[#allocation2 + $0xb0] sm:$0xff]
  %v106 = vld [vmem:[#allocation2 + $0xb8] sm:$0xff]
  %v107 = vld [vmem:[#allocation2 + $0xc0] sm:$0xff]
  %v108 = vld [vmem:[#allocation2 + $0xc8] sm:$0xff]
  %v109 = vld [vmem:[#allocation2 + $0xd0] sm:$0xff]
  %v110 = vld [vmem:[#allocation2 + $0xd8] sm:$0xff]
  %v111 = vld [vmem:[#allocation2 + $0xe0] sm:$0xff]
  %v112 = vld [vmem:[#allocation2 + $0xe8] sm:$0xff]
  %v113 = vld [vmem:[#allocation2 + $0xf0] sm:$0xff]
  %v114 = vld [vmem:[#allocation2 + $0xf8] sm:$0xff]
  %v115 = vld [vmem:[#allocation2 + $0x100] sm:$0xff]
  %v116 = vld [vmem:[#allocation2 + $0x108] sm:$0xff]
  %v117 = vld [vmem:[#allocation2 + $0x110] sm:$0xff]
  %v118 = vld [vmem:[#allocation2 + $0x118] sm:$0xff]
  %v119 = vld [vmem:[#allocation2 + $0x120] sm:$0xff]
  %v120 = vld [vmem:[#allocation2 + $0x128] sm:$0xff]
  %v121 = vld [vmem:[#allocation2 + $0x130] sm:$0xff]
  %v122 = vld [vmem:[#allocation2 + $0x138] sm:$0xff]
  %v123 = vld [vmem:[#allocation2 + $0x140] sm:$0xff]
  %v124 = vld [vmem:[#allocation2 + $0x148] sm:$0xff]
  %v125 = vld [vmem:[#allocation2 + $0x150] sm:$0xff]
  %v126 = vld [vmem:[#allocation2 + $0x158] sm:$0xff]
  %v127 = vld [vmem:[#allocation2 + $0x160] sm:$0xff]
  %v128 = vld [vmem:[#allocation2 + $0x168] sm:$0xff]
  %v129 = vld [vmem:[#allocation2 + $0x170] sm:$0xff]
  %v130 = vld [vmem:[#allocation2 + $0x178] sm:$0xff]
  %v131 = vld [vmem:[#allocation2 + $0x180] sm:$0xff]
  %v132 = vld [vmem:[#allocation2 + $0x188] sm:$0xff]
  %v133 = vld [vmem:[#allocation2 + $0x190] sm:$0xff]
  %v134 = vld [vmem:[#allocation2 + $0x198] sm:$0xff]
  %v135 = vld [vmem:[#allocation2 + $0x1a0] sm:$0xff]
  %v136 = vld [vmem:[#allocation2 + $0x1a8] sm:$0xff]
  %v137 = vld [vmem:[#allocation2 + $0x1b0] sm:$0xff]
  %v138 = vld [vmem:[#allocation2 + $0x1b8] sm:$0xff]
  %v139 = vld [vmem:[#allocation2 + $0x1c0] sm:$0xff]
  %v140 = vld [vmem:[#allocation2 + $0x1c8] sm:$0xff]
  %v141 = vld [vmem:[#allocation2 + $0x1d0] sm:$0xff]
  %v142 = vld [vmem:[#allocation2 + $0x1d8] sm:$0xff]
  %v143 = vld [vmem:[#allocation2 + $0x1e0] sm:$0xff]
  %v144 = vld [vmem:[#allocation2 + $0x1e8] sm:$0xff]
  %v145 = vld [vmem:[#allocation2 + $0x1f0] sm:$0xff]
  %v146 = vld [vmem:[#allocation2 + $0x1f8] sm:$0xff]
  %v147 = vld [vmem:[%s0] sm:$0xf]
  %v148 = vld [vmem:[%s0 + $0x4] sm:$0xf]
  %v149 = vld [vmem:[%s0 + $0x8] sm:$0xf]
  %v150 = vld [vmem:[%s0 + $0xc] sm:$0xf]
  %v151 = vld [vmem:[%s0 + $0x10] sm:$0xf]
  %v152 = vld [vmem:[%s0 + $0x14] sm:$0xf]
  %v153 = vld [vmem:[%s0 + $0x18] sm:$0xf]
  %v154 = vld [vmem:[%s0 + $0x1c] sm:$0xf]
  %v155 = vld [vmem:[%s0 + $0x20] sm:$0xf]
  %v156 = vld [vmem:[%s0 + $0x24] sm:$0xf]
  %v157 = vld [vmem:[%s0 + $0x28] sm:$0xf]
  %v158 = vld [vmem:[%s0 + $0x2c] sm:$0xf]
  %v159 = vld [vmem:[%s0 + $0x30] sm:$0xf]
  %v160 = vld [vmem:[%s0 + $0x34] sm:$0xf]
  %v161 = vld [vmem:[%s0 + $0x38] sm:$0xf]
  %v162 = vld [vmem:[%s0 + $0x3c] sm:$0xf]
  %v163 = vld [vmem:[%s0 + $0x40] sm:$0xf]
  %v164 = vld [vmem:[%s0 + $0x44] sm:$0xf]
  %v165 = vld [vmem:[%s0 + $0x48] sm:$0xf]
  %v166 = vld [vmem:[%s0 + $0x4c] sm:$0xf]
  %v167 = vld [vmem:[%s0 + $0x50] sm:$0xf]
  %v168 = vld [vmem:[%s0 + $0x54] sm:$0xf]
  %v169 = vld [vmem:[%s0 + $0x58] sm:$0xf]
  %v170 = vld [vmem:[%s0 + $0x5c] sm:$0xf]
  %v171 = vld [vmem:[%s0 + $0x60] sm:$0xf]
  %v172 = vld [vmem:[%s0 + $0x64] sm:$0xf]
  %v173 = vld [vmem:[%s0 + $0x68] sm:$0xf]
  %v174 = vld [vmem:[%s0 + $0x6c] sm:$0xf]
  %v175 = vld [vmem:[%s0 + $0x70] sm:$0xf]
  %v176 = vld [vmem:[%s0 + $0x74] sm:$0xf]
  %v177 = vld [vmem:[%s0 + $0x78] sm:$0xf]
  %v178 = vld [vmem:[%s0 + $0x7c] sm:$0xf]
  %v179 = vld [vmem:[%s0 + $0x80] sm:$0xf]
  %v180 = vld [vmem:[%s0 + $0x84] sm:$0xf]
  %v181 = vld [vmem:[%s0 + $0x88] sm:$0xf]
  %v182 = vld [vmem:[%s0 + $0x8c] sm:$0xf]
  %v183 = vld [vmem:[%s0 + $0x90] sm:$0xf]
  %v184 = vld [vmem:[%s0 + $0x94] sm:$0xf]
  %v185 = vld [vmem:[%s0 + $0x98] sm:$0xf]
  %v186 = vld [vmem:[%s0 + $0x9c] sm:$0xf]
  %v187 = vld [vmem:[%s0 + $0xa0] sm:$0xf]
  %v188 = vld [vmem:[%s0 + $0xa4] sm:$0xf]
  %v189 = vld [vmem:[%s0 + $0xa8] sm:$0xf]
  %v190 = vld [vmem:[%s0 + $0xac] sm:$0xf]
  %v191 = vld [vmem:[%s0 + $0xb0] sm:$0xf]
  %v192 = vld [vmem:[%s0 + $0xb4] sm:$0xf]
  %v193 = vld [vmem:[%s0 + $0xb8] sm:$0xf]
  %v194 = vld [vmem:[%s0 + $0xbc] sm:$0xf]
  %v195 = vld [vmem:[%s0 + $0xc0] sm:$0xf]
  %v196 = vld [vmem:[%s0 + $0xc4] sm:$0xf]
  %v197 = vld [vmem:[%s0 + $0xc8] sm:$0xf]
  %v198 = vld [vmem:[%s0 + $0xcc] sm:$0xf]
  %v199 = vld [vmem:[%s0 + $0xd0] sm:$0xf]
  %v200 = vld [vmem:[%s0 + $0xd4] sm:$0xf]
  %v201 = vld [vmem:[%s0 + $0xd8] sm:$0xf]
  %v202 = vld [vmem:[%s0 + $0xdc] sm:$0xf]
  %v203 = vld [vmem:[%s0 + $0xe0] sm:$0xf]
  %v204 = vld [vmem:[%s0 + $0xe4] sm:$0xf]
  %v205 = vld [vmem:[%s0 + $0xe8] sm:$0xf]
  %v206 = vld [vmem:[%s0 + $0xec] sm:$0xf]
  %v207 = vld [vmem:[%s0 + $0xf0] sm:$0xf]
  %v208 = vld [vmem:[%s0 + $0xf4] sm:$0xf]
  %v209 = vld [vmem:[%s0 + $0xf8] sm:$0xf]
  %v210 = vld [vmem:[%s0 + $0xfc] sm:$0xf]
  %v211 = vld [vmem:[%s1] sm:$0xf]
  %v212 = vld [vmem:[%s1 + $0x4] sm:$0xf]
  %v213 = vld [vmem:[%s1 + $0x8] sm:$0xf]
  %v214 = vld [vmem:[%s1 + $0xc] sm:$0xf]
  %v215 = vld [vmem:[%s1 + $0x10] sm:$0xf]
  %v216 = vld [vmem:[%s1 + $0x14] sm:$0xf]
  %v217 = vld [vmem:[%s1 + $0x18] sm:$0xf]
  %v218 = vld [vmem:[%s1 + $0x1c] sm:$0xf]
  %v283 = vunpack.c.l.b16 %v147
  %v284 = vunpack.c.l.b16 %v148
  %v285 = vunpack.c.l.b16 %v149
  %v286 = vunpack.c.l.b16 %v150
  %v287 = vunpack.c.l.b16 %v151
  %v288 = vunpack.c.l.b16 %v152
  %v289 = vunpack.c.l.b16 %v153
  %v290 = vunpack.c.l.b16 %v154
  %v291 = vunpack.c.l.b16 %v155
  %v292 = vunpack.c.l.b16 %v156
  %v293 = vunpack.c.l.b16 %v157
  %v294 = vunpack.c.l.b16 %v158
  %v295 = vunpack.c.l.b16 %v159
  %v296 = vunpack.c.l.b16 %v160
  %v297 = vunpack.c.l.b16 %v161
  %v298 = vunpack.c.l.b16 %v162
  %v299 = vunpack.c.l.b16 %v163
  %v300 = vunpack.c.l.b16 %v164
  %v301 = vunpack.c.l.b16 %v165
  %v302 = vunpack.c.l.b16 %v166
  %v303 = vunpack.c.l.b16 %v167
  %v304 = vunpack.c.l.b16 %v168
  %v305 = vunpack.c.l.b16 %v169
  %v306 = vunpack.c.l.b16 %v170
  %v307 = vunpack.c.l.b16 %v171
  %v308 = vunpack.c.l.b16 %v172
  %v309 = vunpack.c.l.b16 %v173
  %v310 = vunpack.c.l.b16 %v174
  %v311 = vunpack.c.l.b16 %v175
  %v312 = vunpack.c.l.b16 %v176
  %v313 = vunpack.c.l.b16 %v177
  %v314 = vunpack.c.l.b16 %v178
  %v315 = vunpack.c.l.b16 %v179
  %v316 = vunpack.c.l.b16 %v180
  %v317 = vunpack.c.l.b16 %v181
  %v318 = vunpack.c.l.b16 %v182
  %v319 = vunpack.c.l.b16 %v183
  %v320 = vunpack.c.l.b16 %v184
  %v321 = vunpack.c.l.b16 %v185
  %v322 = vunpack.c.l.b16 %v186
  %v323 = vunpack.c.l.b16 %v187
  %v324 = vunpack.c.l.b16 %v188
  %v325 = vunpack.c.l.b16 %v189
  %v326 = vunpack.c.l.b16 %v190
  %v327 = vunpack.c.l.b16 %v191
  %v328 = vunpack.c.l.b16 %v192
  %v329 = vunpack.c.l.b16 %v193
  %v330 = vunpack.c.l.b16 %v194
  %v331 = vunpack.c.l.b16 %v195
  %v332 = vunpack.c.l.b16 %v196
  %v333 = vunpack.c.l.b16 %v197
  %v334 = vunpack.c.l.b16 %v198
  %v335 = vunpack.c.l.b16 %v199
  %v336 = vunpack.c.l.b16 %v200
  %v337 = vunpack.c.l.b16 %v201
  %v338 = vunpack.c.l.b16 %v202
  %v339 = vunpack.c.l.b16 %v203
  %v340 = vunpack.c.l.b16 %v204
  %v341 = vunpack.c.l.b16 %v205
  %v342 = vunpack.c.l.b16 %v206
  %v343 = vunpack.c.l.b16 %v207
  %v344 = vunpack.c.l.b16 %v208
  %v345 = vunpack.c.l.b16 %v209
  %v346 = vunpack.c.l.b16 %v210
  %v347 = vpack.c.b16 %v284, %v283
  %v348 = vpack.c.b16 %v286, %v285
  %v349 = vpack.c.b16 %v288, %v287
  %v350 = vpack.c.b16 %v290, %v289
  %v351 = vpack.c.b16 %v292, %v291
  %v352 = vpack.c.b16 %v294, %v293
  %v353 = vpack.c.b16 %v296, %v295
  %v354 = vpack.c.b16 %v298, %v297
  %v355 = vpack.c.b16 %v300, %v299
  %v356 = vpack.c.b16 %v302, %v301
  %v357 = vpack.c.b16 %v304, %v303
  %v358 = vpack.c.b16 %v306, %v305
  %v359 = vpack.c.b16 %v308, %v307
  %v360 = vpack.c.b16 %v310, %v309
  %v361 = vpack.c.b16 %v312, %v311
  %v362 = vpack.c.b16 %v314, %v313
  %v363 = vpack.c.b16 %v316, %v315
  %v364 = vpack.c.b16 %v318, %v317
  %v365 = vpack.c.b16 %v320, %v319
  %v366 = vpack.c.b16 %v322, %v321
  %v367 = vpack.c.b16 %v324, %v323
  %v368 = vpack.c.b16 %v326, %v325
  %v369 = vpack.c.b16 %v328, %v327
  %v370 = vpack.c.b16 %v330, %v329
  %v371 = vpack.c.b16 %v332, %v331
  %v372 = vpack.c.b16 %v334, %v333
  %v373 = vpack.c.b16 %v336, %v335
  %v374 = vpack.c.b16 %v338, %v337
  %v375 = vpack.c.b16 %v340, %v339
  %v376 = vpack.c.b16 %v342, %v341
  %v377 = vpack.c.b16 %v344, %v343
  %v378 = vpack.c.b16 %v346, %v345
  %v387 = vunpack.c.l.b16 %v211
  %v388 = vunpack.c.l.b16 %v212
  %v389 = vunpack.c.l.b16 %v213
  %v390 = vunpack.c.l.b16 %v214
  %v391 = vunpack.c.l.b16 %v215
  %v392 = vunpack.c.l.b16 %v216
  %v393 = vunpack.c.l.b16 %v217
  %v394 = vunpack.c.l.b16 %v218
  %v395 = vpack.c.b16 %v388, %v387
  %v396 = vpack.c.b16 %v390, %v389
  %v397 = vpack.c.b16 %v392, %v391
  %v398 = vpack.c.b16 %v394, %v393
  %vm403 = vcmask 523264
  %v405 = vsel %vm403, %v347, 0
  %v408 = vsel %vm403, %v348, 0
  %v411 = vsel %vm403, %v349, 0
  %v414 = vsel %vm403, %v350, 0
  %v417 = vsel %vm403, %v351, 0
  %v420 = vsel %vm403, %v352, 0
  %v423 = vsel %vm403, %v353, 0
  %v426 = vsel %vm403, %v354, 0
  %v429 = vsel %vm403, %v355, 0
  %v432 = vsel %vm403, %v356, 0
  %v435 = vsel %vm403, %v357, 0
  %v438 = vsel %vm403, %v358, 0
  %v441 = vsel %vm403, %v359, 0
  %v444 = vsel %vm403, %v360, 0
  %v447 = vsel %vm403, %v361, 0
  %v450 = vsel %vm403, %v362, 0
  %v453 = vsel %vm403, %v363, 0
  %v456 = vsel %vm403, %v364, 0
  %v459 = vsel %vm403, %v365, 0
  %v462 = vsel %vm403, %v366, 0
  %v465 = vsel %vm403, %v367, 0
  %v468 = vsel %vm403, %v368, 0
  %v471 = vsel %vm403, %v369, 0
  %v474 = vsel %vm403, %v370, 0
  %v477 = vsel %vm403, %v371, 0
  %v480 = vsel %vm403, %v372, 0
  %v483 = vsel %vm403, %v373, 0
  %v486 = vsel %vm403, %v374, 0
  %v489 = vsel %vm403, %v375, 0
  %v492 = vsel %vm403, %v376, 0
  %v495 = vsel %vm403, %v377, 0
  %v498 = vsel %vm403, %v378, 0
  %500 = vmatprep.subr.bf16.mxu0 0
  %501 = vmatpush1.bf16.msra.mxu0 %v395
  %502 = vmatprep.subr.bf16.mxu0 0
  %503 = vmatpush1.bf16.msra.mxu0 %v396
  %504 = vmatprep.subr.bf16.mxu0 0
  %505 = vmatpush1.bf16.msra.mxu0 %v397
  %506 = vmatprep.subr.bf16.mxu0 0
  %507 = vmatpush1.bf16.msra.mxu0 %v398
  %508 = vmatprep.subr.bf16.mxu0 0
  %509 = vmatpush1.bf16.msra.mxu0 0
  %510 = vmatprep.subr.bf16.mxu0 0
  %511 = vmatpush1.bf16.msra.mxu0 0
  %512 = vmatprep.subr.bf16.mxu0 0
  %513 = vmatpush1.bf16.msra.mxu0 0
  %514 = vmatprep.subr.bf16.mxu0 0
  %515 = vmatpush1.bf16.msra.mxu0 0
  %516 = vmatprep.subr.bf16.mxu0 0
  %517 = vmatpush1.bf16.msra.mxu0 0
  %518 = vmatprep.subr.bf16.mxu0 0
  %519 = vmatpush1.bf16.msra.mxu0 0
  %520 = vmatprep.subr.bf16.mxu0 0
  %521 = vmatpush1.bf16.msra.mxu0 0
  %522 = vmatprep.subr.bf16.mxu0 0
  %523 = vmatpush1.bf16.msra.mxu0 0
  %524 = vmatprep.subr.bf16.mxu0 0
  %525 = vmatpush1.bf16.msra.mxu0 0
  %526 = vmatprep.subr.bf16.mxu0 0
  %527 = vmatpush1.bf16.msra.mxu0 0
  %528 = vmatprep.subr.bf16.mxu0 0
  %529 = vmatpush1.bf16.msra.mxu0 0
  %530 = vmatprep.subr.bf16.mxu0 0
  %531 = vmatpush1.bf16.msra.mxu0 0
  %532 = vmatprep.mubr.bf16.mxu0 0
  %533 = vmatmul.mubr.bf16.gmra.mrb[0].mxu0 %v405
  %v534 = vpop.f32.mrb[0].mxu0
  %v535 = vadd.f32 0.0, %v534
  %v536 = vpop.f32.mrb[0].mxu0
  %v537 = vpop.f32.mrb[0].mxu0
  %v538 = vadd.f32 0.0, %v537
  %v539 = vpop.f32.mrb[0].mxu0
  %540 = vmatprep.mubr.bf16.mxu0 0
  %541 = vmatmul.mubr.bf16.gmra.mrb[0].mxu0 %v408
  %v542 = vpop.f32.mrb[0].mxu0
  %v543 = vadd.f32 0.0, %v542
  %v544 = vpop.f32.mrb[0].mxu0
  %v545 = vpop.f32.mrb[0].mxu0
  %v546 = vadd.f32 0.0, %v545
  %v547 = vpop.f32.mrb[0].mxu0
  %548 = vmatprep.mubr.bf16.mxu0 0
  %549 = vmatmul.mubr.bf16.gmra.mrb[0].mxu0 %v411
  %v550 = vpop.f32.mrb[0].mxu0
  %v551 = vadd.f32 0.0, %v550
  %v552 = vpop.f32.mrb[0].mxu0
  %v553 = vpop.f32.mrb[0].mxu0
  %v554 = vadd.f32 0.0, %v553
  %v555 = vpop.f32.mrb[0].mxu0
  %556 = vmatprep.mubr.bf16.mxu0 0
  %557 = vmatmul.mubr.bf16.gmra.mrb[0].mxu0 %v414
  %v558 = vpop.f32.mrb[0].mxu0
  %v559 = vadd.f32 0.0, %v558
  %v560 = vpop.f32.mrb[0].mxu0
  %v561 = vpop.f32.mrb[0].mxu0
  %v562 = vadd.f32 0.0, %v561
  %v563 = vpop.f32.mrb[0].mxu0
  %564 = vmatprep.mubr.bf16.mxu0 0
  %565 = vmatmul.mubr.bf16.gmra.mrb[0].mxu0 %v417
  %v566 = vpop.f32.mrb[0].mxu0
  %v567 = vadd.f32 0.0, %v566
  %v568 = vpop.f32.mrb[0].mxu0
  %v569 = vpop.f32.mrb[0].mxu0
  %v570 = vadd.f32 0.0, %v569
  %v571 = vpop.f32.mrb[0].mxu0
  %572 = vmatprep.mubr.bf16.mxu0 0
  %573 = vmatmul.mubr.bf16.gmra.mrb[0].mxu0 %v420
  %v574 = vpop.f32.mrb[0].mxu0
  %v575 = vadd.f32 0.0, %v574
  %v576 = vpop.f32.mrb[0].mxu0
  %v577 = vpop.f32.mrb[0].mxu0
  %v578 = vadd.f32 0.0, %v577
  %v579 = vpop.f32.mrb[0].mxu0
  %580 = vmatprep.mubr.bf16.mxu0 0
  %581 = vmatmul.mubr.bf16.gmra.mrb[0].mxu0 %v423
  %v582 = vpop.f32.mrb[0].mxu0
  %v583 = vadd.f32 0.0, %v582
  %v584 = vpop.f32.mrb[0].mxu0
  %v585 = vpop.f32.mrb[0].mxu0
  %v586 = vadd.f32 0.0, %v585
  %v587 = vpop.f32.mrb[0].mxu0
  %588 = vmatprep.mubr.bf16.mxu0 0
  %589 = vmatmul.mubr.bf16.gmra.mrb[0].mxu0 %v426
  %v590 = vpop.f32.mrb[0].mxu0
  %v591 = vadd.f32 0.0, %v590
  %v592 = vpop.f32.mrb[0].mxu0
  %v593 = vpop.f32.mrb[0].mxu0
  %v594 = vadd.f32 0.0, %v593
  %v595 = vpop.f32.mrb[0].mxu0
  %596 = vmatprep.mubr.bf16.mxu0 0
  %597 = vmatmul.mubr.bf16.gmra.mrb[0].mxu0 %v429
  %v598 = vpop.f32.mrb[0].mxu0
  %v599 = vadd.f32 0.0, %v598
  %v600 = vpop.f32.mrb[0].mxu0
  %v601 = vpop.f32.mrb[0].mxu0
  %v602 = vadd.f32 0.0, %v601
  %v603 = vpop.f32.mrb[0].mxu0
  %604 = vmatprep.mubr.bf16.mxu0 0
  %605 = vmatmul.mubr.bf16.gmra.mrb[0].mxu0 %v432
  %v606 = vpop.f32.mrb[0].mxu0
  %v607 = vadd.f32 0.0, %v606
  %v608 = vpop.f32.mrb[0].mxu0
  %v609 = vpop.f32.mrb[0].mxu0
  %v610 = vadd.f32 0.0, %v609
  %v611 = vpop.f32.mrb[0].mxu0
  %612 = vmatprep.mubr.bf16.mxu0 0
  %613 = vmatmul.mubr.bf16.gmra.mrb[0].mxu0 %v435
  %v614 = vpop.f32.mrb[0].mxu0
  %v615 = vadd.f32 0.0, %v614
  %v616 = vpop.f32.mrb[0].mxu0
  %v617 = vpop.f32.mrb[0].mxu0
  %v618 = vadd.f32 0.0, %v617
  %v619 = vpop.f32.mrb[0].mxu0
  %620 = vmatprep.mubr.bf16.mxu0 0
  %621 = vmatmul.mubr.bf16.gmra.mrb[0].mxu0 %v438
  %v622 = vpop.f32.mrb[0].mxu0
  %v623 = vadd.f32 0.0, %v622
  %v624 = vpop.f32.mrb[0].mxu0
  %v625 = vpop.f32.mrb[0].mxu0
  %v626 = vadd.f32 0.0, %v625
  %v627 = vpop.f32.mrb[0].mxu0
  %628 = vmatprep.mubr.bf16.mxu0 0
  %629 = vmatmul.mubr.bf16.gmra.mrb[0].mxu0 %v441
  %v630 = vpop.f32.mrb[0].mxu0
  %v631 = vadd.f32 0.0, %v630
  %v632 = vpop.f32.mrb[0].mxu0
  %v633 = vpop.f32.mrb[0].mxu0
  %v634 = vadd.f32 0.0, %v633
  %v635 = vpop.f32.mrb[0].mxu0
  %636 = vmatprep.mubr.bf16.mxu0 0
  %637 = vmatmul.mubr.bf16.gmra.mrb[0].mxu0 %v444
  %v638 = vpop.f32.mrb[0].mxu0
  %v639 = vadd.f32 0.0, %v638
  %v640 = vpop.f32.mrb[0].mxu0
  %v641 = vpop.f32.mrb[0].mxu0
  %v642 = vadd.f32 0.0, %v641
  %v643 = vpop.f32.mrb[0].mxu0
  %644 = vmatprep.mubr.bf16.mxu0 0
  %645 = vmatmul.mubr.bf16.gmra.mrb[0].mxu0 %v447
  %v646 = vpop.f32.mrb[0].mxu0
  %v647 = vadd.f32 0.0, %v646
  %v648 = vpop.f32.mrb[0].mxu0
  %v649 = vpop.f32.mrb[0].mxu0
  %v650 = vadd.f32 0.0, %v649
  %v651 = vpop.f32.mrb[0].mxu0
  %652 = vmatprep.mubr.bf16.mxu0 0
  %653 = vmatmul.mubr.bf16.gmra.mrb[0].mxu0 %v450
  %v654 = vpop.f32.mrb[0].mxu0
  %v655 = vadd.f32 0.0, %v654
  %v656 = vpop.f32.mrb[0].mxu0
  %v657 = vpop.f32.mrb[0].mxu0
  %v658 = vadd.f32 0.0, %v657
  %v659 = vpop.f32.mrb[0].mxu0
  %660 = vmatprep.mubr.bf16.mxu0 0
  %661 = vmatmul.mubr.bf16.gmra.mrb[0].mxu0 %v453
  %v662 = vpop.f32.mrb[0].mxu0
  %v663 = vadd.f32 0.0, %v662
  %v664 = vpop.f32.mrb[0].mxu0
  %v665 = vpop.f32.mrb[0].mxu0
  %v666 = vadd.f32 0.0, %v665
  %v667 = vpop.f32.mrb[0].mxu0
  %668 = vmatprep.mubr.bf16.mxu0 0
  %669 = vmatmul.mubr.bf16.gmra.mrb[0].mxu0 %v456
  %v670 = vpop.f32.mrb[0].mxu0
  %v671 = vadd.f32 0.0, %v670
  %v672 = vpop.f32.mrb[0].mxu0
  %v673 = vpop.f32.mrb[0].mxu0
  %v674 = vadd.f32 0.0, %v673
  %v675 = vpop.f32.mrb[0].mxu0
  %676 = vmatprep.mubr.bf16.mxu0 0
  %677 = vmatmul.mubr.bf16.gmra.mrb[0].mxu0 %v459
  %v678 = vpop.f32.mrb[0].mxu0
  %v679 = vadd.f32 0.0, %v678
  %v680 = vpop.f32.mrb[0].mxu0
  %v681 = vpop.f32.mrb[0].mxu0
  %v682 = vadd.f32 0.0, %v681
  %v683 = vpop.f32.mrb[0].mxu0
  %684 = vmatprep.mubr.bf16.mxu0 0
  %685 = vmatmul.mubr.bf16.gmra.mrb[0].mxu0 %v462
  %v686 = vpop.f32.mrb[0].mxu0
  %v687 = vadd.f32 0.0, %v686
  %v688 = vpop.f32.mrb[0].mxu0
  %v689 = vpop.f32.mrb[0].mxu0
  %v690 = vadd.f32 0.0, %v689
  %v691 = vpop.f32.mrb[0].mxu0
  %692 = vmatprep.mubr.bf16.mxu0 0
  %693 = vmatmul.mubr.bf16.gmra.mrb[0].mxu0 %v465
  %v694 = vpop.f32.mrb[0].mxu0
  %v695 = vadd.f32 0.0, %v694
  %v696 = vpop.f32.mrb[0].mxu0
  %v697 = vpop.f32.mrb[0].mxu0
  %v698 = vadd.f32 0.0, %v697
  %v699 = vpop.f32.mrb[0].mxu0
  %700 = vmatprep.mubr.bf16.mxu0 0
  %701 = vmatmul.mubr.bf16.gmra.mrb[0].mxu0 %v468
  %v702 = vpop.f32.mrb[0].mxu0
  %v703 = vadd.f32 0.0, %v702
  %v704 = vpop.f32.mrb[0].mxu0
  %v705 = vpop.f32.mrb[0].mxu0
  %v706 = vadd.f32 0.0, %v705
  %v707 = vpop.f32.mrb[0].mxu0
  %708 = vmatprep.mubr.bf16.mxu0 0
  %709 = vmatmul.mubr.bf16.gmra.mrb[0].mxu0 %v471
  %v710 = vpop.f32.mrb[0].mxu0
  %v711 = vadd.f32 0.0, %v710
  %v712 = vpop.f32.mrb[0].mxu0
  %v713 = vpop.f32.mrb[0].mxu0
  %v714 = vadd.f32 0.0, %v713
  %v715 = vpop.f32.mrb[0].mxu0
  %716 = vmatprep.mubr.bf16.mxu0 0
  %717 = vmatmul.mubr.bf16.gmra.mrb[0].mxu0 %v474
  %v718 = vpop.f32.mrb[0].mxu0
  %v719 = vadd.f32 0.0, %v718
  %v720 = vpop.f32.mrb[0].mxu0
  %v721 = vpop.f32.mrb[0].mxu0
  %v722 = vadd.f32 0.0, %v721
  %v723 = vpop.f32.mrb[0].mxu0
  %724 = vmatprep.mubr.bf16.mxu0 0
  %725 = vmatmul.mubr.bf16.gmra.mrb[0].mxu0 %v477
  %v726 = vpop.f32.mrb[0].mxu0
  %v727 = vadd.f32 0.0, %v726
  %v728 = vpop.f32.mrb[0].mxu0
  %v729 = vpop.f32.mrb[0].mxu0
  %v730 = vadd.f32 0.0, %v729
  %v731 = vpop.f32.mrb[0].mxu0
  %732 = vmatprep.mubr.bf16.mxu0 0
  %733 = vmatmul.mubr.bf16.gmra.mrb[0].mxu0 %v480
  %v734 = vpop.f32.mrb[0].mxu0
  %v735 = vadd.f32 0.0, %v734
  %v736 = vpop.f32.mrb[0].mxu0
  %v737 = vpop.f32.mrb[0].mxu0
  %v738 = vadd.f32 0.0, %v737
  %v739 = vpop.f32.mrb[0].mxu0
  %740 = vmatprep.mubr.bf16.mxu0 0
  %741 = vmatmul.mubr.bf16.gmra.mrb[0].mxu0 %v483
  %v742 = vpop.f32.mrb[0].mxu0
  %v743 = vadd.f32 0.0, %v742
  %v744 = vpop.f32.mrb[0].mxu0
  %v745 = vpop.f32.mrb[0].mxu0
  %v746 = vadd.f32 0.0, %v745
  %v747 = vpop.f32.mrb[0].mxu0
  %748 = vmatprep.mubr.bf16.mxu0 0
  %749 = vmatmul.mubr.bf16.gmra.mrb[0].mxu0 %v486
  %v750 = vpop.f32.mrb[0].mxu0
  %v751 = vadd.f32 0.0, %v750
  %v752 = vpop.f32.mrb[0].mxu0
  %v753 = vpop.f32.mrb[0].mxu0
  %v754 = vadd.f32 0.0, %v753
  %v755 = vpop.f32.mrb[0].mxu0
  %756 = vmatprep.mubr.bf16.mxu0 0
  %757 = vmatmul.mubr.bf16.gmra.mrb[0].mxu0 %v489
  %v758 = vpop.f32.mrb[0].mxu0
  %v759 = vadd.f32 0.0, %v758
  %v760 = vpop.f32.mrb[0].mxu0
  %v761 = vpop.f32.mrb[0].mxu0
  %v762 = vadd.f32 0.0, %v761
  %v763 = vpop.f32.mrb[0].mxu0
  %764 = vmatprep.mubr.bf16.mxu0 0
  %765 = vmatmul.mubr.bf16.gmra.mrb[0].mxu0 %v492
  %v766 = vpop.f32.mrb[0].mxu0
  %v767 = vadd.f32 0.0, %v766
  %v768 = vpop.f32.mrb[0].mxu0
  %v769 = vpop.f32.mrb[0].mxu0
  %v770 = vadd.f32 0.0, %v769
  %v771 = vpop.f32.mrb[0].mxu0
  %772 = vmatprep.mubr.bf16.mxu0 0
  %773 = vmatmul.mubr.bf16.gmra.mrb[0].mxu0 %v495
  %v774 = vpop.f32.mrb[0].mxu0
  %v775 = vadd.f32 0.0, %v774
  %v776 = vpop.f32.mrb[0].mxu0
  %v777 = vpop.f32.mrb[0].mxu0
  %v778 = vadd.f32 0.0, %v777
  %v779 = vpop.f32.mrb[0].mxu0
  %780 = vmatprep.mubr.bf16.mxu0 0
  %781 = vmatmul.mubr.bf16.gmra.mrb[0].mxu0 %v498
  %v782 = vpop.f32.mrb[0].mxu0
  %v783 = vadd.f32 0.0, %v782
  %v784 = vpop.f32.mrb[0].mxu0
  %v785 = vpop.f32.mrb[0].mxu0
  %v786 = vadd.f32 0.0, %v785
  %v787 = vpop.f32.mrb[0].mxu0
  %788 = vdwg.mxu0
  %v789 = vadd.f32 %v83, %v535
  %v790 = vadd.f32 %v84, %v538
  %v791 = vadd.f32 %v85, %v543
  %v792 = vadd.f32 %v86, %v546
  %v793 = vadd.f32 %v87, %v551
  %v794 = vadd.f32 %v88, %v554
  %v795 = vadd.f32 %v89, %v559
  %v796 = vadd.f32 %v90, %v562
  %v797 = vadd.f32 %v91, %v567
  %v798 = vadd.f32 %v92, %v570
  %v799 = vadd.f32 %v93, %v575
  %v800 = vadd.f32 %v94, %v578
  %v801 = vadd.f32 %v95, %v583
  %v802 = vadd.f32 %v96, %v586
  %v803 = vadd.f32 %v97, %v591
  %v804 = vadd.f32 %v98, %v594
  %v805 = vadd.f32 %v99, %v599
  %v806 = vadd.f32 %v100, %v602
  %v807 = vadd.f32 %v101, %v607
  %v808 = vadd.f32 %v102, %v610
  %v809 = vadd.f32 %v103, %v615
  %v810 = vadd.f32 %v104, %v618
  %v811 = vadd.f32 %v105, %v623
  %v812 = vadd.f32 %v106, %v626
  %v813 = vadd.f32 %v107, %v631
  %v814 = vadd.f32 %v108, %v634
  %v815 = vadd.f32 %v109, %v639
  %v816 = vadd.f32 %v110, %v642
  %v817 = vadd.f32 %v111, %v647
  %v818 = vadd.f32 %v112, %v650
  %v819 = vadd.f32 %v113, %v655
  %v820 = vadd.f32 %v114, %v658
  %v821 = vadd.f32 %v115, %v663
  %v822 = vadd.f32 %v116, %v666
  %v823 = vadd.f32 %v117, %v671
  %v824 = vadd.f32 %v118, %v674
  %v825 = vadd.f32 %v119, %v679
  %v826 = vadd.f32 %v120, %v682
  %v827 = vadd.f32 %v121, %v687
  %v828 = vadd.f32 %v122, %v690
  %v829 = vadd.f32 %v123, %v695
  %v830 = vadd.f32 %v124, %v698
  %v831 = vadd.f32 %v125, %v703
  %v832 = vadd.f32 %v126, %v706
  %v833 = vadd.f32 %v127, %v711
  %v834 = vadd.f32 %v128, %v714
  %v835 = vadd.f32 %v129, %v719
  %v836 = vadd.f32 %v130, %v722
  %v837 = vadd.f32 %v131, %v727
  %v838 = vadd.f32 %v132, %v730
  %v839 = vadd.f32 %v133, %v735
  %v840 = vadd.f32 %v134, %v738
  %v841 = vadd.f32 %v135, %v743
  %v842 = vadd.f32 %v136, %v746
  %v843 = vadd.f32 %v137, %v751
  %v844 = vadd.f32 %v138, %v754
  %v845 = vadd.f32 %v139, %v759
  %v846 = vadd.f32 %v140, %v762
  %v847 = vadd.f32 %v141, %v767
  %v848 = vadd.f32 %v142, %v770
  %v849 = vadd.f32 %v143, %v775
  %v850 = vadd.f32 %v144, %v778
  %v851 = vadd.f32 %v145, %v783
  %v852 = vadd.f32 %v146, %v786
  %853 = vst [vmem:[#allocation2] sm:$0xff] %v789
  %854 = vst [vmem:[#allocation2 + $0x8] sm:$0xff] %v790
  %855 = vst [vmem:[#allocation2 + $0x10] sm:$0xff] %v791
  %856 = vst [vmem:[#allocation2 + $0x18] sm:$0xff] %v792
  %857 = vst [vmem:[#allocation2 + $0x20] sm:$0xff] %v793
  %858 = vst [vmem:[#allocation2 + $0x28] sm:$0xff] %v794
  %859 = vst [vmem:[#allocation2 + $0x30] sm:$0xff] %v795
  %860 = vst [vmem:[#allocation2 + $0x38] sm:$0xff] %v796
  %861 = vst [vmem:[#allocation2 + $0x40] sm:$0xff] %v797
  %862 = vst [vmem:[#allocation2 + $0x48] sm:$0xff] %v798
  %863 = vst [vmem:[#allocation2 + $0x50] sm:$0xff] %v799
  %864 = vst [vmem:[#allocation2 + $0x58] sm:$0xff] %v800
  %865 = vst [vmem:[#allocation2 + $0x60] sm:$0xff] %v801
  %866 = vst [vmem:[#allocation2 + $0x68] sm:$0xff] %v802
  %867 = vst [vmem:[#allocation2 + $0x70] sm:$0xff] %v803
  %868 = vst [vmem:[#allocation2 + $0x78] sm:$0xff] %v804
  %869 = vst [vmem:[#allocation2 + $0x80] sm:$0xff] %v805
  %870 = vst [vmem:[#allocation2 + $0x88] sm:$0xff] %v806
  %871 = vst [vmem:[#allocation2 + $0x90] sm:$0xff] %v807
  %872 = vst [vmem:[#allocation2 + $0x98] sm:$0xff] %v808
  %873 = vst [vmem:[#allocation2 + $0xa0] sm:$0xff] %v809
  %874 = vst [vmem:[#allocation2 + $0xa8] sm:$0xff] %v810
  %875 = vst [vmem:[#allocation2 + $0xb0] sm:$0xff] %v811
  %876 = vst [vmem:[#allocation2 + $0xb8] sm:$0xff] %v812
  %877 = vst [vmem:[#allocation2 + $0xc0] sm:$0xff] %v813
  %878 = vst [vmem:[#allocation2 + $0xc8] sm:$0xff] %v814
  %879 = vst [vmem:[#allocation2 + $0xd0] sm:$0xff] %v815
  %880 = vst [vmem:[#allocation2 + $0xd8] sm:$0xff] %v816
  %881 = vst [vmem:[#allocation2 + $0xe0] sm:$0xff] %v817
  %882 = vst [vmem:[#allocation2 + $0xe8] sm:$0xff] %v818
  %883 = vst [vmem:[#allocation2 + $0xf0] sm:$0xff] %v819
  %884 = vst [vmem:[#allocation2 + $0xf8] sm:$0xff] %v820
  %885 = vst [vmem:[#allocation2 + $0x100] sm:$0xff] %v821
  %886 = vst [vmem:[#allocation2 + $0x108] sm:$0xff] %v822
  %887 = vst [vmem:[#allocation2 + $0x110] sm:$0xff] %v823
  %888 = vst [vmem:[#allocation2 + $0x118] sm:$0xff] %v824
  %889 = vst [vmem:[#allocation2 + $0x120] sm:$0xff] %v825
  %890 = vst [vmem:[#allocation2 + $0x128] sm:$0xff] %v826
  %891 = vst [vmem:[#allocation2 + $0x130] sm:$0xff] %v827
  %892 = vst [vmem:[#allocation2 + $0x138] sm:$0xff] %v828
  %893 = vst [vmem:[#allocation2 + $0x140] sm:$0xff] %v829
  %894 = vst [vmem:[#allocation2 + $0x148] sm:$0xff] %v830
  %895 = vst [vmem:[#allocation2 + $0x150] sm:$0xff] %v831
  %896 = vst [vmem:[#allocation2 + $0x158] sm:$0xff] %v832
  %897 = vst [vmem:[#allocation2 + $0x160] sm:$0xff] %v833
  %898 = vst [vmem:[#allocation2 + $0x168] sm:$0xff] %v834
  %899 = vst [vmem:[#allocation2 + $0x170] sm:$0xff] %v835
  %900 = vst [vmem:[#allocation2 + $0x178] sm:$0xff] %v836
  %901 = vst [vmem:[#allocation2 + $0x180] sm:$0xff] %v837
  %902 = vst [vmem:[#allocation2 + $0x188] sm:$0xff] %v838
  %903 = vst [vmem:[#allocation2 + $0x190] sm:$0xff] %v839
  %904 = vst [vmem:[#allocation2 + $0x198] sm:$0xff] %v840
  %905 = vst [vmem:[#allocation2 + $0x1a0] sm:$0xff] %v841
  %906 = vst [vmem:[#allocation2 + $0x1a8] sm:$0xff] %v842
  %907 = vst [vmem:[#allocation2 + $0x1b0] sm:$0xff] %v843
  %908 = vst [vmem:[#allocation2 + $0x1b8] sm:$0xff] %v844
  %909 = vst [vmem:[#allocation2 + $0x1c0] sm:$0xff] %v845
  %910 = vst [vmem:[#allocation2 + $0x1c8] sm:$0xff] %v846
  %911 = vst [vmem:[#allocation2 + $0x1d0] sm:$0xff] %v847
  %912 = vst [vmem:[#allocation2 + $0x1d8] sm:$0xff] %v848
  %913 = vst [vmem:[#allocation2 + $0x1e0] sm:$0xff] %v849
  %914 = vst [vmem:[#allocation2 + $0x1e8] sm:$0xff] %v850
  %915 = vst [vmem:[#allocation2 + $0x1f0] sm:$0xff] %v851
  %916 = vst [vmem:[#allocation2 + $0x1f8] sm:$0xff] %v852
  // Predicated region
  $region18: #{_lambda_.24} parent=0 // pred_check
    %p917 = pneg %p15
  $region19: #{_lambda_.24} parent=0 // pred_check_branch
    %919 = sbr.rel (%p917) target = $region21
  $region20: #{_lambda_.24} parent=0 // pred_region
    %v920 = vld [vmem:[#allocation2] sm:$0xff]
    %v921 = vld [vmem:[#allocation2 + $0x8] sm:$0xff]
    %v922 = vld [vmem:[#allocation2 + $0x10] sm:$0xff]
    %v923 = vld [vmem:[#allocation2 + $0x18] sm:$0xff]
    %v924 = vld [vmem:[#allocation2 + $0x20] sm:$0xff]
    %v925 = vld [vmem:[#allocation2 + $0x28] sm:$0xff]
    %v926 = vld [vmem:[#allocation2 + $0x30] sm:$0xff]
    %v927 = vld [vmem:[#allocation2 + $0x38] sm:$0xff]
    %v928 = vld [vmem:[#allocation2 + $0x40] sm:$0xff]
    %v929 = vld [vmem:[#allocation2 + $0x48] sm:$0xff]
    %v930 = vld [vmem:[#allocation2 + $0x50] sm:$0xff]
    %v931 = vld [vmem:[#allocation2 + $0x58] sm:$0xff]
    %v932 = vld [vmem:[#allocation2 + $0x60] sm:$0xff]
    %v933 = vld [vmem:[#allocation2 + $0x68] sm:$0xff]
    %v934 = vld [vmem:[#allocation2 + $0x70] sm:$0xff]
    %v935 = vld [vmem:[#allocation2 + $0x78] sm:$0xff]
    %v936 = vld [vmem:[#allocation2 + $0x80] sm:$0xff]
    %v937 = vld [vmem:[#allocation2 + $0x88] sm:$0xff]
    %v938 = vld [vmem:[#allocation2 + $0x90] sm:$0xff]
    %v939 = vld [vmem:[#allocation2 + $0x98] sm:$0xff]
    %v940 = vld [vmem:[#allocation2 + $0xa0] sm:$0xff]
    %v941 = vld [vmem:[#allocation2 + $0xa8] sm:$0xff]
    %v942 = vld [vmem:[#allocation2 + $0xb0] sm:$0xff]
    %v943 = vld [vmem:[#allocation2 + $0xb8] sm:$0xff]
    %v944 = vld [vmem:[#allocation2 + $0xc0] sm:$0xff]
    %v945 = vld [vmem:[#allocation2 + $0xc8] sm:$0xff]
    %v946 = vld [vmem:[#allocation2 + $0xd0] sm:$0xff]
    %v947 = vld [vmem:[#allocation2 + $0xd8] sm:$0xff]
    %v948 = vld [vmem:[#allocation2 + $0xe0] sm:$0xff]
    %v949 = vld [vmem:[#allocation2 + $0xe8] sm:$0xff]
    %v950 = vld [vmem:[#allocation2 + $0xf0] sm:$0xff]
    %v951 = vld [vmem:[#allocation2 + $0xf8] sm:$0xff]
    %v952 = vld [vmem:[#allocation2 + $0x100] sm:$0xff]
    %v953 = vld [vmem:[#allocation2 + $0x108] sm:$0xff]
    %v954 = vld [vmem:[#allocation2 + $0x110] sm:$0xff]
    %v955 = vld [vmem:[#allocation2 + $0x118] sm:$0xff]
    %v956 = vld [vmem:[#allocation2 + $0x120] sm:$0xff]
    %v957 = vld [vmem:[#allocation2 + $0x128] sm:$0xff]
    %v958 = vld [vmem:[#allocation2 + $0x130] sm:$0xff]
    %v959 = vld [vmem:[#allocation2 + $0x138] sm:$0xff]
    %v960 = vld [vmem:[#allocation2 + $0x140] sm:$0xff]
    %v961 = vld [vmem:[#allocation2 + $0x148] sm:$0xff]
    %v962 = vld [vmem:[#allocation2 + $0x150] sm:$0xff]
    %v963 = vld [vmem:[#allocation2 + $0x158] sm:$0xff]
    %v964 = vld [vmem:[#allocation2 + $0x160] sm:$0xff]
    %v965 = vld [vmem:[#allocation2 + $0x168] sm:$0xff]
    %v966 = vld [vmem:[#allocation2 + $0x170] sm:$0xff]
    %v967 = vld [vmem:[#allocation2 + $0x178] sm:$0xff]
    %v968 = vld [vmem:[#allocation2 + $0x180] sm:$0xff]
    %v969 = vld [vmem:[#allocation2 + $0x188] sm:$0xff]
    %v970 = vld [vmem:[#allocation2 + $0x190] sm:$0xff]
    %v971 = vld [vmem:[#allocation2 + $0x198] sm:$0xff]
    %v972 = vld [vmem:[#allocation2 + $0x1a0] sm:$0xff]
    %v973 = vld [vmem:[#allocation2 + $0x1a8] sm:$0xff]
    %v974 = vld [vmem:[#allocation2 + $0x1b0] sm:$0xff]
    %v975 = vld [vmem:[#allocation2 + $0x1b8] sm:$0xff]
    %v976 = vld [vmem:[#allocation2 + $0x1c0] sm:$0xff]
    %v977 = vld [vmem:[#allocation2 + $0x1c8] sm:$0xff]
    %v978 = vld [vmem:[#allocation2 + $0x1d0] sm:$0xff]
    %v979 = vld [vmem:[#allocation2 + $0x1d8] sm:$0xff]
    %v980 = vld [vmem:[#allocation2 + $0x1e0] sm:$0xff]
    %v981 = vld [vmem:[#allocation2 + $0x1e8] sm:$0xff]
    %v982 = vld [vmem:[#allocation2 + $0x1f0] sm:$0xff]
    %v983 = vld [vmem:[#allocation2 + $0x1f8] sm:$0xff]
    %v984 = vld [vmem:[%s2] sm:$0x1]
    %v986 = vlaneseq
    %v987 = vshrl.u32 %v986, 7
    %v988 = vsub.s32 0, %v987
    %v989 = vrot.slane %v984, %v988
    %v991 = vadd.f32 %v920, %v989
    %v992 = vadd.f32 %v921, %v989
    %v993 = vadd.f32 %v922, %v989
    %v994 = vadd.f32 %v923, %v989
    %v995 = vadd.f32 %v924, %v989
    %v996 = vadd.f32 %v925, %v989
    %v997 = vadd.f32 %v926, %v989
    %v998 = vadd.f32 %v927, %v989
    %v999 = vadd.f32 %v928, %v989
    %v1000 = vadd.f32 %v929, %v989
    %v1001 = vadd.f32 %v930, %v989
    %v1002 = vadd.f32 %v931, %v989
    %v1003 = vadd.f32 %v932, %v989
    %v1004 = vadd.f32 %v933, %v989
    %v1005 = vadd.f32 %v934, %v989
    %v1006 = vadd.f32 %v935, %v989
    %v1007 = vadd.f32 %v936, %v989
    %v1008 = vadd.f32 %v937, %v989
    %v1009 = vadd.f32 %v938, %v989
    %v1010 = vadd.f32 %v939, %v989
    %v1011 = vadd.f32 %v940, %v989
    %v1012 = vadd.f32 %v941, %v989
    %v1013 = vadd.f32 %v942, %v989
    %v1014 = vadd.f32 %v943, %v989
    %v1015 = vadd.f32 %v944, %v989
    %v1016 = vadd.f32 %v945, %v989
    %v1017 = vadd.f32 %v946, %v989
    %v1018 = vadd.f32 %v947, %v989
    %v1019 = vadd.f32 %v948, %v989
    %v1020 = vadd.f32 %v949, %v989
    %v1021 = vadd.f32 %v950, %v989
    %v1022 = vadd.f32 %v951, %v989
    %v1023 = vadd.f32 %v952, %v989
    %v1024 = vadd.f32 %v953, %v989
    %v1025 = vadd.f32 %v954, %v989
    %v1026 = vadd.f32 %v955, %v989
    %v1027 = vadd.f32 %v956, %v989
    %v1028 = vadd.f32 %v957, %v989
    %v1029 = vadd.f32 %v958, %v989
    %v1030 = vadd.f32 %v959, %v989
    %v1031 = vadd.f32 %v960, %v989
    %v1032 = vadd.f32 %v961, %v989
    %v1033 = vadd.f32 %v962, %v989
    %v1034 = vadd.f32 %v963, %v989
    %v1035 = vadd.f32 %v964, %v989
    %v1036 = vadd.f32 %v965, %v989
    %v1037 = vadd.f32 %v966, %v989
    %v1038 = vadd.f32 %v967, %v989
    %v1039 = vadd.f32 %v968, %v989
    %v1040 = vadd.f32 %v969, %v989
    %v1041 = vadd.f32 %v970, %v989
    %v1042 = vadd.f32 %v971, %v989
    %v1043 = vadd.f32 %v972, %v989
    %v1044 = vadd.f32 %v973, %v989
    %v1045 = vadd.f32 %v974, %v989
    %v1046 = vadd.f32 %v975, %v989
    %v1047 = vadd.f32 %v976, %v989
    %v1048 = vadd.f32 %v977, %v989
    %v1049 = vadd.f32 %v978, %v989
    %v1050 = vadd.f32 %v979, %v989
    %v1051 = vadd.f32 %v980, %v989
    %v1052 = vadd.f32 %v981, %v989
    %v1053 = vadd.f32 %v982, %v989
    %v1054 = vadd.f32 %v983, %v989
    %1055 = vst [vmem:[%s3] sm:$0xff] %v991
    %1056 = vst [vmem:[%s3 + $0x8] sm:$0xff] %v992
    %1057 = vst [vmem:[%s3 + $0x10] sm:$0xff] %v993
    %1058 = vst [vmem:[%s3 + $0x18] sm:$0xff] %v994
    %1059 = vst [vmem:[%s3 + $0x20] sm:$0xff] %v995
    %1060 = vst [vmem:[%s3 + $0x28] sm:$0xff] %v996
    %1061 = vst [vmem:[%s3 + $0x30] sm:$0xff] %v997
    %1062 = vst [vmem:[%s3 + $0x38] sm:$0xff] %v998
    %1063 = vst [vmem:[%s3 + $0x40] sm:$0xff] %v999
    %1064 = vst [vmem:[%s3 + $0x48] sm:$0xff] %v1000
    %1065 = vst [vmem:[%s3 + $0x50] sm:$0xff] %v1001
    %1066 = vst [vmem:[%s3 + $0x58] sm:$0xff] %v1002
    %1067 = vst [vmem:[%s3 + $0x60] sm:$0xff] %v1003
    %1068 = vst [vmem:[%s3 + $0x68] sm:$0xff] %v1004
    %1069 = vst [vmem:[%s3 + $0x70] sm:$0xff] %v1005
    %1070 = vst [vmem:[%s3 + $0x78] sm:$0xff] %v1006
    %1071 = vst [vmem:[%s3 + $0x80] sm:$0xff] %v1007
    %1072 = vst [vmem:[%s3 + $0x88] sm:$0xff] %v1008
    %1073 = vst [vmem:[%s3 + $0x90] sm:$0xff] %v1009
    %1074 = vst [vmem:[%s3 + $0x98] sm:$0xff] %v1010
    %1075 = vst [vmem:[%s3 + $0xa0] sm:$0xff] %v1011
    %1076 = vst [vmem:[%s3 + $0xa8] sm:$0xff] %v1012
    %1077 = vst [vmem:[%s3 + $0xb0] sm:$0xff] %v1013
    %1078 = vst [vmem:[%s3 + $0xb8] sm:$0xff] %v1014
    %1079 = vst [vmem:[%s3 + $0xc0] sm:$0xff] %v1015
    %1080 = vst [vmem:[%s3 + $0xc8] sm:$0xff] %v1016
    %1081 = vst [vmem:[%s3 + $0xd0] sm:$0xff] %v1017
    %1082 = vst [vmem:[%s3 + $0xd8] sm:$0xff] %v1018
    %1083 = vst [vmem:[%s3 + $0xe0] sm:$0xff] %v1019
    %1084 = vst [vmem:[%s3 + $0xe8] sm:$0xff] %v1020
    %1085 = vst [vmem:[%s3 + $0xf0] sm:$0xff] %v1021
    %1086 = vst [vmem:[%s3 + $0xf8] sm:$0xff] %v1022
    %1087 = vst [vmem:[%s3 + $0x100] sm:$0xff] %v1023
    %1088 = vst [vmem:[%s3 + $0x108] sm:$0xff] %v1024
    %1089 = vst [vmem:[%s3 + $0x110] sm:$0xff] %v1025
    %1090 = vst [vmem:[%s3 + $0x118] sm:$0xff] %v1026
    %1091 = vst [vmem:[%s3 + $0x120] sm:$0xff] %v1027
    %1092 = vst [vmem:[%s3 + $0x128] sm:$0xff] %v1028
    %1093 = vst [vmem:[%s3 + $0x130] sm:$0xff] %v1029
    %1094 = vst [vmem:[%s3 + $0x138] sm:$0xff] %v1030
    %1095 = vst [vmem:[%s3 + $0x140] sm:$0xff] %v1031
    %1096 = vst [vmem:[%s3 + $0x148] sm:$0xff] %v1032
    %1097 = vst [vmem:[%s3 + $0x150] sm:$0xff] %v1033
    %1098 = vst [vmem:[%s3 + $0x158] sm:$0xff] %v1034
    %1099 = vst [vmem:[%s3 + $0x160] sm:$0xff] %v1035
    %1100 = vst [vmem:[%s3 + $0x168] sm:$0xff] %v1036
    %1101 = vst [vmem:[%s3 + $0x170] sm:$0xff] %v1037
    %1102 = vst [vmem:[%s3 + $0x178] sm:$0xff] %v1038
    %1103 = vst [vmem:[%s3 + $0x180] sm:$0xff] %v1039
    %1104 = vst [vmem:[%s3 + $0x188] sm:$0xff] %v1040
    %1105 = vst [vmem:[%s3 + $0x190] sm:$0xff] %v1041
    %1106 = vst [vmem:[%s3 + $0x198] sm:$0xff] %v1042
    %1107 = vst [vmem:[%s3 + $0x1a0] sm:$0xff] %v1043
    %1108 = vst [vmem:[%s3 + $0x1a8] sm:$0xff] %v1044
    %1109 = vst [vmem:[%s3 + $0x1b0] sm:$0xff] %v1045
    %1110 = vst [vmem:[%s3 + $0x1b8] sm:$0xff] %v1046
    %1111 = vst [vmem:[%s3 + $0x1c0] sm:$0xff] %v1047
    %1112 = vst [vmem:[%s3 + $0x1c8] sm:$0xff] %v1048
    %1113 = vst [vmem:[%s3 + $0x1d0] sm:$0xff] %v1049
    %1114 = vst [vmem:[%s3 + $0x1d8] sm:$0xff] %v1050
    %1115 = vst [vmem:[%s3 + $0x1e0] sm:$0xff] %v1051
    %1116 = vst [vmem:[%s3 + $0x1e8] sm:$0xff] %v1052
    %1117 = vst [vmem:[%s3 + $0x1f0] sm:$0xff] %v1053
    %1118 = vst [vmem:[%s3 + $0x1f8] sm:$0xff] %v1054
  $region21: #{_lambda_.24} parent=0 // pred_fallthru
    _
  // Predicated region
  $region22: #{_lambda_.24} parent=0 // pred_check
    _
  $region23: #{_lambda_.24} parent=0 // pred_check_branch
    %1120 = sbr.rel (0) target = $region25
  $region24: #{_lambda_.24} parent=0 // pred_region
    _
  $region25: #{_lambda_.24} parent=0 // pred_fallthru
    _
  // Predicated region
  $region26: #{_lambda_.24} parent=0 // pred_check
    _
  $region27: #{_lambda_.24} parent=0 // pred_check_branch
    %1122 = sbr.rel (0) target = $region29
  $region28: #{_lambda_.24} parent=0 // pred_region
    _
  $region29: #{_lambda_.24} parent=0 // pred_fallthru
    _

// kernel: _lambda_.25
$region0: #{_lambda_.25}
  #allocation0 [shape = 'u32[]', space=smem, size = 0x4, offset = 0x4, fixed_abs, tag = 'smem constant byte address 0x4 - core index']
  #allocation1 [shape = 'u32[144,128]{1,0:T(1,128)}', space=vmem, size = 0x12000, scoped, tag = 'internal scratch']
  #allocation2 [shape = 'f32[128,128]{1,0:T(8,128)}', space=vmem, size = 0x10000, scoped, tag = 'scratch operand']
  %s0 = inlined_call_operand.vmem [shape: bf16[1,128,128], index: 0, kind: input, shape index: {}]
  %s1 = inlined_call_operand.vmem [shape: bf16[1,128,128], index: 1, kind: input, shape index: {}]
  %s2 = inlined_call_operand.vmem [shape: f32[1,128], index: 2, kind: input, shape index: {}]
  %s3 = inlined_call_operand.vmem [shape: f32[1,128,128], index: 3, kind: output, shape index: {}]
  %s4 = sld [smem:[#allocation0]]
  $region30: #{_lambda_.25} parent=0
    _
  %s6 = ssub.s32 1, %s4
  %s7 = scalar_select 0, %s6, %s4
  // Predicated region
  $region2: #{_lambda_.25} parent=0 // pred_check
    _
  $region3: #{_lambda_.25} parent=0 // pred_check_branch
    %9 = sbr.rel (0) target = $region5
  $region4: #{_lambda_.25} parent=0 // pred_region
    _
  $region5: #{_lambda_.25} parent=0 // pred_fallthru
    _
  // Predicated region
  $region6: #{_lambda_.25} parent=0 // pred_check
    _
  $region7: #{_lambda_.25} parent=0 // pred_check_branch
    %11 = sbr.rel (0) target = $region9
  $region8: #{_lambda_.25} parent=0 // pred_region
    _
  $region9: #{_lambda_.25} parent=0 // pred_fallthru
    _
  // Predicated region
  $region10: #{_lambda_.25} parent=0 // pred_check
    _
  $region11: #{_lambda_.25} parent=0 // pred_check_branch
    %13 = sbr.rel (0) target = $region13
  $region12: #{_lambda_.25} parent=0 // pred_region
    _
  $region13: #{_lambda_.25} parent=0 // pred_fallthru
    _
  %p15 = scmp.eq.s32.totalorder 0, 0
  // Predicated region
  $region14: #{_lambda_.25} parent=0 // pred_check
    %p16 = pneg %p15
  $region15: #{_lambda_.25} parent=0 // pred_check_branch
    %18 = sbr.rel (%p16) target = $region17
  $region16: #{_lambda_.25} parent=0 // pred_region
    %19 = vst [vmem:[#allocation2] sm:$0xff] 0.0
    %20 = vst [vmem:[#allocation2 + $0x8] sm:$0xff] 0.0
    %21 = vst [vmem:[#allocation2 + $0x10] sm:$0xff] 0.0
    %22 = vst [vmem:[#allocation2 + $0x18] sm:$0xff] 0.0
    %23 = vst [vmem:[#allocation2 + $0x20] sm:$0xff] 0.0
    %24 = vst [vmem:[#allocation2 + $0x28] sm:$0xff] 0.0
    %25 = vst [vmem:[#allocation2 + $0x30] sm:$0xff] 0.0
    %26 = vst [vmem:[#allocation2 + $0x38] sm:$0xff] 0.0
    %27 = vst [vmem:[#allocation2 + $0x40] sm:$0xff] 0.0
    %28 = vst [vmem:[#allocation2 + $0x48] sm:$0xff] 0.0
    %29 = vst [vmem:[#allocation2 + $0x50] sm:$0xff] 0.0
    %30 = vst [vmem:[#allocation2 + $0x58] sm:$0xff] 0.0
    %31 = vst [vmem:[#allocation2 + $0x60] sm:$0xff] 0.0
    %32 = vst [vmem:[#allocation2 + $0x68] sm:$0xff] 0.0
    %33 = vst [vmem:[#allocation2 + $0x70] sm:$0xff] 0.0
    %34 = vst [vmem:[#allocation2 + $0x78] sm:$0xff] 0.0
  $region17: #{_lambda_.25} parent=0 // pred_fallthru
    _
  %v35 = vld [vmem:[#allocation2] sm:$0xff]
  %v36 = vld [vmem:[#allocation2 + $0x8] sm:$0xff]
  %v37 = vld [vmem:[#allocation2 + $0x10] sm:$0xff]
  %v38 = vld [vmem:[#allocation2 + $0x18] sm:$0xff]
  %v39 = vld [vmem:[#allocation2 + $0x20] sm:$0xff]
  %v40 = vld [vmem:[#allocation2 + $0x28] sm:$0xff]
  %v41 = vld [vmem:[#allocation2 + $0x30] sm:$0xff]
  %v42 = vld [vmem:[#allocation2 + $0x38] sm:$0xff]
  %v43 = vld [vmem:[#allocation2 + $0x40] sm:$0xff]
  %v44 = vld [vmem:[#allocation2 + $0x48] sm:$0xff]
  %v45 = vld [vmem:[#allocation2 + $0x50] sm:$0xff]
  %v46 = vld [vmem:[#allocation2 + $0x58] sm:$0xff]
  %v47 = vld [vmem:[#allocation2 + $0x60] sm:$0xff]
  %v48 = vld [vmem:[#allocation2 + $0x68] sm:$0xff]
  %v49 = vld [vmem:[#allocation2 + $0x70] sm:$0xff]
  %v50 = vld [vmem:[#allocation2 + $0x78] sm:$0xff]
  %v51 = vld [vmem:[%s0] sm:$0xf]
  %v52 = vld [vmem:[%s0 + $0x4] sm:$0xf]
  %v53 = vld [vmem:[%s0 + $0x8] sm:$0xf]
  %v54 = vld [vmem:[%s0 + $0xc] sm:$0xf]
  %v55 = vld [vmem:[%s0 + $0x10] sm:$0xf]
  %v56 = vld [vmem:[%s0 + $0x14] sm:$0xf]
  %v57 = vld [vmem:[%s0 + $0x18] sm:$0xf]
  %v58 = vld [vmem:[%s0 + $0x1c] sm:$0xf]
  %v59 = vld [vmem:[%s0 + $0x20] sm:$0xf]
  %v60 = vld [vmem:[%s0 + $0x24] sm:$0xf]
  %v61 = vld [vmem:[%s0 + $0x28] sm:$0xf]
  %v62 = vld [vmem:[%s0 + $0x2c] sm:$0xf]
  %v63 = vld [vmem:[%s0 + $0x30] sm:$0xf]
  %v64 = vld [vmem:[%s0 + $0x34] sm:$0xf]
  %v65 = vld [vmem:[%s0 + $0x38] sm:$0xf]
  %v66 = vld [vmem:[%s0 + $0x3c] sm:$0xf]
  %v67 = vld [vmem:[%s1] sm:$0xf]
  %v68 = vld [vmem:[%s1 + $0x4] sm:$0xf]
  %v69 = vld [vmem:[%s1 + $0x8] sm:$0xf]
  %v70 = vld [vmem:[%s1 + $0xc] sm:$0xf]
  %v71 = vld [vmem:[%s1 + $0x10] sm:$0xf]
  %v72 = vld [vmem:[%s1 + $0x14] sm:$0xf]
  %v73 = vld [vmem:[%s1 + $0x18] sm:$0xf]
  %v74 = vld [vmem:[%s1 + $0x1c] sm:$0xf]
  %v75 = vld [vmem:[%s1 + $0x20] sm:$0xf]
  %v76 = vld [vmem:[%s1 + $0x24] sm:$0xf]
  %v77 = vld [vmem:[%s1 + $0x28] sm:$0xf]
  %v78 = vld [vmem:[%s1 + $0x2c] sm:$0xf]
  %v79 = vld [vmem:[%s1 + $0x30] sm:$0xf]
  %v80 = vld [vmem:[%s1 + $0x34] sm:$0xf]
  %v81 = vld [vmem:[%s1 + $0x38] sm:$0xf]
  %v82 = vld [vmem:[%s1 + $0x3c] sm:$0xf]
  %v99 = vunpack.c.l.b16 %v51
  %v100 = vunpack.c.l.b16 %v52
  %v101 = vunpack.c.l.b16 %v53
  %v102 = vunpack.c.l.b16 %v54
  %v103 = vunpack.c.l.b16 %v55
  %v104 = vunpack.c.l.b16 %v56
  %v105 = vunpack.c.l.b16 %v57
  %v106 = vunpack.c.l.b16 %v58
  %v107 = vunpack.c.l.b16 %v59
  %v108 = vunpack.c.l.b16 %v60
  %v109 = vunpack.c.l.b16 %v61
  %v110 = vunpack.c.l.b16 %v62
  %v111 = vunpack.c.l.b16 %v63
  %v112 = vunpack.c.l.b16 %v64
  %v113 = vunpack.c.l.b16 %v65
  %v114 = vunpack.c.l.b16 %v66
  %v115 = vpack.c.b16 %v100, %v99
  %v116 = vpack.c.b16 %v102, %v101
  %v117 = vpack.c.b16 %v104, %v103
  %v118 = vpack.c.b16 %v106, %v105
  %v119 = vpack.c.b16 %v108, %v107
  %v120 = vpack.c.b16 %v110, %v109
  %v121 = vpack.c.b16 %v112, %v111
  %v122 = vpack.c.b16 %v114, %v113
  %v147 = vunpack.c.l.b16 %v67
  %v148 = vunpack.c.l.b16 %v68
  %v149 = vunpack.c.l.b16 %v69
  %v150 = vunpack.c.l.b16 %v70
  %v151 = vunpack.c.l.b16 %v71
  %v152 = vunpack.c.l.b16 %v72
  %v153 = vunpack.c.l.b16 %v73
  %v154 = vunpack.c.l.b16 %v74
  %v155 = vunpack.c.l.b16 %v75
  %v156 = vunpack.c.l.b16 %v76
  %v157 = vunpack.c.l.b16 %v77
  %v158 = vunpack.c.l.b16 %v78
  %v159 = vunpack.c.l.b16 %v79
  %v160 = vunpack.c.l.b16 %v80
  %v161 = vunpack.c.l.b16 %v81
  %v162 = vunpack.c.l.b16 %v82
  %v163 = vpack.c.b16 %v148, %v147
  %v164 = vpack.c.b16 %v150, %v149
  %v165 = vpack.c.b16 %v152, %v151
  %v166 = vpack.c.b16 %v154, %v153
  %v167 = vpack.c.b16 %v156, %v155
  %v168 = vpack.c.b16 %v158, %v157
  %v169 = vpack.c.b16 %v160, %v159
  %v170 = vpack.c.b16 %v162, %v161
  %179 = vmatprep.subr.bf16.mxu0 0
  %180 = vmatpush1.bf16.msra.mxu0 %v163
  %181 = vmatprep.subr.bf16.mxu0 0
  %182 = vmatpush1.bf16.msra.mxu0 %v164
  %183 = vmatprep.subr.bf16.mxu0 0
  %184 = vmatpush1.bf16.msra.mxu0 %v165
  %185 = vmatprep.subr.bf16.mxu0 0
  %186 = vmatpush1.bf16.msra.mxu0 %v166
  %187 = vmatprep.subr.bf16.mxu0 0
  %188 = vmatpush1.bf16.msra.mxu0 %v167
  %189 = vmatprep.subr.bf16.mxu0 0
  %190 = vmatpush1.bf16.msra.mxu0 %v168
  %191 = vmatprep.subr.bf16.mxu0 0
  %192 = vmatpush1.bf16.msra.mxu0 %v169
  %193 = vmatprep.subr.bf16.mxu0 0
  %194 = vmatpush1.bf16.msra.mxu0 %v170
  %195 = vmatprep.subr.bf16.mxu0 0
  %196 = vmatpush1.bf16.msra.mxu0 0
  %197 = vmatprep.subr.bf16.mxu0 0
  %198 = vmatpush1.bf16.msra.mxu0 0
  %199 = vmatprep.subr.bf16.mxu0 0
  %200 = vmatpush1.bf16.msra.mxu0 0
  %201 = vmatprep.subr.bf16.mxu0 0
  %202 = vmatpush1.bf16.msra.mxu0 0
  %203 = vmatprep.subr.bf16.mxu0 0
  %204 = vmatpush1.bf16.msra.mxu0 0
  %205 = vmatprep.subr.bf16.mxu0 0
  %206 = vmatpush1.bf16.msra.mxu0 0
  %207 = vmatprep.subr.bf16.mxu0 0
  %208 = vmatpush1.bf16.msra.mxu0 0
  %209 = vmatprep.subr.bf16.mxu0 0
  %210 = vmatpush1.bf16.msra.mxu0 0
  %211 = vmatprep.mubr.bf16.mxu0 0
  %212 = vmatmul.mubr.bf16.gmra.mrb[0].mxu0 %v115
  %v213 = vpop.f32.mrb[0].mxu0
  %v214 = vadd.f32 0.0, %v213
  %v215 = vpop.f32.mrb[0].mxu0
  %v216 = vpop.f32.mrb[0].mxu0
  %v217 = vadd.f32 0.0, %v216
  %v218 = vpop.f32.mrb[0].mxu0
  %219 = vmatprep.mubr.bf16.mxu0 0
  %220 = vmatmul.mubr.bf16.gmra.mrb[0].mxu0 %v116
  %v221 = vpop.f32.mrb[0].mxu0
  %v222 = vadd.f32 0.0, %v221
  %v223 = vpop.f32.mrb[0].mxu0
  %v224 = vpop.f32.mrb[0].mxu0
  %v225 = vadd.f32 0.0, %v224
  %v226 = vpop.f32.mrb[0].mxu0
  %227 = vmatprep.mubr.bf16.mxu0 0
  %228 = vmatmul.mubr.bf16.gmra.mrb[0].mxu0 %v117
  %v229 = vpop.f32.mrb[0].mxu0
  %v230 = vadd.f32 0.0, %v229
  %v231 = vpop.f32.mrb[0].mxu0
  %v232 = vpop.f32.mrb[0].mxu0
  %v233 = vadd.f32 0.0, %v232
  %v234 = vpop.f32.mrb[0].mxu0
  %235 = vmatprep.mubr.bf16.mxu0 0
  %236 = vmatmul.mubr.bf16.gmra.mrb[0].mxu0 %v118
  %v237 = vpop.f32.mrb[0].mxu0
  %v238 = vadd.f32 0.0, %v237
  %v239 = vpop.f32.mrb[0].mxu0
  %v240 = vpop.f32.mrb[0].mxu0
  %v241 = vadd.f32 0.0, %v240
  %v242 = vpop.f32.mrb[0].mxu0
  %243 = vmatprep.mubr.bf16.mxu0 0
  %244 = vmatmul.mubr.bf16.gmra.mrb[0].mxu0 %v119
  %v245 = vpop.f32.mrb[0].mxu0
  %v246 = vadd.f32 0.0, %v245
  %v247 = vpop.f32.mrb[0].mxu0
  %v248 = vpop.f32.mrb[0].mxu0
  %v249 = vadd.f32 0.0, %v248
  %v250 = vpop.f32.mrb[0].mxu0
  %251 = vmatprep.mubr.bf16.mxu0 0
  %252 = vmatmul.mubr.bf16.gmra.mrb[0].mxu0 %v120
  %v253 = vpop.f32.mrb[0].mxu0
  %v254 = vadd.f32 0.0, %v253
  %v255 = vpop.f32.mrb[0].mxu0
  %v256 = vpop.f32.mrb[0].mxu0
  %v257 = vadd.f32 0.0, %v256
  %v258 = vpop.f32.mrb[0].mxu0
  %259 = vmatprep.mubr.bf16.mxu0 0
  %260 = vmatmul.mubr.bf16.gmra.mrb[0].mxu0 %v121
  %v261 = vpop.f32.mrb[0].mxu0
  %v262 = vadd.f32 0.0, %v261
  %v263 = vpop.f32.mrb[0].mxu0
  %v264 = vpop.f32.mrb[0].mxu0
  %v265 = vadd.f32 0.0, %v264
  %v266 = vpop.f32.mrb[0].mxu0
  %267 = vmatprep.mubr.bf16.mxu0 0
  %268 = vmatmul.mubr.bf16.gmra.mrb[0].mxu0 %v122
  %v269 = vpop.f32.mrb[0].mxu0
  %v270 = vadd.f32 0.0, %v269
  %v271 = vpop.f32.mrb[0].mxu0
  %v272 = vpop.f32.mrb[0].mxu0
  %v273 = vadd.f32 0.0, %v272
  %v274 = vpop.f32.mrb[0].mxu0
  %275 = vdwg.mxu0
  %v276 = vadd.f32 %v35, %v214
  %v277 = vadd.f32 %v36, %v217
  %v278 = vadd.f32 %v37, %v222
  %v279 = vadd.f32 %v38, %v225
  %v280 = vadd.f32 %v39, %v230
  %v281 = vadd.f32 %v40, %v233
  %v282 = vadd.f32 %v41, %v238
  %v283 = vadd.f32 %v42, %v241
  %v284 = vadd.f32 %v43, %v246
  %v285 = vadd.f32 %v44, %v249
  %v286 = vadd.f32 %v45, %v254
  %v287 = vadd.f32 %v46, %v257
  %v288 = vadd.f32 %v47, %v262
  %v289 = vadd.f32 %v48, %v265
  %v290 = vadd.f32 %v49, %v270
  %v291 = vadd.f32 %v50, %v273
  %292 = vst [vmem:[#allocation2] sm:$0xff] %v276
  %293 = vst [vmem:[#allocation2 + $0x8] sm:$0xff] %v277
  %294 = vst [vmem:[#allocation2 + $0x10] sm:$0xff] %v278
  %295 = vst [vmem:[#allocation2 + $0x18] sm:$0xff] %v279
  %296 = vst [vmem:[#allocation2 + $0x20] sm:$0xff] %v280
  %297 = vst [vmem:[#allocation2 + $0x28] sm:$0xff] %v281
  %298 = vst [vmem:[#allocation2 + $0x30] sm:$0xff] %v282
  %299 = vst [vmem:[#allocation2 + $0x38] sm:$0xff] %v283
  %300 = vst [vmem:[#allocation2 + $0x40] sm:$0xff] %v284
  %301 = vst [vmem:[#allocation2 + $0x48] sm:$0xff] %v285
  %302 = vst [vmem:[#allocation2 + $0x50] sm:$0xff] %v286
  %303 = vst [vmem:[#allocation2 + $0x58] sm:$0xff] %v287
  %304 = vst [vmem:[#allocation2 + $0x60] sm:$0xff] %v288
  %305 = vst [vmem:[#allocation2 + $0x68] sm:$0xff] %v289
  %306 = vst [vmem:[#allocation2 + $0x70] sm:$0xff] %v290
  %307 = vst [vmem:[#allocation2 + $0x78] sm:$0xff] %v291
  // Predicated region
  $region18: #{_lambda_.25} parent=0 // pred_check
    %p308 = pneg %p15
  $region19: #{_lambda_.25} parent=0 // pred_check_branch
    %310 = sbr.rel (%p308) target = $region21
  $region20: #{_lambda_.25} parent=0 // pred_region
    %v311 = vld [vmem:[#allocation2] sm:$0xff]
    %v312 = vld [vmem:[#allocation2 + $0x8] sm:$0xff]
    %v313 = vld [vmem:[#allocation2 + $0x10] sm:$0xff]
    %v314 = vld [vmem:[#allocation2 + $0x18] sm:$0xff]
    %v315 = vld [vmem:[#allocation2 + $0x20] sm:$0xff]
    %v316 = vld [vmem:[#allocation2 + $0x28] sm:$0xff]
    %v317 = vld [vmem:[#allocation2 + $0x30] sm:$0xff]
    %v318 = vld [vmem:[#allocation2 + $0x38] sm:$0xff]
    %v319 = vld [vmem:[#allocation2 + $0x40] sm:$0xff]
    %v320 = vld [vmem:[#allocation2 + $0x48] sm:$0xff]
    %v321 = vld [vmem:[#allocation2 + $0x50] sm:$0xff]
    %v322 = vld [vmem:[#allocation2 + $0x58] sm:$0xff]
    %v323 = vld [vmem:[#allocation2 + $0x60] sm:$0xff]
    %v324 = vld [vmem:[#allocation2 + $0x68] sm:$0xff]
    %v325 = vld [vmem:[#allocation2 + $0x70] sm:$0xff]
    %v326 = vld [vmem:[#allocation2 + $0x78] sm:$0xff]
    %v327 = vld [vmem:[%s2] sm:$0x1]
    %v329 = vlaneseq
    %v330 = vshrl.u32 %v329, 7
    %v331 = vsub.s32 0, %v330
    %v332 = vrot.slane %v327, %v331
    %v334 = vadd.f32 %v311, %v332
    %v335 = vadd.f32 %v312, %v332
    %v336 = vadd.f32 %v313, %v332
    %v337 = vadd.f32 %v314, %v332
    %v338 = vadd.f32 %v315, %v332
    %v339 = vadd.f32 %v316, %v332
    %v340 = vadd.f32 %v317, %v332
    %v341 = vadd.f32 %v318, %v332
    %v342 = vadd.f32 %v319, %v332
    %v343 = vadd.f32 %v320, %v332
    %v344 = vadd.f32 %v321, %v332
    %v345 = vadd.f32 %v322, %v332
    %v346 = vadd.f32 %v323, %v332
    %v347 = vadd.f32 %v324, %v332
    %v348 = vadd.f32 %v325, %v332
    %v349 = vadd.f32 %v326, %v332
    %350 = vst [vmem:[%s3] sm:$0xff] %v334
    %351 = vst [vmem:[%s3 + $0x8] sm:$0xff] %v335
    %352 = vst [vmem:[%s3 + $0x10] sm:$0xff] %v336
    %353 = vst [vmem:[%s3 + $0x18] sm:$0xff] %v337
    %354 = vst [vmem:[%s3 + $0x20] sm:$0xff] %v338
    %355 = vst [vmem:[%s3 + $0x28] sm:$0xff] %v339
    %356 = vst [vmem:[%s3 + $0x30] sm:$0xff] %v340
    %357 = vst [vmem:[%s3 + $0x38] sm:$0xff] %v341
    %358 = vst [vmem:[%s3 + $0x40] sm:$0xff] %v342
    %359 = vst [vmem:[%s3 + $0x48] sm:$0xff] %v343
    %360 = vst [vmem:[%s3 + $0x50] sm:$0xff] %v344
    %361 = vst [vmem:[%s3 + $0x58] sm:$0xff] %v345
    %362 = vst [vmem:[%s3 + $0x60] sm:$0xff] %v346
    %363 = vst [vmem:[%s3 + $0x68] sm:$0xff] %v347
    %364 = vst [vmem:[%s3 + $0x70] sm:$0xff] %v348
    %365 = vst [vmem:[%s3 + $0x78] sm:$0xff] %v349
  $region21: #{_lambda_.25} parent=0 // pred_fallthru
    _
  // Predicated region
  $region22: #{_lambda_.25} parent=0 // pred_check
    _
  $region23: #{_lambda_.25} parent=0 // pred_check_branch
    %367 = sbr.rel (0) target = $region25
  $region24: #{_lambda_.25} parent=0 // pred_region
    _
  $region25: #{_lambda_.25} parent=0 // pred_fallthru
    _
  // Predicated region
  $region26: #{_lambda_.25} parent=0 // pred_check
    _
  $region27: #{_lambda_.25} parent=0 // pred_check_branch
    %369 = sbr.rel (0) target = $region29
  $region28: #{_lambda_.25} parent=0 // pred_region
    _
  $region29: #{_lambda_.25} parent=0 // pred_fallthru
    _

// kernel: _lambda_.26
$region0: #{_lambda_.26}
  #allocation0 [shape = 'u32[]', space=smem, size = 0x4, offset = 0x4, fixed_abs, tag = 'smem constant byte address 0x4 - core index']
  #allocation1 [shape = 'u32[144,128]{1,0:T(1,128)}', space=vmem, size = 0x12000, scoped, tag = 'internal scratch']
  %s0 = inlined_call_operand.vmem [shape: f32[128,128], index: 0, kind: input, shape index: {}]
  %s1 = inlined_call_operand.vmem [shape: f32[1,128], index: 1, kind: output, shape index: {0}]
  %s2 = inlined_call_operand.vmem [shape: f32[1,128], index: 2, kind: output, shape index: {1}]
  %3 = xla_tuple %s1, %s2
  %s4 = sld [smem:[#allocation0]]
  $region26: #{_lambda_.26} parent=0
    _
  %s6 = ssub.s32 1, %s4
  %s7 = scalar_select 0, %s6, %s4
  // Predicated region
  $region2: #{_lambda_.26} parent=0 // pred_check
    _
  $region3: #{_lambda_.26} parent=0 // pred_check_branch
    %9 = sbr.rel (0) target = $region5
  $region4: #{_lambda_.26} parent=0 // pred_region
    _
  $region5: #{_lambda_.26} parent=0 // pred_fallthru
    _
  %v10 = vld [vmem:[%s0] sm:$0xff]
  %v11 = vld [vmem:[%s0 + $0x8] sm:$0xff]
  %v12 = vld [vmem:[%s0 + $0x10] sm:$0xff]
  %v13 = vld [vmem:[%s0 + $0x18] sm:$0xff]
  %v14 = vld [vmem:[%s0 + $0x20] sm:$0xff]
  %v15 = vld [vmem:[%s0 + $0x28] sm:$0xff]
  %v16 = vld [vmem:[%s0 + $0x30] sm:$0xff]
  %v17 = vld [vmem:[%s0 + $0x38] sm:$0xff]
  %v18 = vld [vmem:[%s0 + $0x40] sm:$0xff]
  %v19 = vld [vmem:[%s0 + $0x48] sm:$0xff]
  %v20 = vld [vmem:[%s0 + $0x50] sm:$0xff]
  %v21 = vld [vmem:[%s0 + $0x58] sm:$0xff]
  %v22 = vld [vmem:[%s0 + $0x60] sm:$0xff]
  %v23 = vld [vmem:[%s0 + $0x68] sm:$0xff]
  %v24 = vld [vmem:[%s0 + $0x70] sm:$0xff]
  %v25 = vld [vmem:[%s0 + $0x78] sm:$0xff]
  %p26 = scmp.eq.s32.totalorder 0, 0
  // Predicated region
  $region6: #{_lambda_.26} parent=0 // pred_check
    %p27 = pneg %p26
  $region7: #{_lambda_.26} parent=0 // pred_check_branch
    %29 = sbr.rel (%p27) target = $region9
  $region8: #{_lambda_.26} parent=0 // pred_region
    %30 = vst [vmem:[%s1] sm:$0x1] 0.0
    %31 = vst [vmem:[%s2] sm:$0x1] 0.0
  $region9: #{_lambda_.26} parent=0 // pred_fallthru
    _
  %v32 = vld [vmem:[%s1] sm:$0x1]
  %v33 = vadd.f32 %v10, %v11
  %v34 = vadd.f32 %v33, %v12
  %v35 = vadd.f32 %v34, %v13
  %v36 = vadd.f32 %v35, %v14
  %v37 = vadd.f32 %v36, %v15
  %v38 = vadd.f32 %v37, %v16
  %v39 = vadd.f32 %v38, %v17
  %v40 = vadd.f32 %v39, %v18
  %v41 = vadd.f32 %v40, %v19
  %v42 = vadd.f32 %v41, %v20
  %v43 = vadd.f32 %v42, %v21
  %v44 = vadd.f32 %v43, %v22
  %v45 = vadd.f32 %v44, %v23
  %v46 = vadd.f32 %v45, %v24
  %v47 = vadd.f32 %v46, %v25
  %v48 = vrot.slane %v47, 4
  %v49 = vadd.f32 %v47, %v48
  %v50 = vrot.slane %v49, 2
  %v51 = vadd.f32 %v49, %v50
  %v52 = vrot.slane %v51, 1
  %v53 = vadd.f32 %v51, %v52
  %v54 = vadd.f32 %v32, %v53
  %55 = vst [vmem:[%s1] sm:$0x1] %v54
  %v56 = vld [vmem:[%s2] sm:$0x1]
  %v57 = vmul.f32 %v10, %v10
  %v58 = vmul.f32 %v11, %v11
  %v59 = vmul.f32 %v12, %v12
  %v60 = vmul.f32 %v13, %v13
  %v61 = vmul.f32 %v14, %v14
  %v62 = vmul.f32 %v15, %v15
  %v63 = vmul.f32 %v16, %v16
  %v64 = vmul.f32 %v17, %v17
  %v65 = vmul.f32 %v18, %v18
  %v66 = vmul.f32 %v19, %v19
  %v67 = vmul.f32 %v20, %v20
  %v68 = vmul.f32 %v21, %v21
  %v69 = vmul.f32 %v22, %v22
  %v70 = vmul.f32 %v23, %v23
  %v71 = vmul.f32 %v24, %v24
  %v72 = vmul.f32 %v25, %v25
  %v73 = vadd.f32 %v57, %v58
  %v74 = vadd.f32 %v73, %v59
  %v75 = vadd.f32 %v74, %v60
  %v76 = vadd.f32 %v75, %v61
  %v77 = vadd.f32 %v76, %v62
  %v78 = vadd.f32 %v77, %v63
  %v79 = vadd.f32 %v78, %v64
  %v80 = vadd.f32 %v79, %v65
  %v81 = vadd.f32 %v80, %v66
  %v82 = vadd.f32 %v81, %v67
  %v83 = vadd.f32 %v82, %v68
  %v84 = vadd.f32 %v83, %v69
  %v85 = vadd.f32 %v84, %v70
  %v86 = vadd.f32 %v85, %v71
  %v87 = vadd.f32 %v86, %v72
  %v88 = vrot.slane %v87, 4
  %v89 = vadd.f32 %v87, %v88
  %v90 = vrot.slane %v89, 2
  %v91 = vadd.f32 %v89, %v90
  %v92 = vrot.slane %v91, 1
  %v93 = vadd.f32 %v91, %v92
  %v94 = vadd.f32 %v56, %v93
  %95 = vst [vmem:[%s2] sm:$0x1] %v94
  // Predicated region
  $region10: #{_lambda_.26} parent=0 // pred_check
    _
  $region11: #{_lambda_.26} parent=0 // pred_check_branch
    %97 = sbr.rel (0) target = $region13
  $region12: #{_lambda_.26} parent=0 // pred_region
    _
  $region13: #{_lambda_.26} parent=0 // pred_fallthru
    _
  // Predicated region
  $region14: #{_lambda_.26} parent=0 // pred_check
    _
  $region15: #{_lambda_.26} parent=0 // pred_check_branch
    %99 = sbr.rel (0) target = $region17
  $region16: #{_lambda_.26} parent=0 // pred_region
    _
  $region17: #{_lambda_.26} parent=0 // pred_fallthru
    _
  // Predicated region
  $region18: #{_lambda_.26} parent=0 // pred_check
    _
  $region19: #{_lambda_.26} parent=0 // pred_check_branch
    %101 = sbr.rel (0) target = $region21
  $region20: #{_lambda_.26} parent=0 // pred_region
    _
  $region21: #{_lambda_.26} parent=0 // pred_fallthru
    _
  // Predicated region
  $region22: #{_lambda_.26} parent=0 // pred_check
    _
  $region23: #{_lambda_.26} parent=0 // pred_check_branch
    %103 = sbr.rel (0) target = $region25
  $region24: #{_lambda_.26} parent=0 // pred_region
    _
  $region25: #{_lambda_.26} parent=0 // pred_fallthru
    _

// kernel: _lambda_.27
$region0: #{_lambda_.27}
  #allocation0 [shape = 'u32[]', space=smem, size = 0x4, offset = 0x4, fixed_abs, tag = 'smem constant byte address 0x4 - core index']
  #allocation1 [shape = 'u32[144,128]{1,0:T(1,128)}', space=vmem, size = 0x12000, scoped, tag = 'internal scratch']
  %s0 = inlined_call_operand.vmem [shape: f32[128,128], index: 0, kind: input, shape index: {}]
  %s1 = inlined_call_operand.vmem [shape: f32[1,128], index: 1, kind: input, shape index: {}]
  %s2 = inlined_call_operand.vmem [shape: f32[1,128], index: 2, kind: input, shape index: {}]
  %s3 = inlined_call_operand.vmem [shape: f32[1,128], index: 3, kind: input, shape index: {}]
  %s4 = inlined_call_operand.vmem [shape: f32[1,128], index: 4, kind: input, shape index: {}]
  %s5 = inlined_call_operand.vmem [shape: f32[128,128], index: 5, kind: output, shape index: {}]
  %s6 = sld [smem:[#allocation0]]
  $region30: #{_lambda_.27} parent=0
    _
  %s8 = ssub.s32 1, %s6
  %s9 = scalar_select 0, %s8, %s6
  // Predicated region
  $region2: #{_lambda_.27} parent=0 // pred_check
    _
  $region3: #{_lambda_.27} parent=0 // pred_check_branch
    %11 = sbr.rel (0) target = $region5
  $region4: #{_lambda_.27} parent=0 // pred_region
    _
  $region5: #{_lambda_.27} parent=0 // pred_fallthru
    _
  // Predicated region
  $region6: #{_lambda_.27} parent=0 // pred_check
    _
  $region7: #{_lambda_.27} parent=0 // pred_check_branch
    %13 = sbr.rel (0) target = $region9
  $region8: #{_lambda_.27} parent=0 // pred_region
    _
  $region9: #{_lambda_.27} parent=0 // pred_fallthru
    _
  // Predicated region
  $region10: #{_lambda_.27} parent=0 // pred_check
    _
  $region11: #{_lambda_.27} parent=0 // pred_check_branch
    %15 = sbr.rel (0) target = $region13
  $region12: #{_lambda_.27} parent=0 // pred_region
    _
  $region13: #{_lambda_.27} parent=0 // pred_fallthru
    _
  // Predicated region
  $region14: #{_lambda_.27} parent=0 // pred_check
    _
  $region15: #{_lambda_.27} parent=0 // pred_check_branch
    %17 = sbr.rel (0) target = $region17
  $region16: #{_lambda_.27} parent=0 // pred_region
    _
  $region17: #{_lambda_.27} parent=0 // pred_fallthru
    _
  // Predicated region
  $region18: #{_lambda_.27} parent=0 // pred_check
    _
  $region19: #{_lambda_.27} parent=0 // pred_check_branch
    %19 = sbr.rel (0) target = $region21
  $region20: #{_lambda_.27} parent=0 // pred_region
    _
  $region21: #{_lambda_.27} parent=0 // pred_fallthru
    _
  %v20 = vld [vmem:[%s1] sm:$0x1]
  %v21 = vmul.f32 %v20, 0.0078125
  %v22 = vld [vmem:[%s2] sm:$0x1]
  %v23 = vmul.f32 %v22, 0.0078125
  %v24 = vmul.f32 %v21, %v21
  %v25 = vsub.f32 %v23, %v24
  %v26 = vmax.f32 %v25, 0.0
  %v27 = vadd.f32 %v26, 1e-05
  %v28 = vrsqrt.pop %v27
  %v29 = vld [vmem:[%s3] sm:$0x1]
  %v30 = vmul.f32 %v28, %v29
  %v31 = vld [vmem:[%s0] sm:$0xff]
  %v32 = vld [vmem:[%s0 + $0x8] sm:$0xff]
  %v33 = vld [vmem:[%s0 + $0x10] sm:$0xff]
  %v34 = vld [vmem:[%s0 + $0x18] sm:$0xff]
  %v35 = vld [vmem:[%s0 + $0x20] sm:$0xff]
  %v36 = vld [vmem:[%s0 + $0x28] sm:$0xff]
  %v37 = vld [vmem:[%s0 + $0x30] sm:$0xff]
  %v38 = vld [vmem:[%s0 + $0x38] sm:$0xff]
  %v39 = vld [vmem:[%s0 + $0x40] sm:$0xff]
  %v40 = vld [vmem:[%s0 + $0x48] sm:$0xff]
  %v41 = vld [vmem:[%s0 + $0x50] sm:$0xff]
  %v42 = vld [vmem:[%s0 + $0x58] sm:$0xff]
  %v43 = vld [vmem:[%s0 + $0x60] sm:$0xff]
  %v44 = vld [vmem:[%s0 + $0x68] sm:$0xff]
  %v45 = vld [vmem:[%s0 + $0x70] sm:$0xff]
  %v46 = vld [vmem:[%s0 + $0x78] sm:$0xff]
  %v48 = vlaneseq
  %v49 = vshrl.u32 %v48, 7
  %v50 = vsub.s32 0, %v49
  %v51 = vrot.slane %v21, %v50
  %v53 = vsub.f32 %v31, %v51
  %v54 = vsub.f32 %v32, %v51
  %v55 = vsub.f32 %v33, %v51
  %v56 = vsub.f32 %v34, %v51
  %v57 = vsub.f32 %v35, %v51
  %v58 = vsub.f32 %v36, %v51
  %v59 = vsub.f32 %v37, %v51
  %v60 = vsub.f32 %v38, %v51
  %v61 = vsub.f32 %v39, %v51
  %v62 = vsub.f32 %v40, %v51
  %v63 = vsub.f32 %v41, %v51
  %v64 = vsub.f32 %v42, %v51
  %v65 = vsub.f32 %v43, %v51
  %v66 = vsub.f32 %v44, %v51
  %v67 = vsub.f32 %v45, %v51
  %v68 = vsub.f32 %v46, %v51
  %v70 = vlaneseq
  %v71 = vshrl.u32 %v70, 7
  %v72 = vsub.s32 0, %v71
  %v73 = vrot.slane %v30, %v72
  %v75 = vmul.f32 %v53, %v73
  %v76 = vmul.f32 %v54, %v73
  %v77 = vmul.f32 %v55, %v73
  %v78 = vmul.f32 %v56, %v73
  %v79 = vmul.f32 %v57, %v73
  %v80 = vmul.f32 %v58, %v73
  %v81 = vmul.f32 %v59, %v73
  %v82 = vmul.f32 %v60, %v73
  %v83 = vmul.f32 %v61, %v73
  %v84 = vmul.f32 %v62, %v73
  %v85 = vmul.f32 %v63, %v73
  %v86 = vmul.f32 %v64, %v73
  %v87 = vmul.f32 %v65, %v73
  %v88 = vmul.f32 %v66, %v73
  %v89 = vmul.f32 %v67, %v73
  %v90 = vmul.f32 %v68, %v73
  %v91 = vld [vmem:[%s4] sm:$0x1]
  %v93 = vlaneseq
  %v94 = vshrl.u32 %v93, 7
  %v95 = vsub.s32 0, %v94
  %v96 = vrot.slane %v91, %v95
  %v98 = vadd.f32 %v75, %v96
  %v99 = vadd.f32 %v76, %v96
  %v100 = vadd.f32 %v77, %v96
  %v101 = vadd.f32 %v78, %v96
  %v102 = vadd.f32 %v79, %v96
  %v103 = vadd.f32 %v80, %v96
  %v104 = vadd.f32 %v81, %v96
  %v105 = vadd.f32 %v82, %v96
  %v106 = vadd.f32 %v83, %v96
  %v107 = vadd.f32 %v84, %v96
  %v108 = vadd.f32 %v85, %v96
  %v109 = vadd.f32 %v86, %v96
  %v110 = vadd.f32 %v87, %v96
  %v111 = vadd.f32 %v88, %v96
  %v112 = vadd.f32 %v89, %v96
  %v113 = vadd.f32 %v90, %v96
  %114 = vst [vmem:[%s5] sm:$0xff] %v98
  %115 = vst [vmem:[%s5 + $0x8] sm:$0xff] %v99
  %116 = vst [vmem:[%s5 + $0x10] sm:$0xff] %v100
  %117 = vst [vmem:[%s5 + $0x18] sm:$0xff] %v101
  %118 = vst [vmem:[%s5 + $0x20] sm:$0xff] %v102
  %119 = vst [vmem:[%s5 + $0x28] sm:$0xff] %v103
  %120 = vst [vmem:[%s5 + $0x30] sm:$0xff] %v104
  %121 = vst [vmem:[%s5 + $0x38] sm:$0xff] %v105
  %122 = vst [vmem:[%s5 + $0x40] sm:$0xff] %v106
  %123 = vst [vmem:[%s5 + $0x48] sm:$0xff] %v107
  %124 = vst [vmem:[%s5 + $0x50] sm:$0xff] %v108
  %125 = vst [vmem:[%s5 + $0x58] sm:$0xff] %v109
  %126 = vst [vmem:[%s5 + $0x60] sm:$0xff] %v110
  %127 = vst [vmem:[%s5 + $0x68] sm:$0xff] %v111
  %128 = vst [vmem:[%s5 + $0x70] sm:$0xff] %v112
  %129 = vst [vmem:[%s5 + $0x78] sm:$0xff] %v113
  // Predicated region
  $region22: #{_lambda_.27} parent=0 // pred_check
    _
  $region23: #{_lambda_.27} parent=0 // pred_check_branch
    %131 = sbr.rel (0) target = $region25
  $region24: #{_lambda_.27} parent=0 // pred_region
    _
  $region25: #{_lambda_.27} parent=0 // pred_fallthru
    _
  // Predicated region
  $region26: #{_lambda_.27} parent=0 // pred_check
    _
  $region27: #{_lambda_.27} parent=0 // pred_check_branch
    %133 = sbr.rel (0) target = $region29
  $region28: #{_lambda_.27} parent=0 // pred_region
    _
  $region29: #{_lambda_.27} parent=0 // pred_fallthru
    _

// kernel: _lambda_.28
$region0: #{_lambda_.28}
  #allocation0 [shape = 'u32[]', space=smem, size = 0x4, offset = 0x4, fixed_abs, tag = 'smem constant byte address 0x4 - core index']
  #allocation1 [shape = 'u32[144,128]{1,0:T(1,128)}', space=vmem, size = 0x12000, scoped, tag = 'internal scratch']
  #allocation2 [shape = 'f32[32,128]{1,0:T(8,128)}', space=vmem, size = 0x4000, scoped, tag = 'scratch operand']
  %s0 = inlined_call_operand.vmem [shape: bf16[1,32,256], index: 0, kind: input, shape index: {}]
  %s1 = inlined_call_operand.vmem [shape: bf16[1,256,128], index: 1, kind: input, shape index: {}]
  %s2 = inlined_call_operand.vmem [shape: f32[1,128], index: 2, kind: input, shape index: {}]
  %s3 = inlined_call_operand.vmem [shape: f32[1,32,128], index: 3, kind: output, shape index: {}]
  %s4 = sld [smem:[#allocation0]]
  $region30: #{_lambda_.28} parent=0
    _
  %s6 = ssub.s32 1, %s4
  %s7 = scalar_select 0, %s6, %s4
  // Predicated region
  $region2: #{_lambda_.28} parent=0 // pred_check
    _
  $region3: #{_lambda_.28} parent=0 // pred_check_branch
    %9 = sbr.rel (0) target = $region5
  $region4: #{_lambda_.28} parent=0 // pred_region
    _
  $region5: #{_lambda_.28} parent=0 // pred_fallthru
    _
  // Predicated region
  $region6: #{_lambda_.28} parent=0 // pred_check
    _
  $region7: #{_lambda_.28} parent=0 // pred_check_branch
    %11 = sbr.rel (0) target = $region9
  $region8: #{_lambda_.28} parent=0 // pred_region
    _
  $region9: #{_lambda_.28} parent=0 // pred_fallthru
    _
  // Predicated region
  $region10: #{_lambda_.28} parent=0 // pred_check
    _
  $region11: #{_lambda_.28} parent=0 // pred_check_branch
    %13 = sbr.rel (0) target = $region13
  $region12: #{_lambda_.28} parent=0 // pred_region
    _
  $region13: #{_lambda_.28} parent=0 // pred_fallthru
    _
  %p15 = scmp.eq.s32.totalorder 0, 0
  // Predicated region
  $region14: #{_lambda_.28} parent=0 // pred_check
    %p16 = pneg %p15
  $region15: #{_lambda_.28} parent=0 // pred_check_branch
    %18 = sbr.rel (%p16) target = $region17
  $region16: #{_lambda_.28} parent=0 // pred_region
    %19 = vst [vmem:[#allocation2] sm:$0xff] 0.0
    %20 = vst [vmem:[#allocation2 + $0x8] sm:$0xff] 0.0
    %21 = vst [vmem:[#allocation2 + $0x10] sm:$0xff] 0.0
    %22 = vst [vmem:[#allocation2 + $0x18] sm:$0xff] 0.0
  $region17: #{_lambda_.28} parent=0 // pred_fallthru
    _
  %v23 = vld [vmem:[#allocation2] sm:$0xff]
  %v24 = vld [vmem:[#allocation2 + $0x8] sm:$0xff]
  %v25 = vld [vmem:[#allocation2 + $0x10] sm:$0xff]
  %v26 = vld [vmem:[#allocation2 + $0x18] sm:$0xff]
  %v27 = vld [vmem:[%s0] sm:$0xff]
  %v28 = vld [vmem:[%s0 + $0x8] sm:$0xff]
  %v29 = vld [vmem:[%s0 + $0x10] sm:$0xff]
  %v30 = vld [vmem:[%s0 + $0x18] sm:$0xff]
  %v31 = vld [vmem:[%s1] sm:$0xf]
  %v32 = vld [vmem:[%s1 + $0x4] sm:$0xf]
  %v33 = vld [vmem:[%s1 + $0x8] sm:$0xf]
  %v34 = vld [vmem:[%s1 + $0xc] sm:$0xf]
  %v35 = vld [vmem:[%s1 + $0x10] sm:$0xf]
  %v36 = vld [vmem:[%s1 + $0x14] sm:$0xf]
  %v37 = vld [vmem:[%s1 + $0x18] sm:$0xf]
  %v38 = vld [vmem:[%s1 + $0x1c] sm:$0xf]
  %v39 = vld [vmem:[%s1 + $0x20] sm:$0xf]
  %v40 = vld [vmem:[%s1 + $0x24] sm:$0xf]
  %v41 = vld [vmem:[%s1 + $0x28] sm:$0xf]
  %v42 = vld [vmem:[%s1 + $0x2c] sm:$0xf]
  %v43 = vld [vmem:[%s1 + $0x30] sm:$0xf]
  %v44 = vld [vmem:[%s1 + $0x34] sm:$0xf]
  %v45 = vld [vmem:[%s1 + $0x38] sm:$0xf]
  %v46 = vld [vmem:[%s1 + $0x3c] sm:$0xf]
  %v47 = vld [vmem:[%s1 + $0x40] sm:$0xf]
  %v48 = vld [vmem:[%s1 + $0x44] sm:$0xf]
  %v49 = vld [vmem:[%s1 + $0x48] sm:$0xf]
  %v50 = vld [vmem:[%s1 + $0x4c] sm:$0xf]
  %v51 = vld [vmem:[%s1 + $0x50] sm:$0xf]
  %v52 = vld [vmem:[%s1 + $0x54] sm:$0xf]
  %v53 = vld [vmem:[%s1 + $0x58] sm:$0xf]
  %v54 = vld [vmem:[%s1 + $0x5c] sm:$0xf]
  %v55 = vld [vmem:[%s1 + $0x60] sm:$0xf]
  %v56 = vld [vmem:[%s1 + $0x64] sm:$0xf]
  %v57 = vld [vmem:[%s1 + $0x68] sm:$0xf]
  %v58 = vld [vmem:[%s1 + $0x6c] sm:$0xf]
  %v59 = vld [vmem:[%s1 + $0x70] sm:$0xf]
  %v60 = vld [vmem:[%s1 + $0x74] sm:$0xf]
  %v61 = vld [vmem:[%s1 + $0x78] sm:$0xf]
  %v62 = vld [vmem:[%s1 + $0x7c] sm:$0xf]
  %v67 = vunpack.c.l.b16 %v27
  %v68 = vunpack.c.h.b16 %v27
  %v69 = vunpack.c.l.b16 %v28
  %v70 = vunpack.c.h.b16 %v28
  %v71 = vunpack.c.l.b16 %v29
  %v72 = vunpack.c.h.b16 %v29
  %v73 = vunpack.c.l.b16 %v30
  %v74 = vunpack.c.h.b16 %v30
  %v75 = vpack.c.b16 %v69, %v67
  %v76 = vpack.c.b16 %v70, %v68
  %v77 = vpack.c.b16 %v73, %v71
  %v78 = vpack.c.b16 %v74, %v72
  %v115 = vunpack.c.l.b16 %v31
  %v116 = vunpack.c.l.b16 %v32
  %v117 = vunpack.c.l.b16 %v33
  %v118 = vunpack.c.l.b16 %v34
  %v119 = vunpack.c.l.b16 %v35
  %v120 = vunpack.c.l.b16 %v36
  %v121 = vunpack.c.l.b16 %v37
  %v122 = vunpack.c.l.b16 %v38
  %v123 = vunpack.c.l.b16 %v39
  %v124 = vunpack.c.l.b16 %v40
  %v125 = vunpack.c.l.b16 %v41
  %v126 = vunpack.c.l.b16 %v42
  %v127 = vunpack.c.l.b16 %v43
  %v128 = vunpack.c.l.b16 %v44
  %v129 = vunpack.c.l.b16 %v45
  %v130 = vunpack.c.l.b16 %v46
  %v131 = vunpack.c.l.b16 %v47
  %v132 = vunpack.c.l.b16 %v48
  %v133 = vunpack.c.l.b16 %v49
  %v134 = vunpack.c.l.b16 %v50
  %v135 = vunpack.c.l.b16 %v51
  %v136 = vunpack.c.l.b16 %v52
  %v137 = vunpack.c.l.b16 %v53
  %v138 = vunpack.c.l.b16 %v54
  %v139 = vunpack.c.l.b16 %v55
  %v140 = vunpack.c.l.b16 %v56
  %v141 = vunpack.c.l.b16 %v57
  %v142 = vunpack.c.l.b16 %v58
  %v143 = vunpack.c.l.b16 %v59
  %v144 = vunpack.c.l.b16 %v60
  %v145 = vunpack.c.l.b16 %v61
  %v146 = vunpack.c.l.b16 %v62
  %v147 = vpack.c.b16 %v116, %v115
  %v148 = vpack.c.b16 %v118, %v117
  %v149 = vpack.c.b16 %v120, %v119
  %v150 = vpack.c.b16 %v122, %v121
  %v151 = vpack.c.b16 %v124, %v123
  %v152 = vpack.c.b16 %v126, %v125
  %v153 = vpack.c.b16 %v128, %v127
  %v154 = vpack.c.b16 %v130, %v129
  %v155 = vpack.c.b16 %v132, %v131
  %v156 = vpack.c.b16 %v134, %v133
  %v157 = vpack.c.b16 %v136, %v135
  %v158 = vpack.c.b16 %v138, %v137
  %v159 = vpack.c.b16 %v140, %v139
  %v160 = vpack.c.b16 %v142, %v141
  %v161 = vpack.c.b16 %v144, %v143
  %v162 = vpack.c.b16 %v146, %v145
  %179 = vmatprep.subr.bf16.mxu0 0
  %180 = vmatpush1.bf16.msra.mxu0 %v147
  %181 = vmatprep.subr.bf16.mxu0 0
  %182 = vmatpush1.bf16.msra.mxu0 %v148
  %183 = vmatprep.subr.bf16.mxu0 0
  %184 = vmatpush1.bf16.msra.mxu0 %v149
  %185 = vmatprep.subr.bf16.mxu0 0
  %186 = vmatpush1.bf16.msra.mxu0 %v150
  %187 = vmatprep.subr.bf16.mxu0 0
  %188 = vmatpush1.bf16.msra.mxu0 %v151
  %189 = vmatprep.subr.bf16.mxu0 0
  %190 = vmatpush1.bf16.msra.mxu0 %v152
  %191 = vmatprep.subr.bf16.mxu0 0
  %192 = vmatpush1.bf16.msra.mxu0 %v153
  %193 = vmatprep.subr.bf16.mxu0 0
  %194 = vmatpush1.bf16.msra.mxu0 %v154
  %195 = vmatprep.subr.bf16.mxu0 0
  %196 = vmatpush1.bf16.msra.mxu0 %v155
  %197 = vmatprep.subr.bf16.mxu0 0
  %198 = vmatpush1.bf16.msra.mxu0 %v156
  %199 = vmatprep.subr.bf16.mxu0 0
  %200 = vmatpush1.bf16.msra.mxu0 %v157
  %201 = vmatprep.subr.bf16.mxu0 0
  %202 = vmatpush1.bf16.msra.mxu0 %v158
  %203 = vmatprep.subr.bf16.mxu0 0
  %204 = vmatpush1.bf16.msra.mxu0 %v159
  %205 = vmatprep.subr.bf16.mxu0 0
  %206 = vmatpush1.bf16.msra.mxu0 %v160
  %207 = vmatprep.subr.bf16.mxu0 0
  %208 = vmatpush1.bf16.msra.mxu0 %v161
  %209 = vmatprep.subr.bf16.mxu0 0
  %210 = vmatpush1.bf16.msra.mxu0 %v162
  %211 = vmatprep.mubr.bf16.mxu0 %v76
  %212 = vmatmul.mubr.bf16.gmra.mrb[0].mxu0 %v75
  %v213 = vpop.f32.mrb[0].mxu0
  %v214 = vadd.f32 0.0, %v213
  %v215 = vpop.f32.mrb[0].mxu0
  %v216 = vpop.f32.mrb[0].mxu0
  %v217 = vadd.f32 0.0, %v216
  %v218 = vpop.f32.mrb[0].mxu0
  %219 = vmatprep.mubr.bf16.mxu0 %v78
  %220 = vmatmul.mubr.bf16.gmra.mrb[0].mxu0 %v77
  %v221 = vpop.f32.mrb[0].mxu0
  %v222 = vadd.f32 0.0, %v221
  %v223 = vpop.f32.mrb[0].mxu0
  %v224 = vpop.f32.mrb[0].mxu0
  %v225 = vadd.f32 0.0, %v224
  %v226 = vpop.f32.mrb[0].mxu0
  %227 = vdwg.mxu0
  %v228 = vadd.f32 %v23, %v214
  %v229 = vadd.f32 %v24, %v217
  %v230 = vadd.f32 %v25, %v222
  %v231 = vadd.f32 %v26, %v225
  %232 = vst [vmem:[#allocation2] sm:$0xff] %v228
  %233 = vst [vmem:[#allocation2 + $0x8] sm:$0xff] %v229
  %234 = vst [vmem:[#allocation2 + $0x10] sm:$0xff] %v230
  %235 = vst [vmem:[#allocation2 + $0x18] sm:$0xff] %v231
  // Predicated region
  $region18: #{_lambda_.28} parent=0 // pred_check
    %p236 = pneg %p15
  $region19: #{_lambda_.28} parent=0 // pred_check_branch
    %238 = sbr.rel (%p236) target = $region21
  $region20: #{_lambda_.28} parent=0 // pred_region
    %v239 = vld [vmem:[#allocation2] sm:$0xff]
    %v240 = vld [vmem:[#allocation2 + $0x8] sm:$0xff]
    %v241 = vld [vmem:[#allocation2 + $0x10] sm:$0xff]
    %v242 = vld [vmem:[#allocation2 + $0x18] sm:$0xff]
    %v243 = vld [vmem:[%s2] sm:$0x1]
    %v245 = vlaneseq
    %v246 = vshrl.u32 %v245, 7
    %v247 = vsub.s32 0, %v246
    %v248 = vrot.slane %v243, %v247
    %v250 = vadd.f32 %v239, %v248
    %v251 = vadd.f32 %v240, %v248
    %v252 = vadd.f32 %v241, %v248
    %v253 = vadd.f32 %v242, %v248
    %254 = vst [vmem:[%s3] sm:$0xff] %v250
    %255 = vst [vmem:[%s3 + $0x8] sm:$0xff] %v251
    %256 = vst [vmem:[%s3 + $0x10] sm:$0xff] %v252
    %257 = vst [vmem:[%s3 + $0x18] sm:$0xff] %v253
  $region21: #{_lambda_.28} parent=0 // pred_fallthru
    _
  // Predicated region
  $region22: #{_lambda_.28} parent=0 // pred_check
    _
  $region23: #{_lambda_.28} parent=0 // pred_check_branch
    %259 = sbr.rel (0) target = $region25
  $region24: #{_lambda_.28} parent=0 // pred_region
    _
  $region25: #{_lambda_.28} parent=0 // pred_fallthru
    _
  // Predicated region
  $region26: #{_lambda_.28} parent=0 // pred_check
    _
  $region27: #{_lambda_.28} parent=0 // pred_check_branch
    %261 = sbr.rel (0) target = $region29
  $region28: #{_lambda_.28} parent=0 // pred_region
    _
  $region29: #{_lambda_.28} parent=0 // pred_fallthru
    _

// kernel: _lambda_.29
$region0: #{_lambda_.29}
  #allocation0 [shape = 'u32[]', space=smem, size = 0x4, offset = 0x4, fixed_abs, tag = 'smem constant byte address 0x4 - core index']
  #allocation1 [shape = 'u32[144,128]{1,0:T(1,128)}', space=vmem, size = 0x12000, scoped, tag = 'internal scratch']
  %s0 = inlined_call_operand.vmem [shape: f32[32,128], index: 0, kind: input, shape index: {}]
  %s1 = inlined_call_operand.vmem [shape: f32[1,128], index: 1, kind: output, shape index: {0}]
  %s2 = inlined_call_operand.vmem [shape: f32[1,128], index: 2, kind: output, shape index: {1}]
  %3 = xla_tuple %s1, %s2
  %s4 = sld [smem:[#allocation0]]
  $region26: #{_lambda_.29} parent=0
    _
  %s6 = ssub.s32 1, %s4
  %s7 = scalar_select 0, %s6, %s4
  // Predicated region
  $region2: #{_lambda_.29} parent=0 // pred_check
    _
  $region3: #{_lambda_.29} parent=0 // pred_check_branch
    %9 = sbr.rel (0) target = $region5
  $region4: #{_lambda_.29} parent=0 // pred_region
    _
  $region5: #{_lambda_.29} parent=0 // pred_fallthru
    _
  %v10 = vld [vmem:[%s0] sm:$0xff]
  %v11 = vld [vmem:[%s0 + $0x8] sm:$0xff]
  %v12 = vld [vmem:[%s0 + $0x10] sm:$0xff]
  %v13 = vld [vmem:[%s0 + $0x18] sm:$0xff]
  %p14 = scmp.eq.s32.totalorder 0, 0
  // Predicated region
  $region6: #{_lambda_.29} parent=0 // pred_check
    %p15 = pneg %p14
  $region7: #{_lambda_.29} parent=0 // pred_check_branch
    %17 = sbr.rel (%p15) target = $region9
  $region8: #{_lambda_.29} parent=0 // pred_region
    %18 = vst [vmem:[%s1] sm:$0x1] 0.0
    %19 = vst [vmem:[%s2] sm:$0x1] 0.0
  $region9: #{_lambda_.29} parent=0 // pred_fallthru
    _
  %v20 = vld [vmem:[%s1] sm:$0x1]
  %v21 = vadd.f32 %v10, %v11
  %v22 = vadd.f32 %v21, %v12
  %v23 = vadd.f32 %v22, %v13
  %v24 = vrot.slane %v23, 4
  %v25 = vadd.f32 %v23, %v24
  %v26 = vrot.slane %v25, 2
  %v27 = vadd.f32 %v25, %v26
  %v28 = vrot.slane %v27, 1
  %v29 = vadd.f32 %v27, %v28
  %v30 = vadd.f32 %v20, %v29
  %31 = vst [vmem:[%s1] sm:$0x1] %v30
  %v32 = vld [vmem:[%s2] sm:$0x1]
  %v33 = vmul.f32 %v10, %v10
  %v34 = vmul.f32 %v11, %v11
  %v35 = vmul.f32 %v12, %v12
  %v36 = vmul.f32 %v13, %v13
  %v37 = vadd.f32 %v33, %v34
  %v38 = vadd.f32 %v37, %v35
  %v39 = vadd.f32 %v38, %v36
  %v40 = vrot.slane %v39, 4
  %v41 = vadd.f32 %v39, %v40
  %v42 = vrot.slane %v41, 2
  %v43 = vadd.f32 %v41, %v42
  %v44 = vrot.slane %v43, 1
  %v45 = vadd.f32 %v43, %v44
  %v46 = vadd.f32 %v32, %v45
  %47 = vst [vmem:[%s2] sm:$0x1] %v46
  // Predicated region
  $region10: #{_lambda_.29} parent=0 // pred_check
    _
  $region11: #{_lambda_.29} parent=0 // pred_check_branch
    %49 = sbr.rel (0) target = $region13
  $region12: #{_lambda_.29} parent=0 // pred_region
    _
  $region13: #{_lambda_.29} parent=0 // pred_fallthru
    _
  // Predicated region
  $region14: #{_lambda_.29} parent=0 // pred_check
    _
  $region15: #{_lambda_.29} parent=0 // pred_check_branch
    %51 = sbr.rel (0) target = $region17
  $region16: #{_lambda_.29} parent=0 // pred_region
    _
  $region17: #{_lambda_.29} parent=0 // pred_fallthru
    _
  // Predicated region
  $region18: #{_lambda_.29} parent=0 // pred_check
    _
  $region19: #{_lambda_.29} parent=0 // pred_check_branch
    %53 = sbr.rel (0) target = $region21
  $region20: #{_lambda_.29} parent=0 // pred_region
    _
  $region21: #{_lambda_.29} parent=0 // pred_fallthru
    _
  // Predicated region
  $region22: #{_lambda_.29} parent=0 // pred_check
    _
  $region23: #{_lambda_.29} parent=0 // pred_check_branch
    %55 = sbr.rel (0) target = $region25
  $region24: #{_lambda_.29} parent=0 // pred_region
    _
  $region25: #{_lambda_.29} parent=0 // pred_fallthru
    _

// kernel: _lambda_.30
$region0: #{_lambda_.30}
  #allocation0 [shape = 'u32[]', space=smem, size = 0x4, offset = 0x4, fixed_abs, tag = 'smem constant byte address 0x4 - core index']
  #allocation1 [shape = 'u32[144,128]{1,0:T(1,128)}', space=vmem, size = 0x12000, scoped, tag = 'internal scratch']
  %s0 = inlined_call_operand.vmem [shape: f32[32,128], index: 0, kind: input, shape index: {}]
  %s1 = inlined_call_operand.vmem [shape: f32[1,128], index: 1, kind: input, shape index: {}]
  %s2 = inlined_call_operand.vmem [shape: f32[1,128], index: 2, kind: input, shape index: {}]
  %s3 = inlined_call_operand.vmem [shape: f32[1,128], index: 3, kind: input, shape index: {}]
  %s4 = inlined_call_operand.vmem [shape: f32[1,128], index: 4, kind: input, shape index: {}]
  %s5 = inlined_call_operand.vmem [shape: f32[32,128], index: 5, kind: output, shape index: {}]
  %s6 = sld [smem:[#allocation0]]
  $region30: #{_lambda_.30} parent=0
    _
  %s8 = ssub.s32 1, %s6
  %s9 = scalar_select 0, %s8, %s6
  // Predicated region
  $region2: #{_lambda_.30} parent=0 // pred_check
    _
  $region3: #{_lambda_.30} parent=0 // pred_check_branch
    %11 = sbr.rel (0) target = $region5
  $region4: #{_lambda_.30} parent=0 // pred_region
    _
  $region5: #{_lambda_.30} parent=0 // pred_fallthru
    _
  // Predicated region
  $region6: #{_lambda_.30} parent=0 // pred_check
    _
  $region7: #{_lambda_.30} parent=0 // pred_check_branch
    %13 = sbr.rel (0) target = $region9
  $region8: #{_lambda_.30} parent=0 // pred_region
    _
  $region9: #{_lambda_.30} parent=0 // pred_fallthru
    _
  // Predicated region
  $region10: #{_lambda_.30} parent=0 // pred_check
    _
  $region11: #{_lambda_.30} parent=0 // pred_check_branch
    %15 = sbr.rel (0) target = $region13
  $region12: #{_lambda_.30} parent=0 // pred_region
    _
  $region13: #{_lambda_.30} parent=0 // pred_fallthru
    _
  // Predicated region
  $region14: #{_lambda_.30} parent=0 // pred_check
    _
  $region15: #{_lambda_.30} parent=0 // pred_check_branch
    %17 = sbr.rel (0) target = $region17
  $region16: #{_lambda_.30} parent=0 // pred_region
    _
  $region17: #{_lambda_.30} parent=0 // pred_fallthru
    _
  // Predicated region
  $region18: #{_lambda_.30} parent=0 // pred_check
    _
  $region19: #{_lambda_.30} parent=0 // pred_check_branch
    %19 = sbr.rel (0) target = $region21
  $region20: #{_lambda_.30} parent=0 // pred_region
    _
  $region21: #{_lambda_.30} parent=0 // pred_fallthru
    _
  %v20 = vld [vmem:[%s1] sm:$0x1]
  %v21 = vmul.f32 %v20, 0.03125
  %v22 = vld [vmem:[%s2] sm:$0x1]
  %v23 = vmul.f32 %v22, 0.03125
  %v24 = vmul.f32 %v21, %v21
  %v25 = vsub.f32 %v23, %v24
  %v26 = vmax.f32 %v25, 0.0
  %v27 = vadd.f32 %v26, 1e-05
  %v28 = vrsqrt.pop %v27
  %v29 = vld [vmem:[%s3] sm:$0x1]
  %v30 = vmul.f32 %v28, %v29
  %v31 = vld [vmem:[%s0] sm:$0xff]
  %v32 = vld [vmem:[%s0 + $0x8] sm:$0xff]
  %v33 = vld [vmem:[%s0 + $0x10] sm:$0xff]
  %v34 = vld [vmem:[%s0 + $0x18] sm:$0xff]
  %v36 = vlaneseq
  %v37 = vshrl.u32 %v36, 7
  %v38 = vsub.s32 0, %v37
  %v39 = vrot.slane %v21, %v38
  %v41 = vsub.f32 %v31, %v39
  %v42 = vsub.f32 %v32, %v39
  %v43 = vsub.f32 %v33, %v39
  %v44 = vsub.f32 %v34, %v39
  %v46 = vlaneseq
  %v47 = vshrl.u32 %v46, 7
  %v48 = vsub.s32 0, %v47
  %v49 = vrot.slane %v30, %v48
  %v51 = vmul.f32 %v41, %v49
  %v52 = vmul.f32 %v42, %v49
  %v53 = vmul.f32 %v43, %v49
  %v54 = vmul.f32 %v44, %v49
  %v55 = vld [vmem:[%s4] sm:$0x1]
  %v57 = vlaneseq
  %v58 = vshrl.u32 %v57, 7
  %v59 = vsub.s32 0, %v58
  %v60 = vrot.slane %v55, %v59
  %v62 = vadd.f32 %v51, %v60
  %v63 = vadd.f32 %v52, %v60
  %v64 = vadd.f32 %v53, %v60
  %v65 = vadd.f32 %v54, %v60
  %66 = vst [vmem:[%s5] sm:$0xff] %v62
  %67 = vst [vmem:[%s5 + $0x8] sm:$0xff] %v63
  %68 = vst [vmem:[%s5 + $0x10] sm:$0xff] %v64
  %69 = vst [vmem:[%s5 + $0x18] sm:$0xff] %v65
  // Predicated region
  $region22: #{_lambda_.30} parent=0 // pred_check
    _
  $region23: #{_lambda_.30} parent=0 // pred_check_branch
    %71 = sbr.rel (0) target = $region25
  $region24: #{_lambda_.30} parent=0 // pred_region
    _
  $region25: #{_lambda_.30} parent=0 // pred_fallthru
    _
  // Predicated region
  $region26: #{_lambda_.30} parent=0 // pred_check
    _
  $region27: #{_lambda_.30} parent=0 // pred_check_branch
    %73 = sbr.rel (0) target = $region29
  $region28: #{_lambda_.30} parent=0 // pred_region
    _
  $region29: #{_lambda_.30} parent=0 // pred_fallthru
    _

// kernel: _lambda_.33
$region0: #{_lambda_.33}
  #allocation0 [shape = 'u32[]', space=smem, size = 0x4, offset = 0x4, fixed_abs, tag = 'smem constant byte address 0x4 - core index']
  #allocation1 [shape = 'u32[144,128]{1,0:T(1,128)}', space=vmem, size = 0x12000, scoped, tag = 'internal scratch']
  %s0 = inlined_call_operand.vmem [shape: f32[8,128], index: 0, kind: input, shape index: {}]
  %s1 = inlined_call_operand.vmem [shape: f32[1,128], index: 1, kind: input, shape index: {}]
  %s2 = inlined_call_operand.vmem [shape: f32[1,128], index: 2, kind: input, shape index: {}]
  %s3 = inlined_call_operand.vmem [shape: f32[1,128], index: 3, kind: input, shape index: {}]
  %s4 = inlined_call_operand.vmem [shape: f32[1,128], index: 4, kind: input, shape index: {}]
  %s5 = inlined_call_operand.vmem [shape: f32[8,128], index: 5, kind: output, shape index: {}]
  %s6 = sld [smem:[#allocation0]]
  $region30: #{_lambda_.33} parent=0
    _
  %s8 = ssub.s32 1, %s6
  %s9 = scalar_select 0, %s8, %s6
  // Predicated region
  $region2: #{_lambda_.33} parent=0 // pred_check
    _
  $region3: #{_lambda_.33} parent=0 // pred_check_branch
    %11 = sbr.rel (0) target = $region5
  $region4: #{_lambda_.33} parent=0 // pred_region
    _
  $region5: #{_lambda_.33} parent=0 // pred_fallthru
    _
  // Predicated region
  $region6: #{_lambda_.33} parent=0 // pred_check
    _
  $region7: #{_lambda_.33} parent=0 // pred_check_branch
    %13 = sbr.rel (0) target = $region9
  $region8: #{_lambda_.33} parent=0 // pred_region
    _
  $region9: #{_lambda_.33} parent=0 // pred_fallthru
    _
  // Predicated region
  $region10: #{_lambda_.33} parent=0 // pred_check
    _
  $region11: #{_lambda_.33} parent=0 // pred_check_branch
    %15 = sbr.rel (0) target = $region13
  $region12: #{_lambda_.33} parent=0 // pred_region
    _
  $region13: #{_lambda_.33} parent=0 // pred_fallthru
    _
  // Predicated region
  $region14: #{_lambda_.33} parent=0 // pred_check
    _
  $region15: #{_lambda_.33} parent=0 // pred_check_branch
    %17 = sbr.rel (0) target = $region17
  $region16: #{_lambda_.33} parent=0 // pred_region
    _
  $region17: #{_lambda_.33} parent=0 // pred_fallthru
    _
  // Predicated region
  $region18: #{_lambda_.33} parent=0 // pred_check
    _
  $region19: #{_lambda_.33} parent=0 // pred_check_branch
    %19 = sbr.rel (0) target = $region21
  $region20: #{_lambda_.33} parent=0 // pred_region
    _
  $region21: #{_lambda_.33} parent=0 // pred_fallthru
    _
  %v20 = vld [vmem:[%s1] sm:$0x1]
  %v21 = vmul.f32 %v20, 0.125
  %v22 = vld [vmem:[%s2] sm:$0x1]
  %v23 = vmul.f32 %v22, 0.125
  %v24 = vmul.f32 %v21, %v21
  %v25 = vsub.f32 %v23, %v24
  %v26 = vmax.f32 %v25, 0.0
  %v27 = vadd.f32 %v26, 1e-05
  %v28 = vrsqrt.pop %v27
  %v29 = vld [vmem:[%s3] sm:$0x1]
  %v30 = vmul.f32 %v28, %v29
  %v31 = vld [vmem:[%s0] sm:$0xff]
  %v33 = vlaneseq
  %v34 = vshrl.u32 %v33, 7
  %v35 = vsub.s32 0, %v34
  %v36 = vrot.slane %v21, %v35
  %v38 = vsub.f32 %v31, %v36
  %v40 = vlaneseq
  %v41 = vshrl.u32 %v40, 7
  %v42 = vsub.s32 0, %v41
  %v43 = vrot.slane %v30, %v42
  %v45 = vmul.f32 %v38, %v43
  %v46 = vld [vmem:[%s4] sm:$0x1]
  %v48 = vlaneseq
  %v49 = vshrl.u32 %v48, 7
  %v50 = vsub.s32 0, %v49
  %v51 = vrot.slane %v46, %v50
  %v53 = vadd.f32 %v45, %v51
  %54 = vst [vmem:[%s5] sm:$0xff] %v53
  // Predicated region
  $region22: #{_lambda_.33} parent=0 // pred_check
    _
  $region23: #{_lambda_.33} parent=0 // pred_check_branch
    %56 = sbr.rel (0) target = $region25
  $region24: #{_lambda_.33} parent=0 // pred_region
    _
  $region25: #{_lambda_.33} parent=0 // pred_fallthru
    _
  // Predicated region
  $region26: #{_lambda_.33} parent=0 // pred_check
    _
  $region27: #{_lambda_.33} parent=0 // pred_check_branch
    %58 = sbr.rel (0) target = $region29
  $region28: #{_lambda_.33} parent=0 // pred_region
    _
  $region29: #{_lambda_.33} parent=0 // pred_fallthru
    _

// kernel: _lambda_.31
$region0: #{_lambda_.31}
  #allocation0 [shape = 'u32[]', space=smem, size = 0x4, offset = 0x4, fixed_abs, tag = 'smem constant byte address 0x4 - core index']
  #allocation1 [shape = 'u32[144,128]{1,0:T(1,128)}', space=vmem, size = 0x12000, scoped, tag = 'internal scratch']
  #allocation2 [shape = 'f32[8,128]{1,0:T(8,128)}', space=vmem, size = 0x1000, scoped, tag = 'scratch operand']
  %s0 = inlined_call_operand.vmem [shape: bf16[1,8,512], index: 0, kind: input, shape index: {}]
  %s1 = inlined_call_operand.vmem [shape: bf16[1,512,128], index: 1, kind: input, shape index: {}]
  %s2 = inlined_call_operand.vmem [shape: f32[1,128], index: 2, kind: input, shape index: {}]
  %s3 = inlined_call_operand.vmem [shape: f32[1,8,128], index: 3, kind: output, shape index: {}]
  %s4 = sld [smem:[#allocation0]]
  $region30: #{_lambda_.31} parent=0
    _
  %s6 = ssub.s32 1, %s4
  %s7 = scalar_select 0, %s6, %s4
  // Predicated region
  $region2: #{_lambda_.31} parent=0 // pred_check
    _
  $region3: #{_lambda_.31} parent=0 // pred_check_branch
    %9 = sbr.rel (0) target = $region5
  $region4: #{_lambda_.31} parent=0 // pred_region
    _
  $region5: #{_lambda_.31} parent=0 // pred_fallthru
    _
  // Predicated region
  $region6: #{_lambda_.31} parent=0 // pred_check
    _
  $region7: #{_lambda_.31} parent=0 // pred_check_branch
    %11 = sbr.rel (0) target = $region9
  $region8: #{_lambda_.31} parent=0 // pred_region
    _
  $region9: #{_lambda_.31} parent=0 // pred_fallthru
    _
  // Predicated region
  $region10: #{_lambda_.31} parent=0 // pred_check
    _
  $region11: #{_lambda_.31} parent=0 // pred_check_branch
    %13 = sbr.rel (0) target = $region13
  $region12: #{_lambda_.31} parent=0 // pred_region
    _
  $region13: #{_lambda_.31} parent=0 // pred_fallthru
    _
  %p15 = scmp.eq.s32.totalorder 0, 0
  // Predicated region
  $region14: #{_lambda_.31} parent=0 // pred_check
    %p16 = pneg %p15
  $region15: #{_lambda_.31} parent=0 // pred_check_branch
    %18 = sbr.rel (%p16) target = $region17
  $region16: #{_lambda_.31} parent=0 // pred_region
    %19 = vst [vmem:[#allocation2] sm:$0xff] 0.0
  $region17: #{_lambda_.31} parent=0 // pred_fallthru
    _
  %v20 = vld [vmem:[#allocation2] sm:$0xff]
  %v21 = vld [vmem:[%s0] sm:$0xff]
  %v22 = vld [vmem:[%s0 + $0x8] sm:$0xff]
  %v23 = vld [vmem:[%s1] sm:$0xf]
  %v24 = vld [vmem:[%s1 + $0x4] sm:$0xf]
  %v25 = vld [vmem:[%s1 + $0x8] sm:$0xf]
  %v26 = vld [vmem:[%s1 + $0xc] sm:$0xf]
  %v27 = vld [vmem:[%s1 + $0x10] sm:$0xf]
  %v28 = vld [vmem:[%s1 + $0x14] sm:$0xf]
  %v29 = vld [vmem:[%s1 + $0x18] sm:$0xf]
  %v30 = vld [vmem:[%s1 + $0x1c] sm:$0xf]
  %v31 = vld [vmem:[%s1 + $0x20] sm:$0xf]
  %v32 = vld [vmem:[%s1 + $0x24] sm:$0xf]
  %v33 = vld [vmem:[%s1 + $0x28] sm:$0xf]
  %v34 = vld [vmem:[%s1 + $0x2c] sm:$0xf]
  %v35 = vld [vmem:[%s1 + $0x30] sm:$0xf]
  %v36 = vld [vmem:[%s1 + $0x34] sm:$0xf]
  %v37 = vld [vmem:[%s1 + $0x38] sm:$0xf]
  %v38 = vld [vmem:[%s1 + $0x3c] sm:$0xf]
  %v39 = vld [vmem:[%s1 + $0x40] sm:$0xf]
  %v40 = vld [vmem:[%s1 + $0x44] sm:$0xf]
  %v41 = vld [vmem:[%s1 + $0x48] sm:$0xf]
  %v42 = vld [vmem:[%s1 + $0x4c] sm:$0xf]
  %v43 = vld [vmem:[%s1 + $0x50] sm:$0xf]
  %v44 = vld [vmem:[%s1 + $0x54] sm:$0xf]
  %v45 = vld [vmem:[%s1 + $0x58] sm:$0xf]
  %v46 = vld [vmem:[%s1 + $0x5c] sm:$0xf]
  %v47 = vld [vmem:[%s1 + $0x60] sm:$0xf]
  %v48 = vld [vmem:[%s1 + $0x64] sm:$0xf]
  %v49 = vld [vmem:[%s1 + $0x68] sm:$0xf]
  %v50 = vld [vmem:[%s1 + $0x6c] sm:$0xf]
  %v51 = vld [vmem:[%s1 + $0x70] sm:$0xf]
  %v52 = vld [vmem:[%s1 + $0x74] sm:$0xf]
  %v53 = vld [vmem:[%s1 + $0x78] sm:$0xf]
  %v54 = vld [vmem:[%s1 + $0x7c] sm:$0xf]
  %v55 = vld [vmem:[%s1 + $0x80] sm:$0xf]
  %v56 = vld [vmem:[%s1 + $0x84] sm:$0xf]
  %v57 = vld [vmem:[%s1 + $0x88] sm:$0xf]
  %v58 = vld [vmem:[%s1 + $0x8c] sm:$0xf]
  %v59 = vld [vmem:[%s1 + $0x90] sm:$0xf]
  %v60 = vld [vmem:[%s1 + $0x94] sm:$0xf]
  %v61 = vld [vmem:[%s1 + $0x98] sm:$0xf]
  %v62 = vld [vmem:[%s1 + $0x9c] sm:$0xf]
  %v63 = vld [vmem:[%s1 + $0xa0] sm:$0xf]
  %v64 = vld [vmem:[%s1 + $0xa4] sm:$0xf]
  %v65 = vld [vmem:[%s1 + $0xa8] sm:$0xf]
  %v66 = vld [vmem:[%s1 + $0xac] sm:$0xf]
  %v67 = vld [vmem:[%s1 + $0xb0] sm:$0xf]
  %v68 = vld [vmem:[%s1 + $0xb4] sm:$0xf]
  %v69 = vld [vmem:[%s1 + $0xb8] sm:$0xf]
  %v70 = vld [vmem:[%s1 + $0xbc] sm:$0xf]
  %v71 = vld [vmem:[%s1 + $0xc0] sm:$0xf]
  %v72 = vld [vmem:[%s1 + $0xc4] sm:$0xf]
  %v73 = vld [vmem:[%s1 + $0xc8] sm:$0xf]
  %v74 = vld [vmem:[%s1 + $0xcc] sm:$0xf]
  %v75 = vld [vmem:[%s1 + $0xd0] sm:$0xf]
  %v76 = vld [vmem:[%s1 + $0xd4] sm:$0xf]
  %v77 = vld [vmem:[%s1 + $0xd8] sm:$0xf]
  %v78 = vld [vmem:[%s1 + $0xdc] sm:$0xf]
  %v79 = vld [vmem:[%s1 + $0xe0] sm:$0xf]
  %v80 = vld [vmem:[%s1 + $0xe4] sm:$0xf]
  %v81 = vld [vmem:[%s1 + $0xe8] sm:$0xf]
  %v82 = vld [vmem:[%s1 + $0xec] sm:$0xf]
  %v83 = vld [vmem:[%s1 + $0xf0] sm:$0xf]
  %v84 = vld [vmem:[%s1 + $0xf4] sm:$0xf]
  %v85 = vld [vmem:[%s1 + $0xf8] sm:$0xf]
  %v86 = vld [vmem:[%s1 + $0xfc] sm:$0xf]
  %v89 = vunpack.c.l.b16 %v21
  %v90 = vunpack.c.h.b16 %v21
  %v91 = vunpack.c.l.b16 %v22
  %v92 = vunpack.c.h.b16 %v22
  %v93 = vpack.c.b16 %v89, %v89
  %v94 = vpack.c.b16 %v90, %v90
  %v95 = vpack.c.b16 %v91, %v91
  %v96 = vpack.c.b16 %v92, %v92
  %v165 = vunpack.c.l.b16 %v23
  %v166 = vunpack.c.l.b16 %v24
  %v167 = vunpack.c.l.b16 %v25
  %v168 = vunpack.c.l.b16 %v26
  %v169 = vunpack.c.l.b16 %v27
  %v170 = vunpack.c.l.b16 %v28
  %v171 = vunpack.c.l.b16 %v29
  %v172 = vunpack.c.l.b16 %v30
  %v173 = vunpack.c.l.b16 %v31
  %v174 = vunpack.c.l.b16 %v32
  %v175 = vunpack.c.l.b16 %v33
  %v176 = vunpack.c.l.b16 %v34
  %v177 = vunpack.c.l.b16 %v35
  %v178 = vunpack.c.l.b16 %v36
  %v179 = vunpack.c.l.b16 %v37
  %v180 = vunpack.c.l.b16 %v38
  %v181 = vunpack.c.l.b16 %v39
  %v182 = vunpack.c.l.b16 %v40
  %v183 = vunpack.c.l.b16 %v41
  %v184 = vunpack.c.l.b16 %v42
  %v185 = vunpack.c.l.b16 %v43
  %v186 = vunpack.c.l.b16 %v44
  %v187 = vunpack.c.l.b16 %v45
  %v188 = vunpack.c.l.b16 %v46
  %v189 = vunpack.c.l.b16 %v47
  %v190 = vunpack.c.l.b16 %v48
  %v191 = vunpack.c.l.b16 %v49
  %v192 = vunpack.c.l.b16 %v50
  %v193 = vunpack.c.l.b16 %v51
  %v194 = vunpack.c.l.b16 %v52
  %v195 = vunpack.c.l.b16 %v53
  %v196 = vunpack.c.l.b16 %v54
  %v197 = vunpack.c.l.b16 %v55
  %v198 = vunpack.c.l.b16 %v56
  %v199 = vunpack.c.l.b16 %v57
  %v200 = vunpack.c.l.b16 %v58
  %v201 = vunpack.c.l.b16 %v59
  %v202 = vunpack.c.l.b16 %v60
  %v203 = vunpack.c.l.b16 %v61
  %v204 = vunpack.c.l.b16 %v62
  %v205 = vunpack.c.l.b16 %v63
  %v206 = vunpack.c.l.b16 %v64
  %v207 = vunpack.c.l.b16 %v65
  %v208 = vunpack.c.l.b16 %v66
  %v209 = vunpack.c.l.b16 %v67
  %v210 = vunpack.c.l.b16 %v68
  %v211 = vunpack.c.l.b16 %v69
  %v212 = vunpack.c.l.b16 %v70
  %v213 = vunpack.c.l.b16 %v71
  %v214 = vunpack.c.l.b16 %v72
  %v215 = vunpack.c.l.b16 %v73
  %v216 = vunpack.c.l.b16 %v74
  %v217 = vunpack.c.l.b16 %v75
  %v218 = vunpack.c.l.b16 %v76
  %v219 = vunpack.c.l.b16 %v77
  %v220 = vunpack.c.l.b16 %v78
  %v221 = vunpack.c.l.b16 %v79
  %v222 = vunpack.c.l.b16 %v80
  %v223 = vunpack.c.l.b16 %v81
  %v224 = vunpack.c.l.b16 %v82
  %v225 = vunpack.c.l.b16 %v83
  %v226 = vunpack.c.l.b16 %v84
  %v227 = vunpack.c.l.b16 %v85
  %v228 = vunpack.c.l.b16 %v86
  %v229 = vpack.c.b16 %v166, %v165
  %v230 = vpack.c.b16 %v168, %v167
  %v231 = vpack.c.b16 %v170, %v169
  %v232 = vpack.c.b16 %v172, %v171
  %v233 = vpack.c.b16 %v174, %v173
  %v234 = vpack.c.b16 %v176, %v175
  %v235 = vpack.c.b16 %v178, %v177
  %v236 = vpack.c.b16 %v180, %v179
  %v237 = vpack.c.b16 %v182, %v181
  %v238 = vpack.c.b16 %v184, %v183
  %v239 = vpack.c.b16 %v186, %v185
  %v240 = vpack.c.b16 %v188, %v187
  %v241 = vpack.c.b16 %v190, %v189
  %v242 = vpack.c.b16 %v192, %v191
  %v243 = vpack.c.b16 %v194, %v193
  %v244 = vpack.c.b16 %v196, %v195
  %v245 = vpack.c.b16 %v198, %v197
  %v246 = vpack.c.b16 %v200, %v199
  %v247 = vpack.c.b16 %v202, %v201
  %v248 = vpack.c.b16 %v204, %v203
  %v249 = vpack.c.b16 %v206, %v205
  %v250 = vpack.c.b16 %v208, %v207
  %v251 = vpack.c.b16 %v210, %v209
  %v252 = vpack.c.b16 %v212, %v211
  %v253 = vpack.c.b16 %v214, %v213
  %v254 = vpack.c.b16 %v216, %v215
  %v255 = vpack.c.b16 %v218, %v217
  %v256 = vpack.c.b16 %v220, %v219
  %v257 = vpack.c.b16 %v222, %v221
  %v258 = vpack.c.b16 %v224, %v223
  %v259 = vpack.c.b16 %v226, %v225
  %v260 = vpack.c.b16 %v228, %v227
  %293 = vmatprep.subr.bf16.mxu0 0
  %294 = vmatpush1.bf16.msra.mxu0 %v229
  %295 = vmatprep.subr.bf16.mxu0 0
  %296 = vmatpush1.bf16.msra.mxu0 %v230
  %297 = vmatprep.subr.bf16.mxu0 0
  %298 = vmatpush1.bf16.msra.mxu0 %v231
  %299 = vmatprep.subr.bf16.mxu0 0
  %300 = vmatpush1.bf16.msra.mxu0 %v232
  %301 = vmatprep.subr.bf16.mxu0 0
  %302 = vmatpush1.bf16.msra.mxu0 %v233
  %303 = vmatprep.subr.bf16.mxu0 0
  %304 = vmatpush1.bf16.msra.mxu0 %v234
  %305 = vmatprep.subr.bf16.mxu0 0
  %306 = vmatpush1.bf16.msra.mxu0 %v235
  %307 = vmatprep.subr.bf16.mxu0 0
  %308 = vmatpush1.bf16.msra.mxu0 %v236
  %309 = vmatprep.subr.bf16.mxu0 0
  %310 = vmatpush1.bf16.msra.mxu0 %v237
  %311 = vmatprep.subr.bf16.mxu0 0
  %312 = vmatpush1.bf16.msra.mxu0 %v238
  %313 = vmatprep.subr.bf16.mxu0 0
  %314 = vmatpush1.bf16.msra.mxu0 %v239
  %315 = vmatprep.subr.bf16.mxu0 0
  %316 = vmatpush1.bf16.msra.mxu0 %v240
  %317 = vmatprep.subr.bf16.mxu0 0
  %318 = vmatpush1.bf16.msra.mxu0 %v241
  %319 = vmatprep.subr.bf16.mxu0 0
  %320 = vmatpush1.bf16.msra.mxu0 %v242
  %321 = vmatprep.subr.bf16.mxu0 0
  %322 = vmatpush1.bf16.msra.mxu0 %v243
  %323 = vmatprep.subr.bf16.mxu0 0
  %324 = vmatpush1.bf16.msra.mxu0 %v244
  %325 = vmatprep.mubr.bf16.mxu0 %v94
  %326 = vmatmul.mubr.bf16.gmra.mrb[0].mxu0 %v93
  %v327 = vpop.f32.mrb[0].mxu0
  %v328 = vadd.f32 0.0, %v327
  %v329 = vpop.f32.mrb[0].mxu0
  %v330 = vpop.f32.mrb[0].mxu0
  %v331 = vpop.f32.mrb[0].mxu0
  %332 = vdwg.mxu0
  %333 = vmatprep.subr.bf16.mxu0 0
  %334 = vmatpush1.bf16.msra.mxu0 %v245
  %335 = vmatprep.subr.bf16.mxu0 0
  %336 = vmatpush1.bf16.msra.mxu0 %v246
  %337 = vmatprep.subr.bf16.mxu0 0
  %338 = vmatpush1.bf16.msra.mxu0 %v247
  %339 = vmatprep.subr.bf16.mxu0 0
  %340 = vmatpush1.bf16.msra.mxu0 %v248
  %341 = vmatprep.subr.bf16.mxu0 0
  %342 = vmatpush1.bf16.msra.mxu0 %v249
  %343 = vmatprep.subr.bf16.mxu0 0
  %344 = vmatpush1.bf16.msra.mxu0 %v250
  %345 = vmatprep.subr.bf16.mxu0 0
  %346 = vmatpush1.bf16.msra.mxu0 %v251
  %347 = vmatprep.subr.bf16.mxu0 0
  %348 = vmatpush1.bf16.msra.mxu0 %v252
  %349 = vmatprep.subr.bf16.mxu0 0
  %350 = vmatpush1.bf16.msra.mxu0 %v253
  %351 = vmatprep.subr.bf16.mxu0 0
  %352 = vmatpush1.bf16.msra.mxu0 %v254
  %353 = vmatprep.subr.bf16.mxu0 0
  %354 = vmatpush1.bf16.msra.mxu0 %v255
  %355 = vmatprep.subr.bf16.mxu0 0
  %356 = vmatpush1.bf16.msra.mxu0 %v256
  %357 = vmatprep.subr.bf16.mxu0 0
  %358 = vmatpush1.bf16.msra.mxu0 %v257
  %359 = vmatprep.subr.bf16.mxu0 0
  %360 = vmatpush1.bf16.msra.mxu0 %v258
  %361 = vmatprep.subr.bf16.mxu0 0
  %362 = vmatpush1.bf16.msra.mxu0 %v259
  %363 = vmatprep.subr.bf16.mxu0 0
  %364 = vmatpush1.bf16.msra.mxu0 %v260
  %365 = vmatprep.mubr.bf16.mxu0 %v96
  %366 = vmatmul.mubr.bf16.gmra.mrb[0].mxu0 %v95
  %v367 = vpop.f32.mrb[0].mxu0
  %v368 = vadd.f32 %v328, %v367
  %v369 = vpop.f32.mrb[0].mxu0
  %v370 = vpop.f32.mrb[0].mxu0
  %v371 = vpop.f32.mrb[0].mxu0
  %372 = vdwg.mxu0
  %v373 = vadd.f32 %v20, %v368
  %374 = vst [vmem:[#allocation2] sm:$0xff] %v373
  // Predicated region
  $region18: #{_lambda_.31} parent=0 // pred_check
    %p375 = pneg %p15
  $region19: #{_lambda_.31} parent=0 // pred_check_branch
    %377 = sbr.rel (%p375) target = $region21
  $region20: #{_lambda_.31} parent=0 // pred_region
    %v378 = vld [vmem:[#allocation2] sm:$0xff]
    %v379 = vld [vmem:[%s2] sm:$0x1]
    %v381 = vlaneseq
    %v382 = vshrl.u32 %v381, 7
    %v383 = vsub.s32 0, %v382
    %v384 = vrot.slane %v379, %v383
    %v386 = vadd.f32 %v378, %v384
    %387 = vst [vmem:[%s3] sm:$0xff] %v386
  $region21: #{_lambda_.31} parent=0 // pred_fallthru
    _
  // Predicated region
  $region22: #{_lambda_.31} parent=0 // pred_check
    _
  $region23: #{_lambda_.31} parent=0 // pred_check_branch
    %389 = sbr.rel (0) target = $region25
  $region24: #{_lambda_.31} parent=0 // pred_region
    _
  $region25: #{_lambda_.31} parent=0 // pred_fallthru
    _
  // Predicated region
  $region26: #{_lambda_.31} parent=0 // pred_check
    _
  $region27: #{_lambda_.31} parent=0 // pred_check_branch
    %391 = sbr.rel (0) target = $region29
  $region28: #{_lambda_.31} parent=0 // pred_region
    _
  $region29: #{_lambda_.31} parent=0 // pred_fallthru
    _

// kernel: _lambda_.35
$region0: #{_lambda_.35}
  #allocation0 [shape = 'u32[]', space=smem, size = 0x4, offset = 0x4, fixed_abs, tag = 'smem constant byte address 0x4 - core index']
  #allocation1 [shape = 'u32[144,128]{1,0:T(1,128)}', space=vmem, size = 0x12000, scoped, tag = 'internal scratch']
  #allocation2 [shape = 'f32[2,128]{1,0:T(2,128)}', space=vmem, size = 0x400, scoped, tag = 'scratch operand']
  %s0 = inlined_call_operand.vmem [shape: bf16[4,2,256], index: 0, kind: input, shape index: {}]
  %s1 = inlined_call_operand.vmem [shape: bf16[4,256,128], index: 1, kind: input, shape index: {}]
  %s2 = inlined_call_operand.vmem [shape: f32[1,128], index: 2, kind: input, shape index: {}]
  %s3 = inlined_call_operand.vmem [shape: f32[4,2,128], index: 3, kind: output, shape index: {}]
  %s4 = sld [smem:[#allocation0]]
  $region53: #{_lambda_.35} parent=0
    _
  %s6 = ssub.s32 1, %s4
  %s7 = scalar_select 0, %s6, %s4
  loop: start=0, step=1, limit=6
  $region2: #{_lambda_.35} parent=0 // loop_pre_header
    _
  $region3: #{_lambda_.35} parent=0 // loop_header
    %s9 = sphi 0, %s13
    %p10 = scmp.ge.s32.totalorder %s9, 6
    %s16 = sphi 0, %s35
    %s17 = sphi 0, %s31
    %s18 = sphi 0, %s27
    %s19 = sphi 0, %s16
    %s20 = sphi 0, %s17
    %s21 = sphi 0, %s18
    %s22 = sphi 0, %s19
    %s23 = sphi 0, %s20
    %s24 = sphi 0, %s21
    %s42 = sphi 0, %s44
    %s45 = sphi 0, %s42
    %s46 = sphi 0, %s45
    %s62 = sphi 0, %s46
    %s70 = sphi 0, %s72
    %s73 = sphi 0, %s70
    %s74 = sphi 0, %s73
    %s90 = sphi 0, %s74
    %s94 = sphi 0, %s94
    %s96 = sphi 0, %s94
    %s97 = sphi 0, %s96
    %s111 = sphi 0, %s97
    %s119 = sphi 0, %s121
    %s122 = sphi 0, %s119
    %s123 = sphi 0, %s122
    %s139 = sphi 0, %s123
  $region4: #{_lambda_.35} parent=0 // loop_header_branch
    %12 = sbr.rel (%p10) target = $region8
  $region5: #{_lambda_.35} parent=0 // loop_body
    %s14 = ssub.s32 %s9, 1
    %s15 = ssub.s32 %s9, 2
    %s25 = sadd.s32 1, %s18
    %p26 = scmp.ge.s32.totalorder %s25, 1
    %s27 = scalar_select %p26, 0, %s25
    %s28 = sadd.s32 1, %s17
    %s29 = scalar_select %p26, %s28, %s17
    %p30 = scmp.ge.s32.totalorder %s29, 1
    %s31 = scalar_select %p30, 0, %s29
    %s32 = sadd.s32 1, %s16
    %s33 = scalar_select %p30, %s32, %s16
    %p34 = scmp.ge.s32.totalorder %s33, 4
    %s35 = scalar_select %p34, 0, %s33
    %s36 = ssub.s32 %s16, %s35
    %s37 = ssub.s32 %s17, %s31
    %s38 = sor.u32 %s36, %s37
    %s39 = ssub.s32 %s18, %s27
    %s40 = sor.u32 %s38, %s39
    %p41 = scmp.eq.s32.totalorder %s40, 0
    %s43 = sadd.s32 %s42, 1
    %s44 = scalar_select %p41, %s42, %s43
    %p47 = pneg %p41
    %p48 = scmp.eq.s32.totalorder %s9, 3
    %p49 = por %p47, %p48
    %p50 = scmp.ne.s32.totalorder %s42, %s45
    %p51 = scmp.eq.s32.totalorder %s9, 0
    %p52 = por %p50, %p51
    %p53 = scmp.ne.s32.totalorder %s42, %s45
    %p54 = scmp.eq.s32.totalorder %s14, 3
    %p55 = por %p53, %p54
    %p56 = scmp.ne.s32.totalorder %s45, %s46
    %p57 = scmp.eq.s32.totalorder %s14, 0
    %p58 = por %p56, %p57
    %p59 = scmp.ne.s32.totalorder %s45, %s46
    %p60 = scmp.eq.s32.totalorder %s15, 3
    %p61 = por %p59, %p60
    %p63 = scmp.ne.s32.totalorder %s46, %s62
    %p64 = scmp.eq.s32.totalorder %s15, 0
    %p65 = por %p63, %p64
    %s66 = ssub.s32 %s16, %s35
    %s67 = ssub.s32 %s18, %s27
    %s68 = sor.u32 %s66, %s67
    %p69 = scmp.eq.s32.totalorder %s68, 0
    %s71 = sadd.s32 %s70, 1
    %s72 = scalar_select %p69, %s70, %s71
    %p75 = pneg %p69
    %p76 = scmp.eq.s32.totalorder %s9, 3
    %p77 = por %p75, %p76
    %p78 = scmp.ne.s32.totalorder %s70, %s73
    %p79 = scmp.eq.s32.totalorder %s9, 0
    %p80 = por %p78, %p79
    %p81 = scmp.ne.s32.totalorder %s70, %s73
    %p82 = scmp.eq.s32.totalorder %s14, 3
    %p83 = por %p81, %p82
    %p84 = scmp.ne.s32.totalorder %s73, %s74
    %p85 = scmp.eq.s32.totalorder %s14, 0
    %p86 = por %p84, %p85
    %p87 = scmp.ne.s32.totalorder %s73, %s74
    %p88 = scmp.eq.s32.totalorder %s15, 3
    %p89 = por %p87, %p88
    %p91 = scmp.ne.s32.totalorder %s74, %s90
    %p92 = scmp.eq.s32.totalorder %s15, 0
    %p93 = por %p91, %p92
    %s95 = sadd.s32 %s94, 1
    %p98 = scmp.eq.s32.totalorder %s9, 3
    %p99 = scmp.ne.s32.totalorder %s94, %s96
    %p100 = scmp.eq.s32.totalorder %s9, 0
    %p101 = por %p99, %p100
    %p102 = scmp.ne.s32.totalorder %s94, %s96
    %p103 = scmp.eq.s32.totalorder %s14, 3
    %p104 = por %p102, %p103
    %p105 = scmp.ne.s32.totalorder %s96, %s97
    %p106 = scmp.eq.s32.totalorder %s14, 0
    %p107 = por %p105, %p106
    %p108 = scmp.ne.s32.totalorder %s96, %s97
    %p109 = scmp.eq.s32.totalorder %s15, 3
    %p110 = por %p108, %p109
    %p112 = scmp.ne.s32.totalorder %s97, %s111
    %p113 = scmp.eq.s32.totalorder %s15, 0
    %p114 = por %p112, %p113
    %s115 = ssub.s32 %s16, %s35
    %s116 = ssub.s32 %s17, %s31
    %s117 = sor.u32 %s115, %s116
    %p118 = scmp.eq.s32.totalorder %s117, 0
    %s120 = sadd.s32 %s119, 1
    %s121 = scalar_select %p118, %s119, %s120
    %p124 = pneg %p118
    %p125 = scmp.eq.s32.totalorder %s9, 3
    %p126 = por %p124, %p125
    %p127 = scmp.ne.s32.totalorder %s119, %s122
    %p128 = scmp.eq.s32.totalorder %s9, 0
    %p129 = por %p127, %p128
    %p130 = scmp.ne.s32.totalorder %s119, %s122
    %p131 = scmp.eq.s32.totalorder %s14, 3
    %p132 = por %p130, %p131
    %p133 = scmp.ne.s32.totalorder %s122, %s123
    %p134 = scmp.eq.s32.totalorder %s14, 0
    %p135 = por %p133, %p134
    %p136 = scmp.ne.s32.totalorder %s122, %s123
    %p137 = scmp.eq.s32.totalorder %s15, 3
    %p138 = por %p136, %p137
    %p140 = scmp.ne.s32.totalorder %s123, %s139
    %p141 = scmp.eq.s32.totalorder %s15, 0
    %p142 = por %p140, %p141
    %p143 = scmp.le.s32.totalorder 1, %s9
    %p144 = scmp.lt.s32.totalorder %s9, 5
    %p145 = pnand %p143, %p144
    %p146 = pneg %p145
    // Predicated region
    $region9: #{_lambda_.35} parent=5 // pred_check
      _
    $region10: #{_lambda_.35} parent=5 // pred_check_branch
      %148 = sbr.rel (%p145) target = $region12
    $region11: #{_lambda_.35} parent=5 // pred_region
      %s149 = ssub.s32 %s9, 1
      // Predicated region
      $region13: #{_lambda_.35} parent=11 // pred_check
        %p150 = pneg %p107
      $region14: #{_lambda_.35} parent=11 // pred_check_branch
        %152 = sbr.rel (%p150) target = $region16
      $region15: #{_lambda_.35} parent=11 // pred_region
        _
      $region16: #{_lambda_.35} parent=11 // pred_fallthru
        _
    $region12: #{_lambda_.35} parent=5 // pred_fallthru
      _
    %p153 = scmp.lt.s32.totalorder %s9, 4
    // Predicated region
    $region17: #{_lambda_.35} parent=5 // pred_check
      %p154 = pneg %p153
    $region18: #{_lambda_.35} parent=5 // pred_check_branch
      %156 = sbr.rel (%p154) target = $region20
    $region19: #{_lambda_.35} parent=5 // pred_region
      // Predicated region
      $region21: #{_lambda_.35} parent=19 // pred_check
        %p157 = pneg %p52
      $region22: #{_lambda_.35} parent=19 // pred_check_branch
        %159 = sbr.rel (%p157) target = $region24
      $region23: #{_lambda_.35} parent=19 // pred_region
        %s160 = smul.u32 2, %s18
        %p161 = scmp.lt.s32.totalorder %s16, 3
        %s162 = scalar_select %p161, %s16, 3
        %p163 = scmp.lt.s32.totalorder %s17, 0
        %s164 = scalar_select %p163, %s17, 0
        %p165 = scmp.lt.s32.totalorder %s160, 1
        %s166 = scalar_select %p165, %s160, 1
        %s167 = smul.addr %s164, 2
        %s168 = sadd.s32 %s166, %s167
        %s169 = smul.addr %s162, 2
        %s170 = sadd.s32 %s168, %s169
        %s171 = scalar_lea.vmem %s0, %s170
        %s172 = smul.u32 2, %s18
      $region24: #{_lambda_.35} parent=19 // pred_fallthru
        _
      // Predicated region
      $region25: #{_lambda_.35} parent=19 // pred_check
        %p173 = pneg %p80
      $region26: #{_lambda_.35} parent=19 // pred_check_branch
        %175 = sbr.rel (%p173) target = $region28
      $region27: #{_lambda_.35} parent=19 // pred_region
        %s176 = smul.u32 32, %s18
        %p177 = scmp.lt.s32.totalorder %s16, 3
        %s178 = scalar_select %p177, %s16, 3
        %p179 = scmp.lt.s32.totalorder %s176, 31
        %s180 = scalar_select %p179, %s176, 31
        %s181 = smul.addr %s178, 32
        %s182 = sadd.s32 %s180, %s181
        %s183 = smul.addr %s182, 4
        %s184 = scalar_lea.vmem %s1, %s183
        %s185 = smul.u32 32, %s18
      $region28: #{_lambda_.35} parent=19 // pred_fallthru
        _
    $region20: #{_lambda_.35} parent=5 // pred_fallthru
      _
    %p186 = scmp.le.s32.totalorder 1, %s9
    %p187 = scmp.lt.s32.totalorder %s9, 5
    %p188 = pnand %p186, %p187
    %p189 = pneg %p188
    // Predicated region
    $region29: #{_lambda_.35} parent=5 // pred_check
      _
    $region30: #{_lambda_.35} parent=5 // pred_check_branch
      %191 = sbr.rel (%p188) target = $region32
    $region31: #{_lambda_.35} parent=5 // pred_region
      %s192 = ssub.s32 %s9, 1
      %s193 = smul.u32 2, %s21
      %p194 = scmp.lt.s32.totalorder %s19, 3
      %s195 = scalar_select %p194, %s19, 3
      %p196 = scmp.lt.s32.totalorder %s20, 0
      %s197 = scalar_select %p196, %s20, 0
      %p198 = scmp.lt.s32.totalorder %s193, 1
      %s199 = scalar_select %p198, %s193, 1
      %s200 = smul.addr %s197, 2
      %s201 = sadd.s32 %s199, %s200
      %s202 = smul.addr %s195, 2
      %s203 = sadd.s32 %s201, %s202
      %s204 = scalar_lea.vmem %s0, %s203
      %p205 = pneg %p58
      %p206 = pneg %p55
      %s207 = smul.u32 32, %s21
      %p208 = scmp.lt.s32.totalorder %s19, 3
      %s209 = scalar_select %p208, %s19, 3
      %p210 = scmp.lt.s32.totalorder %s207, 31
      %s211 = scalar_select %p210, %s207, 31
      %s212 = smul.addr %s209, 32
      %s213 = sadd.s32 %s211, %s212
      %s214 = smul.addr %s213, 4
      %s215 = scalar_lea.vmem %s1, %s214
      %p216 = pneg %p86
      %p217 = pneg %p83
      %p218 = pneg %p107
      %p219 = pneg %p104
      %p220 = pneg %p135
      %p221 = pneg %p132
      %p222 = scmp.lt.s32.totalorder %s19, 3
      %s223 = scalar_select %p222, %s19, 3
      %p224 = scmp.lt.s32.totalorder %s20, 0
      %s225 = scalar_select %p224, %s20, 0
      %s226 = sadd.s32 %s225, %s223
      %s227 = smul.addr %s226, 2
      %s228 = scalar_lea.vmem %s3, %s227
      %s229 = smul.u32 2, %s21
      %p230 = scmp.lt.s32.totalorder %s19, 3
      %s231 = scalar_select %p230, %s19, 3
      %p232 = scmp.lt.s32.totalorder %s20, 0
      %s233 = scalar_select %p232, %s20, 0
      %p234 = scmp.lt.s32.totalorder %s229, 1
      %s235 = scalar_select %p234, %s229, 1
      %s236 = smul.addr %s233, 2
      %s237 = sadd.s32 %s235, %s236
      %s238 = smul.addr %s231, 2
      %s239 = sadd.s32 %s237, %s238
      %s240 = scalar_lea.vmem %s0, %s239
      %s241 = smul.u32 2, %s21
      %s242 = smul.u32 32, %s21
      %p243 = scmp.lt.s32.totalorder %s19, 3
      %s244 = scalar_select %p243, %s19, 3
      %p245 = scmp.lt.s32.totalorder %s242, 31
      %s246 = scalar_select %p245, %s242, 31
      %s247 = smul.addr %s244, 32
      %s248 = sadd.s32 %s246, %s247
      %s249 = smul.addr %s248, 4
      %s250 = scalar_lea.vmem %s1, %s249
      %s251 = smul.u32 32, %s21
      %p252 = scmp.lt.s32.totalorder %s19, 3
      %s253 = scalar_select %p252, %s19, 3
      %p254 = scmp.lt.s32.totalorder %s20, 0
      %s255 = scalar_select %p254, %s20, 0
      %s256 = sadd.s32 %s255, %s253
      %s257 = smul.addr %s256, 2
      %s258 = scalar_lea.vmem %s3, %s257
      %p260 = scmp.eq.s32.totalorder %s21, 0
      // Predicated region
      $region33: #{_lambda_.35} parent=31 // pred_check
        %p261 = pneg %p260
      $region34: #{_lambda_.35} parent=31 // pred_check_branch
        %263 = sbr.rel (%p261) target = $region36
      $region35: #{_lambda_.35} parent=31 // pred_region
        %264 = vst [vmem:[#allocation2] sm:$0x3] 0.0
      $region36: #{_lambda_.35} parent=31 // pred_fallthru
        _
      %v265 = vld [vmem:[#allocation2] sm:$0x3]
      %v266 = vld [vmem:[%s240] sm:$0x3]
      %v267 = vld [vmem:[%s250] sm:$0xf]
      %v268 = vld [vmem:[%s250 + $0x4] sm:$0xf]
      %v269 = vld [vmem:[%s250 + $0x8] sm:$0xf]
      %v270 = vld [vmem:[%s250 + $0xc] sm:$0xf]
      %v271 = vld [vmem:[%s250 + $0x10] sm:$0xf]
      %v272 = vld [vmem:[%s250 + $0x14] sm:$0xf]
      %v273 = vld [vmem:[%s250 + $0x18] sm:$0xf]
      %v274 = vld [vmem:[%s250 + $0x1c] sm:$0xf]
      %v275 = vld [vmem:[%s250 + $0x20] sm:$0xf]
      %v276 = vld [vmem:[%s250 + $0x24] sm:$0xf]
      %v277 = vld [vmem:[%s250 + $0x28] sm:$0xf]
      %v278 = vld [vmem:[%s250 + $0x2c] sm:$0xf]
      %v279 = vld [vmem:[%s250 + $0x30] sm:$0xf]
      %v280 = vld [vmem:[%s250 + $0x34] sm:$0xf]
      %v281 = vld [vmem:[%s250 + $0x38] sm:$0xf]
      %v282 = vld [vmem:[%s250 + $0x3c] sm:$0xf]
      %v283 = vld [vmem:[%s250 + $0x40] sm:$0xf]
      %v284 = vld [vmem:[%s250 + $0x44] sm:$0xf]
      %v285 = vld [vmem:[%s250 + $0x48] sm:$0xf]
      %v286 = vld [vmem:[%s250 + $0x4c] sm:$0xf]
      %v287 = vld [vmem:[%s250 + $0x50] sm:$0xf]
      %v288 = vld [vmem:[%s250 + $0x54] sm:$0xf]
      %v289 = vld [vmem:[%s250 + $0x58] sm:$0xf]
      %v290 = vld [vmem:[%s250 + $0x5c] sm:$0xf]
      %v291 = vld [vmem:[%s250 + $0x60] sm:$0xf]
      %v292 = vld [vmem:[%s250 + $0x64] sm:$0xf]
      %v293 = vld [vmem:[%s250 + $0x68] sm:$0xf]
      %v294 = vld [vmem:[%s250 + $0x6c] sm:$0xf]
      %v295 = vld [vmem:[%s250 + $0x70] sm:$0xf]
      %v296 = vld [vmem:[%s250 + $0x74] sm:$0xf]
      %v297 = vld [vmem:[%s250 + $0x78] sm:$0xf]
      %v298 = vld [vmem:[%s250 + $0x7c] sm:$0xf]
      %v301 = vunpack.c.l.s4 1966171168
      %v302 = vunpack.c.0.s8 %v301
      %v303 = vlaneseq
      %v304 = vshrl.u32 %v303, 7
      %v305 = vsub.s32 %v302, %v304
      %v306 = vrot.slane %v266, %v305
      %v307 = vcombine.high %v306, %v306
      %v309 = vunpack.c.l.s4 1966171168
      %v310 = vunpack.c.0.s8 %v309
      %v311 = vlaneseq
      %v312 = vshrl.u32 %v311, 7
      %v313 = vsub.s32 %v310, %v312
      %v314 = vrot.slane %v306, %v313
      %v316 = vunpack.c.l.s4 1966171168
      %v317 = vunpack.c.0.s8 %v316
      %v318 = vlaneseq
      %v319 = vshrl.u32 %v318, 7
      %v320 = vsub.s32 %v317, %v319
      %v321 = vrot.slane %v307, %v320
      %v356 = vunpack.c.l.b16 %v267
      %v357 = vunpack.c.l.b16 %v268
      %v358 = vunpack.c.l.b16 %v269
      %v359 = vunpack.c.l.b16 %v270
      %v360 = vunpack.c.l.b16 %v271
      %v361 = vunpack.c.l.b16 %v272
      %v362 = vunpack.c.l.b16 %v273
      %v363 = vunpack.c.l.b16 %v274
      %v364 = vunpack.c.l.b16 %v275
      %v365 = vunpack.c.l.b16 %v276
      %v366 = vunpack.c.l.b16 %v277
      %v367 = vunpack.c.l.b16 %v278
      %v368 = vunpack.c.l.b16 %v279
      %v369 = vunpack.c.l.b16 %v280
      %v370 = vunpack.c.l.b16 %v281
      %v371 = vunpack.c.l.b16 %v282
      %v372 = vunpack.c.l.b16 %v283
      %v373 = vunpack.c.l.b16 %v284
      %v374 = vunpack.c.l.b16 %v285
      %v375 = vunpack.c.l.b16 %v286
      %v376 = vunpack.c.l.b16 %v287
      %v377 = vunpack.c.l.b16 %v288
      %v378 = vunpack.c.l.b16 %v289
      %v379 = vunpack.c.l.b16 %v290
      %v380 = vunpack.c.l.b16 %v291
      %v381 = vunpack.c.l.b16 %v292
      %v382 = vunpack.c.l.b16 %v293
      %v383 = vunpack.c.l.b16 %v294
      %v384 = vunpack.c.l.b16 %v295
      %v385 = vunpack.c.l.b16 %v296
      %v386 = vunpack.c.l.b16 %v297
      %v387 = vunpack.c.l.b16 %v298
      %v388 = vpack.c.b16 %v357, %v356
      %v389 = vpack.c.b16 %v359, %v358
      %v390 = vpack.c.b16 %v361, %v360
      %v391 = vpack.c.b16 %v363, %v362
      %v392 = vpack.c.b16 %v365, %v364
      %v393 = vpack.c.b16 %v367, %v366
      %v394 = vpack.c.b16 %v369, %v368
      %v395 = vpack.c.b16 %v371, %v370
      %v396 = vpack.c.b16 %v373, %v372
      %v397 = vpack.c.b16 %v375, %v374
      %v398 = vpack.c.b16 %v377, %v376
      %v399 = vpack.c.b16 %v379, %v378
      %v400 = vpack.c.b16 %v381, %v380
      %v401 = vpack.c.b16 %v383, %v382
      %v402 = vpack.c.b16 %v385, %v384
      %v403 = vpack.c.b16 %v387, %v386
      %420 = vmatprep.subr.bf16.mxu0 0
      %421 = vmatpush1.bf16.msra.mxu0 %v388
      %422 = vmatprep.subr.bf16.mxu0 0
      %423 = vmatpush1.bf16.msra.mxu0 %v389
      %424 = vmatprep.subr.bf16.mxu0 0
      %425 = vmatpush1.bf16.msra.mxu0 %v390
      %426 = vmatprep.subr.bf16.mxu0 0
      %427 = vmatpush1.bf16.msra.mxu0 %v391
      %428 = vmatprep.subr.bf16.mxu0 0
      %429 = vmatpush1.bf16.msra.mxu0 %v392
      %430 = vmatprep.subr.bf16.mxu0 0
      %431 = vmatpush1.bf16.msra.mxu0 %v393
      %432 = vmatprep.subr.bf16.mxu0 0
      %433 = vmatpush1.bf16.msra.mxu0 %v394
      %434 = vmatprep.subr.bf16.mxu0 0
      %435 = vmatpush1.bf16.msra.mxu0 %v395
      %436 = vmatprep.subr.bf16.mxu0 0
      %437 = vmatpush1.bf16.msra.mxu0 %v396
      %438 = vmatprep.subr.bf16.mxu0 0
      %439 = vmatpush1.bf16.msra.mxu0 %v397
      %440 = vmatprep.subr.bf16.mxu0 0
      %441 = vmatpush1.bf16.msra.mxu0 %v398
      %442 = vmatprep.subr.bf16.mxu0 0
      %443 = vmatpush1.bf16.msra.mxu0 %v399
      %444 = vmatprep.subr.bf16.mxu0 0
      %445 = vmatpush1.bf16.msra.mxu0 %v400
      %446 = vmatprep.subr.bf16.mxu0 0
      %447 = vmatpush1.bf16.msra.mxu0 %v401
      %448 = vmatprep.subr.bf16.mxu0 0
      %449 = vmatpush1.bf16.msra.mxu0 %v402
      %450 = vmatprep.subr.bf16.mxu0 0
      %451 = vmatpush1.bf16.msra.mxu0 %v403
      %452 = vmatprep.mubr.bf16.mxu0 %v321
      %453 = vmatmul.mubr.bf16.gmra.mrb[0].mxu0 %v314
      %v454 = vpop.f32.mrb[0].mxu0
      %v455 = vadd.f32 0.0, %v454
      %v456 = vpop.f32.mrb[0].mxu0
      %v457 = vpop.f32.mrb[0].mxu0
      %v458 = vpop.f32.mrb[0].mxu0
      %459 = vdwg.mxu0
      %v460 = vadd.f32 %v265, %v455
      %461 = vst [vmem:[#allocation2] sm:$0x3] %v460
      // Predicated region
      $region37: #{_lambda_.35} parent=31 // pred_check
        %p462 = pneg %p260
      $region38: #{_lambda_.35} parent=31 // pred_check_branch
        %464 = sbr.rel (%p462) target = $region40
      $region39: #{_lambda_.35} parent=31 // pred_region
        %v465 = vld [vmem:[#allocation2] sm:$0x3]
        %v466 = vld [vmem:[%s2] sm:$0x1]
        %v468 = vlaneseq
        %v469 = vshrl.u32 %v468, 7
        %v470 = vsub.s32 0, %v469
        %v471 = vrot.slane %v466, %v470
        %v473 = vadd.f32 %v465, %v471
        %474 = vst [vmem:[%s258] sm:$0x3] %v473
      $region40: #{_lambda_.35} parent=31 // pred_fallthru
        _
      %p475 = scmp.lt.s32.totalorder %s19, 3
      %s476 = scalar_select %p475, %s19, 3
      %p477 = scmp.lt.s32.totalorder %s20, 0
      %s478 = scalar_select %p477, %s20, 0
      %s479 = sadd.s32 %s478, %s476
      %s480 = smul.addr %s479, 2
      %s481 = scalar_lea.vmem %s3, %s480
      // Predicated region
      $region41: #{_lambda_.35} parent=31 // pred_check
        %p482 = pneg %p132
      $region42: #{_lambda_.35} parent=31 // pred_check_branch
        %484 = sbr.rel (%p482) target = $region44
      $region43: #{_lambda_.35} parent=31 // pred_region
        _
      $region44: #{_lambda_.35} parent=31 // pred_fallthru
        _
    $region32: #{_lambda_.35} parent=5 // pred_fallthru
      _
    %p485 = scmp.le.s32.totalorder 2, %s9
    // Predicated region
    $region45: #{_lambda_.35} parent=5 // pred_check
      %p486 = pneg %p485
    $region46: #{_lambda_.35} parent=5 // pred_check_branch
      %488 = sbr.rel (%p486) target = $region48
    $region47: #{_lambda_.35} parent=5 // pred_region
      %s489 = ssub.s32 %s9, 2
      // Predicated region
      $region49: #{_lambda_.35} parent=47 // pred_check
        %p490 = pneg %p138
      $region50: #{_lambda_.35} parent=47 // pred_check_branch
        %492 = sbr.rel (%p490) target = $region52
      $region51: #{_lambda_.35} parent=47 // pred_region
        %p493 = scmp.lt.s32.totalorder %s22, 3
        %s494 = scalar_select %p493, %s22, 3
        %p495 = scmp.lt.s32.totalorder %s23, 0
        %s496 = scalar_select %p495, %s23, 0
        %s497 = sadd.s32 %s496, %s494
        %s498 = smul.addr %s497, 2
        %s499 = scalar_lea.vmem %s3, %s498
      $region52: #{_lambda_.35} parent=47 // pred_fallthru
        _
    $region48: #{_lambda_.35} parent=5 // pred_fallthru
      _
  $region6: #{_lambda_.35} parent=0 // loop_footer
    %s13 = sadd.s32 1, %s9
  $region7: #{_lambda_.35} parent=0 // loop_footer_branch
    %8 = sbr.rel target = $region3
  $region8: #{_lambda_.35} parent=0 // loop_exit
    _

// kernel: _lambda_.32
$region0: #{_lambda_.32}
  #allocation0 [shape = 'u32[]', space=smem, size = 0x4, offset = 0x4, fixed_abs, tag = 'smem constant byte address 0x4 - core index']
  #allocation1 [shape = 'u32[144,128]{1,0:T(1,128)}', space=vmem, size = 0x12000, scoped, tag = 'internal scratch']
  %s0 = inlined_call_operand.vmem [shape: f32[8,128], index: 0, kind: input, shape index: {}]
  %s1 = inlined_call_operand.vmem [shape: f32[1,128], index: 1, kind: output, shape index: {0}]
  %s2 = inlined_call_operand.vmem [shape: f32[1,128], index: 2, kind: output, shape index: {1}]
  %3 = xla_tuple %s1, %s2
  %s4 = sld [smem:[#allocation0]]
  $region26: #{_lambda_.32} parent=0
    _
  %s6 = ssub.s32 1, %s4
  %s7 = scalar_select 0, %s6, %s4
  // Predicated region
  $region2: #{_lambda_.32} parent=0 // pred_check
    _
  $region3: #{_lambda_.32} parent=0 // pred_check_branch
    %9 = sbr.rel (0) target = $region5
  $region4: #{_lambda_.32} parent=0 // pred_region
    _
  $region5: #{_lambda_.32} parent=0 // pred_fallthru
    _
  %v10 = vld [vmem:[%s0] sm:$0xff]
  %p11 = scmp.eq.s32.totalorder 0, 0
  // Predicated region
  $region6: #{_lambda_.32} parent=0 // pred_check
    %p12 = pneg %p11
  $region7: #{_lambda_.32} parent=0 // pred_check_branch
    %14 = sbr.rel (%p12) target = $region9
  $region8: #{_lambda_.32} parent=0 // pred_region
    %15 = vst [vmem:[%s1] sm:$0x1] 0.0
    %16 = vst [vmem:[%s2] sm:$0x1] 0.0
  $region9: #{_lambda_.32} parent=0 // pred_fallthru
    _
  %v17 = vld [vmem:[%s1] sm:$0x1]
  %v18 = vrot.slane %v10, 4
  %v19 = vadd.f32 %v10, %v18
  %v20 = vrot.slane %v19, 2
  %v21 = vadd.f32 %v19, %v20
  %v22 = vrot.slane %v21, 1
  %v23 = vadd.f32 %v21, %v22
  %v24 = vadd.f32 %v17, %v23
  %25 = vst [vmem:[%s1] sm:$0x1] %v24
  %v26 = vld [vmem:[%s2] sm:$0x1]
  %v27 = vmul.f32 %v10, %v10
  %v28 = vrot.slane %v27, 4
  %v29 = vadd.f32 %v27, %v28
  %v30 = vrot.slane %v29, 2
  %v31 = vadd.f32 %v29, %v30
  %v32 = vrot.slane %v31, 1
  %v33 = vadd.f32 %v31, %v32
  %v34 = vadd.f32 %v26, %v33
  %35 = vst [vmem:[%s2] sm:$0x1] %v34
  // Predicated region
  $region10: #{_lambda_.32} parent=0 // pred_check
    _
  $region11: #{_lambda_.32} parent=0 // pred_check_branch
    %37 = sbr.rel (0) target = $region13
  $region12: #{_lambda_.32} parent=0 // pred_region
    _
  $region13: #{_lambda_.32} parent=0 // pred_fallthru
    _
  // Predicated region
  $region14: #{_lambda_.32} parent=0 // pred_check
    _
  $region15: #{_lambda_.32} parent=0 // pred_check_branch
    %39 = sbr.rel (0) target = $region17
  $region16: #{_lambda_.32} parent=0 // pred_region
    _
  $region17: #{_lambda_.32} parent=0 // pred_fallthru
    _
  // Predicated region
  $region18: #{_lambda_.32} parent=0 // pred_check
    _
  $region19: #{_lambda_.32} parent=0 // pred_check_branch
    %41 = sbr.rel (0) target = $region21
  $region20: #{_lambda_.32} parent=0 // pred_region
    _
  $region21: #{_lambda_.32} parent=0 // pred_fallthru
    _
  // Predicated region
  $region22: #{_lambda_.32} parent=0 // pred_check
    _
  $region23: #{_lambda_.32} parent=0 // pred_check_branch
    %43 = sbr.rel (0) target = $region25
  $region24: #{_lambda_.32} parent=0 // pred_region
    _
  $region25: #{_lambda_.32} parent=0 // pred_fallthru
    _

// kernel: _lambda_.34
$region0: #{_lambda_.34}
  #allocation0 [shape = 'u32[]', space=smem, size = 0x4, offset = 0x4, fixed_abs, tag = 'smem constant byte address 0x4 - core index']
  #allocation1 [shape = 'u32[144,128]{1,0:T(1,128)}', space=vmem, size = 0x12000, scoped, tag = 'internal scratch']
  #allocation2 [shape = 'f32[2,128]{1,0:T(2,128)}', space=vmem, size = 0x400, scoped, tag = 'scratch operand']
  %s0 = inlined_call_operand.vmem [shape: bf16[1,2,1024], index: 0, kind: input, shape index: {}]
  %s1 = inlined_call_operand.vmem [shape: bf16[1,1024,128], index: 1, kind: input, shape index: {}]
  %s2 = inlined_call_operand.vmem [shape: f32[1,128], index: 2, kind: input, shape index: {}]
  %s3 = inlined_call_operand.vmem [shape: f32[1,2,128], index: 3, kind: output, shape index: {}]
  %s4 = sld [smem:[#allocation0]]
  $region53: #{_lambda_.34} parent=0
    _
  %s6 = ssub.s32 1, %s4
  %s7 = scalar_select 0, %s6, %s4
  loop: start=0, step=1, limit=4
  $region2: #{_lambda_.34} parent=0 // loop_pre_header
    _
  $region3: #{_lambda_.34} parent=0 // loop_header
    %s9 = sphi 0, %s13
    %p10 = scmp.ge.s32.totalorder %s9, 4
    %s16 = sphi 0, %s35
    %s17 = sphi 0, %s31
    %s18 = sphi 0, %s27
    %s19 = sphi 0, %s16
    %s20 = sphi 0, %s17
    %s21 = sphi 0, %s18
    %s22 = sphi 0, %s19
    %s23 = sphi 0, %s20
    %s24 = sphi 0, %s21
    %s42 = sphi 0, %s44
    %s45 = sphi 0, %s42
    %s46 = sphi 0, %s45
    %s62 = sphi 0, %s46
    %s70 = sphi 0, %s72
    %s73 = sphi 0, %s70
    %s74 = sphi 0, %s73
    %s90 = sphi 0, %s74
    %s94 = sphi 0, %s94
    %s96 = sphi 0, %s94
    %s97 = sphi 0, %s96
    %s111 = sphi 0, %s97
    %s119 = sphi 0, %s121
    %s122 = sphi 0, %s119
    %s123 = sphi 0, %s122
    %s139 = sphi 0, %s123
  $region4: #{_lambda_.34} parent=0 // loop_header_branch
    %12 = sbr.rel (%p10) target = $region8
  $region5: #{_lambda_.34} parent=0 // loop_body
    %s14 = ssub.s32 %s9, 1
    %s15 = ssub.s32 %s9, 2
    %s25 = sadd.s32 1, %s18
    %p26 = scmp.ge.s32.totalorder %s25, 2
    %s27 = scalar_select %p26, 0, %s25
    %s28 = sadd.s32 1, %s17
    %s29 = scalar_select %p26, %s28, %s17
    %p30 = scmp.ge.s32.totalorder %s29, 1
    %s31 = scalar_select %p30, 0, %s29
    %s32 = sadd.s32 1, %s16
    %s33 = scalar_select %p30, %s32, %s16
    %p34 = scmp.ge.s32.totalorder %s33, 1
    %s35 = scalar_select %p34, 0, %s33
    %s36 = ssub.s32 %s16, %s35
    %s37 = ssub.s32 %s17, %s31
    %s38 = sor.u32 %s36, %s37
    %s39 = ssub.s32 %s18, %s27
    %s40 = sor.u32 %s38, %s39
    %p41 = scmp.eq.s32.totalorder %s40, 0
    %s43 = sadd.s32 %s42, 1
    %s44 = scalar_select %p41, %s42, %s43
    %p47 = pneg %p41
    %p48 = scmp.eq.s32.totalorder %s9, 1
    %p49 = por %p47, %p48
    %p50 = scmp.ne.s32.totalorder %s42, %s45
    %p51 = scmp.eq.s32.totalorder %s9, 0
    %p52 = por %p50, %p51
    %p53 = scmp.ne.s32.totalorder %s42, %s45
    %p54 = scmp.eq.s32.totalorder %s14, 1
    %p55 = por %p53, %p54
    %p56 = scmp.ne.s32.totalorder %s45, %s46
    %p57 = scmp.eq.s32.totalorder %s14, 0
    %p58 = por %p56, %p57
    %p59 = scmp.ne.s32.totalorder %s45, %s46
    %p60 = scmp.eq.s32.totalorder %s15, 1
    %p61 = por %p59, %p60
    %p63 = scmp.ne.s32.totalorder %s46, %s62
    %p64 = scmp.eq.s32.totalorder %s15, 0
    %p65 = por %p63, %p64
    %s66 = ssub.s32 %s16, %s35
    %s67 = ssub.s32 %s18, %s27
    %s68 = sor.u32 %s66, %s67
    %p69 = scmp.eq.s32.totalorder %s68, 0
    %s71 = sadd.s32 %s70, 1
    %s72 = scalar_select %p69, %s70, %s71
    %p75 = pneg %p69
    %p76 = scmp.eq.s32.totalorder %s9, 1
    %p77 = por %p75, %p76
    %p78 = scmp.ne.s32.totalorder %s70, %s73
    %p79 = scmp.eq.s32.totalorder %s9, 0
    %p80 = por %p78, %p79
    %p81 = scmp.ne.s32.totalorder %s70, %s73
    %p82 = scmp.eq.s32.totalorder %s14, 1
    %p83 = por %p81, %p82
    %p84 = scmp.ne.s32.totalorder %s73, %s74
    %p85 = scmp.eq.s32.totalorder %s14, 0
    %p86 = por %p84, %p85
    %p87 = scmp.ne.s32.totalorder %s73, %s74
    %p88 = scmp.eq.s32.totalorder %s15, 1
    %p89 = por %p87, %p88
    %p91 = scmp.ne.s32.totalorder %s74, %s90
    %p92 = scmp.eq.s32.totalorder %s15, 0
    %p93 = por %p91, %p92
    %s95 = sadd.s32 %s94, 1
    %p98 = scmp.eq.s32.totalorder %s9, 1
    %p99 = scmp.ne.s32.totalorder %s94, %s96
    %p100 = scmp.eq.s32.totalorder %s9, 0
    %p101 = por %p99, %p100
    %p102 = scmp.ne.s32.totalorder %s94, %s96
    %p103 = scmp.eq.s32.totalorder %s14, 1
    %p104 = por %p102, %p103
    %p105 = scmp.ne.s32.totalorder %s96, %s97
    %p106 = scmp.eq.s32.totalorder %s14, 0
    %p107 = por %p105, %p106
    %p108 = scmp.ne.s32.totalorder %s96, %s97
    %p109 = scmp.eq.s32.totalorder %s15, 1
    %p110 = por %p108, %p109
    %p112 = scmp.ne.s32.totalorder %s97, %s111
    %p113 = scmp.eq.s32.totalorder %s15, 0
    %p114 = por %p112, %p113
    %s115 = ssub.s32 %s16, %s35
    %s116 = ssub.s32 %s17, %s31
    %s117 = sor.u32 %s115, %s116
    %p118 = scmp.eq.s32.totalorder %s117, 0
    %s120 = sadd.s32 %s119, 1
    %s121 = scalar_select %p118, %s119, %s120
    %p124 = pneg %p118
    %p125 = scmp.eq.s32.totalorder %s9, 1
    %p126 = por %p124, %p125
    %p127 = scmp.ne.s32.totalorder %s119, %s122
    %p128 = scmp.eq.s32.totalorder %s9, 0
    %p129 = por %p127, %p128
    %p130 = scmp.ne.s32.totalorder %s119, %s122
    %p131 = scmp.eq.s32.totalorder %s14, 1
    %p132 = por %p130, %p131
    %p133 = scmp.ne.s32.totalorder %s122, %s123
    %p134 = scmp.eq.s32.totalorder %s14, 0
    %p135 = por %p133, %p134
    %p136 = scmp.ne.s32.totalorder %s122, %s123
    %p137 = scmp.eq.s32.totalorder %s15, 1
    %p138 = por %p136, %p137
    %p140 = scmp.ne.s32.totalorder %s123, %s139
    %p141 = scmp.eq.s32.totalorder %s15, 0
    %p142 = por %p140, %p141
    %p143 = scmp.le.s32.totalorder 1, %s9
    %p144 = scmp.lt.s32.totalorder %s9, 3
    %p145 = pnand %p143, %p144
    %p146 = pneg %p145
    // Predicated region
    $region9: #{_lambda_.34} parent=5 // pred_check
      _
    $region10: #{_lambda_.34} parent=5 // pred_check_branch
      %148 = sbr.rel (%p145) target = $region12
    $region11: #{_lambda_.34} parent=5 // pred_region
      %s149 = ssub.s32 %s9, 1
      // Predicated region
      $region13: #{_lambda_.34} parent=11 // pred_check
        %p150 = pneg %p107
      $region14: #{_lambda_.34} parent=11 // pred_check_branch
        %152 = sbr.rel (%p150) target = $region16
      $region15: #{_lambda_.34} parent=11 // pred_region
        _
      $region16: #{_lambda_.34} parent=11 // pred_fallthru
        _
    $region12: #{_lambda_.34} parent=5 // pred_fallthru
      _
    %p153 = scmp.lt.s32.totalorder %s9, 2
    // Predicated region
    $region17: #{_lambda_.34} parent=5 // pred_check
      %p154 = pneg %p153
    $region18: #{_lambda_.34} parent=5 // pred_check_branch
      %156 = sbr.rel (%p154) target = $region20
    $region19: #{_lambda_.34} parent=5 // pred_region
      // Predicated region
      $region21: #{_lambda_.34} parent=19 // pred_check
        %p157 = pneg %p52
      $region22: #{_lambda_.34} parent=19 // pred_check_branch
        %159 = sbr.rel (%p157) target = $region24
      $region23: #{_lambda_.34} parent=19 // pred_region
        %s160 = smul.u32 4, %s18
        %p161 = scmp.lt.s32.totalorder %s16, 0
        %s162 = scalar_select %p161, %s16, 0
        %p163 = scmp.lt.s32.totalorder %s17, 0
        %s164 = scalar_select %p163, %s17, 0
        %p165 = scmp.lt.s32.totalorder %s160, 7
        %s166 = scalar_select %p165, %s160, 7
        %s167 = smul.addr %s164, 8
        %s168 = sadd.s32 %s166, %s167
        %s169 = smul.addr %s162, 8
        %s170 = sadd.s32 %s168, %s169
        %s171 = scalar_lea.vmem %s0, %s170
        %s172 = smul.u32 4, %s18
      $region24: #{_lambda_.34} parent=19 // pred_fallthru
        _
      // Predicated region
      $region25: #{_lambda_.34} parent=19 // pred_check
        %p173 = pneg %p80
      $region26: #{_lambda_.34} parent=19 // pred_check_branch
        %175 = sbr.rel (%p173) target = $region28
      $region27: #{_lambda_.34} parent=19 // pred_region
        %s176 = smul.u32 64, %s18
        %p177 = scmp.lt.s32.totalorder %s16, 0
        %s178 = scalar_select %p177, %s16, 0
        %p179 = scmp.lt.s32.totalorder %s176, 127
        %s180 = scalar_select %p179, %s176, 127
        %s181 = smul.addr %s178, 128
        %s182 = sadd.s32 %s180, %s181
        %s183 = smul.addr %s182, 4
        %s184 = scalar_lea.vmem %s1, %s183
        %s185 = smul.u32 64, %s18
      $region28: #{_lambda_.34} parent=19 // pred_fallthru
        _
    $region20: #{_lambda_.34} parent=5 // pred_fallthru
      _
    %p186 = scmp.le.s32.totalorder 1, %s9
    %p187 = scmp.lt.s32.totalorder %s9, 3
    %p188 = pnand %p186, %p187
    %p189 = pneg %p188
    // Predicated region
    $region29: #{_lambda_.34} parent=5 // pred_check
      _
    $region30: #{_lambda_.34} parent=5 // pred_check_branch
      %191 = sbr.rel (%p188) target = $region32
    $region31: #{_lambda_.34} parent=5 // pred_region
      %s192 = ssub.s32 %s9, 1
      %s193 = smul.u32 4, %s21
      %p194 = scmp.lt.s32.totalorder %s19, 0
      %s195 = scalar_select %p194, %s19, 0
      %p196 = scmp.lt.s32.totalorder %s20, 0
      %s197 = scalar_select %p196, %s20, 0
      %p198 = scmp.lt.s32.totalorder %s193, 7
      %s199 = scalar_select %p198, %s193, 7
      %s200 = smul.addr %s197, 8
      %s201 = sadd.s32 %s199, %s200
      %s202 = smul.addr %s195, 8
      %s203 = sadd.s32 %s201, %s202
      %s204 = scalar_lea.vmem %s0, %s203
      %p205 = pneg %p58
      %p206 = pneg %p55
      %s207 = smul.u32 64, %s21
      %p208 = scmp.lt.s32.totalorder %s19, 0
      %s209 = scalar_select %p208, %s19, 0
      %p210 = scmp.lt.s32.totalorder %s207, 127
      %s211 = scalar_select %p210, %s207, 127
      %s212 = smul.addr %s209, 128
      %s213 = sadd.s32 %s211, %s212
      %s214 = smul.addr %s213, 4
      %s215 = scalar_lea.vmem %s1, %s214
      %p216 = pneg %p86
      %p217 = pneg %p83
      %p218 = pneg %p107
      %p219 = pneg %p104
      %p220 = pneg %p135
      %p221 = pneg %p132
      %p222 = scmp.lt.s32.totalorder %s19, 0
      %s223 = scalar_select %p222, %s19, 0
      %p224 = scmp.lt.s32.totalorder %s20, 0
      %s225 = scalar_select %p224, %s20, 0
      %s226 = sadd.s32 %s225, %s223
      %s227 = smul.addr %s226, 2
      %s228 = scalar_lea.vmem %s3, %s227
      %s229 = smul.u32 4, %s21
      %p230 = scmp.lt.s32.totalorder %s19, 0
      %s231 = scalar_select %p230, %s19, 0
      %p232 = scmp.lt.s32.totalorder %s20, 0
      %s233 = scalar_select %p232, %s20, 0
      %p234 = scmp.lt.s32.totalorder %s229, 7
      %s235 = scalar_select %p234, %s229, 7
      %s236 = smul.addr %s233, 8
      %s237 = sadd.s32 %s235, %s236
      %s238 = smul.addr %s231, 8
      %s239 = sadd.s32 %s237, %s238
      %s240 = scalar_lea.vmem %s0, %s239
      %s241 = smul.u32 4, %s21
      %s242 = smul.u32 64, %s21
      %p243 = scmp.lt.s32.totalorder %s19, 0
      %s244 = scalar_select %p243, %s19, 0
      %p245 = scmp.lt.s32.totalorder %s242, 127
      %s246 = scalar_select %p245, %s242, 127
      %s247 = smul.addr %s244, 128
      %s248 = sadd.s32 %s246, %s247
      %s249 = smul.addr %s248, 4
      %s250 = scalar_lea.vmem %s1, %s249
      %s251 = smul.u32 64, %s21
      %p252 = scmp.lt.s32.totalorder %s19, 0
      %s253 = scalar_select %p252, %s19, 0
      %p254 = scmp.lt.s32.totalorder %s20, 0
      %s255 = scalar_select %p254, %s20, 0
      %s256 = sadd.s32 %s255, %s253
      %s257 = smul.addr %s256, 2
      %s258 = scalar_lea.vmem %s3, %s257
      %p260 = scmp.eq.s32.totalorder %s21, 0
      // Predicated region
      $region33: #{_lambda_.34} parent=31 // pred_check
        %p261 = pneg %p260
      $region34: #{_lambda_.34} parent=31 // pred_check_branch
        %263 = sbr.rel (%p261) target = $region36
      $region35: #{_lambda_.34} parent=31 // pred_region
        %264 = vst [vmem:[#allocation2] sm:$0x3] 0.0
      $region36: #{_lambda_.34} parent=31 // pred_fallthru
        _
      %v265 = vld [vmem:[#allocation2] sm:$0x3]
      %v266 = vld [vmem:[%s240] sm:$0xf]
      %v267 = vld [vmem:[%s250] sm:$0xf]
      %v268 = vld [vmem:[%s250 + $0x4] sm:$0xf]
      %v269 = vld [vmem:[%s250 + $0x8] sm:$0xf]
      %v270 = vld [vmem:[%s250 + $0xc] sm:$0xf]
      %v271 = vld [vmem:[%s250 + $0x10] sm:$0xf]
      %v272 = vld [vmem:[%s250 + $0x14] sm:$0xf]
      %v273 = vld [vmem:[%s250 + $0x18] sm:$0xf]
      %v274 = vld [vmem:[%s250 + $0x1c] sm:$0xf]
      %v275 = vld [vmem:[%s250 + $0x20] sm:$0xf]
      %v276 = vld [vmem:[%s250 + $0x24] sm:$0xf]
      %v277 = vld [vmem:[%s250 + $0x28] sm:$0xf]
      %v278 = vld [vmem:[%s250 + $0x2c] sm:$0xf]
      %v279 = vld [vmem:[%s250 + $0x30] sm:$0xf]
      %v280 = vld [vmem:[%s250 + $0x34] sm:$0xf]
      %v281 = vld [vmem:[%s250 + $0x38] sm:$0xf]
      %v282 = vld [vmem:[%s250 + $0x3c] sm:$0xf]
      %v283 = vld [vmem:[%s250 + $0x40] sm:$0xf]
      %v284 = vld [vmem:[%s250 + $0x44] sm:$0xf]
      %v285 = vld [vmem:[%s250 + $0x48] sm:$0xf]
      %v286 = vld [vmem:[%s250 + $0x4c] sm:$0xf]
      %v287 = vld [vmem:[%s250 + $0x50] sm:$0xf]
      %v288 = vld [vmem:[%s250 + $0x54] sm:$0xf]
      %v289 = vld [vmem:[%s250 + $0x58] sm:$0xf]
      %v290 = vld [vmem:[%s250 + $0x5c] sm:$0xf]
      %v291 = vld [vmem:[%s250 + $0x60] sm:$0xf]
      %v292 = vld [vmem:[%s250 + $0x64] sm:$0xf]
      %v293 = vld [vmem:[%s250 + $0x68] sm:$0xf]
      %v294 = vld [vmem:[%s250 + $0x6c] sm:$0xf]
      %v295 = vld [vmem:[%s250 + $0x70] sm:$0xf]
      %v296 = vld [vmem:[%s250 + $0x74] sm:$0xf]
      %v297 = vld [vmem:[%s250 + $0x78] sm:$0xf]
      %v298 = vld [vmem:[%s250 + $0x7c] sm:$0xf]
      %v299 = vld [vmem:[%s250 + $0x80] sm:$0xf]
      %v300 = vld [vmem:[%s250 + $0x84] sm:$0xf]
      %v301 = vld [vmem:[%s250 + $0x88] sm:$0xf]
      %v302 = vld [vmem:[%s250 + $0x8c] sm:$0xf]
      %v303 = vld [vmem:[%s250 + $0x90] sm:$0xf]
      %v304 = vld [vmem:[%s250 + $0x94] sm:$0xf]
      %v305 = vld [vmem:[%s250 + $0x98] sm:$0xf]
      %v306 = vld [vmem:[%s250 + $0x9c] sm:$0xf]
      %v307 = vld [vmem:[%s250 + $0xa0] sm:$0xf]
      %v308 = vld [vmem:[%s250 + $0xa4] sm:$0xf]
      %v309 = vld [vmem:[%s250 + $0xa8] sm:$0xf]
      %v310 = vld [vmem:[%s250 + $0xac] sm:$0xf]
      %v311 = vld [vmem:[%s250 + $0xb0] sm:$0xf]
      %v312 = vld [vmem:[%s250 + $0xb4] sm:$0xf]
      %v313 = vld [vmem:[%s250 + $0xb8] sm:$0xf]
      %v314 = vld [vmem:[%s250 + $0xbc] sm:$0xf]
      %v315 = vld [vmem:[%s250 + $0xc0] sm:$0xf]
      %v316 = vld [vmem:[%s250 + $0xc4] sm:$0xf]
      %v317 = vld [vmem:[%s250 + $0xc8] sm:$0xf]
      %v318 = vld [vmem:[%s250 + $0xcc] sm:$0xf]
      %v319 = vld [vmem:[%s250 + $0xd0] sm:$0xf]
      %v320 = vld [vmem:[%s250 + $0xd4] sm:$0xf]
      %v321 = vld [vmem:[%s250 + $0xd8] sm:$0xf]
      %v322 = vld [vmem:[%s250 + $0xdc] sm:$0xf]
      %v323 = vld [vmem:[%s250 + $0xe0] sm:$0xf]
      %v324 = vld [vmem:[%s250 + $0xe4] sm:$0xf]
      %v325 = vld [vmem:[%s250 + $0xe8] sm:$0xf]
      %v326 = vld [vmem:[%s250 + $0xec] sm:$0xf]
      %v327 = vld [vmem:[%s250 + $0xf0] sm:$0xf]
      %v328 = vld [vmem:[%s250 + $0xf4] sm:$0xf]
      %v329 = vld [vmem:[%s250 + $0xf8] sm:$0xf]
      %v330 = vld [vmem:[%s250 + $0xfc] sm:$0xf]
      %v333 = vunpack.c.l.s4 1966171168
      %v334 = vunpack.c.0.s8 %v333
      %v335 = vlaneseq
      %v336 = vshrl.u32 %v335, 7
      %v337 = vsub.s32 %v334, %v336
      %v338 = vrot.slane %v266, %v337
      %v339 = vcombine.high %v338, %v338
      %v341 = vunpack.c.l.s4 1966171168
      %v342 = vunpack.c.0.s8 %v341
      %v343 = vlaneseq
      %v344 = vshrl.u32 %v343, 7
      %v345 = vsub.s32 %v342, %v344
      %v346 = vrot.slane %v338, %v345
      %v348 = vunpack.c.l.s4 1966171168
      %v349 = vunpack.c.0.s8 %v348
      %v350 = vlaneseq
      %v351 = vshrl.u32 %v350, 7
      %v352 = vsub.s32 %v349, %v351
      %v353 = vrot.slane %v339, %v352
      %v354 = vcombine.high %v346, %v346
      %v355 = vcombine.high %v353, %v353
      %v424 = vunpack.c.l.b16 %v267
      %v425 = vunpack.c.l.b16 %v268
      %v426 = vunpack.c.l.b16 %v269
      %v427 = vunpack.c.l.b16 %v270
      %v428 = vunpack.c.l.b16 %v271
      %v429 = vunpack.c.l.b16 %v272
      %v430 = vunpack.c.l.b16 %v273
      %v431 = vunpack.c.l.b16 %v274
      %v432 = vunpack.c.l.b16 %v275
      %v433 = vunpack.c.l.b16 %v276
      %v434 = vunpack.c.l.b16 %v277
      %v435 = vunpack.c.l.b16 %v278
      %v436 = vunpack.c.l.b16 %v279
      %v437 = vunpack.c.l.b16 %v280
      %v438 = vunpack.c.l.b16 %v281
      %v439 = vunpack.c.l.b16 %v282
      %v440 = vunpack.c.l.b16 %v283
      %v441 = vunpack.c.l.b16 %v284
      %v442 = vunpack.c.l.b16 %v285
      %v443 = vunpack.c.l.b16 %v286
      %v444 = vunpack.c.l.b16 %v287
      %v445 = vunpack.c.l.b16 %v288
      %v446 = vunpack.c.l.b16 %v289
      %v447 = vunpack.c.l.b16 %v290
      %v448 = vunpack.c.l.b16 %v291
      %v449 = vunpack.c.l.b16 %v292
      %v450 = vunpack.c.l.b16 %v293
      %v451 = vunpack.c.l.b16 %v294
      %v452 = vunpack.c.l.b16 %v295
      %v453 = vunpack.c.l.b16 %v296
      %v454 = vunpack.c.l.b16 %v297
      %v455 = vunpack.c.l.b16 %v298
      %v456 = vunpack.c.l.b16 %v299
      %v457 = vunpack.c.l.b16 %v300
      %v458 = vunpack.c.l.b16 %v301
      %v459 = vunpack.c.l.b16 %v302
      %v460 = vunpack.c.l.b16 %v303
      %v461 = vunpack.c.l.b16 %v304
      %v462 = vunpack.c.l.b16 %v305
      %v463 = vunpack.c.l.b16 %v306
      %v464 = vunpack.c.l.b16 %v307
      %v465 = vunpack.c.l.b16 %v308
      %v466 = vunpack.c.l.b16 %v309
      %v467 = vunpack.c.l.b16 %v310
      %v468 = vunpack.c.l.b16 %v311
      %v469 = vunpack.c.l.b16 %v312
      %v470 = vunpack.c.l.b16 %v313
      %v471 = vunpack.c.l.b16 %v314
      %v472 = vunpack.c.l.b16 %v315
      %v473 = vunpack.c.l.b16 %v316
      %v474 = vunpack.c.l.b16 %v317
      %v475 = vunpack.c.l.b16 %v318
      %v476 = vunpack.c.l.b16 %v319
      %v477 = vunpack.c.l.b16 %v320
      %v478 = vunpack.c.l.b16 %v321
      %v479 = vunpack.c.l.b16 %v322
      %v480 = vunpack.c.l.b16 %v323
      %v481 = vunpack.c.l.b16 %v324
      %v482 = vunpack.c.l.b16 %v325
      %v483 = vunpack.c.l.b16 %v326
      %v484 = vunpack.c.l.b16 %v327
      %v485 = vunpack.c.l.b16 %v328
      %v486 = vunpack.c.l.b16 %v329
      %v487 = vunpack.c.l.b16 %v330
      %v488 = vpack.c.b16 %v425, %v424
      %v489 = vpack.c.b16 %v427, %v426
      %v490 = vpack.c.b16 %v429, %v428
      %v491 = vpack.c.b16 %v431, %v430
      %v492 = vpack.c.b16 %v433, %v432
      %v493 = vpack.c.b16 %v435, %v434
      %v494 = vpack.c.b16 %v437, %v436
      %v495 = vpack.c.b16 %v439, %v438
      %v496 = vpack.c.b16 %v441, %v440
      %v497 = vpack.c.b16 %v443, %v442
      %v498 = vpack.c.b16 %v445, %v444
      %v499 = vpack.c.b16 %v447, %v446
      %v500 = vpack.c.b16 %v449, %v448
      %v501 = vpack.c.b16 %v451, %v450
      %v502 = vpack.c.b16 %v453, %v452
      %v503 = vpack.c.b16 %v455, %v454
      %v504 = vpack.c.b16 %v457, %v456
      %v505 = vpack.c.b16 %v459, %v458
      %v506 = vpack.c.b16 %v461, %v460
      %v507 = vpack.c.b16 %v463, %v462
      %v508 = vpack.c.b16 %v465, %v464
      %v509 = vpack.c.b16 %v467, %v466
      %v510 = vpack.c.b16 %v469, %v468
      %v511 = vpack.c.b16 %v471, %v470
      %v512 = vpack.c.b16 %v473, %v472
      %v513 = vpack.c.b16 %v475, %v474
      %v514 = vpack.c.b16 %v477, %v476
      %v515 = vpack.c.b16 %v479, %v478
      %v516 = vpack.c.b16 %v481, %v480
      %v517 = vpack.c.b16 %v483, %v482
      %v518 = vpack.c.b16 %v485, %v484
      %v519 = vpack.c.b16 %v487, %v486
      %552 = vmatprep.subr.bf16.mxu0 0
      %553 = vmatpush1.bf16.msra.mxu0 %v488
      %554 = vmatprep.subr.bf16.mxu0 0
      %555 = vmatpush1.bf16.msra.mxu0 %v489
      %556 = vmatprep.subr.bf16.mxu0 0
      %557 = vmatpush1.bf16.msra.mxu0 %v490
      %558 = vmatprep.subr.bf16.mxu0 0
      %559 = vmatpush1.bf16.msra.mxu0 %v491
      %560 = vmatprep.subr.bf16.mxu0 0
      %561 = vmatpush1.bf16.msra.mxu0 %v492
      %562 = vmatprep.subr.bf16.mxu0 0
      %563 = vmatpush1.bf16.msra.mxu0 %v493
      %564 = vmatprep.subr.bf16.mxu0 0
      %565 = vmatpush1.bf16.msra.mxu0 %v494
      %566 = vmatprep.subr.bf16.mxu0 0
      %567 = vmatpush1.bf16.msra.mxu0 %v495
      %568 = vmatprep.subr.bf16.mxu0 0
      %569 = vmatpush1.bf16.msra.mxu0 %v496
      %570 = vmatprep.subr.bf16.mxu0 0
      %571 = vmatpush1.bf16.msra.mxu0 %v497
      %572 = vmatprep.subr.bf16.mxu0 0
      %573 = vmatpush1.bf16.msra.mxu0 %v498
      %574 = vmatprep.subr.bf16.mxu0 0
      %575 = vmatpush1.bf16.msra.mxu0 %v499
      %576 = vmatprep.subr.bf16.mxu0 0
      %577 = vmatpush1.bf16.msra.mxu0 %v500
      %578 = vmatprep.subr.bf16.mxu0 0
      %579 = vmatpush1.bf16.msra.mxu0 %v501
      %580 = vmatprep.subr.bf16.mxu0 0
      %581 = vmatpush1.bf16.msra.mxu0 %v502
      %582 = vmatprep.subr.bf16.mxu0 0
      %583 = vmatpush1.bf16.msra.mxu0 %v503
      %584 = vmatprep.mubr.bf16.mxu0 %v353
      %585 = vmatmul.mubr.bf16.gmra.mrb[0].mxu0 %v346
      %v586 = vpop.f32.mrb[0].mxu0
      %v587 = vadd.f32 0.0, %v586
      %v588 = vpop.f32.mrb[0].mxu0
      %v589 = vpop.f32.mrb[0].mxu0
      %v590 = vpop.f32.mrb[0].mxu0
      %591 = vdwg.mxu0
      %592 = vmatprep.subr.bf16.mxu0 0
      %593 = vmatpush1.bf16.msra.mxu0 %v504
      %594 = vmatprep.subr.bf16.mxu0 0
      %595 = vmatpush1.bf16.msra.mxu0 %v505
      %596 = vmatprep.subr.bf16.mxu0 0
      %597 = vmatpush1.bf16.msra.mxu0 %v506
      %598 = vmatprep.subr.bf16.mxu0 0
      %599 = vmatpush1.bf16.msra.mxu0 %v507
      %600 = vmatprep.subr.bf16.mxu0 0
      %601 = vmatpush1.bf16.msra.mxu0 %v508
      %602 = vmatprep.subr.bf16.mxu0 0
      %603 = vmatpush1.bf16.msra.mxu0 %v509
      %604 = vmatprep.subr.bf16.mxu0 0
      %605 = vmatpush1.bf16.msra.mxu0 %v510
      %606 = vmatprep.subr.bf16.mxu0 0
      %607 = vmatpush1.bf16.msra.mxu0 %v511
      %608 = vmatprep.subr.bf16.mxu0 0
      %609 = vmatpush1.bf16.msra.mxu0 %v512
      %610 = vmatprep.subr.bf16.mxu0 0
      %611 = vmatpush1.bf16.msra.mxu0 %v513
      %612 = vmatprep.subr.bf16.mxu0 0
      %613 = vmatpush1.bf16.msra.mxu0 %v514
      %614 = vmatprep.subr.bf16.mxu0 0
      %615 = vmatpush1.bf16.msra.mxu0 %v515
      %616 = vmatprep.subr.bf16.mxu0 0
      %617 = vmatpush1.bf16.msra.mxu0 %v516
      %618 = vmatprep.subr.bf16.mxu0 0
      %619 = vmatpush1.bf16.msra.mxu0 %v517
      %620 = vmatprep.subr.bf16.mxu0 0
      %621 = vmatpush1.bf16.msra.mxu0 %v518
      %622 = vmatprep.subr.bf16.mxu0 0
      %623 = vmatpush1.bf16.msra.mxu0 %v519
      %624 = vmatprep.mubr.bf16.mxu0 %v355
      %625 = vmatmul.mubr.bf16.gmra.mrb[0].mxu0 %v354
      %v626 = vpop.f32.mrb[0].mxu0
      %v627 = vadd.f32 %v587, %v626
      %v628 = vpop.f32.mrb[0].mxu0
      %v629 = vpop.f32.mrb[0].mxu0
      %v630 = vpop.f32.mrb[0].mxu0
      %631 = vdwg.mxu0
      %v632 = vadd.f32 %v265, %v627
      %633 = vst [vmem:[#allocation2] sm:$0x3] %v632
      %p634 = scmp.eq.s32.totalorder %s21, 1
      // Predicated region
      $region37: #{_lambda_.34} parent=31 // pred_check
        %p635 = pneg %p634
      $region38: #{_lambda_.34} parent=31 // pred_check_branch
        %637 = sbr.rel (%p635) target = $region40
      $region39: #{_lambda_.34} parent=31 // pred_region
        %v638 = vld [vmem:[#allocation2] sm:$0x3]
        %v639 = vld [vmem:[%s2] sm:$0x1]
        %v641 = vlaneseq
        %v642 = vshrl.u32 %v641, 7
        %v643 = vsub.s32 0, %v642
        %v644 = vrot.slane %v639, %v643
        %v646 = vadd.f32 %v638, %v644
        %647 = vst [vmem:[%s258] sm:$0x3] %v646
      $region40: #{_lambda_.34} parent=31 // pred_fallthru
        _
      %p648 = scmp.lt.s32.totalorder %s19, 0
      %s649 = scalar_select %p648, %s19, 0
      %p650 = scmp.lt.s32.totalorder %s20, 0
      %s651 = scalar_select %p650, %s20, 0
      %s652 = sadd.s32 %s651, %s649
      %s653 = smul.addr %s652, 2
      %s654 = scalar_lea.vmem %s3, %s653
      // Predicated region
      $region41: #{_lambda_.34} parent=31 // pred_check
        %p655 = pneg %p132
      $region42: #{_lambda_.34} parent=31 // pred_check_branch
        %657 = sbr.rel (%p655) target = $region44
      $region43: #{_lambda_.34} parent=31 // pred_region
        _
      $region44: #{_lambda_.34} parent=31 // pred_fallthru
        _
      // Predicated region
      $region45: #{_lambda_.34} parent=31 // pred_check
        %p658 = pneg %p132
      $region46: #{_lambda_.34} parent=31 // pred_check_branch
        %660 = sbr.rel (%p658) target = $region48
      $region47: #{_lambda_.34} parent=31 // pred_region
        %p661 = scmp.lt.s32.totalorder %s19, 0
        %s662 = scalar_select %p661, %s19, 0
        %p663 = scmp.lt.s32.totalorder %s20, 0
        %s664 = scalar_select %p663, %s20, 0
        %s665 = sadd.s32 %s664, %s662
        %s666 = smul.addr %s665, 2
        %s667 = scalar_lea.vmem %s3, %s666
      $region48: #{_lambda_.34} parent=31 // pred_fallthru
        _
    $region32: #{_lambda_.34} parent=5 // pred_fallthru
      _
    %p668 = scmp.le.s32.totalorder 2, %s9
    // Predicated region
    $region49: #{_lambda_.34} parent=5 // pred_check
      %p669 = pneg %p668
    $region50: #{_lambda_.34} parent=5 // pred_check_branch
      %671 = sbr.rel (%p669) target = $region52
    $region51: #{_lambda_.34} parent=5 // pred_region
      %s672 = ssub.s32 %s9, 2
    $region52: #{_lambda_.34} parent=5 // pred_fallthru
      _
  $region6: #{_lambda_.34} parent=0 // loop_footer
    %s13 = sadd.s32 1, %s9
  $region7: #{_lambda_.34} parent=0 // loop_footer_branch
    %8 = sbr.rel target = $region3
  $region8: #{_lambda_.34} parent=0 // loop_exit
    _

// kernel: _lambda_.38
$region0: #{_lambda_.38}
  #allocation0 [shape = 'u32[]', space=smem, size = 0x4, offset = 0x4, fixed_abs, tag = 'smem constant byte address 0x4 - core index']
  #allocation1 [shape = 'u32[144,128]{1,0:T(1,128)}', space=vmem, size = 0x12000, scoped, tag = 'internal scratch']
  #allocation2 [shape = 'f32[8,128]{1,0:T(8,128)}', space=vmem, size = 0x1000, scoped, tag = 'scratch operand']
  %s0 = inlined_call_operand.vmem [shape: bf16[4,8,512], index: 0, kind: input, shape index: {}]
  %s1 = inlined_call_operand.vmem [shape: bf16[4,512,128], index: 1, kind: input, shape index: {}]
  %s2 = inlined_call_operand.vmem [shape: f32[1,128], index: 2, kind: input, shape index: {}]
  %s3 = inlined_call_operand.vmem [shape: f32[4,8,128], index: 3, kind: output, shape index: {}]
  %s4 = sld [smem:[#allocation0]]
  $region53: #{_lambda_.38} parent=0
    _
  %s6 = ssub.s32 1, %s4
  %s7 = scalar_select 0, %s6, %s4
  loop: start=0, step=1, limit=6
  $region2: #{_lambda_.38} parent=0 // loop_pre_header
    _
  $region3: #{_lambda_.38} parent=0 // loop_header
    %s9 = sphi 0, %s13
    %p10 = scmp.ge.s32.totalorder %s9, 6
    %s16 = sphi 0, %s35
    %s17 = sphi 0, %s31
    %s18 = sphi 0, %s27
    %s19 = sphi 0, %s16
    %s20 = sphi 0, %s17
    %s21 = sphi 0, %s18
    %s22 = sphi 0, %s19
    %s23 = sphi 0, %s20
    %s24 = sphi 0, %s21
    %s42 = sphi 0, %s44
    %s45 = sphi 0, %s42
    %s46 = sphi 0, %s45
    %s62 = sphi 0, %s46
    %s70 = sphi 0, %s72
    %s73 = sphi 0, %s70
    %s74 = sphi 0, %s73
    %s90 = sphi 0, %s74
    %s94 = sphi 0, %s94
    %s96 = sphi 0, %s94
    %s97 = sphi 0, %s96
    %s111 = sphi 0, %s97
    %s119 = sphi 0, %s121
    %s122 = sphi 0, %s119
    %s123 = sphi 0, %s122
    %s139 = sphi 0, %s123
  $region4: #{_lambda_.38} parent=0 // loop_header_branch
    %12 = sbr.rel (%p10) target = $region8
  $region5: #{_lambda_.38} parent=0 // loop_body
    %s14 = ssub.s32 %s9, 1
    %s15 = ssub.s32 %s9, 2
    %s25 = sadd.s32 1, %s18
    %p26 = scmp.ge.s32.totalorder %s25, 1
    %s27 = scalar_select %p26, 0, %s25
    %s28 = sadd.s32 1, %s17
    %s29 = scalar_select %p26, %s28, %s17
    %p30 = scmp.ge.s32.totalorder %s29, 1
    %s31 = scalar_select %p30, 0, %s29
    %s32 = sadd.s32 1, %s16
    %s33 = scalar_select %p30, %s32, %s16
    %p34 = scmp.ge.s32.totalorder %s33, 4
    %s35 = scalar_select %p34, 0, %s33
    %s36 = ssub.s32 %s16, %s35
    %s37 = ssub.s32 %s17, %s31
    %s38 = sor.u32 %s36, %s37
    %s39 = ssub.s32 %s18, %s27
    %s40 = sor.u32 %s38, %s39
    %p41 = scmp.eq.s32.totalorder %s40, 0
    %s43 = sadd.s32 %s42, 1
    %s44 = scalar_select %p41, %s42, %s43
    %p47 = pneg %p41
    %p48 = scmp.eq.s32.totalorder %s9, 3
    %p49 = por %p47, %p48
    %p50 = scmp.ne.s32.totalorder %s42, %s45
    %p51 = scmp.eq.s32.totalorder %s9, 0
    %p52 = por %p50, %p51
    %p53 = scmp.ne.s32.totalorder %s42, %s45
    %p54 = scmp.eq.s32.totalorder %s14, 3
    %p55 = por %p53, %p54
    %p56 = scmp.ne.s32.totalorder %s45, %s46
    %p57 = scmp.eq.s32.totalorder %s14, 0
    %p58 = por %p56, %p57
    %p59 = scmp.ne.s32.totalorder %s45, %s46
    %p60 = scmp.eq.s32.totalorder %s15, 3
    %p61 = por %p59, %p60
    %p63 = scmp.ne.s32.totalorder %s46, %s62
    %p64 = scmp.eq.s32.totalorder %s15, 0
    %p65 = por %p63, %p64
    %s66 = ssub.s32 %s16, %s35
    %s67 = ssub.s32 %s18, %s27
    %s68 = sor.u32 %s66, %s67
    %p69 = scmp.eq.s32.totalorder %s68, 0
    %s71 = sadd.s32 %s70, 1
    %s72 = scalar_select %p69, %s70, %s71
    %p75 = pneg %p69
    %p76 = scmp.eq.s32.totalorder %s9, 3
    %p77 = por %p75, %p76
    %p78 = scmp.ne.s32.totalorder %s70, %s73
    %p79 = scmp.eq.s32.totalorder %s9, 0
    %p80 = por %p78, %p79
    %p81 = scmp.ne.s32.totalorder %s70, %s73
    %p82 = scmp.eq.s32.totalorder %s14, 3
    %p83 = por %p81, %p82
    %p84 = scmp.ne.s32.totalorder %s73, %s74
    %p85 = scmp.eq.s32.totalorder %s14, 0
    %p86 = por %p84, %p85
    %p87 = scmp.ne.s32.totalorder %s73, %s74
    %p88 = scmp.eq.s32.totalorder %s15, 3
    %p89 = por %p87, %p88
    %p91 = scmp.ne.s32.totalorder %s74, %s90
    %p92 = scmp.eq.s32.totalorder %s15, 0
    %p93 = por %p91, %p92
    %s95 = sadd.s32 %s94, 1
    %p98 = scmp.eq.s32.totalorder %s9, 3
    %p99 = scmp.ne.s32.totalorder %s94, %s96
    %p100 = scmp.eq.s32.totalorder %s9, 0
    %p101 = por %p99, %p100
    %p102 = scmp.ne.s32.totalorder %s94, %s96
    %p103 = scmp.eq.s32.totalorder %s14, 3
    %p104 = por %p102, %p103
    %p105 = scmp.ne.s32.totalorder %s96, %s97
    %p106 = scmp.eq.s32.totalorder %s14, 0
    %p107 = por %p105, %p106
    %p108 = scmp.ne.s32.totalorder %s96, %s97
    %p109 = scmp.eq.s32.totalorder %s15, 3
    %p110 = por %p108, %p109
    %p112 = scmp.ne.s32.totalorder %s97, %s111
    %p113 = scmp.eq.s32.totalorder %s15, 0
    %p114 = por %p112, %p113
    %s115 = ssub.s32 %s16, %s35
    %s116 = ssub.s32 %s17, %s31
    %s117 = sor.u32 %s115, %s116
    %p118 = scmp.eq.s32.totalorder %s117, 0
    %s120 = sadd.s32 %s119, 1
    %s121 = scalar_select %p118, %s119, %s120
    %p124 = pneg %p118
    %p125 = scmp.eq.s32.totalorder %s9, 3
    %p126 = por %p124, %p125
    %p127 = scmp.ne.s32.totalorder %s119, %s122
    %p128 = scmp.eq.s32.totalorder %s9, 0
    %p129 = por %p127, %p128
    %p130 = scmp.ne.s32.totalorder %s119, %s122
    %p131 = scmp.eq.s32.totalorder %s14, 3
    %p132 = por %p130, %p131
    %p133 = scmp.ne.s32.totalorder %s122, %s123
    %p134 = scmp.eq.s32.totalorder %s14, 0
    %p135 = por %p133, %p134
    %p136 = scmp.ne.s32.totalorder %s122, %s123
    %p137 = scmp.eq.s32.totalorder %s15, 3
    %p138 = por %p136, %p137
    %p140 = scmp.ne.s32.totalorder %s123, %s139
    %p141 = scmp.eq.s32.totalorder %s15, 0
    %p142 = por %p140, %p141
    %p143 = scmp.le.s32.totalorder 1, %s9
    %p144 = scmp.lt.s32.totalorder %s9, 5
    %p145 = pnand %p143, %p144
    %p146 = pneg %p145
    // Predicated region
    $region9: #{_lambda_.38} parent=5 // pred_check
      _
    $region10: #{_lambda_.38} parent=5 // pred_check_branch
      %148 = sbr.rel (%p145) target = $region12
    $region11: #{_lambda_.38} parent=5 // pred_region
      %s149 = ssub.s32 %s9, 1
      // Predicated region
      $region13: #{_lambda_.38} parent=11 // pred_check
        %p150 = pneg %p107
      $region14: #{_lambda_.38} parent=11 // pred_check_branch
        %152 = sbr.rel (%p150) target = $region16
      $region15: #{_lambda_.38} parent=11 // pred_region
        _
      $region16: #{_lambda_.38} parent=11 // pred_fallthru
        _
    $region12: #{_lambda_.38} parent=5 // pred_fallthru
      _
    %p153 = scmp.lt.s32.totalorder %s9, 4
    // Predicated region
    $region17: #{_lambda_.38} parent=5 // pred_check
      %p154 = pneg %p153
    $region18: #{_lambda_.38} parent=5 // pred_check_branch
      %156 = sbr.rel (%p154) target = $region20
    $region19: #{_lambda_.38} parent=5 // pred_region
      // Predicated region
      $region21: #{_lambda_.38} parent=19 // pred_check
        %p157 = pneg %p52
      $region22: #{_lambda_.38} parent=19 // pred_check_branch
        %159 = sbr.rel (%p157) target = $region24
      $region23: #{_lambda_.38} parent=19 // pred_region
        %s160 = smul.u32 4, %s18
        %p161 = scmp.lt.s32.totalorder %s16, 3
        %s162 = scalar_select %p161, %s16, 3
        %p163 = scmp.lt.s32.totalorder %s17, 0
        %s164 = scalar_select %p163, %s17, 0
        %p165 = scmp.lt.s32.totalorder %s160, 3
        %s166 = scalar_select %p165, %s160, 3
        %s167 = smul.addr %s164, 4
        %s168 = sadd.s32 %s166, %s167
        %s169 = smul.addr %s162, 4
        %s170 = sadd.s32 %s168, %s169
        %s171 = smul.addr %s170, 4
        %s172 = scalar_lea.vmem %s0, %s171
        %s173 = smul.u32 4, %s18
      $region24: #{_lambda_.38} parent=19 // pred_fallthru
        _
      // Predicated region
      $region25: #{_lambda_.38} parent=19 // pred_check
        %p174 = pneg %p80
      $region26: #{_lambda_.38} parent=19 // pred_check_branch
        %176 = sbr.rel (%p174) target = $region28
      $region27: #{_lambda_.38} parent=19 // pred_region
        %s177 = smul.u32 64, %s18
        %p178 = scmp.lt.s32.totalorder %s16, 3
        %s179 = scalar_select %p178, %s16, 3
        %p180 = scmp.lt.s32.totalorder %s177, 63
        %s181 = scalar_select %p180, %s177, 63
        %s182 = smul.addr %s179, 64
        %s183 = sadd.s32 %s181, %s182
        %s184 = smul.addr %s183, 4
        %s185 = scalar_lea.vmem %s1, %s184
        %s186 = smul.u32 64, %s18
      $region28: #{_lambda_.38} parent=19 // pred_fallthru
        _
    $region20: #{_lambda_.38} parent=5 // pred_fallthru
      _
    %p187 = scmp.le.s32.totalorder 1, %s9
    %p188 = scmp.lt.s32.totalorder %s9, 5
    %p189 = pnand %p187, %p188
    %p190 = pneg %p189
    // Predicated region
    $region29: #{_lambda_.38} parent=5 // pred_check
      _
    $region30: #{_lambda_.38} parent=5 // pred_check_branch
      %192 = sbr.rel (%p189) target = $region32
    $region31: #{_lambda_.38} parent=5 // pred_region
      %s193 = ssub.s32 %s9, 1
      %s194 = smul.u32 4, %s21
      %p195 = scmp.lt.s32.totalorder %s19, 3
      %s196 = scalar_select %p195, %s19, 3
      %p197 = scmp.lt.s32.totalorder %s20, 0
      %s198 = scalar_select %p197, %s20, 0
      %p199 = scmp.lt.s32.totalorder %s194, 3
      %s200 = scalar_select %p199, %s194, 3
      %s201 = smul.addr %s198, 4
      %s202 = sadd.s32 %s200, %s201
      %s203 = smul.addr %s196, 4
      %s204 = sadd.s32 %s202, %s203
      %s205 = smul.addr %s204, 4
      %s206 = scalar_lea.vmem %s0, %s205
      %p207 = pneg %p58
      %p208 = pneg %p55
      %s209 = smul.u32 64, %s21
      %p210 = scmp.lt.s32.totalorder %s19, 3
      %s211 = scalar_select %p210, %s19, 3
      %p212 = scmp.lt.s32.totalorder %s209, 63
      %s213 = scalar_select %p212, %s209, 63
      %s214 = smul.addr %s211, 64
      %s215 = sadd.s32 %s213, %s214
      %s216 = smul.addr %s215, 4
      %s217 = scalar_lea.vmem %s1, %s216
      %p218 = pneg %p86
      %p219 = pneg %p83
      %p220 = pneg %p107
      %p221 = pneg %p104
      %p222 = pneg %p135
      %p223 = pneg %p132
      %p224 = scmp.lt.s32.totalorder %s19, 3
      %s225 = scalar_select %p224, %s19, 3
      %p226 = scmp.lt.s32.totalorder %s20, 0
      %s227 = scalar_select %p226, %s20, 0
      %s228 = sadd.s32 %s227, %s225
      %s229 = smul.addr %s228, 8
      %s230 = scalar_lea.vmem %s3, %s229
      %s231 = smul.u32 4, %s21
      %p232 = scmp.lt.s32.totalorder %s19, 3
      %s233 = scalar_select %p232, %s19, 3
      %p234 = scmp.lt.s32.totalorder %s20, 0
      %s235 = scalar_select %p234, %s20, 0
      %p236 = scmp.lt.s32.totalorder %s231, 3
      %s237 = scalar_select %p236, %s231, 3
      %s238 = smul.addr %s235, 4
      %s239 = sadd.s32 %s237, %s238
      %s240 = smul.addr %s233, 4
      %s241 = sadd.s32 %s239, %s240
      %s242 = smul.addr %s241, 4
      %s243 = scalar_lea.vmem %s0, %s242
      %s244 = smul.u32 4, %s21
      %s245 = smul.u32 64, %s21
      %p246 = scmp.lt.s32.totalorder %s19, 3
      %s247 = scalar_select %p246, %s19, 3
      %p248 = scmp.lt.s32.totalorder %s245, 63
      %s249 = scalar_select %p248, %s245, 63
      %s250 = smul.addr %s247, 64
      %s251 = sadd.s32 %s249, %s250
      %s252 = smul.addr %s251, 4
      %s253 = scalar_lea.vmem %s1, %s252
      %s254 = smul.u32 64, %s21
      %p255 = scmp.lt.s32.totalorder %s19, 3
      %s256 = scalar_select %p255, %s19, 3
      %p257 = scmp.lt.s32.totalorder %s20, 0
      %s258 = scalar_select %p257, %s20, 0
      %s259 = sadd.s32 %s258, %s256
      %s260 = smul.addr %s259, 8
      %s261 = scalar_lea.vmem %s3, %s260
      %p263 = scmp.eq.s32.totalorder %s21, 0
      // Predicated region
      $region33: #{_lambda_.38} parent=31 // pred_check
        %p264 = pneg %p263
      $region34: #{_lambda_.38} parent=31 // pred_check_branch
        %266 = sbr.rel (%p264) target = $region36
      $region35: #{_lambda_.38} parent=31 // pred_region
        %267 = vst [vmem:[#allocation2] sm:$0xff] 0.0
      $region36: #{_lambda_.38} parent=31 // pred_fallthru
        _
      %v268 = vld [vmem:[#allocation2] sm:$0xff]
      %v269 = vld [vmem:[%s243] sm:$0xff]
      %v270 = vld [vmem:[%s243 + $0x8] sm:$0xff]
      %v271 = vld [vmem:[%s253] sm:$0xf]
      %v272 = vld [vmem:[%s253 + $0x4] sm:$0xf]
      %v273 = vld [vmem:[%s253 + $0x8] sm:$0xf]
      %v274 = vld [vmem:[%s253 + $0xc] sm:$0xf]
      %v275 = vld [vmem:[%s253 + $0x10] sm:$0xf]
      %v276 = vld [vmem:[%s253 + $0x14] sm:$0xf]
      %v277 = vld [vmem:[%s253 + $0x18] sm:$0xf]
      %v278 = vld [vmem:[%s253 + $0x1c] sm:$0xf]
      %v279 = vld [vmem:[%s253 + $0x20] sm:$0xf]
      %v280 = vld [vmem:[%s253 + $0x24] sm:$0xf]
      %v281 = vld [vmem:[%s253 + $0x28] sm:$0xf]
      %v282 = vld [vmem:[%s253 + $0x2c] sm:$0xf]
      %v283 = vld [vmem:[%s253 + $0x30] sm:$0xf]
      %v284 = vld [vmem:[%s253 + $0x34] sm:$0xf]
      %v285 = vld [vmem:[%s253 + $0x38] sm:$0xf]
      %v286 = vld [vmem:[%s253 + $0x3c] sm:$0xf]
      %v287 = vld [vmem:[%s253 + $0x40] sm:$0xf]
      %v288 = vld [vmem:[%s253 + $0x44] sm:$0xf]
      %v289 = vld [vmem:[%s253 + $0x48] sm:$0xf]
      %v290 = vld [vmem:[%s253 + $0x4c] sm:$0xf]
      %v291 = vld [vmem:[%s253 + $0x50] sm:$0xf]
      %v292 = vld [vmem:[%s253 + $0x54] sm:$0xf]
      %v293 = vld [vmem:[%s253 + $0x58] sm:$0xf]
      %v294 = vld [vmem:[%s253 + $0x5c] sm:$0xf]
      %v295 = vld [vmem:[%s253 + $0x60] sm:$0xf]
      %v296 = vld [vmem:[%s253 + $0x64] sm:$0xf]
      %v297 = vld [vmem:[%s253 + $0x68] sm:$0xf]
      %v298 = vld [vmem:[%s253 + $0x6c] sm:$0xf]
      %v299 = vld [vmem:[%s253 + $0x70] sm:$0xf]
      %v300 = vld [vmem:[%s253 + $0x74] sm:$0xf]
      %v301 = vld [vmem:[%s253 + $0x78] sm:$0xf]
      %v302 = vld [vmem:[%s253 + $0x7c] sm:$0xf]
      %v303 = vld [vmem:[%s253 + $0x80] sm:$0xf]
      %v304 = vld [vmem:[%s253 + $0x84] sm:$0xf]
      %v305 = vld [vmem:[%s253 + $0x88] sm:$0xf]
      %v306 = vld [vmem:[%s253 + $0x8c] sm:$0xf]
      %v307 = vld [vmem:[%s253 + $0x90] sm:$0xf]
      %v308 = vld [vmem:[%s253 + $0x94] sm:$0xf]
      %v309 = vld [vmem:[%s253 + $0x98] sm:$0xf]
      %v310 = vld [vmem:[%s253 + $0x9c] sm:$0xf]
      %v311 = vld [vmem:[%s253 + $0xa0] sm:$0xf]
      %v312 = vld [vmem:[%s253 + $0xa4] sm:$0xf]
      %v313 = vld [vmem:[%s253 + $0xa8] sm:$0xf]
      %v314 = vld [vmem:[%s253 + $0xac] sm:$0xf]
      %v315 = vld [vmem:[%s253 + $0xb0] sm:$0xf]
      %v316 = vld [vmem:[%s253 + $0xb4] sm:$0xf]
      %v317 = vld [vmem:[%s253 + $0xb8] sm:$0xf]
      %v318 = vld [vmem:[%s253 + $0xbc] sm:$0xf]
      %v319 = vld [vmem:[%s253 + $0xc0] sm:$0xf]
      %v320 = vld [vmem:[%s253 + $0xc4] sm:$0xf]
      %v321 = vld [vmem:[%s253 + $0xc8] sm:$0xf]
      %v322 = vld [vmem:[%s253 + $0xcc] sm:$0xf]
      %v323 = vld [vmem:[%s253 + $0xd0] sm:$0xf]
      %v324 = vld [vmem:[%s253 + $0xd4] sm:$0xf]
      %v325 = vld [vmem:[%s253 + $0xd8] sm:$0xf]
      %v326 = vld [vmem:[%s253 + $0xdc] sm:$0xf]
      %v327 = vld [vmem:[%s253 + $0xe0] sm:$0xf]
      %v328 = vld [vmem:[%s253 + $0xe4] sm:$0xf]
      %v329 = vld [vmem:[%s253 + $0xe8] sm:$0xf]
      %v330 = vld [vmem:[%s253 + $0xec] sm:$0xf]
      %v331 = vld [vmem:[%s253 + $0xf0] sm:$0xf]
      %v332 = vld [vmem:[%s253 + $0xf4] sm:$0xf]
      %v333 = vld [vmem:[%s253 + $0xf8] sm:$0xf]
      %v334 = vld [vmem:[%s253 + $0xfc] sm:$0xf]
      %v337 = vunpack.c.l.b16 %v269
      %v338 = vunpack.c.h.b16 %v269
      %v339 = vunpack.c.l.b16 %v270
      %v340 = vunpack.c.h.b16 %v270
      %v341 = vpack.c.b16 %v337, %v337
      %v342 = vpack.c.b16 %v338, %v338
      %v343 = vpack.c.b16 %v339, %v339
      %v344 = vpack.c.b16 %v340, %v340
      %v413 = vunpack.c.l.b16 %v271
      %v414 = vunpack.c.l.b16 %v272
      %v415 = vunpack.c.l.b16 %v273
      %v416 = vunpack.c.l.b16 %v274
      %v417 = vunpack.c.l.b16 %v275
      %v418 = vunpack.c.l.b16 %v276
      %v419 = vunpack.c.l.b16 %v277
      %v420 = vunpack.c.l.b16 %v278
      %v421 = vunpack.c.l.b16 %v279
      %v422 = vunpack.c.l.b16 %v280
      %v423 = vunpack.c.l.b16 %v281
      %v424 = vunpack.c.l.b16 %v282
      %v425 = vunpack.c.l.b16 %v283
      %v426 = vunpack.c.l.b16 %v284
      %v427 = vunpack.c.l.b16 %v285
      %v428 = vunpack.c.l.b16 %v286
      %v429 = vunpack.c.l.b16 %v287
      %v430 = vunpack.c.l.b16 %v288
      %v431 = vunpack.c.l.b16 %v289
      %v432 = vunpack.c.l.b16 %v290
      %v433 = vunpack.c.l.b16 %v291
      %v434 = vunpack.c.l.b16 %v292
      %v435 = vunpack.c.l.b16 %v293
      %v436 = vunpack.c.l.b16 %v294
      %v437 = vunpack.c.l.b16 %v295
      %v438 = vunpack.c.l.b16 %v296
      %v439 = vunpack.c.l.b16 %v297
      %v440 = vunpack.c.l.b16 %v298
      %v441 = vunpack.c.l.b16 %v299
      %v442 = vunpack.c.l.b16 %v300
      %v443 = vunpack.c.l.b16 %v301
      %v444 = vunpack.c.l.b16 %v302
      %v445 = vunpack.c.l.b16 %v303
      %v446 = vunpack.c.l.b16 %v304
      %v447 = vunpack.c.l.b16 %v305
      %v448 = vunpack.c.l.b16 %v306
      %v449 = vunpack.c.l.b16 %v307
      %v450 = vunpack.c.l.b16 %v308
      %v451 = vunpack.c.l.b16 %v309
      %v452 = vunpack.c.l.b16 %v310
      %v453 = vunpack.c.l.b16 %v311
      %v454 = vunpack.c.l.b16 %v312
      %v455 = vunpack.c.l.b16 %v313
      %v456 = vunpack.c.l.b16 %v314
      %v457 = vunpack.c.l.b16 %v315
      %v458 = vunpack.c.l.b16 %v316
      %v459 = vunpack.c.l.b16 %v317
      %v460 = vunpack.c.l.b16 %v318
      %v461 = vunpack.c.l.b16 %v319
      %v462 = vunpack.c.l.b16 %v320
      %v463 = vunpack.c.l.b16 %v321
      %v464 = vunpack.c.l.b16 %v322
      %v465 = vunpack.c.l.b16 %v323
      %v466 = vunpack.c.l.b16 %v324
      %v467 = vunpack.c.l.b16 %v325
      %v468 = vunpack.c.l.b16 %v326
      %v469 = vunpack.c.l.b16 %v327
      %v470 = vunpack.c.l.b16 %v328
      %v471 = vunpack.c.l.b16 %v329
      %v472 = vunpack.c.l.b16 %v330
      %v473 = vunpack.c.l.b16 %v331
      %v474 = vunpack.c.l.b16 %v332
      %v475 = vunpack.c.l.b16 %v333
      %v476 = vunpack.c.l.b16 %v334
      %v477 = vpack.c.b16 %v414, %v413
      %v478 = vpack.c.b16 %v416, %v415
      %v479 = vpack.c.b16 %v418, %v417
      %v480 = vpack.c.b16 %v420, %v419
      %v481 = vpack.c.b16 %v422, %v421
      %v482 = vpack.c.b16 %v424, %v423
      %v483 = vpack.c.b16 %v426, %v425
      %v484 = vpack.c.b16 %v428, %v427
      %v485 = vpack.c.b16 %v430, %v429
      %v486 = vpack.c.b16 %v432, %v431
      %v487 = vpack.c.b16 %v434, %v433
      %v488 = vpack.c.b16 %v436, %v435
      %v489 = vpack.c.b16 %v438, %v437
      %v490 = vpack.c.b16 %v440, %v439
      %v491 = vpack.c.b16 %v442, %v441
      %v492 = vpack.c.b16 %v444, %v443
      %v493 = vpack.c.b16 %v446, %v445
      %v494 = vpack.c.b16 %v448, %v447
      %v495 = vpack.c.b16 %v450, %v449
      %v496 = vpack.c.b16 %v452, %v451
      %v497 = vpack.c.b16 %v454, %v453
      %v498 = vpack.c.b16 %v456, %v455
      %v499 = vpack.c.b16 %v458, %v457
      %v500 = vpack.c.b16 %v460, %v459
      %v501 = vpack.c.b16 %v462, %v461
      %v502 = vpack.c.b16 %v464, %v463
      %v503 = vpack.c.b16 %v466, %v465
      %v504 = vpack.c.b16 %v468, %v467
      %v505 = vpack.c.b16 %v470, %v469
      %v506 = vpack.c.b16 %v472, %v471
      %v507 = vpack.c.b16 %v474, %v473
      %v508 = vpack.c.b16 %v476, %v475
      %541 = vmatprep.subr.bf16.mxu0 0
      %542 = vmatpush1.bf16.msra.mxu0 %v477
      %543 = vmatprep.subr.bf16.mxu0 0
      %544 = vmatpush1.bf16.msra.mxu0 %v478
      %545 = vmatprep.subr.bf16.mxu0 0
      %546 = vmatpush1.bf16.msra.mxu0 %v479
      %547 = vmatprep.subr.bf16.mxu0 0
      %548 = vmatpush1.bf16.msra.mxu0 %v480
      %549 = vmatprep.subr.bf16.mxu0 0
      %550 = vmatpush1.bf16.msra.mxu0 %v481
      %551 = vmatprep.subr.bf16.mxu0 0
      %552 = vmatpush1.bf16.msra.mxu0 %v482
      %553 = vmatprep.subr.bf16.mxu0 0
      %554 = vmatpush1.bf16.msra.mxu0 %v483
      %555 = vmatprep.subr.bf16.mxu0 0
      %556 = vmatpush1.bf16.msra.mxu0 %v484
      %557 = vmatprep.subr.bf16.mxu0 0
      %558 = vmatpush1.bf16.msra.mxu0 %v485
      %559 = vmatprep.subr.bf16.mxu0 0
      %560 = vmatpush1.bf16.msra.mxu0 %v486
      %561 = vmatprep.subr.bf16.mxu0 0
      %562 = vmatpush1.bf16.msra.mxu0 %v487
      %563 = vmatprep.subr.bf16.mxu0 0
      %564 = vmatpush1.bf16.msra.mxu0 %v488
      %565 = vmatprep.subr.bf16.mxu0 0
      %566 = vmatpush1.bf16.msra.mxu0 %v489
      %567 = vmatprep.subr.bf16.mxu0 0
      %568 = vmatpush1.bf16.msra.mxu0 %v490
      %569 = vmatprep.subr.bf16.mxu0 0
      %570 = vmatpush1.bf16.msra.mxu0 %v491
      %571 = vmatprep.subr.bf16.mxu0 0
      %572 = vmatpush1.bf16.msra.mxu0 %v492
      %573 = vmatprep.mubr.bf16.mxu0 %v342
      %574 = vmatmul.mubr.bf16.gmra.mrb[0].mxu0 %v341
      %v575 = vpop.f32.mrb[0].mxu0
      %v576 = vadd.f32 0.0, %v575
      %v577 = vpop.f32.mrb[0].mxu0
      %v578 = vpop.f32.mrb[0].mxu0
      %v579 = vpop.f32.mrb[0].mxu0
      %580 = vdwg.mxu0
      %581 = vmatprep.subr.bf16.mxu0 0
      %582 = vmatpush1.bf16.msra.mxu0 %v493
      %583 = vmatprep.subr.bf16.mxu0 0
      %584 = vmatpush1.bf16.msra.mxu0 %v494
      %585 = vmatprep.subr.bf16.mxu0 0
      %586 = vmatpush1.bf16.msra.mxu0 %v495
      %587 = vmatprep.subr.bf16.mxu0 0
      %588 = vmatpush1.bf16.msra.mxu0 %v496
      %589 = vmatprep.subr.bf16.mxu0 0
      %590 = vmatpush1.bf16.msra.mxu0 %v497
      %591 = vmatprep.subr.bf16.mxu0 0
      %592 = vmatpush1.bf16.msra.mxu0 %v498
      %593 = vmatprep.subr.bf16.mxu0 0
      %594 = vmatpush1.bf16.msra.mxu0 %v499
      %595 = vmatprep.subr.bf16.mxu0 0
      %596 = vmatpush1.bf16.msra.mxu0 %v500
      %597 = vmatprep.subr.bf16.mxu0 0
      %598 = vmatpush1.bf16.msra.mxu0 %v501
      %599 = vmatprep.subr.bf16.mxu0 0
      %600 = vmatpush1.bf16.msra.mxu0 %v502
      %601 = vmatprep.subr.bf16.mxu0 0
      %602 = vmatpush1.bf16.msra.mxu0 %v503
      %603 = vmatprep.subr.bf16.mxu0 0
      %604 = vmatpush1.bf16.msra.mxu0 %v504
      %605 = vmatprep.subr.bf16.mxu0 0
      %606 = vmatpush1.bf16.msra.mxu0 %v505
      %607 = vmatprep.subr.bf16.mxu0 0
      %608 = vmatpush1.bf16.msra.mxu0 %v506
      %609 = vmatprep.subr.bf16.mxu0 0
      %610 = vmatpush1.bf16.msra.mxu0 %v507
      %611 = vmatprep.subr.bf16.mxu0 0
      %612 = vmatpush1.bf16.msra.mxu0 %v508
      %613 = vmatprep.mubr.bf16.mxu0 %v344
      %614 = vmatmul.mubr.bf16.gmra.mrb[0].mxu0 %v343
      %v615 = vpop.f32.mrb[0].mxu0
      %v616 = vadd.f32 %v576, %v615
      %v617 = vpop.f32.mrb[0].mxu0
      %v618 = vpop.f32.mrb[0].mxu0
      %v619 = vpop.f32.mrb[0].mxu0
      %620 = vdwg.mxu0
      %v621 = vadd.f32 %v268, %v616
      %622 = vst [vmem:[#allocation2] sm:$0xff] %v621
      // Predicated region
      $region37: #{_lambda_.38} parent=31 // pred_check
        %p623 = pneg %p263
      $region38: #{_lambda_.38} parent=31 // pred_check_branch
        %625 = sbr.rel (%p623) target = $region40
      $region39: #{_lambda_.38} parent=31 // pred_region
        %v626 = vld [vmem:[#allocation2] sm:$0xff]
        %v627 = vld [vmem:[%s2] sm:$0x1]
        %v629 = vlaneseq
        %v630 = vshrl.u32 %v629, 7
        %v631 = vsub.s32 0, %v630
        %v632 = vrot.slane %v627, %v631
        %v634 = vadd.f32 %v626, %v632
        %635 = vst [vmem:[%s261] sm:$0xff] %v634
      $region40: #{_lambda_.38} parent=31 // pred_fallthru
        _
      %p636 = scmp.lt.s32.totalorder %s19, 3
      %s637 = scalar_select %p636, %s19, 3
      %p638 = scmp.lt.s32.totalorder %s20, 0
      %s639 = scalar_select %p638, %s20, 0
      %s640 = sadd.s32 %s639, %s637
      %s641 = smul.addr %s640, 8
      %s642 = scalar_lea.vmem %s3, %s641
      // Predicated region
      $region41: #{_lambda_.38} parent=31 // pred_check
        %p643 = pneg %p132
      $region42: #{_lambda_.38} parent=31 // pred_check_branch
        %645 = sbr.rel (%p643) target = $region44
      $region43: #{_lambda_.38} parent=31 // pred_region
        _
      $region44: #{_lambda_.38} parent=31 // pred_fallthru
        _
    $region32: #{_lambda_.38} parent=5 // pred_fallthru
      _
    %p646 = scmp.le.s32.totalorder 2, %s9
    // Predicated region
    $region45: #{_lambda_.38} parent=5 // pred_check
      %p647 = pneg %p646
    $region46: #{_lambda_.38} parent=5 // pred_check_branch
      %649 = sbr.rel (%p647) target = $region48
    $region47: #{_lambda_.38} parent=5 // pred_region
      %s650 = ssub.s32 %s9, 2
      // Predicated region
      $region49: #{_lambda_.38} parent=47 // pred_check
        %p651 = pneg %p138
      $region50: #{_lambda_.38} parent=47 // pred_check_branch
        %653 = sbr.rel (%p651) target = $region52
      $region51: #{_lambda_.38} parent=47 // pred_region
        %p654 = scmp.lt.s32.totalorder %s22, 3
        %s655 = scalar_select %p654, %s22, 3
        %p656 = scmp.lt.s32.totalorder %s23, 0
        %s657 = scalar_select %p656, %s23, 0
        %s658 = sadd.s32 %s657, %s655
        %s659 = smul.addr %s658, 8
        %s660 = scalar_lea.vmem %s3, %s659
      $region52: #{_lambda_.38} parent=47 // pred_fallthru
        _
    $region48: #{_lambda_.38} parent=5 // pred_fallthru
      _
  $region6: #{_lambda_.38} parent=0 // loop_footer
    %s13 = sadd.s32 1, %s9
  $region7: #{_lambda_.38} parent=0 // loop_footer_branch
    %8 = sbr.rel target = $region3
  $region8: #{_lambda_.38} parent=0 // loop_exit
    _

// kernel: _lambda_.41
$region0: #{_lambda_.41}
  #allocation0 [shape = 'u32[]', space=smem, size = 0x4, offset = 0x4, fixed_abs, tag = 'smem constant byte address 0x4 - core index']
  #allocation1 [shape = 'u32[144,128]{1,0:T(1,128)}', space=vmem, size = 0x12000, scoped, tag = 'internal scratch']
  #allocation2 [shape = 'f32[32,128]{1,0:T(8,128)}', space=vmem, size = 0x4000, scoped, tag = 'scratch operand']
  %s0 = inlined_call_operand.vmem [shape: bf16[4,32,256], index: 0, kind: input, shape index: {}]
  %s1 = inlined_call_operand.vmem [shape: bf16[4,256,128], index: 1, kind: input, shape index: {}]
  %s2 = inlined_call_operand.vmem [shape: f32[1,128], index: 2, kind: input, shape index: {}]
  %s3 = inlined_call_operand.vmem [shape: f32[4,32,128], index: 3, kind: output, shape index: {}]
  %s4 = sld [smem:[#allocation0]]
  $region53: #{_lambda_.41} parent=0
    _
  %s6 = ssub.s32 1, %s4
  %s7 = scalar_select 0, %s6, %s4
  loop: start=0, step=1, limit=6
  $region2: #{_lambda_.41} parent=0 // loop_pre_header
    _
  $region3: #{_lambda_.41} parent=0 // loop_header
    %s9 = sphi 0, %s13
    %p10 = scmp.ge.s32.totalorder %s9, 6
    %s16 = sphi 0, %s35
    %s17 = sphi 0, %s31
    %s18 = sphi 0, %s27
    %s19 = sphi 0, %s16
    %s20 = sphi 0, %s17
    %s21 = sphi 0, %s18
    %s22 = sphi 0, %s19
    %s23 = sphi 0, %s20
    %s24 = sphi 0, %s21
    %s42 = sphi 0, %s44
    %s45 = sphi 0, %s42
    %s46 = sphi 0, %s45
    %s62 = sphi 0, %s46
    %s70 = sphi 0, %s72
    %s73 = sphi 0, %s70
    %s74 = sphi 0, %s73
    %s90 = sphi 0, %s74
    %s94 = sphi 0, %s94
    %s96 = sphi 0, %s94
    %s97 = sphi 0, %s96
    %s111 = sphi 0, %s97
    %s119 = sphi 0, %s121
    %s122 = sphi 0, %s119
    %s123 = sphi 0, %s122
    %s139 = sphi 0, %s123
  $region4: #{_lambda_.41} parent=0 // loop_header_branch
    %12 = sbr.rel (%p10) target = $region8
  $region5: #{_lambda_.41} parent=0 // loop_body
    %s14 = ssub.s32 %s9, 1
    %s15 = ssub.s32 %s9, 2
    %s25 = sadd.s32 1, %s18
    %p26 = scmp.ge.s32.totalorder %s25, 1
    %s27 = scalar_select %p26, 0, %s25
    %s28 = sadd.s32 1, %s17
    %s29 = scalar_select %p26, %s28, %s17
    %p30 = scmp.ge.s32.totalorder %s29, 1
    %s31 = scalar_select %p30, 0, %s29
    %s32 = sadd.s32 1, %s16
    %s33 = scalar_select %p30, %s32, %s16
    %p34 = scmp.ge.s32.totalorder %s33, 4
    %s35 = scalar_select %p34, 0, %s33
    %s36 = ssub.s32 %s16, %s35
    %s37 = ssub.s32 %s17, %s31
    %s38 = sor.u32 %s36, %s37
    %s39 = ssub.s32 %s18, %s27
    %s40 = sor.u32 %s38, %s39
    %p41 = scmp.eq.s32.totalorder %s40, 0
    %s43 = sadd.s32 %s42, 1
    %s44 = scalar_select %p41, %s42, %s43
    %p47 = pneg %p41
    %p48 = scmp.eq.s32.totalorder %s9, 3
    %p49 = por %p47, %p48
    %p50 = scmp.ne.s32.totalorder %s42, %s45
    %p51 = scmp.eq.s32.totalorder %s9, 0
    %p52 = por %p50, %p51
    %p53 = scmp.ne.s32.totalorder %s42, %s45
    %p54 = scmp.eq.s32.totalorder %s14, 3
    %p55 = por %p53, %p54
    %p56 = scmp.ne.s32.totalorder %s45, %s46
    %p57 = scmp.eq.s32.totalorder %s14, 0
    %p58 = por %p56, %p57
    %p59 = scmp.ne.s32.totalorder %s45, %s46
    %p60 = scmp.eq.s32.totalorder %s15, 3
    %p61 = por %p59, %p60
    %p63 = scmp.ne.s32.totalorder %s46, %s62
    %p64 = scmp.eq.s32.totalorder %s15, 0
    %p65 = por %p63, %p64
    %s66 = ssub.s32 %s16, %s35
    %s67 = ssub.s32 %s18, %s27
    %s68 = sor.u32 %s66, %s67
    %p69 = scmp.eq.s32.totalorder %s68, 0
    %s71 = sadd.s32 %s70, 1
    %s72 = scalar_select %p69, %s70, %s71
    %p75 = pneg %p69
    %p76 = scmp.eq.s32.totalorder %s9, 3
    %p77 = por %p75, %p76
    %p78 = scmp.ne.s32.totalorder %s70, %s73
    %p79 = scmp.eq.s32.totalorder %s9, 0
    %p80 = por %p78, %p79
    %p81 = scmp.ne.s32.totalorder %s70, %s73
    %p82 = scmp.eq.s32.totalorder %s14, 3
    %p83 = por %p81, %p82
    %p84 = scmp.ne.s32.totalorder %s73, %s74
    %p85 = scmp.eq.s32.totalorder %s14, 0
    %p86 = por %p84, %p85
    %p87 = scmp.ne.s32.totalorder %s73, %s74
    %p88 = scmp.eq.s32.totalorder %s15, 3
    %p89 = por %p87, %p88
    %p91 = scmp.ne.s32.totalorder %s74, %s90
    %p92 = scmp.eq.s32.totalorder %s15, 0
    %p93 = por %p91, %p92
    %s95 = sadd.s32 %s94, 1
    %p98 = scmp.eq.s32.totalorder %s9, 3
    %p99 = scmp.ne.s32.totalorder %s94, %s96
    %p100 = scmp.eq.s32.totalorder %s9, 0
    %p101 = por %p99, %p100
    %p102 = scmp.ne.s32.totalorder %s94, %s96
    %p103 = scmp.eq.s32.totalorder %s14, 3
    %p104 = por %p102, %p103
    %p105 = scmp.ne.s32.totalorder %s96, %s97
    %p106 = scmp.eq.s32.totalorder %s14, 0
    %p107 = por %p105, %p106
    %p108 = scmp.ne.s32.totalorder %s96, %s97
    %p109 = scmp.eq.s32.totalorder %s15, 3
    %p110 = por %p108, %p109
    %p112 = scmp.ne.s32.totalorder %s97, %s111
    %p113 = scmp.eq.s32.totalorder %s15, 0
    %p114 = por %p112, %p113
    %s115 = ssub.s32 %s16, %s35
    %s116 = ssub.s32 %s17, %s31
    %s117 = sor.u32 %s115, %s116
    %p118 = scmp.eq.s32.totalorder %s117, 0
    %s120 = sadd.s32 %s119, 1
    %s121 = scalar_select %p118, %s119, %s120
    %p124 = pneg %p118
    %p125 = scmp.eq.s32.totalorder %s9, 3
    %p126 = por %p124, %p125
    %p127 = scmp.ne.s32.totalorder %s119, %s122
    %p128 = scmp.eq.s32.totalorder %s9, 0
    %p129 = por %p127, %p128
    %p130 = scmp.ne.s32.totalorder %s119, %s122
    %p131 = scmp.eq.s32.totalorder %s14, 3
    %p132 = por %p130, %p131
    %p133 = scmp.ne.s32.totalorder %s122, %s123
    %p134 = scmp.eq.s32.totalorder %s14, 0
    %p135 = por %p133, %p134
    %p136 = scmp.ne.s32.totalorder %s122, %s123
    %p137 = scmp.eq.s32.totalorder %s15, 3
    %p138 = por %p136, %p137
    %p140 = scmp.ne.s32.totalorder %s123, %s139
    %p141 = scmp.eq.s32.totalorder %s15, 0
    %p142 = por %p140, %p141
    %p143 = scmp.le.s32.totalorder 1, %s9
    %p144 = scmp.lt.s32.totalorder %s9, 5
    %p145 = pnand %p143, %p144
    %p146 = pneg %p145
    // Predicated region
    $region9: #{_lambda_.41} parent=5 // pred_check
      _
    $region10: #{_lambda_.41} parent=5 // pred_check_branch
      %148 = sbr.rel (%p145) target = $region12
    $region11: #{_lambda_.41} parent=5 // pred_region
      %s149 = ssub.s32 %s9, 1
      // Predicated region
      $region13: #{_lambda_.41} parent=11 // pred_check
        %p150 = pneg %p107
      $region14: #{_lambda_.41} parent=11 // pred_check_branch
        %152 = sbr.rel (%p150) target = $region16
      $region15: #{_lambda_.41} parent=11 // pred_region
        _
      $region16: #{_lambda_.41} parent=11 // pred_fallthru
        _
    $region12: #{_lambda_.41} parent=5 // pred_fallthru
      _
    %p153 = scmp.lt.s32.totalorder %s9, 4
    // Predicated region
    $region17: #{_lambda_.41} parent=5 // pred_check
      %p154 = pneg %p153
    $region18: #{_lambda_.41} parent=5 // pred_check_branch
      %156 = sbr.rel (%p154) target = $region20
    $region19: #{_lambda_.41} parent=5 // pred_region
      // Predicated region
      $region21: #{_lambda_.41} parent=19 // pred_check
        %p157 = pneg %p52
      $region22: #{_lambda_.41} parent=19 // pred_check_branch
        %159 = sbr.rel (%p157) target = $region24
      $region23: #{_lambda_.41} parent=19 // pred_region
        %s160 = smul.u32 4, %s17
        %s161 = smul.u32 2, %s18
        %p162 = scmp.lt.s32.totalorder %s16, 3
        %s163 = scalar_select %p162, %s16, 3
        %p164 = scmp.lt.s32.totalorder %s160, 3
        %s165 = scalar_select %p164, %s160, 3
        %p166 = scmp.lt.s32.totalorder %s161, 1
        %s167 = scalar_select %p166, %s161, 1
        %s168 = smul.addr %s165, 2
        %s169 = sadd.s32 %s167, %s168
        %s170 = smul.addr %s163, 8
        %s171 = sadd.s32 %s169, %s170
        %s172 = smul.addr %s171, 4
        %s173 = scalar_lea.vmem %s0, %s172
        %s174 = smul.u32 4, %s17
        %s175 = smul.u32 2, %s18
      $region24: #{_lambda_.41} parent=19 // pred_fallthru
        _
      // Predicated region
      $region25: #{_lambda_.41} parent=19 // pred_check
        %p176 = pneg %p80
      $region26: #{_lambda_.41} parent=19 // pred_check_branch
        %178 = sbr.rel (%p176) target = $region28
      $region27: #{_lambda_.41} parent=19 // pred_region
        %s179 = smul.u32 32, %s18
        %p180 = scmp.lt.s32.totalorder %s16, 3
        %s181 = scalar_select %p180, %s16, 3
        %p182 = scmp.lt.s32.totalorder %s179, 31
        %s183 = scalar_select %p182, %s179, 31
        %s184 = smul.addr %s181, 32
        %s185 = sadd.s32 %s183, %s184
        %s186 = smul.addr %s185, 4
        %s187 = scalar_lea.vmem %s1, %s186
        %s188 = smul.u32 32, %s18
      $region28: #{_lambda_.41} parent=19 // pred_fallthru
        _
    $region20: #{_lambda_.41} parent=5 // pred_fallthru
      _
    %p189 = scmp.le.s32.totalorder 1, %s9
    %p190 = scmp.lt.s32.totalorder %s9, 5
    %p191 = pnand %p189, %p190
    %p192 = pneg %p191
    // Predicated region
    $region29: #{_lambda_.41} parent=5 // pred_check
      _
    $region30: #{_lambda_.41} parent=5 // pred_check_branch
      %194 = sbr.rel (%p191) target = $region32
    $region31: #{_lambda_.41} parent=5 // pred_region
      %s195 = ssub.s32 %s9, 1
      %s196 = smul.u32 4, %s20
      %s197 = smul.u32 2, %s21
      %p198 = scmp.lt.s32.totalorder %s19, 3
      %s199 = scalar_select %p198, %s19, 3
      %p200 = scmp.lt.s32.totalorder %s196, 3
      %s201 = scalar_select %p200, %s196, 3
      %p202 = scmp.lt.s32.totalorder %s197, 1
      %s203 = scalar_select %p202, %s197, 1
      %s204 = smul.addr %s201, 2
      %s205 = sadd.s32 %s203, %s204
      %s206 = smul.addr %s199, 8
      %s207 = sadd.s32 %s205, %s206
      %s208 = smul.addr %s207, 4
      %s209 = scalar_lea.vmem %s0, %s208
      %p210 = pneg %p58
      %p211 = pneg %p55
      %s212 = smul.u32 32, %s21
      %p213 = scmp.lt.s32.totalorder %s19, 3
      %s214 = scalar_select %p213, %s19, 3
      %p215 = scmp.lt.s32.totalorder %s212, 31
      %s216 = scalar_select %p215, %s212, 31
      %s217 = smul.addr %s214, 32
      %s218 = sadd.s32 %s216, %s217
      %s219 = smul.addr %s218, 4
      %s220 = scalar_lea.vmem %s1, %s219
      %p221 = pneg %p86
      %p222 = pneg %p83
      %p223 = pneg %p107
      %p224 = pneg %p104
      %p225 = pneg %p135
      %p226 = pneg %p132
      %s227 = smul.u32 4, %s20
      %p228 = scmp.lt.s32.totalorder %s19, 3
      %s229 = scalar_select %p228, %s19, 3
      %p230 = scmp.lt.s32.totalorder %s227, 3
      %s231 = scalar_select %p230, %s227, 3
      %s232 = smul.addr %s229, 4
      %s233 = sadd.s32 %s231, %s232
      %s234 = smul.addr %s233, 8
      %s235 = scalar_lea.vmem %s3, %s234
      %s236 = smul.u32 4, %s20
      %s237 = smul.u32 2, %s21
      %p238 = scmp.lt.s32.totalorder %s19, 3
      %s239 = scalar_select %p238, %s19, 3
      %p240 = scmp.lt.s32.totalorder %s236, 3
      %s241 = scalar_select %p240, %s236, 3
      %p242 = scmp.lt.s32.totalorder %s237, 1
      %s243 = scalar_select %p242, %s237, 1
      %s244 = smul.addr %s241, 2
      %s245 = sadd.s32 %s243, %s244
      %s246 = smul.addr %s239, 8
      %s247 = sadd.s32 %s245, %s246
      %s248 = smul.addr %s247, 4
      %s249 = scalar_lea.vmem %s0, %s248
      %s250 = smul.u32 4, %s20
      %s251 = smul.u32 2, %s21
      %s252 = smul.u32 32, %s21
      %p253 = scmp.lt.s32.totalorder %s19, 3
      %s254 = scalar_select %p253, %s19, 3
      %p255 = scmp.lt.s32.totalorder %s252, 31
      %s256 = scalar_select %p255, %s252, 31
      %s257 = smul.addr %s254, 32
      %s258 = sadd.s32 %s256, %s257
      %s259 = smul.addr %s258, 4
      %s260 = scalar_lea.vmem %s1, %s259
      %s261 = smul.u32 32, %s21
      %s262 = smul.u32 4, %s20
      %p263 = scmp.lt.s32.totalorder %s19, 3
      %s264 = scalar_select %p263, %s19, 3
      %p265 = scmp.lt.s32.totalorder %s262, 3
      %s266 = scalar_select %p265, %s262, 3
      %s267 = smul.addr %s264, 4
      %s268 = sadd.s32 %s266, %s267
      %s269 = smul.addr %s268, 8
      %s270 = scalar_lea.vmem %s3, %s269
      %s271 = smul.u32 4, %s20
      %p273 = scmp.eq.s32.totalorder %s21, 0
      // Predicated region
      $region33: #{_lambda_.41} parent=31 // pred_check
        %p274 = pneg %p273
      $region34: #{_lambda_.41} parent=31 // pred_check_branch
        %276 = sbr.rel (%p274) target = $region36
      $region35: #{_lambda_.41} parent=31 // pred_region
        %277 = vst [vmem:[#allocation2] sm:$0xff] 0.0
        %278 = vst [vmem:[#allocation2 + $0x8] sm:$0xff] 0.0
        %279 = vst [vmem:[#allocation2 + $0x10] sm:$0xff] 0.0
        %280 = vst [vmem:[#allocation2 + $0x18] sm:$0xff] 0.0
      $region36: #{_lambda_.41} parent=31 // pred_fallthru
        _
      %v281 = vld [vmem:[#allocation2] sm:$0xff]
      %v282 = vld [vmem:[#allocation2 + $0x8] sm:$0xff]
      %v283 = vld [vmem:[#allocation2 + $0x10] sm:$0xff]
      %v284 = vld [vmem:[#allocation2 + $0x18] sm:$0xff]
      %v285 = vld [vmem:[%s249] sm:$0xff]
      %v286 = vld [vmem:[%s249 + $0x8] sm:$0xff]
      %v287 = vld [vmem:[%s249 + $0x10] sm:$0xff]
      %v288 = vld [vmem:[%s249 + $0x18] sm:$0xff]
      %v289 = vld [vmem:[%s260] sm:$0xf]
      %v290 = vld [vmem:[%s260 + $0x4] sm:$0xf]
      %v291 = vld [vmem:[%s260 + $0x8] sm:$0xf]
      %v292 = vld [vmem:[%s260 + $0xc] sm:$0xf]
      %v293 = vld [vmem:[%s260 + $0x10] sm:$0xf]
      %v294 = vld [vmem:[%s260 + $0x14] sm:$0xf]
      %v295 = vld [vmem:[%s260 + $0x18] sm:$0xf]
      %v296 = vld [vmem:[%s260 + $0x1c] sm:$0xf]
      %v297 = vld [vmem:[%s260 + $0x20] sm:$0xf]
      %v298 = vld [vmem:[%s260 + $0x24] sm:$0xf]
      %v299 = vld [vmem:[%s260 + $0x28] sm:$0xf]
      %v300 = vld [vmem:[%s260 + $0x2c] sm:$0xf]
      %v301 = vld [vmem:[%s260 + $0x30] sm:$0xf]
      %v302 = vld [vmem:[%s260 + $0x34] sm:$0xf]
      %v303 = vld [vmem:[%s260 + $0x38] sm:$0xf]
      %v304 = vld [vmem:[%s260 + $0x3c] sm:$0xf]
      %v305 = vld [vmem:[%s260 + $0x40] sm:$0xf]
      %v306 = vld [vmem:[%s260 + $0x44] sm:$0xf]
      %v307 = vld [vmem:[%s260 + $0x48] sm:$0xf]
      %v308 = vld [vmem:[%s260 + $0x4c] sm:$0xf]
      %v309 = vld [vmem:[%s260 + $0x50] sm:$0xf]
      %v310 = vld [vmem:[%s260 + $0x54] sm:$0xf]
      %v311 = vld [vmem:[%s260 + $0x58] sm:$0xf]
      %v312 = vld [vmem:[%s260 + $0x5c] sm:$0xf]
      %v313 = vld [vmem:[%s260 + $0x60] sm:$0xf]
      %v314 = vld [vmem:[%s260 + $0x64] sm:$0xf]
      %v315 = vld [vmem:[%s260 + $0x68] sm:$0xf]
      %v316 = vld [vmem:[%s260 + $0x6c] sm:$0xf]
      %v317 = vld [vmem:[%s260 + $0x70] sm:$0xf]
      %v318 = vld [vmem:[%s260 + $0x74] sm:$0xf]
      %v319 = vld [vmem:[%s260 + $0x78] sm:$0xf]
      %v320 = vld [vmem:[%s260 + $0x7c] sm:$0xf]
      %v325 = vunpack.c.l.b16 %v285
      %v326 = vunpack.c.h.b16 %v285
      %v327 = vunpack.c.l.b16 %v286
      %v328 = vunpack.c.h.b16 %v286
      %v329 = vunpack.c.l.b16 %v287
      %v330 = vunpack.c.h.b16 %v287
      %v331 = vunpack.c.l.b16 %v288
      %v332 = vunpack.c.h.b16 %v288
      %v333 = vpack.c.b16 %v327, %v325
      %v334 = vpack.c.b16 %v328, %v326
      %v335 = vpack.c.b16 %v331, %v329
      %v336 = vpack.c.b16 %v332, %v330
      %v373 = vunpack.c.l.b16 %v289
      %v374 = vunpack.c.l.b16 %v290
      %v375 = vunpack.c.l.b16 %v291
      %v376 = vunpack.c.l.b16 %v292
      %v377 = vunpack.c.l.b16 %v293
      %v378 = vunpack.c.l.b16 %v294
      %v379 = vunpack.c.l.b16 %v295
      %v380 = vunpack.c.l.b16 %v296
      %v381 = vunpack.c.l.b16 %v297
      %v382 = vunpack.c.l.b16 %v298
      %v383 = vunpack.c.l.b16 %v299
      %v384 = vunpack.c.l.b16 %v300
      %v385 = vunpack.c.l.b16 %v301
      %v386 = vunpack.c.l.b16 %v302
      %v387 = vunpack.c.l.b16 %v303
      %v388 = vunpack.c.l.b16 %v304
      %v389 = vunpack.c.l.b16 %v305
      %v390 = vunpack.c.l.b16 %v306
      %v391 = vunpack.c.l.b16 %v307
      %v392 = vunpack.c.l.b16 %v308
      %v393 = vunpack.c.l.b16 %v309
      %v394 = vunpack.c.l.b16 %v310
      %v395 = vunpack.c.l.b16 %v311
      %v396 = vunpack.c.l.b16 %v312
      %v397 = vunpack.c.l.b16 %v313
      %v398 = vunpack.c.l.b16 %v314
      %v399 = vunpack.c.l.b16 %v315
      %v400 = vunpack.c.l.b16 %v316
      %v401 = vunpack.c.l.b16 %v317
      %v402 = vunpack.c.l.b16 %v318
      %v403 = vunpack.c.l.b16 %v319
      %v404 = vunpack.c.l.b16 %v320
      %v405 = vpack.c.b16 %v374, %v373
      %v406 = vpack.c.b16 %v376, %v375
      %v407 = vpack.c.b16 %v378, %v377
      %v408 = vpack.c.b16 %v380, %v379
      %v409 = vpack.c.b16 %v382, %v381
      %v410 = vpack.c.b16 %v384, %v383
      %v411 = vpack.c.b16 %v386, %v385
      %v412 = vpack.c.b16 %v388, %v387
      %v413 = vpack.c.b16 %v390, %v389
      %v414 = vpack.c.b16 %v392, %v391
      %v415 = vpack.c.b16 %v394, %v393
      %v416 = vpack.c.b16 %v396, %v395
      %v417 = vpack.c.b16 %v398, %v397
      %v418 = vpack.c.b16 %v400, %v399
      %v419 = vpack.c.b16 %v402, %v401
      %v420 = vpack.c.b16 %v404, %v403
      %437 = vmatprep.subr.bf16.mxu0 0
      %438 = vmatpush1.bf16.msra.mxu0 %v405
      %439 = vmatprep.subr.bf16.mxu0 0
      %440 = vmatpush1.bf16.msra.mxu0 %v406
      %441 = vmatprep.subr.bf16.mxu0 0
      %442 = vmatpush1.bf16.msra.mxu0 %v407
      %443 = vmatprep.subr.bf16.mxu0 0
      %444 = vmatpush1.bf16.msra.mxu0 %v408
      %445 = vmatprep.subr.bf16.mxu0 0
      %446 = vmatpush1.bf16.msra.mxu0 %v409
      %447 = vmatprep.subr.bf16.mxu0 0
      %448 = vmatpush1.bf16.msra.mxu0 %v410
      %449 = vmatprep.subr.bf16.mxu0 0
      %450 = vmatpush1.bf16.msra.mxu0 %v411
      %451 = vmatprep.subr.bf16.mxu0 0
      %452 = vmatpush1.bf16.msra.mxu0 %v412
      %453 = vmatprep.subr.bf16.mxu0 0
      %454 = vmatpush1.bf16.msra.mxu0 %v413
      %455 = vmatprep.subr.bf16.mxu0 0
      %456 = vmatpush1.bf16.msra.mxu0 %v414
      %457 = vmatprep.subr.bf16.mxu0 0
      %458 = vmatpush1.bf16.msra.mxu0 %v415
      %459 = vmatprep.subr.bf16.mxu0 0
      %460 = vmatpush1.bf16.msra.mxu0 %v416
      %461 = vmatprep.subr.bf16.mxu0 0
      %462 = vmatpush1.bf16.msra.mxu0 %v417
      %463 = vmatprep.subr.bf16.mxu0 0
      %464 = vmatpush1.bf16.msra.mxu0 %v418
      %465 = vmatprep.subr.bf16.mxu0 0
      %466 = vmatpush1.bf16.msra.mxu0 %v419
      %467 = vmatprep.subr.bf16.mxu0 0
      %468 = vmatpush1.bf16.msra.mxu0 %v420
      %469 = vmatprep.mubr.bf16.mxu0 %v334
      %470 = vmatmul.mubr.bf16.gmra.mrb[0].mxu0 %v333
      %v471 = vpop.f32.mrb[0].mxu0
      %v472 = vadd.f32 0.0, %v471
      %v473 = vpop.f32.mrb[0].mxu0
      %v474 = vpop.f32.mrb[0].mxu0
      %v475 = vadd.f32 0.0, %v474
      %v476 = vpop.f32.mrb[0].mxu0
      %477 = vmatprep.mubr.bf16.mxu0 %v336
      %478 = vmatmul.mubr.bf16.gmra.mrb[0].mxu0 %v335
      %v479 = vpop.f32.mrb[0].mxu0
      %v480 = vadd.f32 0.0, %v479
      %v481 = vpop.f32.mrb[0].mxu0
      %v482 = vpop.f32.mrb[0].mxu0
      %v483 = vadd.f32 0.0, %v482
      %v484 = vpop.f32.mrb[0].mxu0
      %485 = vdwg.mxu0
      %v486 = vadd.f32 %v281, %v472
      %v487 = vadd.f32 %v282, %v475
      %v488 = vadd.f32 %v283, %v480
      %v489 = vadd.f32 %v284, %v483
      %490 = vst [vmem:[#allocation2] sm:$0xff] %v486
      %491 = vst [vmem:[#allocation2 + $0x8] sm:$0xff] %v487
      %492 = vst [vmem:[#allocation2 + $0x10] sm:$0xff] %v488
      %493 = vst [vmem:[#allocation2 + $0x18] sm:$0xff] %v489
      // Predicated region
      $region37: #{_lambda_.41} parent=31 // pred_check
        %p494 = pneg %p273
      $region38: #{_lambda_.41} parent=31 // pred_check_branch
        %496 = sbr.rel (%p494) target = $region40
      $region39: #{_lambda_.41} parent=31 // pred_region
        %v497 = vld [vmem:[#allocation2] sm:$0xff]
        %v498 = vld [vmem:[#allocation2 + $0x8] sm:$0xff]
        %v499 = vld [vmem:[#allocation2 + $0x10] sm:$0xff]
        %v500 = vld [vmem:[#allocation2 + $0x18] sm:$0xff]
        %v501 = vld [vmem:[%s2] sm:$0x1]
        %v503 = vlaneseq
        %v504 = vshrl.u32 %v503, 7
        %v505 = vsub.s32 0, %v504
        %v506 = vrot.slane %v501, %v505
        %v508 = vadd.f32 %v497, %v506
        %v509 = vadd.f32 %v498, %v506
        %v510 = vadd.f32 %v499, %v506
        %v511 = vadd.f32 %v500, %v506
        %512 = vst [vmem:[%s270] sm:$0xff] %v508
        %513 = vst [vmem:[%s270 + $0x8] sm:$0xff] %v509
        %514 = vst [vmem:[%s270 + $0x10] sm:$0xff] %v510
        %515 = vst [vmem:[%s270 + $0x18] sm:$0xff] %v511
      $region40: #{_lambda_.41} parent=31 // pred_fallthru
        _
      %s516 = smul.u32 4, %s20
      %p517 = scmp.lt.s32.totalorder %s19, 3
      %s518 = scalar_select %p517, %s19, 3
      %p519 = scmp.lt.s32.totalorder %s516, 3
      %s520 = scalar_select %p519, %s516, 3
      %s521 = smul.addr %s518, 4
      %s522 = sadd.s32 %s520, %s521
      %s523 = smul.addr %s522, 8
      %s524 = scalar_lea.vmem %s3, %s523
      // Predicated region
      $region41: #{_lambda_.41} parent=31 // pred_check
        %p525 = pneg %p132
      $region42: #{_lambda_.41} parent=31 // pred_check_branch
        %527 = sbr.rel (%p525) target = $region44
      $region43: #{_lambda_.41} parent=31 // pred_region
        %s528 = smul.u32 4, %s20
      $region44: #{_lambda_.41} parent=31 // pred_fallthru
        _
    $region32: #{_lambda_.41} parent=5 // pred_fallthru
      _
    %p529 = scmp.le.s32.totalorder 2, %s9
    // Predicated region
    $region45: #{_lambda_.41} parent=5 // pred_check
      %p530 = pneg %p529
    $region46: #{_lambda_.41} parent=5 // pred_check_branch
      %532 = sbr.rel (%p530) target = $region48
    $region47: #{_lambda_.41} parent=5 // pred_region
      %s533 = ssub.s32 %s9, 2
      // Predicated region
      $region49: #{_lambda_.41} parent=47 // pred_check
        %p534 = pneg %p138
      $region50: #{_lambda_.41} parent=47 // pred_check_branch
        %536 = sbr.rel (%p534) target = $region52
      $region51: #{_lambda_.41} parent=47 // pred_region
        %s537 = smul.u32 4, %s23
        %p538 = scmp.lt.s32.totalorder %s22, 3
        %s539 = scalar_select %p538, %s22, 3
        %p540 = scmp.lt.s32.totalorder %s537, 3
        %s541 = scalar_select %p540, %s537, 3
        %s542 = smul.addr %s539, 4
        %s543 = sadd.s32 %s541, %s542
        %s544 = smul.addr %s543, 8
        %s545 = scalar_lea.vmem %s3, %s544
      $region52: #{_lambda_.41} parent=47 // pred_fallthru
        _
    $region48: #{_lambda_.41} parent=5 // pred_fallthru
      _
  $region6: #{_lambda_.41} parent=0 // loop_footer
    %s13 = sadd.s32 1, %s9
  $region7: #{_lambda_.41} parent=0 // loop_footer_branch
    %8 = sbr.rel target = $region3
  $region8: #{_lambda_.41} parent=0 // loop_exit
    _

// kernel: _lambda_.45
$region0: #{_lambda_.45}
  #allocation0 [shape = 'u32[]', space=smem, size = 0x4, offset = 0x4, fixed_abs, tag = 'smem constant byte address 0x4 - core index']
  #allocation1 [shape = 'u32[144,128]{1,0:T(1,128)}', space=vmem, size = 0x12000, scoped, tag = 'internal scratch']
  %s0 = inlined_call_operand.vmem [shape: f32[512,128], index: 0, kind: input, shape index: {}]
  %s1 = inlined_call_operand.vmem [shape: f32[1,128], index: 1, kind: output, shape index: {0}]
  %s2 = inlined_call_operand.vmem [shape: f32[1,128], index: 2, kind: output, shape index: {1}]
  %3 = xla_tuple %s1, %s2
  %s4 = sld [smem:[#allocation0]]
  $region26: #{_lambda_.45} parent=0
    _
  %s6 = ssub.s32 1, %s4
  %s7 = scalar_select 0, %s6, %s4
  // Predicated region
  $region2: #{_lambda_.45} parent=0 // pred_check
    _
  $region3: #{_lambda_.45} parent=0 // pred_check_branch
    %9 = sbr.rel (0) target = $region5
  $region4: #{_lambda_.45} parent=0 // pred_region
    _
  $region5: #{_lambda_.45} parent=0 // pred_fallthru
    _
  %v10 = vld [vmem:[%s0] sm:$0xff]
  %v11 = vld [vmem:[%s0 + $0x8] sm:$0xff]
  %v12 = vld [vmem:[%s0 + $0x10] sm:$0xff]
  %v13 = vld [vmem:[%s0 + $0x18] sm:$0xff]
  %v14 = vld [vmem:[%s0 + $0x20] sm:$0xff]
  %v15 = vld [vmem:[%s0 + $0x28] sm:$0xff]
  %v16 = vld [vmem:[%s0 + $0x30] sm:$0xff]
  %v17 = vld [vmem:[%s0 + $0x38] sm:$0xff]
  %v18 = vld [vmem:[%s0 + $0x40] sm:$0xff]
  %v19 = vld [vmem:[%s0 + $0x48] sm:$0xff]
  %v20 = vld [vmem:[%s0 + $0x50] sm:$0xff]
  %v21 = vld [vmem:[%s0 + $0x58] sm:$0xff]
  %v22 = vld [vmem:[%s0 + $0x60] sm:$0xff]
  %v23 = vld [vmem:[%s0 + $0x68] sm:$0xff]
  %v24 = vld [vmem:[%s0 + $0x70] sm:$0xff]
  %v25 = vld [vmem:[%s0 + $0x78] sm:$0xff]
  %v26 = vld [vmem:[%s0 + $0x80] sm:$0xff]
  %v27 = vld [vmem:[%s0 + $0x88] sm:$0xff]
  %v28 = vld [vmem:[%s0 + $0x90] sm:$0xff]
  %v29 = vld [vmem:[%s0 + $0x98] sm:$0xff]
  %v30 = vld [vmem:[%s0 + $0xa0] sm:$0xff]
  %v31 = vld [vmem:[%s0 + $0xa8] sm:$0xff]
  %v32 = vld [vmem:[%s0 + $0xb0] sm:$0xff]
  %v33 = vld [vmem:[%s0 + $0xb8] sm:$0xff]
  %v34 = vld [vmem:[%s0 + $0xc0] sm:$0xff]
  %v35 = vld [vmem:[%s0 + $0xc8] sm:$0xff]
  %v36 = vld [vmem:[%s0 + $0xd0] sm:$0xff]
  %v37 = vld [vmem:[%s0 + $0xd8] sm:$0xff]
  %v38 = vld [vmem:[%s0 + $0xe0] sm:$0xff]
  %v39 = vld [vmem:[%s0 + $0xe8] sm:$0xff]
  %v40 = vld [vmem:[%s0 + $0xf0] sm:$0xff]
  %v41 = vld [vmem:[%s0 + $0xf8] sm:$0xff]
  %v42 = vld [vmem:[%s0 + $0x100] sm:$0xff]
  %v43 = vld [vmem:[%s0 + $0x108] sm:$0xff]
  %v44 = vld [vmem:[%s0 + $0x110] sm:$0xff]
  %v45 = vld [vmem:[%s0 + $0x118] sm:$0xff]
  %v46 = vld [vmem:[%s0 + $0x120] sm:$0xff]
  %v47 = vld [vmem:[%s0 + $0x128] sm:$0xff]
  %v48 = vld [vmem:[%s0 + $0x130] sm:$0xff]
  %v49 = vld [vmem:[%s0 + $0x138] sm:$0xff]
  %v50 = vld [vmem:[%s0 + $0x140] sm:$0xff]
  %v51 = vld [vmem:[%s0 + $0x148] sm:$0xff]
  %v52 = vld [vmem:[%s0 + $0x150] sm:$0xff]
  %v53 = vld [vmem:[%s0 + $0x158] sm:$0xff]
  %v54 = vld [vmem:[%s0 + $0x160] sm:$0xff]
  %v55 = vld [vmem:[%s0 + $0x168] sm:$0xff]
  %v56 = vld [vmem:[%s0 + $0x170] sm:$0xff]
  %v57 = vld [vmem:[%s0 + $0x178] sm:$0xff]
  %v58 = vld [vmem:[%s0 + $0x180] sm:$0xff]
  %v59 = vld [vmem:[%s0 + $0x188] sm:$0xff]
  %v60 = vld [vmem:[%s0 + $0x190] sm:$0xff]
  %v61 = vld [vmem:[%s0 + $0x198] sm:$0xff]
  %v62 = vld [vmem:[%s0 + $0x1a0] sm:$0xff]
  %v63 = vld [vmem:[%s0 + $0x1a8] sm:$0xff]
  %v64 = vld [vmem:[%s0 + $0x1b0] sm:$0xff]
  %v65 = vld [vmem:[%s0 + $0x1b8] sm:$0xff]
  %v66 = vld [vmem:[%s0 + $0x1c0] sm:$0xff]
  %v67 = vld [vmem:[%s0 + $0x1c8] sm:$0xff]
  %v68 = vld [vmem:[%s0 + $0x1d0] sm:$0xff]
  %v69 = vld [vmem:[%s0 + $0x1d8] sm:$0xff]
  %v70 = vld [vmem:[%s0 + $0x1e0] sm:$0xff]
  %v71 = vld [vmem:[%s0 + $0x1e8] sm:$0xff]
  %v72 = vld [vmem:[%s0 + $0x1f0] sm:$0xff]
  %v73 = vld [vmem:[%s0 + $0x1f8] sm:$0xff]
  %p74 = scmp.eq.s32.totalorder 0, 0
  // Predicated region
  $region6: #{_lambda_.45} parent=0 // pred_check
    %p75 = pneg %p74
  $region7: #{_lambda_.45} parent=0 // pred_check_branch
    %77 = sbr.rel (%p75) target = $region9
  $region8: #{_lambda_.45} parent=0 // pred_region
    %78 = vst [vmem:[%s1] sm:$0x1] 0.0
    %79 = vst [vmem:[%s2] sm:$0x1] 0.0
  $region9: #{_lambda_.45} parent=0 // pred_fallthru
    _
  %v80 = vld [vmem:[%s1] sm:$0x1]
  %v81 = vadd.f32 %v10, %v11
  %v82 = vadd.f32 %v81, %v12
  %v83 = vadd.f32 %v82, %v13
  %v84 = vadd.f32 %v83, %v14
  %v85 = vadd.f32 %v84, %v15
  %v86 = vadd.f32 %v85, %v16
  %v87 = vadd.f32 %v86, %v17
  %v88 = vadd.f32 %v87, %v18
  %v89 = vadd.f32 %v88, %v19
  %v90 = vadd.f32 %v89, %v20
  %v91 = vadd.f32 %v90, %v21
  %v92 = vadd.f32 %v91, %v22
  %v93 = vadd.f32 %v92, %v23
  %v94 = vadd.f32 %v93, %v24
  %v95 = vadd.f32 %v94, %v25
  %v96 = vadd.f32 %v95, %v26
  %v97 = vadd.f32 %v96, %v27
  %v98 = vadd.f32 %v97, %v28
  %v99 = vadd.f32 %v98, %v29
  %v100 = vadd.f32 %v99, %v30
  %v101 = vadd.f32 %v100, %v31
  %v102 = vadd.f32 %v101, %v32
  %v103 = vadd.f32 %v102, %v33
  %v104 = vadd.f32 %v103, %v34
  %v105 = vadd.f32 %v104, %v35
  %v106 = vadd.f32 %v105, %v36
  %v107 = vadd.f32 %v106, %v37
  %v108 = vadd.f32 %v107, %v38
  %v109 = vadd.f32 %v108, %v39
  %v110 = vadd.f32 %v109, %v40
  %v111 = vadd.f32 %v110, %v41
  %v112 = vadd.f32 %v111, %v42
  %v113 = vadd.f32 %v112, %v43
  %v114 = vadd.f32 %v113, %v44
  %v115 = vadd.f32 %v114, %v45
  %v116 = vadd.f32 %v115, %v46
  %v117 = vadd.f32 %v116, %v47
  %v118 = vadd.f32 %v117, %v48
  %v119 = vadd.f32 %v118, %v49
  %v120 = vadd.f32 %v119, %v50
  %v121 = vadd.f32 %v120, %v51
  %v122 = vadd.f32 %v121, %v52
  %v123 = vadd.f32 %v122, %v53
  %v124 = vadd.f32 %v123, %v54
  %v125 = vadd.f32 %v124, %v55
  %v126 = vadd.f32 %v125, %v56
  %v127 = vadd.f32 %v126, %v57
  %v128 = vadd.f32 %v127, %v58
  %v129 = vadd.f32 %v128, %v59
  %v130 = vadd.f32 %v129, %v60
  %v131 = vadd.f32 %v130, %v61
  %v132 = vadd.f32 %v131, %v62
  %v133 = vadd.f32 %v132, %v63
  %v134 = vadd.f32 %v133, %v64
  %v135 = vadd.f32 %v134, %v65
  %v136 = vadd.f32 %v135, %v66
  %v137 = vadd.f32 %v136, %v67
  %v138 = vadd.f32 %v137, %v68
  %v139 = vadd.f32 %v138, %v69
  %v140 = vadd.f32 %v139, %v70
  %v141 = vadd.f32 %v140, %v71
  %v142 = vadd.f32 %v141, %v72
  %v143 = vadd.f32 %v142, %v73
  %v144 = vrot.slane %v143, 4
  %v145 = vadd.f32 %v143, %v144
  %v146 = vrot.slane %v145, 2
  %v147 = vadd.f32 %v145, %v146
  %v148 = vrot.slane %v147, 1
  %v149 = vadd.f32 %v147, %v148
  %v150 = vadd.f32 %v80, %v149
  %151 = vst [vmem:[%s1] sm:$0x1] %v150
  %v152 = vld [vmem:[%s2] sm:$0x1]
  %v153 = vmul.f32 %v10, %v10
  %v154 = vmul.f32 %v11, %v11
  %v155 = vmul.f32 %v12, %v12
  %v156 = vmul.f32 %v13, %v13
  %v157 = vmul.f32 %v14, %v14
  %v158 = vmul.f32 %v15, %v15
  %v159 = vmul.f32 %v16, %v16
  %v160 = vmul.f32 %v17, %v17
  %v161 = vmul.f32 %v18, %v18
  %v162 = vmul.f32 %v19, %v19
  %v163 = vmul.f32 %v20, %v20
  %v164 = vmul.f32 %v21, %v21
  %v165 = vmul.f32 %v22, %v22
  %v166 = vmul.f32 %v23, %v23
  %v167 = vmul.f32 %v24, %v24
  %v168 = vmul.f32 %v25, %v25
  %v169 = vmul.f32 %v26, %v26
  %v170 = vmul.f32 %v27, %v27
  %v171 = vmul.f32 %v28, %v28
  %v172 = vmul.f32 %v29, %v29
  %v173 = vmul.f32 %v30, %v30
  %v174 = vmul.f32 %v31, %v31
  %v175 = vmul.f32 %v32, %v32
  %v176 = vmul.f32 %v33, %v33
  %v177 = vmul.f32 %v34, %v34
  %v178 = vmul.f32 %v35, %v35
  %v179 = vmul.f32 %v36, %v36
  %v180 = vmul.f32 %v37, %v37
  %v181 = vmul.f32 %v38, %v38
  %v182 = vmul.f32 %v39, %v39
  %v183 = vmul.f32 %v40, %v40
  %v184 = vmul.f32 %v41, %v41
  %v185 = vmul.f32 %v42, %v42
  %v186 = vmul.f32 %v43, %v43
  %v187 = vmul.f32 %v44, %v44
  %v188 = vmul.f32 %v45, %v45
  %v189 = vmul.f32 %v46, %v46
  %v190 = vmul.f32 %v47, %v47
  %v191 = vmul.f32 %v48, %v48
  %v192 = vmul.f32 %v49, %v49
  %v193 = vmul.f32 %v50, %v50
  %v194 = vmul.f32 %v51, %v51
  %v195 = vmul.f32 %v52, %v52
  %v196 = vmul.f32 %v53, %v53
  %v197 = vmul.f32 %v54, %v54
  %v198 = vmul.f32 %v55, %v55
  %v199 = vmul.f32 %v56, %v56
  %v200 = vmul.f32 %v57, %v57
  %v201 = vmul.f32 %v58, %v58
  %v202 = vmul.f32 %v59, %v59
  %v203 = vmul.f32 %v60, %v60
  %v204 = vmul.f32 %v61, %v61
  %v205 = vmul.f32 %v62, %v62
  %v206 = vmul.f32 %v63, %v63
  %v207 = vmul.f32 %v64, %v64
  %v208 = vmul.f32 %v65, %v65
  %v209 = vmul.f32 %v66, %v66
  %v210 = vmul.f32 %v67, %v67
  %v211 = vmul.f32 %v68, %v68
  %v212 = vmul.f32 %v69, %v69
  %v213 = vmul.f32 %v70, %v70
  %v214 = vmul.f32 %v71, %v71
  %v215 = vmul.f32 %v72, %v72
  %v216 = vmul.f32 %v73, %v73
  %v217 = vadd.f32 %v153, %v154
  %v218 = vadd.f32 %v217, %v155
  %v219 = vadd.f32 %v218, %v156
  %v220 = vadd.f32 %v219, %v157
  %v221 = vadd.f32 %v220, %v158
  %v222 = vadd.f32 %v221, %v159
  %v223 = vadd.f32 %v222, %v160
  %v224 = vadd.f32 %v223, %v161
  %v225 = vadd.f32 %v224, %v162
  %v226 = vadd.f32 %v225, %v163
  %v227 = vadd.f32 %v226, %v164
  %v228 = vadd.f32 %v227, %v165
  %v229 = vadd.f32 %v228, %v166
  %v230 = vadd.f32 %v229, %v167
  %v231 = vadd.f32 %v230, %v168
  %v232 = vadd.f32 %v231, %v169
  %v233 = vadd.f32 %v232, %v170
  %v234 = vadd.f32 %v233, %v171
  %v235 = vadd.f32 %v234, %v172
  %v236 = vadd.f32 %v235, %v173
  %v237 = vadd.f32 %v236, %v174
  %v238 = vadd.f32 %v237, %v175
  %v239 = vadd.f32 %v238, %v176
  %v240 = vadd.f32 %v239, %v177
  %v241 = vadd.f32 %v240, %v178
  %v242 = vadd.f32 %v241, %v179
  %v243 = vadd.f32 %v242, %v180
  %v244 = vadd.f32 %v243, %v181
  %v245 = vadd.f32 %v244, %v182
  %v246 = vadd.f32 %v245, %v183
  %v247 = vadd.f32 %v246, %v184
  %v248 = vadd.f32 %v247, %v185
  %v249 = vadd.f32 %v248, %v186
  %v250 = vadd.f32 %v249, %v187
  %v251 = vadd.f32 %v250, %v188
  %v252 = vadd.f32 %v251, %v189
  %v253 = vadd.f32 %v252, %v190
  %v254 = vadd.f32 %v253, %v191
  %v255 = vadd.f32 %v254, %v192
  %v256 = vadd.f32 %v255, %v193
  %v257 = vadd.f32 %v256, %v194
  %v258 = vadd.f32 %v257, %v195
  %v259 = vadd.f32 %v258, %v196
  %v260 = vadd.f32 %v259, %v197
  %v261 = vadd.f32 %v260, %v198
  %v262 = vadd.f32 %v261, %v199
  %v263 = vadd.f32 %v262, %v200
  %v264 = vadd.f32 %v263, %v201
  %v265 = vadd.f32 %v264, %v202
  %v266 = vadd.f32 %v265, %v203
  %v267 = vadd.f32 %v266, %v204
  %v268 = vadd.f32 %v267, %v205
  %v269 = vadd.f32 %v268, %v206
  %v270 = vadd.f32 %v269, %v207
  %v271 = vadd.f32 %v270, %v208
  %v272 = vadd.f32 %v271, %v209
  %v273 = vadd.f32 %v272, %v210
  %v274 = vadd.f32 %v273, %v211
  %v275 = vadd.f32 %v274, %v212
  %v276 = vadd.f32 %v275, %v213
  %v277 = vadd.f32 %v276, %v214
  %v278 = vadd.f32 %v277, %v215
  %v279 = vadd.f32 %v278, %v216
  %v280 = vrot.slane %v279, 4
  %v281 = vadd.f32 %v279, %v280
  %v282 = vrot.slane %v281, 2
  %v283 = vadd.f32 %v281, %v282
  %v284 = vrot.slane %v283, 1
  %v285 = vadd.f32 %v283, %v284
  %v286 = vadd.f32 %v152, %v285
  %287 = vst [vmem:[%s2] sm:$0x1] %v286
  // Predicated region
  $region10: #{_lambda_.45} parent=0 // pred_check
    _
  $region11: #{_lambda_.45} parent=0 // pred_check_branch
    %289 = sbr.rel (0) target = $region13
  $region12: #{_lambda_.45} parent=0 // pred_region
    _
  $region13: #{_lambda_.45} parent=0 // pred_fallthru
    _
  // Predicated region
  $region14: #{_lambda_.45} parent=0 // pred_check
    _
  $region15: #{_lambda_.45} parent=0 // pred_check_branch
    %291 = sbr.rel (0) target = $region17
  $region16: #{_lambda_.45} parent=0 // pred_region
    _
  $region17: #{_lambda_.45} parent=0 // pred_fallthru
    _
  // Predicated region
  $region18: #{_lambda_.45} parent=0 // pred_check
    _
  $region19: #{_lambda_.45} parent=0 // pred_check_branch
    %293 = sbr.rel (0) target = $region21
  $region20: #{_lambda_.45} parent=0 // pred_region
    _
  $region21: #{_lambda_.45} parent=0 // pred_fallthru
    _
  // Predicated region
  $region22: #{_lambda_.45} parent=0 // pred_check
    _
  $region23: #{_lambda_.45} parent=0 // pred_check_branch
    %295 = sbr.rel (0) target = $region25
  $region24: #{_lambda_.45} parent=0 // pred_region
    _
  $region25: #{_lambda_.45} parent=0 // pred_fallthru
    _

// kernel: _lambda_.44
$region0: #{_lambda_.44}
  #allocation0 [shape = 'u32[]', space=smem, size = 0x4, offset = 0x4, fixed_abs, tag = 'smem constant byte address 0x4 - core index']
  #allocation1 [shape = 'u32[144,128]{1,0:T(1,128)}', space=vmem, size = 0x12000, scoped, tag = 'internal scratch']
  #allocation2 [shape = 'f32[128,128]{1,0:T(8,128)}', space=vmem, size = 0x10000, scoped, tag = 'scratch operand']
  %s0 = inlined_call_operand.vmem [shape: bf16[4,128,128], index: 0, kind: input, shape index: {}]
  %s1 = inlined_call_operand.vmem [shape: bf16[4,128,128], index: 1, kind: input, shape index: {}]
  %s2 = inlined_call_operand.vmem [shape: f32[1,128], index: 2, kind: input, shape index: {}]
  %s3 = inlined_call_operand.vmem [shape: f32[4,128,128], index: 3, kind: output, shape index: {}]
  %s4 = sld [smem:[#allocation0]]
  $region53: #{_lambda_.44} parent=0
    _
  %s6 = ssub.s32 1, %s4
  %s7 = scalar_select 0, %s6, %s4
  loop: start=0, step=1, limit=6
  $region2: #{_lambda_.44} parent=0 // loop_pre_header
    _
  $region3: #{_lambda_.44} parent=0 // loop_header
    %s9 = sphi 0, %s13
    %p10 = scmp.ge.s32.totalorder %s9, 6
    %s16 = sphi 0, %s35
    %s17 = sphi 0, %s31
    %s18 = sphi 0, %s27
    %s19 = sphi 0, %s16
    %s20 = sphi 0, %s17
    %s21 = sphi 0, %s18
    %s22 = sphi 0, %s19
    %s23 = sphi 0, %s20
    %s24 = sphi 0, %s21
    %s42 = sphi 0, %s44
    %s45 = sphi 0, %s42
    %s46 = sphi 0, %s45
    %s62 = sphi 0, %s46
    %s70 = sphi 0, %s72
    %s73 = sphi 0, %s70
    %s74 = sphi 0, %s73
    %s90 = sphi 0, %s74
    %s94 = sphi 0, %s94
    %s96 = sphi 0, %s94
    %s97 = sphi 0, %s96
    %s111 = sphi 0, %s97
    %s119 = sphi 0, %s121
    %s122 = sphi 0, %s119
    %s123 = sphi 0, %s122
    %s139 = sphi 0, %s123
  $region4: #{_lambda_.44} parent=0 // loop_header_branch
    %12 = sbr.rel (%p10) target = $region8
  $region5: #{_lambda_.44} parent=0 // loop_body
    %s14 = ssub.s32 %s9, 1
    %s15 = ssub.s32 %s9, 2
    %s25 = sadd.s32 1, %s18
    %p26 = scmp.ge.s32.totalorder %s25, 1
    %s27 = scalar_select %p26, 0, %s25
    %s28 = sadd.s32 1, %s17
    %s29 = scalar_select %p26, %s28, %s17
    %p30 = scmp.ge.s32.totalorder %s29, 1
    %s31 = scalar_select %p30, 0, %s29
    %s32 = sadd.s32 1, %s16
    %s33 = scalar_select %p30, %s32, %s16
    %p34 = scmp.ge.s32.totalorder %s33, 4
    %s35 = scalar_select %p34, 0, %s33
    %s36 = ssub.s32 %s16, %s35
    %s37 = ssub.s32 %s17, %s31
    %s38 = sor.u32 %s36, %s37
    %s39 = ssub.s32 %s18, %s27
    %s40 = sor.u32 %s38, %s39
    %p41 = scmp.eq.s32.totalorder %s40, 0
    %s43 = sadd.s32 %s42, 1
    %s44 = scalar_select %p41, %s42, %s43
    %p47 = pneg %p41
    %p48 = scmp.eq.s32.totalorder %s9, 3
    %p49 = por %p47, %p48
    %p50 = scmp.ne.s32.totalorder %s42, %s45
    %p51 = scmp.eq.s32.totalorder %s9, 0
    %p52 = por %p50, %p51
    %p53 = scmp.ne.s32.totalorder %s42, %s45
    %p54 = scmp.eq.s32.totalorder %s14, 3
    %p55 = por %p53, %p54
    %p56 = scmp.ne.s32.totalorder %s45, %s46
    %p57 = scmp.eq.s32.totalorder %s14, 0
    %p58 = por %p56, %p57
    %p59 = scmp.ne.s32.totalorder %s45, %s46
    %p60 = scmp.eq.s32.totalorder %s15, 3
    %p61 = por %p59, %p60
    %p63 = scmp.ne.s32.totalorder %s46, %s62
    %p64 = scmp.eq.s32.totalorder %s15, 0
    %p65 = por %p63, %p64
    %s66 = ssub.s32 %s16, %s35
    %s67 = ssub.s32 %s18, %s27
    %s68 = sor.u32 %s66, %s67
    %p69 = scmp.eq.s32.totalorder %s68, 0
    %s71 = sadd.s32 %s70, 1
    %s72 = scalar_select %p69, %s70, %s71
    %p75 = pneg %p69
    %p76 = scmp.eq.s32.totalorder %s9, 3
    %p77 = por %p75, %p76
    %p78 = scmp.ne.s32.totalorder %s70, %s73
    %p79 = scmp.eq.s32.totalorder %s9, 0
    %p80 = por %p78, %p79
    %p81 = scmp.ne.s32.totalorder %s70, %s73
    %p82 = scmp.eq.s32.totalorder %s14, 3
    %p83 = por %p81, %p82
    %p84 = scmp.ne.s32.totalorder %s73, %s74
    %p85 = scmp.eq.s32.totalorder %s14, 0
    %p86 = por %p84, %p85
    %p87 = scmp.ne.s32.totalorder %s73, %s74
    %p88 = scmp.eq.s32.totalorder %s15, 3
    %p89 = por %p87, %p88
    %p91 = scmp.ne.s32.totalorder %s74, %s90
    %p92 = scmp.eq.s32.totalorder %s15, 0
    %p93 = por %p91, %p92
    %s95 = sadd.s32 %s94, 1
    %p98 = scmp.eq.s32.totalorder %s9, 3
    %p99 = scmp.ne.s32.totalorder %s94, %s96
    %p100 = scmp.eq.s32.totalorder %s9, 0
    %p101 = por %p99, %p100
    %p102 = scmp.ne.s32.totalorder %s94, %s96
    %p103 = scmp.eq.s32.totalorder %s14, 3
    %p104 = por %p102, %p103
    %p105 = scmp.ne.s32.totalorder %s96, %s97
    %p106 = scmp.eq.s32.totalorder %s14, 0
    %p107 = por %p105, %p106
    %p108 = scmp.ne.s32.totalorder %s96, %s97
    %p109 = scmp.eq.s32.totalorder %s15, 3
    %p110 = por %p108, %p109
    %p112 = scmp.ne.s32.totalorder %s97, %s111
    %p113 = scmp.eq.s32.totalorder %s15, 0
    %p114 = por %p112, %p113
    %s115 = ssub.s32 %s16, %s35
    %s116 = ssub.s32 %s17, %s31
    %s117 = sor.u32 %s115, %s116
    %p118 = scmp.eq.s32.totalorder %s117, 0
    %s120 = sadd.s32 %s119, 1
    %s121 = scalar_select %p118, %s119, %s120
    %p124 = pneg %p118
    %p125 = scmp.eq.s32.totalorder %s9, 3
    %p126 = por %p124, %p125
    %p127 = scmp.ne.s32.totalorder %s119, %s122
    %p128 = scmp.eq.s32.totalorder %s9, 0
    %p129 = por %p127, %p128
    %p130 = scmp.ne.s32.totalorder %s119, %s122
    %p131 = scmp.eq.s32.totalorder %s14, 3
    %p132 = por %p130, %p131
    %p133 = scmp.ne.s32.totalorder %s122, %s123
    %p134 = scmp.eq.s32.totalorder %s14, 0
    %p135 = por %p133, %p134
    %p136 = scmp.ne.s32.totalorder %s122, %s123
    %p137 = scmp.eq.s32.totalorder %s15, 3
    %p138 = por %p136, %p137
    %p140 = scmp.ne.s32.totalorder %s123, %s139
    %p141 = scmp.eq.s32.totalorder %s15, 0
    %p142 = por %p140, %p141
    %p143 = scmp.le.s32.totalorder 1, %s9
    %p144 = scmp.lt.s32.totalorder %s9, 5
    %p145 = pnand %p143, %p144
    %p146 = pneg %p145
    // Predicated region
    $region9: #{_lambda_.44} parent=5 // pred_check
      _
    $region10: #{_lambda_.44} parent=5 // pred_check_branch
      %148 = sbr.rel (%p145) target = $region12
    $region11: #{_lambda_.44} parent=5 // pred_region
      %s149 = ssub.s32 %s9, 1
      // Predicated region
      $region13: #{_lambda_.44} parent=11 // pred_check
        %p150 = pneg %p107
      $region14: #{_lambda_.44} parent=11 // pred_check_branch
        %152 = sbr.rel (%p150) target = $region16
      $region15: #{_lambda_.44} parent=11 // pred_region
        _
      $region16: #{_lambda_.44} parent=11 // pred_fallthru
        _
    $region12: #{_lambda_.44} parent=5 // pred_fallthru
      _
    %p153 = scmp.lt.s32.totalorder %s9, 4
    // Predicated region
    $region17: #{_lambda_.44} parent=5 // pred_check
      %p154 = pneg %p153
    $region18: #{_lambda_.44} parent=5 // pred_check_branch
      %156 = sbr.rel (%p154) target = $region20
    $region19: #{_lambda_.44} parent=5 // pred_region
      // Predicated region
      $region21: #{_lambda_.44} parent=19 // pred_check
        %p157 = pneg %p52
      $region22: #{_lambda_.44} parent=19 // pred_check_branch
        %159 = sbr.rel (%p157) target = $region24
      $region23: #{_lambda_.44} parent=19 // pred_region
        %s160 = smul.u32 16, %s17
        %p161 = scmp.lt.s32.totalorder %s16, 3
        %s162 = scalar_select %p161, %s16, 3
        %p163 = scmp.lt.s32.totalorder %s160, 15
        %s164 = scalar_select %p163, %s160, 15
        %p165 = scmp.lt.s32.totalorder %s18, 0
        %s166 = scalar_select %p165, %s18, 0
        %s167 = sadd.s32 %s166, %s164
        %s168 = smul.addr %s162, 16
        %s169 = sadd.s32 %s167, %s168
        %s170 = smul.addr %s169, 4
        %s171 = scalar_lea.vmem %s0, %s170
        %s172 = smul.u32 16, %s17
      $region24: #{_lambda_.44} parent=19 // pred_fallthru
        _
      // Predicated region
      $region25: #{_lambda_.44} parent=19 // pred_check
        %p173 = pneg %p80
      $region26: #{_lambda_.44} parent=19 // pred_check_branch
        %175 = sbr.rel (%p173) target = $region28
      $region27: #{_lambda_.44} parent=19 // pred_region
        %s176 = smul.u32 16, %s18
        %p177 = scmp.lt.s32.totalorder %s16, 3
        %s178 = scalar_select %p177, %s16, 3
        %p179 = scmp.lt.s32.totalorder %s176, 15
        %s180 = scalar_select %p179, %s176, 15
        %s181 = smul.addr %s178, 16
        %s182 = sadd.s32 %s180, %s181
        %s183 = smul.addr %s182, 4
        %s184 = scalar_lea.vmem %s1, %s183
        %s185 = smul.u32 16, %s18
      $region28: #{_lambda_.44} parent=19 // pred_fallthru
        _
    $region20: #{_lambda_.44} parent=5 // pred_fallthru
      _
    %p186 = scmp.le.s32.totalorder 1, %s9
    %p187 = scmp.lt.s32.totalorder %s9, 5
    %p188 = pnand %p186, %p187
    %p189 = pneg %p188
    // Predicated region
    $region29: #{_lambda_.44} parent=5 // pred_check
      _
    $region30: #{_lambda_.44} parent=5 // pred_check_branch
      %191 = sbr.rel (%p188) target = $region32
    $region31: #{_lambda_.44} parent=5 // pred_region
      %s192 = ssub.s32 %s9, 1
      %s193 = smul.u32 16, %s20
      %p194 = scmp.lt.s32.totalorder %s19, 3
      %s195 = scalar_select %p194, %s19, 3
      %p196 = scmp.lt.s32.totalorder %s193, 15
      %s197 = scalar_select %p196, %s193, 15
      %p198 = scmp.lt.s32.totalorder %s21, 0
      %s199 = scalar_select %p198, %s21, 0
      %s200 = sadd.s32 %s199, %s197
      %s201 = smul.addr %s195, 16
      %s202 = sadd.s32 %s200, %s201
      %s203 = smul.addr %s202, 4
      %s204 = scalar_lea.vmem %s0, %s203
      %p205 = pneg %p58
      %p206 = pneg %p55
      %s207 = smul.u32 16, %s21
      %p208 = scmp.lt.s32.totalorder %s19, 3
      %s209 = scalar_select %p208, %s19, 3
      %p210 = scmp.lt.s32.totalorder %s207, 15
      %s211 = scalar_select %p210, %s207, 15
      %s212 = smul.addr %s209, 16
      %s213 = sadd.s32 %s211, %s212
      %s214 = smul.addr %s213, 4
      %s215 = scalar_lea.vmem %s1, %s214
      %p216 = pneg %p86
      %p217 = pneg %p83
      %p218 = pneg %p107
      %p219 = pneg %p104
      %p220 = pneg %p135
      %p221 = pneg %p132
      %s222 = smul.u32 16, %s20
      %p223 = scmp.lt.s32.totalorder %s19, 3
      %s224 = scalar_select %p223, %s19, 3
      %p225 = scmp.lt.s32.totalorder %s222, 15
      %s226 = scalar_select %p225, %s222, 15
      %s227 = smul.addr %s224, 16
      %s228 = sadd.s32 %s226, %s227
      %s229 = smul.addr %s228, 8
      %s230 = scalar_lea.vmem %s3, %s229
      %s231 = smul.u32 16, %s20
      %p232 = scmp.lt.s32.totalorder %s19, 3
      %s233 = scalar_select %p232, %s19, 3
      %p234 = scmp.lt.s32.totalorder %s231, 15
      %s235 = scalar_select %p234, %s231, 15
      %p236 = scmp.lt.s32.totalorder %s21, 0
      %s237 = scalar_select %p236, %s21, 0
      %s238 = sadd.s32 %s237, %s235
      %s239 = smul.addr %s233, 16
      %s240 = sadd.s32 %s238, %s239
      %s241 = smul.addr %s240, 4
      %s242 = scalar_lea.vmem %s0, %s241
      %s243 = smul.u32 16, %s20
      %s244 = smul.u32 16, %s21
      %p245 = scmp.lt.s32.totalorder %s19, 3
      %s246 = scalar_select %p245, %s19, 3
      %p247 = scmp.lt.s32.totalorder %s244, 15
      %s248 = scalar_select %p247, %s244, 15
      %s249 = smul.addr %s246, 16
      %s250 = sadd.s32 %s248, %s249
      %s251 = smul.addr %s250, 4
      %s252 = scalar_lea.vmem %s1, %s251
      %s253 = smul.u32 16, %s21
      %s254 = smul.u32 16, %s20
      %p255 = scmp.lt.s32.totalorder %s19, 3
      %s256 = scalar_select %p255, %s19, 3
      %p257 = scmp.lt.s32.totalorder %s254, 15
      %s258 = scalar_select %p257, %s254, 15
      %s259 = smul.addr %s256, 16
      %s260 = sadd.s32 %s258, %s259
      %s261 = smul.addr %s260, 8
      %s262 = scalar_lea.vmem %s3, %s261
      %s263 = smul.u32 16, %s20
      %p265 = scmp.eq.s32.totalorder %s21, 0
      // Predicated region
      $region33: #{_lambda_.44} parent=31 // pred_check
        %p266 = pneg %p265
      $region34: #{_lambda_.44} parent=31 // pred_check_branch
        %268 = sbr.rel (%p266) target = $region36
      $region35: #{_lambda_.44} parent=31 // pred_region
        %269 = vst [vmem:[#allocation2] sm:$0xff] 0.0
        %270 = vst [vmem:[#allocation2 + $0x8] sm:$0xff] 0.0
        %271 = vst [vmem:[#allocation2 + $0x10] sm:$0xff] 0.0
        %272 = vst [vmem:[#allocation2 + $0x18] sm:$0xff] 0.0
        %273 = vst [vmem:[#allocation2 + $0x20] sm:$0xff] 0.0
        %274 = vst [vmem:[#allocation2 + $0x28] sm:$0xff] 0.0
        %275 = vst [vmem:[#allocation2 + $0x30] sm:$0xff] 0.0
        %276 = vst [vmem:[#allocation2 + $0x38] sm:$0xff] 0.0
        %277 = vst [vmem:[#allocation2 + $0x40] sm:$0xff] 0.0
        %278 = vst [vmem:[#allocation2 + $0x48] sm:$0xff] 0.0
        %279 = vst [vmem:[#allocation2 + $0x50] sm:$0xff] 0.0
        %280 = vst [vmem:[#allocation2 + $0x58] sm:$0xff] 0.0
        %281 = vst [vmem:[#allocation2 + $0x60] sm:$0xff] 0.0
        %282 = vst [vmem:[#allocation2 + $0x68] sm:$0xff] 0.0
        %283 = vst [vmem:[#allocation2 + $0x70] sm:$0xff] 0.0
        %284 = vst [vmem:[#allocation2 + $0x78] sm:$0xff] 0.0
      $region36: #{_lambda_.44} parent=31 // pred_fallthru
        _
      %v285 = vld [vmem:[#allocation2] sm:$0xff]
      %v286 = vld [vmem:[#allocation2 + $0x8] sm:$0xff]
      %v287 = vld [vmem:[#allocation2 + $0x10] sm:$0xff]
      %v288 = vld [vmem:[#allocation2 + $0x18] sm:$0xff]
      %v289 = vld [vmem:[#allocation2 + $0x20] sm:$0xff]
      %v290 = vld [vmem:[#allocation2 + $0x28] sm:$0xff]
      %v291 = vld [vmem:[#allocation2 + $0x30] sm:$0xff]
      %v292 = vld [vmem:[#allocation2 + $0x38] sm:$0xff]
      %v293 = vld [vmem:[#allocation2 + $0x40] sm:$0xff]
      %v294 = vld [vmem:[#allocation2 + $0x48] sm:$0xff]
      %v295 = vld [vmem:[#allocation2 + $0x50] sm:$0xff]
      %v296 = vld [vmem:[#allocation2 + $0x58] sm:$0xff]
      %v297 = vld [vmem:[#allocation2 + $0x60] sm:$0xff]
      %v298 = vld [vmem:[#allocation2 + $0x68] sm:$0xff]
      %v299 = vld [vmem:[#allocation2 + $0x70] sm:$0xff]
      %v300 = vld [vmem:[#allocation2 + $0x78] sm:$0xff]
      %v301 = vld [vmem:[%s242] sm:$0xf]
      %v302 = vld [vmem:[%s242 + $0x4] sm:$0xf]
      %v303 = vld [vmem:[%s242 + $0x8] sm:$0xf]
      %v304 = vld [vmem:[%s242 + $0xc] sm:$0xf]
      %v305 = vld [vmem:[%s242 + $0x10] sm:$0xf]
      %v306 = vld [vmem:[%s242 + $0x14] sm:$0xf]
      %v307 = vld [vmem:[%s242 + $0x18] sm:$0xf]
      %v308 = vld [vmem:[%s242 + $0x1c] sm:$0xf]
      %v309 = vld [vmem:[%s242 + $0x20] sm:$0xf]
      %v310 = vld [vmem:[%s242 + $0x24] sm:$0xf]
      %v311 = vld [vmem:[%s242 + $0x28] sm:$0xf]
      %v312 = vld [vmem:[%s242 + $0x2c] sm:$0xf]
      %v313 = vld [vmem:[%s242 + $0x30] sm:$0xf]
      %v314 = vld [vmem:[%s242 + $0x34] sm:$0xf]
      %v315 = vld [vmem:[%s242 + $0x38] sm:$0xf]
      %v316 = vld [vmem:[%s242 + $0x3c] sm:$0xf]
      %v317 = vld [vmem:[%s252] sm:$0xf]
      %v318 = vld [vmem:[%s252 + $0x4] sm:$0xf]
      %v319 = vld [vmem:[%s252 + $0x8] sm:$0xf]
      %v320 = vld [vmem:[%s252 + $0xc] sm:$0xf]
      %v321 = vld [vmem:[%s252 + $0x10] sm:$0xf]
      %v322 = vld [vmem:[%s252 + $0x14] sm:$0xf]
      %v323 = vld [vmem:[%s252 + $0x18] sm:$0xf]
      %v324 = vld [vmem:[%s252 + $0x1c] sm:$0xf]
      %v325 = vld [vmem:[%s252 + $0x20] sm:$0xf]
      %v326 = vld [vmem:[%s252 + $0x24] sm:$0xf]
      %v327 = vld [vmem:[%s252 + $0x28] sm:$0xf]
      %v328 = vld [vmem:[%s252 + $0x2c] sm:$0xf]
      %v329 = vld [vmem:[%s252 + $0x30] sm:$0xf]
      %v330 = vld [vmem:[%s252 + $0x34] sm:$0xf]
      %v331 = vld [vmem:[%s252 + $0x38] sm:$0xf]
      %v332 = vld [vmem:[%s252 + $0x3c] sm:$0xf]
      %v349 = vunpack.c.l.b16 %v301
      %v350 = vunpack.c.l.b16 %v302
      %v351 = vunpack.c.l.b16 %v303
      %v352 = vunpack.c.l.b16 %v304
      %v353 = vunpack.c.l.b16 %v305
      %v354 = vunpack.c.l.b16 %v306
      %v355 = vunpack.c.l.b16 %v307
      %v356 = vunpack.c.l.b16 %v308
      %v357 = vunpack.c.l.b16 %v309
      %v358 = vunpack.c.l.b16 %v310
      %v359 = vunpack.c.l.b16 %v311
      %v360 = vunpack.c.l.b16 %v312
      %v361 = vunpack.c.l.b16 %v313
      %v362 = vunpack.c.l.b16 %v314
      %v363 = vunpack.c.l.b16 %v315
      %v364 = vunpack.c.l.b16 %v316
      %v365 = vpack.c.b16 %v350, %v349
      %v366 = vpack.c.b16 %v352, %v351
      %v367 = vpack.c.b16 %v354, %v353
      %v368 = vpack.c.b16 %v356, %v355
      %v369 = vpack.c.b16 %v358, %v357
      %v370 = vpack.c.b16 %v360, %v359
      %v371 = vpack.c.b16 %v362, %v361
      %v372 = vpack.c.b16 %v364, %v363
      %v397 = vunpack.c.l.b16 %v317
      %v398 = vunpack.c.l.b16 %v318
      %v399 = vunpack.c.l.b16 %v319
      %v400 = vunpack.c.l.b16 %v320
      %v401 = vunpack.c.l.b16 %v321
      %v402 = vunpack.c.l.b16 %v322
      %v403 = vunpack.c.l.b16 %v323
      %v404 = vunpack.c.l.b16 %v324
      %v405 = vunpack.c.l.b16 %v325
      %v406 = vunpack.c.l.b16 %v326
      %v407 = vunpack.c.l.b16 %v327
      %v408 = vunpack.c.l.b16 %v328
      %v409 = vunpack.c.l.b16 %v329
      %v410 = vunpack.c.l.b16 %v330
      %v411 = vunpack.c.l.b16 %v331
      %v412 = vunpack.c.l.b16 %v332
      %v413 = vpack.c.b16 %v398, %v397
      %v414 = vpack.c.b16 %v400, %v399
      %v415 = vpack.c.b16 %v402, %v401
      %v416 = vpack.c.b16 %v404, %v403
      %v417 = vpack.c.b16 %v406, %v405
      %v418 = vpack.c.b16 %v408, %v407
      %v419 = vpack.c.b16 %v410, %v409
      %v420 = vpack.c.b16 %v412, %v411
      %429 = vmatprep.subr.bf16.mxu0 0
      %430 = vmatpush1.bf16.msra.mxu0 %v413
      %431 = vmatprep.subr.bf16.mxu0 0
      %432 = vmatpush1.bf16.msra.mxu0 %v414
      %433 = vmatprep.subr.bf16.mxu0 0
      %434 = vmatpush1.bf16.msra.mxu0 %v415
      %435 = vmatprep.subr.bf16.mxu0 0
      %436 = vmatpush1.bf16.msra.mxu0 %v416
      %437 = vmatprep.subr.bf16.mxu0 0
      %438 = vmatpush1.bf16.msra.mxu0 %v417
      %439 = vmatprep.subr.bf16.mxu0 0
      %440 = vmatpush1.bf16.msra.mxu0 %v418
      %441 = vmatprep.subr.bf16.mxu0 0
      %442 = vmatpush1.bf16.msra.mxu0 %v419
      %443 = vmatprep.subr.bf16.mxu0 0
      %444 = vmatpush1.bf16.msra.mxu0 %v420
      %445 = vmatprep.subr.bf16.mxu0 0
      %446 = vmatpush1.bf16.msra.mxu0 0
      %447 = vmatprep.subr.bf16.mxu0 0
      %448 = vmatpush1.bf16.msra.mxu0 0
      %449 = vmatprep.subr.bf16.mxu0 0
      %450 = vmatpush1.bf16.msra.mxu0 0
      %451 = vmatprep.subr.bf16.mxu0 0
      %452 = vmatpush1.bf16.msra.mxu0 0
      %453 = vmatprep.subr.bf16.mxu0 0
      %454 = vmatpush1.bf16.msra.mxu0 0
      %455 = vmatprep.subr.bf16.mxu0 0
      %456 = vmatpush1.bf16.msra.mxu0 0
      %457 = vmatprep.subr.bf16.mxu0 0
      %458 = vmatpush1.bf16.msra.mxu0 0
      %459 = vmatprep.subr.bf16.mxu0 0
      %460 = vmatpush1.bf16.msra.mxu0 0
      %461 = vmatprep.mubr.bf16.mxu0 0
      %462 = vmatmul.mubr.bf16.gmra.mrb[0].mxu0 %v365
      %v463 = vpop.f32.mrb[0].mxu0
      %v464 = vadd.f32 0.0, %v463
      %v465 = vpop.f32.mrb[0].mxu0
      %v466 = vpop.f32.mrb[0].mxu0
      %v467 = vadd.f32 0.0, %v466
      %v468 = vpop.f32.mrb[0].mxu0
      %469 = vmatprep.mubr.bf16.mxu0 0
      %470 = vmatmul.mubr.bf16.gmra.mrb[0].mxu0 %v366
      %v471 = vpop.f32.mrb[0].mxu0
      %v472 = vadd.f32 0.0, %v471
      %v473 = vpop.f32.mrb[0].mxu0
      %v474 = vpop.f32.mrb[0].mxu0
      %v475 = vadd.f32 0.0, %v474
      %v476 = vpop.f32.mrb[0].mxu0
      %477 = vmatprep.mubr.bf16.mxu0 0
      %478 = vmatmul.mubr.bf16.gmra.mrb[0].mxu0 %v367
      %v479 = vpop.f32.mrb[0].mxu0
      %v480 = vadd.f32 0.0, %v479
      %v481 = vpop.f32.mrb[0].mxu0
      %v482 = vpop.f32.mrb[0].mxu0
      %v483 = vadd.f32 0.0, %v482
      %v484 = vpop.f32.mrb[0].mxu0
      %485 = vmatprep.mubr.bf16.mxu0 0
      %486 = vmatmul.mubr.bf16.gmra.mrb[0].mxu0 %v368
      %v487 = vpop.f32.mrb[0].mxu0
      %v488 = vadd.f32 0.0, %v487
      %v489 = vpop.f32.mrb[0].mxu0
      %v490 = vpop.f32.mrb[0].mxu0
      %v491 = vadd.f32 0.0, %v490
      %v492 = vpop.f32.mrb[0].mxu0
      %493 = vmatprep.mubr.bf16.mxu0 0
      %494 = vmatmul.mubr.bf16.gmra.mrb[0].mxu0 %v369
      %v495 = vpop.f32.mrb[0].mxu0
      %v496 = vadd.f32 0.0, %v495
      %v497 = vpop.f32.mrb[0].mxu0
      %v498 = vpop.f32.mrb[0].mxu0
      %v499 = vadd.f32 0.0, %v498
      %v500 = vpop.f32.mrb[0].mxu0
      %501 = vmatprep.mubr.bf16.mxu0 0
      %502 = vmatmul.mubr.bf16.gmra.mrb[0].mxu0 %v370
      %v503 = vpop.f32.mrb[0].mxu0
      %v504 = vadd.f32 0.0, %v503
      %v505 = vpop.f32.mrb[0].mxu0
      %v506 = vpop.f32.mrb[0].mxu0
      %v507 = vadd.f32 0.0, %v506
      %v508 = vpop.f32.mrb[0].mxu0
      %509 = vmatprep.mubr.bf16.mxu0 0
      %510 = vmatmul.mubr.bf16.gmra.mrb[0].mxu0 %v371
      %v511 = vpop.f32.mrb[0].mxu0
      %v512 = vadd.f32 0.0, %v511
      %v513 = vpop.f32.mrb[0].mxu0
      %v514 = vpop.f32.mrb[0].mxu0
      %v515 = vadd.f32 0.0, %v514
      %v516 = vpop.f32.mrb[0].mxu0
      %517 = vmatprep.mubr.bf16.mxu0 0
      %518 = vmatmul.mubr.bf16.gmra.mrb[0].mxu0 %v372
      %v519 = vpop.f32.mrb[0].mxu0
      %v520 = vadd.f32 0.0, %v519
      %v521 = vpop.f32.mrb[0].mxu0
      %v522 = vpop.f32.mrb[0].mxu0
      %v523 = vadd.f32 0.0, %v522
      %v524 = vpop.f32.mrb[0].mxu0
      %525 = vdwg.mxu0
      %v526 = vadd.f32 %v285, %v464
      %v527 = vadd.f32 %v286, %v467
      %v528 = vadd.f32 %v287, %v472
      %v529 = vadd.f32 %v288, %v475
      %v530 = vadd.f32 %v289, %v480
      %v531 = vadd.f32 %v290, %v483
      %v532 = vadd.f32 %v291, %v488
      %v533 = vadd.f32 %v292, %v491
      %v534 = vadd.f32 %v293, %v496
      %v535 = vadd.f32 %v294, %v499
      %v536 = vadd.f32 %v295, %v504
      %v537 = vadd.f32 %v296, %v507
      %v538 = vadd.f32 %v297, %v512
      %v539 = vadd.f32 %v298, %v515
      %v540 = vadd.f32 %v299, %v520
      %v541 = vadd.f32 %v300, %v523
      %542 = vst [vmem:[#allocation2] sm:$0xff] %v526
      %543 = vst [vmem:[#allocation2 + $0x8] sm:$0xff] %v527
      %544 = vst [vmem:[#allocation2 + $0x10] sm:$0xff] %v528
      %545 = vst [vmem:[#allocation2 + $0x18] sm:$0xff] %v529
      %546 = vst [vmem:[#allocation2 + $0x20] sm:$0xff] %v530
      %547 = vst [vmem:[#allocation2 + $0x28] sm:$0xff] %v531
      %548 = vst [vmem:[#allocation2 + $0x30] sm:$0xff] %v532
      %549 = vst [vmem:[#allocation2 + $0x38] sm:$0xff] %v533
      %550 = vst [vmem:[#allocation2 + $0x40] sm:$0xff] %v534
      %551 = vst [vmem:[#allocation2 + $0x48] sm:$0xff] %v535
      %552 = vst [vmem:[#allocation2 + $0x50] sm:$0xff] %v536
      %553 = vst [vmem:[#allocation2 + $0x58] sm:$0xff] %v537
      %554 = vst [vmem:[#allocation2 + $0x60] sm:$0xff] %v538
      %555 = vst [vmem:[#allocation2 + $0x68] sm:$0xff] %v539
      %556 = vst [vmem:[#allocation2 + $0x70] sm:$0xff] %v540
      %557 = vst [vmem:[#allocation2 + $0x78] sm:$0xff] %v541
      // Predicated region
      $region37: #{_lambda_.44} parent=31 // pred_check
        %p558 = pneg %p265
      $region38: #{_lambda_.44} parent=31 // pred_check_branch
        %560 = sbr.rel (%p558) target = $region40
      $region39: #{_lambda_.44} parent=31 // pred_region
        %v561 = vld [vmem:[#allocation2] sm:$0xff]
        %v562 = vld [vmem:[#allocation2 + $0x8] sm:$0xff]
        %v563 = vld [vmem:[#allocation2 + $0x10] sm:$0xff]
        %v564 = vld [vmem:[#allocation2 + $0x18] sm:$0xff]
        %v565 = vld [vmem:[#allocation2 + $0x20] sm:$0xff]
        %v566 = vld [vmem:[#allocation2 + $0x28] sm:$0xff]
        %v567 = vld [vmem:[#allocation2 + $0x30] sm:$0xff]
        %v568 = vld [vmem:[#allocation2 + $0x38] sm:$0xff]
        %v569 = vld [vmem:[#allocation2 + $0x40] sm:$0xff]
        %v570 = vld [vmem:[#allocation2 + $0x48] sm:$0xff]
        %v571 = vld [vmem:[#allocation2 + $0x50] sm:$0xff]
        %v572 = vld [vmem:[#allocation2 + $0x58] sm:$0xff]
        %v573 = vld [vmem:[#allocation2 + $0x60] sm:$0xff]
        %v574 = vld [vmem:[#allocation2 + $0x68] sm:$0xff]
        %v575 = vld [vmem:[#allocation2 + $0x70] sm:$0xff]
        %v576 = vld [vmem:[#allocation2 + $0x78] sm:$0xff]
        %v577 = vld [vmem:[%s2] sm:$0x1]
        %v579 = vlaneseq
        %v580 = vshrl.u32 %v579, 7
        %v581 = vsub.s32 0, %v580
        %v582 = vrot.slane %v577, %v581
        %v584 = vadd.f32 %v561, %v582
        %v585 = vadd.f32 %v562, %v582
        %v586 = vadd.f32 %v563, %v582
        %v587 = vadd.f32 %v564, %v582
        %v588 = vadd.f32 %v565, %v582
        %v589 = vadd.f32 %v566, %v582
        %v590 = vadd.f32 %v567, %v582
        %v591 = vadd.f32 %v568, %v582
        %v592 = vadd.f32 %v569, %v582
        %v593 = vadd.f32 %v570, %v582
        %v594 = vadd.f32 %v571, %v582
        %v595 = vadd.f32 %v572, %v582
        %v596 = vadd.f32 %v573, %v582
        %v597 = vadd.f32 %v574, %v582
        %v598 = vadd.f32 %v575, %v582
        %v599 = vadd.f32 %v576, %v582
        %600 = vst [vmem:[%s262] sm:$0xff] %v584
        %601 = vst [vmem:[%s262 + $0x8] sm:$0xff] %v585
        %602 = vst [vmem:[%s262 + $0x10] sm:$0xff] %v586
        %603 = vst [vmem:[%s262 + $0x18] sm:$0xff] %v587
        %604 = vst [vmem:[%s262 + $0x20] sm:$0xff] %v588
        %605 = vst [vmem:[%s262 + $0x28] sm:$0xff] %v589
        %606 = vst [vmem:[%s262 + $0x30] sm:$0xff] %v590
        %607 = vst [vmem:[%s262 + $0x38] sm:$0xff] %v591
        %608 = vst [vmem:[%s262 + $0x40] sm:$0xff] %v592
        %609 = vst [vmem:[%s262 + $0x48] sm:$0xff] %v593
        %610 = vst [vmem:[%s262 + $0x50] sm:$0xff] %v594
        %611 = vst [vmem:[%s262 + $0x58] sm:$0xff] %v595
        %612 = vst [vmem:[%s262 + $0x60] sm:$0xff] %v596
        %613 = vst [vmem:[%s262 + $0x68] sm:$0xff] %v597
        %614 = vst [vmem:[%s262 + $0x70] sm:$0xff] %v598
        %615 = vst [vmem:[%s262 + $0x78] sm:$0xff] %v599
      $region40: #{_lambda_.44} parent=31 // pred_fallthru
        _
      %s616 = smul.u32 16, %s20
      %p617 = scmp.lt.s32.totalorder %s19, 3
      %s618 = scalar_select %p617, %s19, 3
      %p619 = scmp.lt.s32.totalorder %s616, 15
      %s620 = scalar_select %p619, %s616, 15
      %s621 = smul.addr %s618, 16
      %s622 = sadd.s32 %s620, %s621
      %s623 = smul.addr %s622, 8
      %s624 = scalar_lea.vmem %s3, %s623
      // Predicated region
      $region41: #{_lambda_.44} parent=31 // pred_check
        %p625 = pneg %p132
      $region42: #{_lambda_.44} parent=31 // pred_check_branch
        %627 = sbr.rel (%p625) target = $region44
      $region43: #{_lambda_.44} parent=31 // pred_region
        %s628 = smul.u32 16, %s20
      $region44: #{_lambda_.44} parent=31 // pred_fallthru
        _
    $region32: #{_lambda_.44} parent=5 // pred_fallthru
      _
    %p629 = scmp.le.s32.totalorder 2, %s9
    // Predicated region
    $region45: #{_lambda_.44} parent=5 // pred_check
      %p630 = pneg %p629
    $region46: #{_lambda_.44} parent=5 // pred_check_branch
      %632 = sbr.rel (%p630) target = $region48
    $region47: #{_lambda_.44} parent=5 // pred_region
      %s633 = ssub.s32 %s9, 2
      // Predicated region
      $region49: #{_lambda_.44} parent=47 // pred_check
        %p634 = pneg %p138
      $region50: #{_lambda_.44} parent=47 // pred_check_branch
        %636 = sbr.rel (%p634) target = $region52
      $region51: #{_lambda_.44} parent=47 // pred_region
        %s637 = smul.u32 16, %s23
        %p638 = scmp.lt.s32.totalorder %s22, 3
        %s639 = scalar_select %p638, %s22, 3
        %p640 = scmp.lt.s32.totalorder %s637, 15
        %s641 = scalar_select %p640, %s637, 15
        %s642 = smul.addr %s639, 16
        %s643 = sadd.s32 %s641, %s642
        %s644 = smul.addr %s643, 8
        %s645 = scalar_lea.vmem %s3, %s644
      $region52: #{_lambda_.44} parent=47 // pred_fallthru
        _
    $region48: #{_lambda_.44} parent=5 // pred_fallthru
      _
  $region6: #{_lambda_.44} parent=0 // loop_footer
    %s13 = sadd.s32 1, %s9
  $region7: #{_lambda_.44} parent=0 // loop_footer_branch
    %8 = sbr.rel target = $region3
  $region8: #{_lambda_.44} parent=0 // loop_exit
    _

// kernel: _lambda_.46
$region0: #{_lambda_.46}
  #allocation0 [shape = 'u32[]', space=smem, size = 0x4, offset = 0x4, fixed_abs, tag = 'smem constant byte address 0x4 - core index']
  #allocation1 [shape = 'u32[144,128]{1,0:T(1,128)}', space=vmem, size = 0x12000, scoped, tag = 'internal scratch']
  %s0 = inlined_call_operand.vmem [shape: f32[512,128], index: 0, kind: input, shape index: {}]
  %s1 = inlined_call_operand.vmem [shape: f32[1,128], index: 1, kind: input, shape index: {}]
  %s2 = inlined_call_operand.vmem [shape: f32[1,128], index: 2, kind: input, shape index: {}]
  %s3 = inlined_call_operand.vmem [shape: f32[1,128], index: 3, kind: input, shape index: {}]
  %s4 = inlined_call_operand.vmem [shape: f32[1,128], index: 4, kind: input, shape index: {}]
  %s5 = inlined_call_operand.vmem [shape: f32[512,128], index: 5, kind: output, shape index: {}]
  %s6 = sld [smem:[#allocation0]]
  $region30: #{_lambda_.46} parent=0
    _
  %s8 = ssub.s32 1, %s6
  %s9 = scalar_select 0, %s8, %s6
  // Predicated region
  $region2: #{_lambda_.46} parent=0 // pred_check
    _
  $region3: #{_lambda_.46} parent=0 // pred_check_branch
    %11 = sbr.rel (0) target = $region5
  $region4: #{_lambda_.46} parent=0 // pred_region
    _
  $region5: #{_lambda_.46} parent=0 // pred_fallthru
    _
  // Predicated region
  $region6: #{_lambda_.46} parent=0 // pred_check
    _
  $region7: #{_lambda_.46} parent=0 // pred_check_branch
    %13 = sbr.rel (0) target = $region9
  $region8: #{_lambda_.46} parent=0 // pred_region
    _
  $region9: #{_lambda_.46} parent=0 // pred_fallthru
    _
  // Predicated region
  $region10: #{_lambda_.46} parent=0 // pred_check
    _
  $region11: #{_lambda_.46} parent=0 // pred_check_branch
    %15 = sbr.rel (0) target = $region13
  $region12: #{_lambda_.46} parent=0 // pred_region
    _
  $region13: #{_lambda_.46} parent=0 // pred_fallthru
    _
  // Predicated region
  $region14: #{_lambda_.46} parent=0 // pred_check
    _
  $region15: #{_lambda_.46} parent=0 // pred_check_branch
    %17 = sbr.rel (0) target = $region17
  $region16: #{_lambda_.46} parent=0 // pred_region
    _
  $region17: #{_lambda_.46} parent=0 // pred_fallthru
    _
  // Predicated region
  $region18: #{_lambda_.46} parent=0 // pred_check
    _
  $region19: #{_lambda_.46} parent=0 // pred_check_branch
    %19 = sbr.rel (0) target = $region21
  $region20: #{_lambda_.46} parent=0 // pred_region
    _
  $region21: #{_lambda_.46} parent=0 // pred_fallthru
    _
  %v20 = vld [vmem:[%s1] sm:$0x1]
  %v21 = vmul.f32 %v20, 0.001953125
  %v22 = vld [vmem:[%s2] sm:$0x1]
  %v23 = vmul.f32 %v22, 0.001953125
  %v24 = vmul.f32 %v21, %v21
  %v25 = vsub.f32 %v23, %v24
  %v26 = vmax.f32 %v25, 0.0
  %v27 = vadd.f32 %v26, 1e-05
  %v28 = vrsqrt.pop %v27
  %v29 = vld [vmem:[%s3] sm:$0x1]
  %v30 = vmul.f32 %v28, %v29
  %v31 = vld [vmem:[%s0] sm:$0xff]
  %v32 = vld [vmem:[%s0 + $0x8] sm:$0xff]
  %v33 = vld [vmem:[%s0 + $0x10] sm:$0xff]
  %v34 = vld [vmem:[%s0 + $0x18] sm:$0xff]
  %v35 = vld [vmem:[%s0 + $0x20] sm:$0xff]
  %v36 = vld [vmem:[%s0 + $0x28] sm:$0xff]
  %v37 = vld [vmem:[%s0 + $0x30] sm:$0xff]
  %v38 = vld [vmem:[%s0 + $0x38] sm:$0xff]
  %v39 = vld [vmem:[%s0 + $0x40] sm:$0xff]
  %v40 = vld [vmem:[%s0 + $0x48] sm:$0xff]
  %v41 = vld [vmem:[%s0 + $0x50] sm:$0xff]
  %v42 = vld [vmem:[%s0 + $0x58] sm:$0xff]
  %v43 = vld [vmem:[%s0 + $0x60] sm:$0xff]
  %v44 = vld [vmem:[%s0 + $0x68] sm:$0xff]
  %v45 = vld [vmem:[%s0 + $0x70] sm:$0xff]
  %v46 = vld [vmem:[%s0 + $0x78] sm:$0xff]
  %v47 = vld [vmem:[%s0 + $0x80] sm:$0xff]
  %v48 = vld [vmem:[%s0 + $0x88] sm:$0xff]
  %v49 = vld [vmem:[%s0 + $0x90] sm:$0xff]
  %v50 = vld [vmem:[%s0 + $0x98] sm:$0xff]
  %v51 = vld [vmem:[%s0 + $0xa0] sm:$0xff]
  %v52 = vld [vmem:[%s0 + $0xa8] sm:$0xff]
  %v53 = vld [vmem:[%s0 + $0xb0] sm:$0xff]
  %v54 = vld [vmem:[%s0 + $0xb8] sm:$0xff]
  %v55 = vld [vmem:[%s0 + $0xc0] sm:$0xff]
  %v56 = vld [vmem:[%s0 + $0xc8] sm:$0xff]
  %v57 = vld [vmem:[%s0 + $0xd0] sm:$0xff]
  %v58 = vld [vmem:[%s0 + $0xd8] sm:$0xff]
  %v59 = vld [vmem:[%s0 + $0xe0] sm:$0xff]
  %v60 = vld [vmem:[%s0 + $0xe8] sm:$0xff]
  %v61 = vld [vmem:[%s0 + $0xf0] sm:$0xff]
  %v62 = vld [vmem:[%s0 + $0xf8] sm:$0xff]
  %v63 = vld [vmem:[%s0 + $0x100] sm:$0xff]
  %v64 = vld [vmem:[%s0 + $0x108] sm:$0xff]
  %v65 = vld [vmem:[%s0 + $0x110] sm:$0xff]
  %v66 = vld [vmem:[%s0 + $0x118] sm:$0xff]
  %v67 = vld [vmem:[%s0 + $0x120] sm:$0xff]
  %v68 = vld [vmem:[%s0 + $0x128] sm:$0xff]
  %v69 = vld [vmem:[%s0 + $0x130] sm:$0xff]
  %v70 = vld [vmem:[%s0 + $0x138] sm:$0xff]
  %v71 = vld [vmem:[%s0 + $0x140] sm:$0xff]
  %v72 = vld [vmem:[%s0 + $0x148] sm:$0xff]
  %v73 = vld [vmem:[%s0 + $0x150] sm:$0xff]
  %v74 = vld [vmem:[%s0 + $0x158] sm:$0xff]
  %v75 = vld [vmem:[%s0 + $0x160] sm:$0xff]
  %v76 = vld [vmem:[%s0 + $0x168] sm:$0xff]
  %v77 = vld [vmem:[%s0 + $0x170] sm:$0xff]
  %v78 = vld [vmem:[%s0 + $0x178] sm:$0xff]
  %v79 = vld [vmem:[%s0 + $0x180] sm:$0xff]
  %v80 = vld [vmem:[%s0 + $0x188] sm:$0xff]
  %v81 = vld [vmem:[%s0 + $0x190] sm:$0xff]
  %v82 = vld [vmem:[%s0 + $0x198] sm:$0xff]
  %v83 = vld [vmem:[%s0 + $0x1a0] sm:$0xff]
  %v84 = vld [vmem:[%s0 + $0x1a8] sm:$0xff]
  %v85 = vld [vmem:[%s0 + $0x1b0] sm:$0xff]
  %v86 = vld [vmem:[%s0 + $0x1b8] sm:$0xff]
  %v87 = vld [vmem:[%s0 + $0x1c0] sm:$0xff]
  %v88 = vld [vmem:[%s0 + $0x1c8] sm:$0xff]
  %v89 = vld [vmem:[%s0 + $0x1d0] sm:$0xff]
  %v90 = vld [vmem:[%s0 + $0x1d8] sm:$0xff]
  %v91 = vld [vmem:[%s0 + $0x1e0] sm:$0xff]
  %v92 = vld [vmem:[%s0 + $0x1e8] sm:$0xff]
  %v93 = vld [vmem:[%s0 + $0x1f0] sm:$0xff]
  %v94 = vld [vmem:[%s0 + $0x1f8] sm:$0xff]
  %v96 = vlaneseq
  %v97 = vshrl.u32 %v96, 7
  %v98 = vsub.s32 0, %v97
  %v99 = vrot.slane %v21, %v98
  %v101 = vsub.f32 %v31, %v99
  %v102 = vsub.f32 %v32, %v99
  %v103 = vsub.f32 %v33, %v99
  %v104 = vsub.f32 %v34, %v99
  %v105 = vsub.f32 %v35, %v99
  %v106 = vsub.f32 %v36, %v99
  %v107 = vsub.f32 %v37, %v99
  %v108 = vsub.f32 %v38, %v99
  %v109 = vsub.f32 %v39, %v99
  %v110 = vsub.f32 %v40, %v99
  %v111 = vsub.f32 %v41, %v99
  %v112 = vsub.f32 %v42, %v99
  %v113 = vsub.f32 %v43, %v99
  %v114 = vsub.f32 %v44, %v99
  %v115 = vsub.f32 %v45, %v99
  %v116 = vsub.f32 %v46, %v99
  %v117 = vsub.f32 %v47, %v99
  %v118 = vsub.f32 %v48, %v99
  %v119 = vsub.f32 %v49, %v99
  %v120 = vsub.f32 %v50, %v99
  %v121 = vsub.f32 %v51, %v99
  %v122 = vsub.f32 %v52, %v99
  %v123 = vsub.f32 %v53, %v99
  %v124 = vsub.f32 %v54, %v99
  %v125 = vsub.f32 %v55, %v99
  %v126 = vsub.f32 %v56, %v99
  %v127 = vsub.f32 %v57, %v99
  %v128 = vsub.f32 %v58, %v99
  %v129 = vsub.f32 %v59, %v99
  %v130 = vsub.f32 %v60, %v99
  %v131 = vsub.f32 %v61, %v99
  %v132 = vsub.f32 %v62, %v99
  %v133 = vsub.f32 %v63, %v99
  %v134 = vsub.f32 %v64, %v99
  %v135 = vsub.f32 %v65, %v99
  %v136 = vsub.f32 %v66, %v99
  %v137 = vsub.f32 %v67, %v99
  %v138 = vsub.f32 %v68, %v99
  %v139 = vsub.f32 %v69, %v99
  %v140 = vsub.f32 %v70, %v99
  %v141 = vsub.f32 %v71, %v99
  %v142 = vsub.f32 %v72, %v99
  %v143 = vsub.f32 %v73, %v99
  %v144 = vsub.f32 %v74, %v99
  %v145 = vsub.f32 %v75, %v99
  %v146 = vsub.f32 %v76, %v99
  %v147 = vsub.f32 %v77, %v99
  %v148 = vsub.f32 %v78, %v99
  %v149 = vsub.f32 %v79, %v99
  %v150 = vsub.f32 %v80, %v99
  %v151 = vsub.f32 %v81, %v99
  %v152 = vsub.f32 %v82, %v99
  %v153 = vsub.f32 %v83, %v99
  %v154 = vsub.f32 %v84, %v99
  %v155 = vsub.f32 %v85, %v99
  %v156 = vsub.f32 %v86, %v99
  %v157 = vsub.f32 %v87, %v99
  %v158 = vsub.f32 %v88, %v99
  %v159 = vsub.f32 %v89, %v99
  %v160 = vsub.f32 %v90, %v99
  %v161 = vsub.f32 %v91, %v99
  %v162 = vsub.f32 %v92, %v99
  %v163 = vsub.f32 %v93, %v99
  %v164 = vsub.f32 %v94, %v99
  %v166 = vlaneseq
  %v167 = vshrl.u32 %v166, 7
  %v168 = vsub.s32 0, %v167
  %v169 = vrot.slane %v30, %v168
  %v171 = vmul.f32 %v101, %v169
  %v172 = vmul.f32 %v102, %v169
  %v173 = vmul.f32 %v103, %v169
  %v174 = vmul.f32 %v104, %v169
  %v175 = vmul.f32 %v105, %v169
  %v176 = vmul.f32 %v106, %v169
  %v177 = vmul.f32 %v107, %v169
  %v178 = vmul.f32 %v108, %v169
  %v179 = vmul.f32 %v109, %v169
  %v180 = vmul.f32 %v110, %v169
  %v181 = vmul.f32 %v111, %v169
  %v182 = vmul.f32 %v112, %v169
  %v183 = vmul.f32 %v113, %v169
  %v184 = vmul.f32 %v114, %v169
  %v185 = vmul.f32 %v115, %v169
  %v186 = vmul.f32 %v116, %v169
  %v187 = vmul.f32 %v117, %v169
  %v188 = vmul.f32 %v118, %v169
  %v189 = vmul.f32 %v119, %v169
  %v190 = vmul.f32 %v120, %v169
  %v191 = vmul.f32 %v121, %v169
  %v192 = vmul.f32 %v122, %v169
  %v193 = vmul.f32 %v123, %v169
  %v194 = vmul.f32 %v124, %v169
  %v195 = vmul.f32 %v125, %v169
  %v196 = vmul.f32 %v126, %v169
  %v197 = vmul.f32 %v127, %v169
  %v198 = vmul.f32 %v128, %v169
  %v199 = vmul.f32 %v129, %v169
  %v200 = vmul.f32 %v130, %v169
  %v201 = vmul.f32 %v131, %v169
  %v202 = vmul.f32 %v132, %v169
  %v203 = vmul.f32 %v133, %v169
  %v204 = vmul.f32 %v134, %v169
  %v205 = vmul.f32 %v135, %v169
  %v206 = vmul.f32 %v136, %v169
  %v207 = vmul.f32 %v137, %v169
  %v208 = vmul.f32 %v138, %v169
  %v209 = vmul.f32 %v139, %v169
  %v210 = vmul.f32 %v140, %v169
  %v211 = vmul.f32 %v141, %v169
  %v212 = vmul.f32 %v142, %v169
  %v213 = vmul.f32 %v143, %v169
  %v214 = vmul.f32 %v144, %v169
  %v215 = vmul.f32 %v145, %v169
  %v216 = vmul.f32 %v146, %v169
  %v217 = vmul.f32 %v147, %v169
  %v218 = vmul.f32 %v148, %v169
  %v219 = vmul.f32 %v149, %v169
  %v220 = vmul.f32 %v150, %v169
  %v221 = vmul.f32 %v151, %v169
  %v222 = vmul.f32 %v152, %v169
  %v223 = vmul.f32 %v153, %v169
  %v224 = vmul.f32 %v154, %v169
  %v225 = vmul.f32 %v155, %v169
  %v226 = vmul.f32 %v156, %v169
  %v227 = vmul.f32 %v157, %v169
  %v228 = vmul.f32 %v158, %v169
  %v229 = vmul.f32 %v159, %v169
  %v230 = vmul.f32 %v160, %v169
  %v231 = vmul.f32 %v161, %v169
  %v232 = vmul.f32 %v162, %v169
  %v233 = vmul.f32 %v163, %v169
  %v234 = vmul.f32 %v164, %v169
  %v235 = vld [vmem:[%s4] sm:$0x1]
  %v237 = vlaneseq
  %v238 = vshrl.u32 %v237, 7
  %v239 = vsub.s32 0, %v238
  %v240 = vrot.slane %v235, %v239
  %v242 = vadd.f32 %v171, %v240
  %v243 = vadd.f32 %v172, %v240
  %v244 = vadd.f32 %v173, %v240
  %v245 = vadd.f32 %v174, %v240
  %v246 = vadd.f32 %v175, %v240
  %v247 = vadd.f32 %v176, %v240
  %v248 = vadd.f32 %v177, %v240
  %v249 = vadd.f32 %v178, %v240
  %v250 = vadd.f32 %v179, %v240
  %v251 = vadd.f32 %v180, %v240
  %v252 = vadd.f32 %v181, %v240
  %v253 = vadd.f32 %v182, %v240
  %v254 = vadd.f32 %v183, %v240
  %v255 = vadd.f32 %v184, %v240
  %v256 = vadd.f32 %v185, %v240
  %v257 = vadd.f32 %v186, %v240
  %v258 = vadd.f32 %v187, %v240
  %v259 = vadd.f32 %v188, %v240
  %v260 = vadd.f32 %v189, %v240
  %v261 = vadd.f32 %v190, %v240
  %v262 = vadd.f32 %v191, %v240
  %v263 = vadd.f32 %v192, %v240
  %v264 = vadd.f32 %v193, %v240
  %v265 = vadd.f32 %v194, %v240
  %v266 = vadd.f32 %v195, %v240
  %v267 = vadd.f32 %v196, %v240
  %v268 = vadd.f32 %v197, %v240
  %v269 = vadd.f32 %v198, %v240
  %v270 = vadd.f32 %v199, %v240
  %v271 = vadd.f32 %v200, %v240
  %v272 = vadd.f32 %v201, %v240
  %v273 = vadd.f32 %v202, %v240
  %v274 = vadd.f32 %v203, %v240
  %v275 = vadd.f32 %v204, %v240
  %v276 = vadd.f32 %v205, %v240
  %v277 = vadd.f32 %v206, %v240
  %v278 = vadd.f32 %v207, %v240
  %v279 = vadd.f32 %v208, %v240
  %v280 = vadd.f32 %v209, %v240
  %v281 = vadd.f32 %v210, %v240
  %v282 = vadd.f32 %v211, %v240
  %v283 = vadd.f32 %v212, %v240
  %v284 = vadd.f32 %v213, %v240
  %v285 = vadd.f32 %v214, %v240
  %v286 = vadd.f32 %v215, %v240
  %v287 = vadd.f32 %v216, %v240
  %v288 = vadd.f32 %v217, %v240
  %v289 = vadd.f32 %v218, %v240
  %v290 = vadd.f32 %v219, %v240
  %v291 = vadd.f32 %v220, %v240
  %v292 = vadd.f32 %v221, %v240
  %v293 = vadd.f32 %v222, %v240
  %v294 = vadd.f32 %v223, %v240
  %v295 = vadd.f32 %v224, %v240
  %v296 = vadd.f32 %v225, %v240
  %v297 = vadd.f32 %v226, %v240
  %v298 = vadd.f32 %v227, %v240
  %v299 = vadd.f32 %v228, %v240
  %v300 = vadd.f32 %v229, %v240
  %v301 = vadd.f32 %v230, %v240
  %v302 = vadd.f32 %v231, %v240
  %v303 = vadd.f32 %v232, %v240
  %v304 = vadd.f32 %v233, %v240
  %v305 = vadd.f32 %v234, %v240
  %306 = vst [vmem:[%s5] sm:$0xff] %v242
  %307 = vst [vmem:[%s5 + $0x8] sm:$0xff] %v243
  %308 = vst [vmem:[%s5 + $0x10] sm:$0xff] %v244
  %309 = vst [vmem:[%s5 + $0x18] sm:$0xff] %v245
  %310 = vst [vmem:[%s5 + $0x20] sm:$0xff] %v246
  %311 = vst [vmem:[%s5 + $0x28] sm:$0xff] %v247
  %312 = vst [vmem:[%s5 + $0x30] sm:$0xff] %v248
  %313 = vst [vmem:[%s5 + $0x38] sm:$0xff] %v249
  %314 = vst [vmem:[%s5 + $0x40] sm:$0xff] %v250
  %315 = vst [vmem:[%s5 + $0x48] sm:$0xff] %v251
  %316 = vst [vmem:[%s5 + $0x50] sm:$0xff] %v252
  %317 = vst [vmem:[%s5 + $0x58] sm:$0xff] %v253
  %318 = vst [vmem:[%s5 + $0x60] sm:$0xff] %v254
  %319 = vst [vmem:[%s5 + $0x68] sm:$0xff] %v255
  %320 = vst [vmem:[%s5 + $0x70] sm:$0xff] %v256
  %321 = vst [vmem:[%s5 + $0x78] sm:$0xff] %v257
  %322 = vst [vmem:[%s5 + $0x80] sm:$0xff] %v258
  %323 = vst [vmem:[%s5 + $0x88] sm:$0xff] %v259
  %324 = vst [vmem:[%s5 + $0x90] sm:$0xff] %v260
  %325 = vst [vmem:[%s5 + $0x98] sm:$0xff] %v261
  %326 = vst [vmem:[%s5 + $0xa0] sm:$0xff] %v262
  %327 = vst [vmem:[%s5 + $0xa8] sm:$0xff] %v263
  %328 = vst [vmem:[%s5 + $0xb0] sm:$0xff] %v264
  %329 = vst [vmem:[%s5 + $0xb8] sm:$0xff] %v265
  %330 = vst [vmem:[%s5 + $0xc0] sm:$0xff] %v266
  %331 = vst [vmem:[%s5 + $0xc8] sm:$0xff] %v267
  %332 = vst [vmem:[%s5 + $0xd0] sm:$0xff] %v268
  %333 = vst [vmem:[%s5 + $0xd8] sm:$0xff] %v269
  %334 = vst [vmem:[%s5 + $0xe0] sm:$0xff] %v270
  %335 = vst [vmem:[%s5 + $0xe8] sm:$0xff] %v271
  %336 = vst [vmem:[%s5 + $0xf0] sm:$0xff] %v272
  %337 = vst [vmem:[%s5 + $0xf8] sm:$0xff] %v273
  %338 = vst [vmem:[%s5 + $0x100] sm:$0xff] %v274
  %339 = vst [vmem:[%s5 + $0x108] sm:$0xff] %v275
  %340 = vst [vmem:[%s5 + $0x110] sm:$0xff] %v276
  %341 = vst [vmem:[%s5 + $0x118] sm:$0xff] %v277
  %342 = vst [vmem:[%s5 + $0x120] sm:$0xff] %v278
  %343 = vst [vmem:[%s5 + $0x128] sm:$0xff] %v279
  %344 = vst [vmem:[%s5 + $0x130] sm:$0xff] %v280
  %345 = vst [vmem:[%s5 + $0x138] sm:$0xff] %v281
  %346 = vst [vmem:[%s5 + $0x140] sm:$0xff] %v282
  %347 = vst [vmem:[%s5 + $0x148] sm:$0xff] %v283
  %348 = vst [vmem:[%s5 + $0x150] sm:$0xff] %v284
  %349 = vst [vmem:[%s5 + $0x158] sm:$0xff] %v285
  %350 = vst [vmem:[%s5 + $0x160] sm:$0xff] %v286
  %351 = vst [vmem:[%s5 + $0x168] sm:$0xff] %v287
  %352 = vst [vmem:[%s5 + $0x170] sm:$0xff] %v288
  %353 = vst [vmem:[%s5 + $0x178] sm:$0xff] %v289
  %354 = vst [vmem:[%s5 + $0x180] sm:$0xff] %v290
  %355 = vst [vmem:[%s5 + $0x188] sm:$0xff] %v291
  %356 = vst [vmem:[%s5 + $0x190] sm:$0xff] %v292
  %357 = vst [vmem:[%s5 + $0x198] sm:$0xff] %v293
  %358 = vst [vmem:[%s5 + $0x1a0] sm:$0xff] %v294
  %359 = vst [vmem:[%s5 + $0x1a8] sm:$0xff] %v295
  %360 = vst [vmem:[%s5 + $0x1b0] sm:$0xff] %v296
  %361 = vst [vmem:[%s5 + $0x1b8] sm:$0xff] %v297
  %362 = vst [vmem:[%s5 + $0x1c0] sm:$0xff] %v298
  %363 = vst [vmem:[%s5 + $0x1c8] sm:$0xff] %v299
  %364 = vst [vmem:[%s5 + $0x1d0] sm:$0xff] %v300
  %365 = vst [vmem:[%s5 + $0x1d8] sm:$0xff] %v301
  %366 = vst [vmem:[%s5 + $0x1e0] sm:$0xff] %v302
  %367 = vst [vmem:[%s5 + $0x1e8] sm:$0xff] %v303
  %368 = vst [vmem:[%s5 + $0x1f0] sm:$0xff] %v304
  %369 = vst [vmem:[%s5 + $0x1f8] sm:$0xff] %v305
  // Predicated region
  $region22: #{_lambda_.46} parent=0 // pred_check
    _
  $region23: #{_lambda_.46} parent=0 // pred_check_branch
    %371 = sbr.rel (0) target = $region25
  $region24: #{_lambda_.46} parent=0 // pred_region
    _
  $region25: #{_lambda_.46} parent=0 // pred_fallthru
    _
  // Predicated region
  $region26: #{_lambda_.46} parent=0 // pred_check
    _
  $region27: #{_lambda_.46} parent=0 // pred_check_branch
    %373 = sbr.rel (0) target = $region29
  $region28: #{_lambda_.46} parent=0 // pred_region
    _
  $region29: #{_lambda_.46} parent=0 // pred_fallthru
    _

// kernel: _lambda_.47
$region0: #{_lambda_.47}
  #allocation0 [shape = 'u32[]', space=smem, size = 0x4, offset = 0x4, fixed_abs, tag = 'smem constant byte address 0x4 - core index']
  #allocation1 [shape = 'u32[144,128]{1,0:T(1,128)}', space=vmem, size = 0x12000, scoped, tag = 'internal scratch']
  #allocation2 [shape = 'f32[512,128]{1,0:T(8,128)}', space=vmem, size = 0x40000, scoped, tag = 'scratch operand']
  %s0 = inlined_call_operand.vmem [shape: bf16[4,512,64], index: 0, kind: input, shape index: {}]
  %s1 = inlined_call_operand.vmem [shape: bf16[4,64,128], index: 1, kind: input, shape index: {}]
  %s2 = inlined_call_operand.vmem [shape: f32[1,128], index: 2, kind: input, shape index: {}]
  %s3 = inlined_call_operand.vmem [shape: f32[4,512,128], index: 3, kind: output, shape index: {}]
  %s4 = sld [smem:[#allocation0]]
  $region53: #{_lambda_.47} parent=0
    _
  %s6 = ssub.s32 1, %s4
  %s7 = scalar_select 0, %s6, %s4
  loop: start=0, step=1, limit=6
  $region2: #{_lambda_.47} parent=0 // loop_pre_header
    _
  $region3: #{_lambda_.47} parent=0 // loop_header
    %s9 = sphi 0, %s13
    %p10 = scmp.ge.s32.totalorder %s9, 6
    %s16 = sphi 0, %s35
    %s17 = sphi 0, %s31
    %s18 = sphi 0, %s27
    %s19 = sphi 0, %s16
    %s20 = sphi 0, %s17
    %s21 = sphi 0, %s18
    %s22 = sphi 0, %s19
    %s23 = sphi 0, %s20
    %s24 = sphi 0, %s21
    %s42 = sphi 0, %s44
    %s45 = sphi 0, %s42
    %s46 = sphi 0, %s45
    %s62 = sphi 0, %s46
    %s70 = sphi 0, %s72
    %s73 = sphi 0, %s70
    %s74 = sphi 0, %s73
    %s90 = sphi 0, %s74
    %s94 = sphi 0, %s94
    %s96 = sphi 0, %s94
    %s97 = sphi 0, %s96
    %s111 = sphi 0, %s97
    %s119 = sphi 0, %s121
    %s122 = sphi 0, %s119
    %s123 = sphi 0, %s122
    %s139 = sphi 0, %s123
  $region4: #{_lambda_.47} parent=0 // loop_header_branch
    %12 = sbr.rel (%p10) target = $region8
  $region5: #{_lambda_.47} parent=0 // loop_body
    %s14 = ssub.s32 %s9, 1
    %s15 = ssub.s32 %s9, 2
    %s25 = sadd.s32 1, %s18
    %p26 = scmp.ge.s32.totalorder %s25, 1
    %s27 = scalar_select %p26, 0, %s25
    %s28 = sadd.s32 1, %s17
    %s29 = scalar_select %p26, %s28, %s17
    %p30 = scmp.ge.s32.totalorder %s29, 1
    %s31 = scalar_select %p30, 0, %s29
    %s32 = sadd.s32 1, %s16
    %s33 = scalar_select %p30, %s32, %s16
    %p34 = scmp.ge.s32.totalorder %s33, 4
    %s35 = scalar_select %p34, 0, %s33
    %s36 = ssub.s32 %s16, %s35
    %s37 = ssub.s32 %s17, %s31
    %s38 = sor.u32 %s36, %s37
    %s39 = ssub.s32 %s18, %s27
    %s40 = sor.u32 %s38, %s39
    %p41 = scmp.eq.s32.totalorder %s40, 0
    %s43 = sadd.s32 %s42, 1
    %s44 = scalar_select %p41, %s42, %s43
    %p47 = pneg %p41
    %p48 = scmp.eq.s32.totalorder %s9, 3
    %p49 = por %p47, %p48
    %p50 = scmp.ne.s32.totalorder %s42, %s45
    %p51 = scmp.eq.s32.totalorder %s9, 0
    %p52 = por %p50, %p51
    %p53 = scmp.ne.s32.totalorder %s42, %s45
    %p54 = scmp.eq.s32.totalorder %s14, 3
    %p55 = por %p53, %p54
    %p56 = scmp.ne.s32.totalorder %s45, %s46
    %p57 = scmp.eq.s32.totalorder %s14, 0
    %p58 = por %p56, %p57
    %p59 = scmp.ne.s32.totalorder %s45, %s46
    %p60 = scmp.eq.s32.totalorder %s15, 3
    %p61 = por %p59, %p60
    %p63 = scmp.ne.s32.totalorder %s46, %s62
    %p64 = scmp.eq.s32.totalorder %s15, 0
    %p65 = por %p63, %p64
    %s66 = ssub.s32 %s16, %s35
    %s67 = ssub.s32 %s18, %s27
    %s68 = sor.u32 %s66, %s67
    %p69 = scmp.eq.s32.totalorder %s68, 0
    %s71 = sadd.s32 %s70, 1
    %s72 = scalar_select %p69, %s70, %s71
    %p75 = pneg %p69
    %p76 = scmp.eq.s32.totalorder %s9, 3
    %p77 = por %p75, %p76
    %p78 = scmp.ne.s32.totalorder %s70, %s73
    %p79 = scmp.eq.s32.totalorder %s9, 0
    %p80 = por %p78, %p79
    %p81 = scmp.ne.s32.totalorder %s70, %s73
    %p82 = scmp.eq.s32.totalorder %s14, 3
    %p83 = por %p81, %p82
    %p84 = scmp.ne.s32.totalorder %s73, %s74
    %p85 = scmp.eq.s32.totalorder %s14, 0
    %p86 = por %p84, %p85
    %p87 = scmp.ne.s32.totalorder %s73, %s74
    %p88 = scmp.eq.s32.totalorder %s15, 3
    %p89 = por %p87, %p88
    %p91 = scmp.ne.s32.totalorder %s74, %s90
    %p92 = scmp.eq.s32.totalorder %s15, 0
    %p93 = por %p91, %p92
    %s95 = sadd.s32 %s94, 1
    %p98 = scmp.eq.s32.totalorder %s9, 3
    %p99 = scmp.ne.s32.totalorder %s94, %s96
    %p100 = scmp.eq.s32.totalorder %s9, 0
    %p101 = por %p99, %p100
    %p102 = scmp.ne.s32.totalorder %s94, %s96
    %p103 = scmp.eq.s32.totalorder %s14, 3
    %p104 = por %p102, %p103
    %p105 = scmp.ne.s32.totalorder %s96, %s97
    %p106 = scmp.eq.s32.totalorder %s14, 0
    %p107 = por %p105, %p106
    %p108 = scmp.ne.s32.totalorder %s96, %s97
    %p109 = scmp.eq.s32.totalorder %s15, 3
    %p110 = por %p108, %p109
    %p112 = scmp.ne.s32.totalorder %s97, %s111
    %p113 = scmp.eq.s32.totalorder %s15, 0
    %p114 = por %p112, %p113
    %s115 = ssub.s32 %s16, %s35
    %s116 = ssub.s32 %s17, %s31
    %s117 = sor.u32 %s115, %s116
    %p118 = scmp.eq.s32.totalorder %s117, 0
    %s120 = sadd.s32 %s119, 1
    %s121 = scalar_select %p118, %s119, %s120
    %p124 = pneg %p118
    %p125 = scmp.eq.s32.totalorder %s9, 3
    %p126 = por %p124, %p125
    %p127 = scmp.ne.s32.totalorder %s119, %s122
    %p128 = scmp.eq.s32.totalorder %s9, 0
    %p129 = por %p127, %p128
    %p130 = scmp.ne.s32.totalorder %s119, %s122
    %p131 = scmp.eq.s32.totalorder %s14, 3
    %p132 = por %p130, %p131
    %p133 = scmp.ne.s32.totalorder %s122, %s123
    %p134 = scmp.eq.s32.totalorder %s14, 0
    %p135 = por %p133, %p134
    %p136 = scmp.ne.s32.totalorder %s122, %s123
    %p137 = scmp.eq.s32.totalorder %s15, 3
    %p138 = por %p136, %p137
    %p140 = scmp.ne.s32.totalorder %s123, %s139
    %p141 = scmp.eq.s32.totalorder %s15, 0
    %p142 = por %p140, %p141
    %p143 = scmp.le.s32.totalorder 1, %s9
    %p144 = scmp.lt.s32.totalorder %s9, 5
    %p145 = pnand %p143, %p144
    %p146 = pneg %p145
    // Predicated region
    $region9: #{_lambda_.47} parent=5 // pred_check
      _
    $region10: #{_lambda_.47} parent=5 // pred_check_branch
      %148 = sbr.rel (%p145) target = $region12
    $region11: #{_lambda_.47} parent=5 // pred_region
      %s149 = ssub.s32 %s9, 1
      // Predicated region
      $region13: #{_lambda_.47} parent=11 // pred_check
        %p150 = pneg %p107
      $region14: #{_lambda_.47} parent=11 // pred_check_branch
        %152 = sbr.rel (%p150) target = $region16
      $region15: #{_lambda_.47} parent=11 // pred_region
        _
      $region16: #{_lambda_.47} parent=11 // pred_fallthru
        _
    $region12: #{_lambda_.47} parent=5 // pred_fallthru
      _
    %p153 = scmp.lt.s32.totalorder %s9, 4
    // Predicated region
    $region17: #{_lambda_.47} parent=5 // pred_check
      %p154 = pneg %p153
    $region18: #{_lambda_.47} parent=5 // pred_check_branch
      %156 = sbr.rel (%p154) target = $region20
    $region19: #{_lambda_.47} parent=5 // pred_region
      // Predicated region
      $region21: #{_lambda_.47} parent=19 // pred_check
        %p157 = pneg %p52
      $region22: #{_lambda_.47} parent=19 // pred_check_branch
        %159 = sbr.rel (%p157) target = $region24
      $region23: #{_lambda_.47} parent=19 // pred_region
        %s160 = smul.u32 64, %s17
        %p161 = scmp.lt.s32.totalorder %s16, 3
        %s162 = scalar_select %p161, %s16, 3
        %p163 = scmp.lt.s32.totalorder %s160, 63
        %s164 = scalar_select %p163, %s160, 63
        %p165 = scmp.lt.s32.totalorder %s18, 0
        %s166 = scalar_select %p165, %s18, 0
        %s167 = sadd.s32 %s166, %s164
        %s168 = smul.addr %s162, 64
        %s169 = sadd.s32 %s167, %s168
        %s170 = smul.addr %s169, 4
        %s171 = scalar_lea.vmem %s0, %s170
        %s172 = smul.u32 64, %s17
      $region24: #{_lambda_.47} parent=19 // pred_fallthru
        _
      // Predicated region
      $region25: #{_lambda_.47} parent=19 // pred_check
        %p173 = pneg %p80
      $region26: #{_lambda_.47} parent=19 // pred_check_branch
        %175 = sbr.rel (%p173) target = $region28
      $region27: #{_lambda_.47} parent=19 // pred_region
        %s176 = smul.u32 8, %s18
        %p177 = scmp.lt.s32.totalorder %s16, 3
        %s178 = scalar_select %p177, %s16, 3
        %p179 = scmp.lt.s32.totalorder %s176, 7
        %s180 = scalar_select %p179, %s176, 7
        %s181 = smul.addr %s178, 8
        %s182 = sadd.s32 %s180, %s181
        %s183 = smul.addr %s182, 4
        %s184 = scalar_lea.vmem %s1, %s183
        %s185 = smul.u32 8, %s18
      $region28: #{_lambda_.47} parent=19 // pred_fallthru
        _
    $region20: #{_lambda_.47} parent=5 // pred_fallthru
      _
    %p186 = scmp.le.s32.totalorder 1, %s9
    %p187 = scmp.lt.s32.totalorder %s9, 5
    %p188 = pnand %p186, %p187
    %p189 = pneg %p188
    // Predicated region
    $region29: #{_lambda_.47} parent=5 // pred_check
      _
    $region30: #{_lambda_.47} parent=5 // pred_check_branch
      %191 = sbr.rel (%p188) target = $region32
    $region31: #{_lambda_.47} parent=5 // pred_region
      %s192 = ssub.s32 %s9, 1
      %s193 = smul.u32 64, %s20
      %p194 = scmp.lt.s32.totalorder %s19, 3
      %s195 = scalar_select %p194, %s19, 3
      %p196 = scmp.lt.s32.totalorder %s193, 63
      %s197 = scalar_select %p196, %s193, 63
      %p198 = scmp.lt.s32.totalorder %s21, 0
      %s199 = scalar_select %p198, %s21, 0
      %s200 = sadd.s32 %s199, %s197
      %s201 = smul.addr %s195, 64
      %s202 = sadd.s32 %s200, %s201
      %s203 = smul.addr %s202, 4
      %s204 = scalar_lea.vmem %s0, %s203
      %p205 = pneg %p58
      %p206 = pneg %p55
      %s207 = smul.u32 8, %s21
      %p208 = scmp.lt.s32.totalorder %s19, 3
      %s209 = scalar_select %p208, %s19, 3
      %p210 = scmp.lt.s32.totalorder %s207, 7
      %s211 = scalar_select %p210, %s207, 7
      %s212 = smul.addr %s209, 8
      %s213 = sadd.s32 %s211, %s212
      %s214 = smul.addr %s213, 4
      %s215 = scalar_lea.vmem %s1, %s214
      %p216 = pneg %p86
      %p217 = pneg %p83
      %p218 = pneg %p107
      %p219 = pneg %p104
      %p220 = pneg %p135
      %p221 = pneg %p132
      %s222 = smul.u32 64, %s20
      %p223 = scmp.lt.s32.totalorder %s19, 3
      %s224 = scalar_select %p223, %s19, 3
      %p225 = scmp.lt.s32.totalorder %s222, 63
      %s226 = scalar_select %p225, %s222, 63
      %s227 = smul.addr %s224, 64
      %s228 = sadd.s32 %s226, %s227
      %s229 = smul.addr %s228, 8
      %s230 = scalar_lea.vmem %s3, %s229
      %s231 = smul.u32 64, %s20
      %p232 = scmp.lt.s32.totalorder %s19, 3
      %s233 = scalar_select %p232, %s19, 3
      %p234 = scmp.lt.s32.totalorder %s231, 63
      %s235 = scalar_select %p234, %s231, 63
      %p236 = scmp.lt.s32.totalorder %s21, 0
      %s237 = scalar_select %p236, %s21, 0
      %s238 = sadd.s32 %s237, %s235
      %s239 = smul.addr %s233, 64
      %s240 = sadd.s32 %s238, %s239
      %s241 = smul.addr %s240, 4
      %s242 = scalar_lea.vmem %s0, %s241
      %s243 = smul.u32 64, %s20
      %s244 = smul.u32 8, %s21
      %p245 = scmp.lt.s32.totalorder %s19, 3
      %s246 = scalar_select %p245, %s19, 3
      %p247 = scmp.lt.s32.totalorder %s244, 7
      %s248 = scalar_select %p247, %s244, 7
      %s249 = smul.addr %s246, 8
      %s250 = sadd.s32 %s248, %s249
      %s251 = smul.addr %s250, 4
      %s252 = scalar_lea.vmem %s1, %s251
      %s253 = smul.u32 8, %s21
      %s254 = smul.u32 64, %s20
      %p255 = scmp.lt.s32.totalorder %s19, 3
      %s256 = scalar_select %p255, %s19, 3
      %p257 = scmp.lt.s32.totalorder %s254, 63
      %s258 = scalar_select %p257, %s254, 63
      %s259 = smul.addr %s256, 64
      %s260 = sadd.s32 %s258, %s259
      %s261 = smul.addr %s260, 8
      %s262 = scalar_lea.vmem %s3, %s261
      %s263 = smul.u32 64, %s20
      %p265 = scmp.eq.s32.totalorder %s21, 0
      // Predicated region
      $region33: #{_lambda_.47} parent=31 // pred_check
        %p266 = pneg %p265
      $region34: #{_lambda_.47} parent=31 // pred_check_branch
        %268 = sbr.rel (%p266) target = $region36
      $region35: #{_lambda_.47} parent=31 // pred_region
        %269 = vst [vmem:[#allocation2] sm:$0xff] 0.0
        %270 = vst [vmem:[#allocation2 + $0x8] sm:$0xff] 0.0
        %271 = vst [vmem:[#allocation2 + $0x10] sm:$0xff] 0.0
        %272 = vst [vmem:[#allocation2 + $0x18] sm:$0xff] 0.0
        %273 = vst [vmem:[#allocation2 + $0x20] sm:$0xff] 0.0
        %274 = vst [vmem:[#allocation2 + $0x28] sm:$0xff] 0.0
        %275 = vst [vmem:[#allocation2 + $0x30] sm:$0xff] 0.0
        %276 = vst [vmem:[#allocation2 + $0x38] sm:$0xff] 0.0
        %277 = vst [vmem:[#allocation2 + $0x40] sm:$0xff] 0.0
        %278 = vst [vmem:[#allocation2 + $0x48] sm:$0xff] 0.0
        %279 = vst [vmem:[#allocation2 + $0x50] sm:$0xff] 0.0
        %280 = vst [vmem:[#allocation2 + $0x58] sm:$0xff] 0.0
        %281 = vst [vmem:[#allocation2 + $0x60] sm:$0xff] 0.0
        %282 = vst [vmem:[#allocation2 + $0x68] sm:$0xff] 0.0
        %283 = vst [vmem:[#allocation2 + $0x70] sm:$0xff] 0.0
        %284 = vst [vmem:[#allocation2 + $0x78] sm:$0xff] 0.0
        %285 = vst [vmem:[#allocation2 + $0x80] sm:$0xff] 0.0
        %286 = vst [vmem:[#allocation2 + $0x88] sm:$0xff] 0.0
        %287 = vst [vmem:[#allocation2 + $0x90] sm:$0xff] 0.0
        %288 = vst [vmem:[#allocation2 + $0x98] sm:$0xff] 0.0
        %289 = vst [vmem:[#allocation2 + $0xa0] sm:$0xff] 0.0
        %290 = vst [vmem:[#allocation2 + $0xa8] sm:$0xff] 0.0
        %291 = vst [vmem:[#allocation2 + $0xb0] sm:$0xff] 0.0
        %292 = vst [vmem:[#allocation2 + $0xb8] sm:$0xff] 0.0
        %293 = vst [vmem:[#allocation2 + $0xc0] sm:$0xff] 0.0
        %294 = vst [vmem:[#allocation2 + $0xc8] sm:$0xff] 0.0
        %295 = vst [vmem:[#allocation2 + $0xd0] sm:$0xff] 0.0
        %296 = vst [vmem:[#allocation2 + $0xd8] sm:$0xff] 0.0
        %297 = vst [vmem:[#allocation2 + $0xe0] sm:$0xff] 0.0
        %298 = vst [vmem:[#allocation2 + $0xe8] sm:$0xff] 0.0
        %299 = vst [vmem:[#allocation2 + $0xf0] sm:$0xff] 0.0
        %300 = vst [vmem:[#allocation2 + $0xf8] sm:$0xff] 0.0
        %301 = vst [vmem:[#allocation2 + $0x100] sm:$0xff] 0.0
        %302 = vst [vmem:[#allocation2 + $0x108] sm:$0xff] 0.0
        %303 = vst [vmem:[#allocation2 + $0x110] sm:$0xff] 0.0
        %304 = vst [vmem:[#allocation2 + $0x118] sm:$0xff] 0.0
        %305 = vst [vmem:[#allocation2 + $0x120] sm:$0xff] 0.0
        %306 = vst [vmem:[#allocation2 + $0x128] sm:$0xff] 0.0
        %307 = vst [vmem:[#allocation2 + $0x130] sm:$0xff] 0.0
        %308 = vst [vmem:[#allocation2 + $0x138] sm:$0xff] 0.0
        %309 = vst [vmem:[#allocation2 + $0x140] sm:$0xff] 0.0
        %310 = vst [vmem:[#allocation2 + $0x148] sm:$0xff] 0.0
        %311 = vst [vmem:[#allocation2 + $0x150] sm:$0xff] 0.0
        %312 = vst [vmem:[#allocation2 + $0x158] sm:$0xff] 0.0
        %313 = vst [vmem:[#allocation2 + $0x160] sm:$0xff] 0.0
        %314 = vst [vmem:[#allocation2 + $0x168] sm:$0xff] 0.0
        %315 = vst [vmem:[#allocation2 + $0x170] sm:$0xff] 0.0
        %316 = vst [vmem:[#allocation2 + $0x178] sm:$0xff] 0.0
        %317 = vst [vmem:[#allocation2 + $0x180] sm:$0xff] 0.0
        %318 = vst [vmem:[#allocation2 + $0x188] sm:$0xff] 0.0
        %319 = vst [vmem:[#allocation2 + $0x190] sm:$0xff] 0.0
        %320 = vst [vmem:[#allocation2 + $0x198] sm:$0xff] 0.0
        %321 = vst [vmem:[#allocation2 + $0x1a0] sm:$0xff] 0.0
        %322 = vst [vmem:[#allocation2 + $0x1a8] sm:$0xff] 0.0
        %323 = vst [vmem:[#allocation2 + $0x1b0] sm:$0xff] 0.0
        %324 = vst [vmem:[#allocation2 + $0x1b8] sm:$0xff] 0.0
        %325 = vst [vmem:[#allocation2 + $0x1c0] sm:$0xff] 0.0
        %326 = vst [vmem:[#allocation2 + $0x1c8] sm:$0xff] 0.0
        %327 = vst [vmem:[#allocation2 + $0x1d0] sm:$0xff] 0.0
        %328 = vst [vmem:[#allocation2 + $0x1d8] sm:$0xff] 0.0
        %329 = vst [vmem:[#allocation2 + $0x1e0] sm:$0xff] 0.0
        %330 = vst [vmem:[#allocation2 + $0x1e8] sm:$0xff] 0.0
        %331 = vst [vmem:[#allocation2 + $0x1f0] sm:$0xff] 0.0
        %332 = vst [vmem:[#allocation2 + $0x1f8] sm:$0xff] 0.0
      $region36: #{_lambda_.47} parent=31 // pred_fallthru
        _
      %v333 = vld [vmem:[#allocation2] sm:$0xff]
      %v334 = vld [vmem:[#allocation2 + $0x8] sm:$0xff]
      %v335 = vld [vmem:[#allocation2 + $0x10] sm:$0xff]
      %v336 = vld [vmem:[#allocation2 + $0x18] sm:$0xff]
      %v337 = vld [vmem:[#allocation2 + $0x20] sm:$0xff]
      %v338 = vld [vmem:[#allocation2 + $0x28] sm:$0xff]
      %v339 = vld [vmem:[#allocation2 + $0x30] sm:$0xff]
      %v340 = vld [vmem:[#allocation2 + $0x38] sm:$0xff]
      %v341 = vld [vmem:[#allocation2 + $0x40] sm:$0xff]
      %v342 = vld [vmem:[#allocation2 + $0x48] sm:$0xff]
      %v343 = vld [vmem:[#allocation2 + $0x50] sm:$0xff]
      %v344 = vld [vmem:[#allocation2 + $0x58] sm:$0xff]
      %v345 = vld [vmem:[#allocation2 + $0x60] sm:$0xff]
      %v346 = vld [vmem:[#allocation2 + $0x68] sm:$0xff]
      %v347 = vld [vmem:[#allocation2 + $0x70] sm:$0xff]
      %v348 = vld [vmem:[#allocation2 + $0x78] sm:$0xff]
      %v349 = vld [vmem:[#allocation2 + $0x80] sm:$0xff]
      %v350 = vld [vmem:[#allocation2 + $0x88] sm:$0xff]
      %v351 = vld [vmem:[#allocation2 + $0x90] sm:$0xff]
      %v352 = vld [vmem:[#allocation2 + $0x98] sm:$0xff]
      %v353 = vld [vmem:[#allocation2 + $0xa0] sm:$0xff]
      %v354 = vld [vmem:[#allocation2 + $0xa8] sm:$0xff]
      %v355 = vld [vmem:[#allocation2 + $0xb0] sm:$0xff]
      %v356 = vld [vmem:[#allocation2 + $0xb8] sm:$0xff]
      %v357 = vld [vmem:[#allocation2 + $0xc0] sm:$0xff]
      %v358 = vld [vmem:[#allocation2 + $0xc8] sm:$0xff]
      %v359 = vld [vmem:[#allocation2 + $0xd0] sm:$0xff]
      %v360 = vld [vmem:[#allocation2 + $0xd8] sm:$0xff]
      %v361 = vld [vmem:[#allocation2 + $0xe0] sm:$0xff]
      %v362 = vld [vmem:[#allocation2 + $0xe8] sm:$0xff]
      %v363 = vld [vmem:[#allocation2 + $0xf0] sm:$0xff]
      %v364 = vld [vmem:[#allocation2 + $0xf8] sm:$0xff]
      %v365 = vld [vmem:[#allocation2 + $0x100] sm:$0xff]
      %v366 = vld [vmem:[#allocation2 + $0x108] sm:$0xff]
      %v367 = vld [vmem:[#allocation2 + $0x110] sm:$0xff]
      %v368 = vld [vmem:[#allocation2 + $0x118] sm:$0xff]
      %v369 = vld [vmem:[#allocation2 + $0x120] sm:$0xff]
      %v370 = vld [vmem:[#allocation2 + $0x128] sm:$0xff]
      %v371 = vld [vmem:[#allocation2 + $0x130] sm:$0xff]
      %v372 = vld [vmem:[#allocation2 + $0x138] sm:$0xff]
      %v373 = vld [vmem:[#allocation2 + $0x140] sm:$0xff]
      %v374 = vld [vmem:[#allocation2 + $0x148] sm:$0xff]
      %v375 = vld [vmem:[#allocation2 + $0x150] sm:$0xff]
      %v376 = vld [vmem:[#allocation2 + $0x158] sm:$0xff]
      %v377 = vld [vmem:[#allocation2 + $0x160] sm:$0xff]
      %v378 = vld [vmem:[#allocation2 + $0x168] sm:$0xff]
      %v379 = vld [vmem:[#allocation2 + $0x170] sm:$0xff]
      %v380 = vld [vmem:[#allocation2 + $0x178] sm:$0xff]
      %v381 = vld [vmem:[#allocation2 + $0x180] sm:$0xff]
      %v382 = vld [vmem:[#allocation2 + $0x188] sm:$0xff]
      %v383 = vld [vmem:[#allocation2 + $0x190] sm:$0xff]
      %v384 = vld [vmem:[#allocation2 + $0x198] sm:$0xff]
      %v385 = vld [vmem:[#allocation2 + $0x1a0] sm:$0xff]
      %v386 = vld [vmem:[#allocation2 + $0x1a8] sm:$0xff]
      %v387 = vld [vmem:[#allocation2 + $0x1b0] sm:$0xff]
      %v388 = vld [vmem:[#allocation2 + $0x1b8] sm:$0xff]
      %v389 = vld [vmem:[#allocation2 + $0x1c0] sm:$0xff]
      %v390 = vld [vmem:[#allocation2 + $0x1c8] sm:$0xff]
      %v391 = vld [vmem:[#allocation2 + $0x1d0] sm:$0xff]
      %v392 = vld [vmem:[#allocation2 + $0x1d8] sm:$0xff]
      %v393 = vld [vmem:[#allocation2 + $0x1e0] sm:$0xff]
      %v394 = vld [vmem:[#allocation2 + $0x1e8] sm:$0xff]
      %v395 = vld [vmem:[#allocation2 + $0x1f0] sm:$0xff]
      %v396 = vld [vmem:[#allocation2 + $0x1f8] sm:$0xff]
      %v397 = vld [vmem:[%s242] sm:$0xf]
      %v398 = vld [vmem:[%s242 + $0x4] sm:$0xf]
      %v399 = vld [vmem:[%s242 + $0x8] sm:$0xf]
      %v400 = vld [vmem:[%s242 + $0xc] sm:$0xf]
      %v401 = vld [vmem:[%s242 + $0x10] sm:$0xf]
      %v402 = vld [vmem:[%s242 + $0x14] sm:$0xf]
      %v403 = vld [vmem:[%s242 + $0x18] sm:$0xf]
      %v404 = vld [vmem:[%s242 + $0x1c] sm:$0xf]
      %v405 = vld [vmem:[%s242 + $0x20] sm:$0xf]
      %v406 = vld [vmem:[%s242 + $0x24] sm:$0xf]
      %v407 = vld [vmem:[%s242 + $0x28] sm:$0xf]
      %v408 = vld [vmem:[%s242 + $0x2c] sm:$0xf]
      %v409 = vld [vmem:[%s242 + $0x30] sm:$0xf]
      %v410 = vld [vmem:[%s242 + $0x34] sm:$0xf]
      %v411 = vld [vmem:[%s242 + $0x38] sm:$0xf]
      %v412 = vld [vmem:[%s242 + $0x3c] sm:$0xf]
      %v413 = vld [vmem:[%s242 + $0x40] sm:$0xf]
      %v414 = vld [vmem:[%s242 + $0x44] sm:$0xf]
      %v415 = vld [vmem:[%s242 + $0x48] sm:$0xf]
      %v416 = vld [vmem:[%s242 + $0x4c] sm:$0xf]
      %v417 = vld [vmem:[%s242 + $0x50] sm:$0xf]
      %v418 = vld [vmem:[%s242 + $0x54] sm:$0xf]
      %v419 = vld [vmem:[%s242 + $0x58] sm:$0xf]
      %v420 = vld [vmem:[%s242 + $0x5c] sm:$0xf]
      %v421 = vld [vmem:[%s242 + $0x60] sm:$0xf]
      %v422 = vld [vmem:[%s242 + $0x64] sm:$0xf]
      %v423 = vld [vmem:[%s242 + $0x68] sm:$0xf]
      %v424 = vld [vmem:[%s242 + $0x6c] sm:$0xf]
      %v425 = vld [vmem:[%s242 + $0x70] sm:$0xf]
      %v426 = vld [vmem:[%s242 + $0x74] sm:$0xf]
      %v427 = vld [vmem:[%s242 + $0x78] sm:$0xf]
      %v428 = vld [vmem:[%s242 + $0x7c] sm:$0xf]
      %v429 = vld [vmem:[%s242 + $0x80] sm:$0xf]
      %v430 = vld [vmem:[%s242 + $0x84] sm:$0xf]
      %v431 = vld [vmem:[%s242 + $0x88] sm:$0xf]
      %v432 = vld [vmem:[%s242 + $0x8c] sm:$0xf]
      %v433 = vld [vmem:[%s242 + $0x90] sm:$0xf]
      %v434 = vld [vmem:[%s242 + $0x94] sm:$0xf]
      %v435 = vld [vmem:[%s242 + $0x98] sm:$0xf]
      %v436 = vld [vmem:[%s242 + $0x9c] sm:$0xf]
      %v437 = vld [vmem:[%s242 + $0xa0] sm:$0xf]
      %v438 = vld [vmem:[%s242 + $0xa4] sm:$0xf]
      %v439 = vld [vmem:[%s242 + $0xa8] sm:$0xf]
      %v440 = vld [vmem:[%s242 + $0xac] sm:$0xf]
      %v441 = vld [vmem:[%s242 + $0xb0] sm:$0xf]
      %v442 = vld [vmem:[%s242 + $0xb4] sm:$0xf]
      %v443 = vld [vmem:[%s242 + $0xb8] sm:$0xf]
      %v444 = vld [vmem:[%s242 + $0xbc] sm:$0xf]
      %v445 = vld [vmem:[%s242 + $0xc0] sm:$0xf]
      %v446 = vld [vmem:[%s242 + $0xc4] sm:$0xf]
      %v447 = vld [vmem:[%s242 + $0xc8] sm:$0xf]
      %v448 = vld [vmem:[%s242 + $0xcc] sm:$0xf]
      %v449 = vld [vmem:[%s242 + $0xd0] sm:$0xf]
      %v450 = vld [vmem:[%s242 + $0xd4] sm:$0xf]
      %v451 = vld [vmem:[%s242 + $0xd8] sm:$0xf]
      %v452 = vld [vmem:[%s242 + $0xdc] sm:$0xf]
      %v453 = vld [vmem:[%s242 + $0xe0] sm:$0xf]
      %v454 = vld [vmem:[%s242 + $0xe4] sm:$0xf]
      %v455 = vld [vmem:[%s242 + $0xe8] sm:$0xf]
      %v456 = vld [vmem:[%s242 + $0xec] sm:$0xf]
      %v457 = vld [vmem:[%s242 + $0xf0] sm:$0xf]
      %v458 = vld [vmem:[%s242 + $0xf4] sm:$0xf]
      %v459 = vld [vmem:[%s242 + $0xf8] sm:$0xf]
      %v460 = vld [vmem:[%s242 + $0xfc] sm:$0xf]
      %v461 = vld [vmem:[%s252] sm:$0xf]
      %v462 = vld [vmem:[%s252 + $0x4] sm:$0xf]
      %v463 = vld [vmem:[%s252 + $0x8] sm:$0xf]
      %v464 = vld [vmem:[%s252 + $0xc] sm:$0xf]
      %v465 = vld [vmem:[%s252 + $0x10] sm:$0xf]
      %v466 = vld [vmem:[%s252 + $0x14] sm:$0xf]
      %v467 = vld [vmem:[%s252 + $0x18] sm:$0xf]
      %v468 = vld [vmem:[%s252 + $0x1c] sm:$0xf]
      %v533 = vunpack.c.l.b16 %v397
      %v534 = vunpack.c.l.b16 %v398
      %v535 = vunpack.c.l.b16 %v399
      %v536 = vunpack.c.l.b16 %v400
      %v537 = vunpack.c.l.b16 %v401
      %v538 = vunpack.c.l.b16 %v402
      %v539 = vunpack.c.l.b16 %v403
      %v540 = vunpack.c.l.b16 %v404
      %v541 = vunpack.c.l.b16 %v405
      %v542 = vunpack.c.l.b16 %v406
      %v543 = vunpack.c.l.b16 %v407
      %v544 = vunpack.c.l.b16 %v408
      %v545 = vunpack.c.l.b16 %v409
      %v546 = vunpack.c.l.b16 %v410
      %v547 = vunpack.c.l.b16 %v411
      %v548 = vunpack.c.l.b16 %v412
      %v549 = vunpack.c.l.b16 %v413
      %v550 = vunpack.c.l.b16 %v414
      %v551 = vunpack.c.l.b16 %v415
      %v552 = vunpack.c.l.b16 %v416
      %v553 = vunpack.c.l.b16 %v417
      %v554 = vunpack.c.l.b16 %v418
      %v555 = vunpack.c.l.b16 %v419
      %v556 = vunpack.c.l.b16 %v420
      %v557 = vunpack.c.l.b16 %v421
      %v558 = vunpack.c.l.b16 %v422
      %v559 = vunpack.c.l.b16 %v423
      %v560 = vunpack.c.l.b16 %v424
      %v561 = vunpack.c.l.b16 %v425
      %v562 = vunpack.c.l.b16 %v426
      %v563 = vunpack.c.l.b16 %v427
      %v564 = vunpack.c.l.b16 %v428
      %v565 = vunpack.c.l.b16 %v429
      %v566 = vunpack.c.l.b16 %v430
      %v567 = vunpack.c.l.b16 %v431
      %v568 = vunpack.c.l.b16 %v432
      %v569 = vunpack.c.l.b16 %v433
      %v570 = vunpack.c.l.b16 %v434
      %v571 = vunpack.c.l.b16 %v435
      %v572 = vunpack.c.l.b16 %v436
      %v573 = vunpack.c.l.b16 %v437
      %v574 = vunpack.c.l.b16 %v438
      %v575 = vunpack.c.l.b16 %v439
      %v576 = vunpack.c.l.b16 %v440
      %v577 = vunpack.c.l.b16 %v441
      %v578 = vunpack.c.l.b16 %v442
      %v579 = vunpack.c.l.b16 %v443
      %v580 = vunpack.c.l.b16 %v444
      %v581 = vunpack.c.l.b16 %v445
      %v582 = vunpack.c.l.b16 %v446
      %v583 = vunpack.c.l.b16 %v447
      %v584 = vunpack.c.l.b16 %v448
      %v585 = vunpack.c.l.b16 %v449
      %v586 = vunpack.c.l.b16 %v450
      %v587 = vunpack.c.l.b16 %v451
      %v588 = vunpack.c.l.b16 %v452
      %v589 = vunpack.c.l.b16 %v453
      %v590 = vunpack.c.l.b16 %v454
      %v591 = vunpack.c.l.b16 %v455
      %v592 = vunpack.c.l.b16 %v456
      %v593 = vunpack.c.l.b16 %v457
      %v594 = vunpack.c.l.b16 %v458
      %v595 = vunpack.c.l.b16 %v459
      %v596 = vunpack.c.l.b16 %v460
      %v597 = vpack.c.b16 %v534, %v533
      %v598 = vpack.c.b16 %v536, %v535
      %v599 = vpack.c.b16 %v538, %v537
      %v600 = vpack.c.b16 %v540, %v539
      %v601 = vpack.c.b16 %v542, %v541
      %v602 = vpack.c.b16 %v544, %v543
      %v603 = vpack.c.b16 %v546, %v545
      %v604 = vpack.c.b16 %v548, %v547
      %v605 = vpack.c.b16 %v550, %v549
      %v606 = vpack.c.b16 %v552, %v551
      %v607 = vpack.c.b16 %v554, %v553
      %v608 = vpack.c.b16 %v556, %v555
      %v609 = vpack.c.b16 %v558, %v557
      %v610 = vpack.c.b16 %v560, %v559
      %v611 = vpack.c.b16 %v562, %v561
      %v612 = vpack.c.b16 %v564, %v563
      %v613 = vpack.c.b16 %v566, %v565
      %v614 = vpack.c.b16 %v568, %v567
      %v615 = vpack.c.b16 %v570, %v569
      %v616 = vpack.c.b16 %v572, %v571
      %v617 = vpack.c.b16 %v574, %v573
      %v618 = vpack.c.b16 %v576, %v575
      %v619 = vpack.c.b16 %v578, %v577
      %v620 = vpack.c.b16 %v580, %v579
      %v621 = vpack.c.b16 %v582, %v581
      %v622 = vpack.c.b16 %v584, %v583
      %v623 = vpack.c.b16 %v586, %v585
      %v624 = vpack.c.b16 %v588, %v587
      %v625 = vpack.c.b16 %v590, %v589
      %v626 = vpack.c.b16 %v592, %v591
      %v627 = vpack.c.b16 %v594, %v593
      %v628 = vpack.c.b16 %v596, %v595
      %v637 = vunpack.c.l.b16 %v461
      %v638 = vunpack.c.l.b16 %v462
      %v639 = vunpack.c.l.b16 %v463
      %v640 = vunpack.c.l.b16 %v464
      %v641 = vunpack.c.l.b16 %v465
      %v642 = vunpack.c.l.b16 %v466
      %v643 = vunpack.c.l.b16 %v467
      %v644 = vunpack.c.l.b16 %v468
      %v645 = vpack.c.b16 %v638, %v637
      %v646 = vpack.c.b16 %v640, %v639
      %v647 = vpack.c.b16 %v642, %v641
      %v648 = vpack.c.b16 %v644, %v643
      %vm653 = vcmask 523264
      %v655 = vsel %vm653, %v597, 0
      %v658 = vsel %vm653, %v598, 0
      %v661 = vsel %vm653, %v599, 0
      %v664 = vsel %vm653, %v600, 0
      %v667 = vsel %vm653, %v601, 0
      %v670 = vsel %vm653, %v602, 0
      %v673 = vsel %vm653, %v603, 0
      %v676 = vsel %vm653, %v604, 0
      %v679 = vsel %vm653, %v605, 0
      %v682 = vsel %vm653, %v606, 0
      %v685 = vsel %vm653, %v607, 0
      %v688 = vsel %vm653, %v608, 0
      %v691 = vsel %vm653, %v609, 0
      %v694 = vsel %vm653, %v610, 0
      %v697 = vsel %vm653, %v611, 0
      %v700 = vsel %vm653, %v612, 0
      %v703 = vsel %vm653, %v613, 0
      %v706 = vsel %vm653, %v614, 0
      %v709 = vsel %vm653, %v615, 0
      %v712 = vsel %vm653, %v616, 0
      %v715 = vsel %vm653, %v617, 0
      %v718 = vsel %vm653, %v618, 0
      %v721 = vsel %vm653, %v619, 0
      %v724 = vsel %vm653, %v620, 0
      %v727 = vsel %vm653, %v621, 0
      %v730 = vsel %vm653, %v622, 0
      %v733 = vsel %vm653, %v623, 0
      %v736 = vsel %vm653, %v624, 0
      %v739 = vsel %vm653, %v625, 0
      %v742 = vsel %vm653, %v626, 0
      %v745 = vsel %vm653, %v627, 0
      %v748 = vsel %vm653, %v628, 0
      %750 = vmatprep.subr.bf16.mxu0 0
      %751 = vmatpush1.bf16.msra.mxu0 %v645
      %752 = vmatprep.subr.bf16.mxu0 0
      %753 = vmatpush1.bf16.msra.mxu0 %v646
      %754 = vmatprep.subr.bf16.mxu0 0
      %755 = vmatpush1.bf16.msra.mxu0 %v647
      %756 = vmatprep.subr.bf16.mxu0 0
      %757 = vmatpush1.bf16.msra.mxu0 %v648
      %758 = vmatprep.subr.bf16.mxu0 0
      %759 = vmatpush1.bf16.msra.mxu0 0
      %760 = vmatprep.subr.bf16.mxu0 0
      %761 = vmatpush1.bf16.msra.mxu0 0
      %762 = vmatprep.subr.bf16.mxu0 0
      %763 = vmatpush1.bf16.msra.mxu0 0
      %764 = vmatprep.subr.bf16.mxu0 0
      %765 = vmatpush1.bf16.msra.mxu0 0
      %766 = vmatprep.subr.bf16.mxu0 0
      %767 = vmatpush1.bf16.msra.mxu0 0
      %768 = vmatprep.subr.bf16.mxu0 0
      %769 = vmatpush1.bf16.msra.mxu0 0
      %770 = vmatprep.subr.bf16.mxu0 0
      %771 = vmatpush1.bf16.msra.mxu0 0
      %772 = vmatprep.subr.bf16.mxu0 0
      %773 = vmatpush1.bf16.msra.mxu0 0
      %774 = vmatprep.subr.bf16.mxu0 0
      %775 = vmatpush1.bf16.msra.mxu0 0
      %776 = vmatprep.subr.bf16.mxu0 0
      %777 = vmatpush1.bf16.msra.mxu0 0
      %778 = vmatprep.subr.bf16.mxu0 0
      %779 = vmatpush1.bf16.msra.mxu0 0
      %780 = vmatprep.subr.bf16.mxu0 0
      %781 = vmatpush1.bf16.msra.mxu0 0
      %782 = vmatprep.mubr.bf16.mxu0 0
      %783 = vmatmul.mubr.bf16.gmra.mrb[0].mxu0 %v655
      %v784 = vpop.f32.mrb[0].mxu0
      %v785 = vadd.f32 0.0, %v784
      %v786 = vpop.f32.mrb[0].mxu0
      %v787 = vpop.f32.mrb[0].mxu0
      %v788 = vadd.f32 0.0, %v787
      %v789 = vpop.f32.mrb[0].mxu0
      %790 = vmatprep.mubr.bf16.mxu0 0
      %791 = vmatmul.mubr.bf16.gmra.mrb[0].mxu0 %v658
      %v792 = vpop.f32.mrb[0].mxu0
      %v793 = vadd.f32 0.0, %v792
      %v794 = vpop.f32.mrb[0].mxu0
      %v795 = vpop.f32.mrb[0].mxu0
      %v796 = vadd.f32 0.0, %v795
      %v797 = vpop.f32.mrb[0].mxu0
      %798 = vmatprep.mubr.bf16.mxu0 0
      %799 = vmatmul.mubr.bf16.gmra.mrb[0].mxu0 %v661
      %v800 = vpop.f32.mrb[0].mxu0
      %v801 = vadd.f32 0.0, %v800
      %v802 = vpop.f32.mrb[0].mxu0
      %v803 = vpop.f32.mrb[0].mxu0
      %v804 = vadd.f32 0.0, %v803
      %v805 = vpop.f32.mrb[0].mxu0
      %806 = vmatprep.mubr.bf16.mxu0 0
      %807 = vmatmul.mubr.bf16.gmra.mrb[0].mxu0 %v664
      %v808 = vpop.f32.mrb[0].mxu0
      %v809 = vadd.f32 0.0, %v808
      %v810 = vpop.f32.mrb[0].mxu0
      %v811 = vpop.f32.mrb[0].mxu0
      %v812 = vadd.f32 0.0, %v811
      %v813 = vpop.f32.mrb[0].mxu0
      %814 = vmatprep.mubr.bf16.mxu0 0
      %815 = vmatmul.mubr.bf16.gmra.mrb[0].mxu0 %v667
      %v816 = vpop.f32.mrb[0].mxu0
      %v817 = vadd.f32 0.0, %v816
      %v818 = vpop.f32.mrb[0].mxu0
      %v819 = vpop.f32.mrb[0].mxu0
      %v820 = vadd.f32 0.0, %v819
      %v821 = vpop.f32.mrb[0].mxu0
      %822 = vmatprep.mubr.bf16.mxu0 0
      %823 = vmatmul.mubr.bf16.gmra.mrb[0].mxu0 %v670
      %v824 = vpop.f32.mrb[0].mxu0
      %v825 = vadd.f32 0.0, %v824
      %v826 = vpop.f32.mrb[0].mxu0
      %v827 = vpop.f32.mrb[0].mxu0
      %v828 = vadd.f32 0.0, %v827
      %v829 = vpop.f32.mrb[0].mxu0
      %830 = vmatprep.mubr.bf16.mxu0 0
      %831 = vmatmul.mubr.bf16.gmra.mrb[0].mxu0 %v673
      %v832 = vpop.f32.mrb[0].mxu0
      %v833 = vadd.f32 0.0, %v832
      %v834 = vpop.f32.mrb[0].mxu0
      %v835 = vpop.f32.mrb[0].mxu0
      %v836 = vadd.f32 0.0, %v835
      %v837 = vpop.f32.mrb[0].mxu0
      %838 = vmatprep.mubr.bf16.mxu0 0
      %839 = vmatmul.mubr.bf16.gmra.mrb[0].mxu0 %v676
      %v840 = vpop.f32.mrb[0].mxu0
      %v841 = vadd.f32 0.0, %v840
      %v842 = vpop.f32.mrb[0].mxu0
      %v843 = vpop.f32.mrb[0].mxu0
      %v844 = vadd.f32 0.0, %v843
      %v845 = vpop.f32.mrb[0].mxu0
      %846 = vmatprep.mubr.bf16.mxu0 0
      %847 = vmatmul.mubr.bf16.gmra.mrb[0].mxu0 %v679
      %v848 = vpop.f32.mrb[0].mxu0
      %v849 = vadd.f32 0.0, %v848
      %v850 = vpop.f32.mrb[0].mxu0
      %v851 = vpop.f32.mrb[0].mxu0
      %v852 = vadd.f32 0.0, %v851
      %v853 = vpop.f32.mrb[0].mxu0
      %854 = vmatprep.mubr.bf16.mxu0 0
      %855 = vmatmul.mubr.bf16.gmra.mrb[0].mxu0 %v682
      %v856 = vpop.f32.mrb[0].mxu0
      %v857 = vadd.f32 0.0, %v856
      %v858 = vpop.f32.mrb[0].mxu0
      %v859 = vpop.f32.mrb[0].mxu0
      %v860 = vadd.f32 0.0, %v859
      %v861 = vpop.f32.mrb[0].mxu0
      %862 = vmatprep.mubr.bf16.mxu0 0
      %863 = vmatmul.mubr.bf16.gmra.mrb[0].mxu0 %v685
      %v864 = vpop.f32.mrb[0].mxu0
      %v865 = vadd.f32 0.0, %v864
      %v866 = vpop.f32.mrb[0].mxu0
      %v867 = vpop.f32.mrb[0].mxu0
      %v868 = vadd.f32 0.0, %v867
      %v869 = vpop.f32.mrb[0].mxu0
      %870 = vmatprep.mubr.bf16.mxu0 0
      %871 = vmatmul.mubr.bf16.gmra.mrb[0].mxu0 %v688
      %v872 = vpop.f32.mrb[0].mxu0
      %v873 = vadd.f32 0.0, %v872
      %v874 = vpop.f32.mrb[0].mxu0
      %v875 = vpop.f32.mrb[0].mxu0
      %v876 = vadd.f32 0.0, %v875
      %v877 = vpop.f32.mrb[0].mxu0
      %878 = vmatprep.mubr.bf16.mxu0 0
      %879 = vmatmul.mubr.bf16.gmra.mrb[0].mxu0 %v691
      %v880 = vpop.f32.mrb[0].mxu0
      %v881 = vadd.f32 0.0, %v880
      %v882 = vpop.f32.mrb[0].mxu0
      %v883 = vpop.f32.mrb[0].mxu0
      %v884 = vadd.f32 0.0, %v883
      %v885 = vpop.f32.mrb[0].mxu0
      %886 = vmatprep.mubr.bf16.mxu0 0
      %887 = vmatmul.mubr.bf16.gmra.mrb[0].mxu0 %v694
      %v888 = vpop.f32.mrb[0].mxu0
      %v889 = vadd.f32 0.0, %v888
      %v890 = vpop.f32.mrb[0].mxu0
      %v891 = vpop.f32.mrb[0].mxu0
      %v892 = vadd.f32 0.0, %v891
      %v893 = vpop.f32.mrb[0].mxu0
      %894 = vmatprep.mubr.bf16.mxu0 0
      %895 = vmatmul.mubr.bf16.gmra.mrb[0].mxu0 %v697
      %v896 = vpop.f32.mrb[0].mxu0
      %v897 = vadd.f32 0.0, %v896
      %v898 = vpop.f32.mrb[0].mxu0
      %v899 = vpop.f32.mrb[0].mxu0
      %v900 = vadd.f32 0.0, %v899
      %v901 = vpop.f32.mrb[0].mxu0
      %902 = vmatprep.mubr.bf16.mxu0 0
      %903 = vmatmul.mubr.bf16.gmra.mrb[0].mxu0 %v700
      %v904 = vpop.f32.mrb[0].mxu0
      %v905 = vadd.f32 0.0, %v904
      %v906 = vpop.f32.mrb[0].mxu0
      %v907 = vpop.f32.mrb[0].mxu0
      %v908 = vadd.f32 0.0, %v907
      %v909 = vpop.f32.mrb[0].mxu0
      %910 = vmatprep.mubr.bf16.mxu0 0
      %911 = vmatmul.mubr.bf16.gmra.mrb[0].mxu0 %v703
      %v912 = vpop.f32.mrb[0].mxu0
      %v913 = vadd.f32 0.0, %v912
      %v914 = vpop.f32.mrb[0].mxu0
      %v915 = vpop.f32.mrb[0].mxu0
      %v916 = vadd.f32 0.0, %v915
      %v917 = vpop.f32.mrb[0].mxu0
      %918 = vmatprep.mubr.bf16.mxu0 0
      %919 = vmatmul.mubr.bf16.gmra.mrb[0].mxu0 %v706
      %v920 = vpop.f32.mrb[0].mxu0
      %v921 = vadd.f32 0.0, %v920
      %v922 = vpop.f32.mrb[0].mxu0
      %v923 = vpop.f32.mrb[0].mxu0
      %v924 = vadd.f32 0.0, %v923
      %v925 = vpop.f32.mrb[0].mxu0
      %926 = vmatprep.mubr.bf16.mxu0 0
      %927 = vmatmul.mubr.bf16.gmra.mrb[0].mxu0 %v709
      %v928 = vpop.f32.mrb[0].mxu0
      %v929 = vadd.f32 0.0, %v928
      %v930 = vpop.f32.mrb[0].mxu0
      %v931 = vpop.f32.mrb[0].mxu0
      %v932 = vadd.f32 0.0, %v931
      %v933 = vpop.f32.mrb[0].mxu0
      %934 = vmatprep.mubr.bf16.mxu0 0
      %935 = vmatmul.mubr.bf16.gmra.mrb[0].mxu0 %v712
      %v936 = vpop.f32.mrb[0].mxu0
      %v937 = vadd.f32 0.0, %v936
      %v938 = vpop.f32.mrb[0].mxu0
      %v939 = vpop.f32.mrb[0].mxu0
      %v940 = vadd.f32 0.0, %v939
      %v941 = vpop.f32.mrb[0].mxu0
      %942 = vmatprep.mubr.bf16.mxu0 0
      %943 = vmatmul.mubr.bf16.gmra.mrb[0].mxu0 %v715
      %v944 = vpop.f32.mrb[0].mxu0
      %v945 = vadd.f32 0.0, %v944
      %v946 = vpop.f32.mrb[0].mxu0
      %v947 = vpop.f32.mrb[0].mxu0
      %v948 = vadd.f32 0.0, %v947
      %v949 = vpop.f32.mrb[0].mxu0
      %950 = vmatprep.mubr.bf16.mxu0 0
      %951 = vmatmul.mubr.bf16.gmra.mrb[0].mxu0 %v718
      %v952 = vpop.f32.mrb[0].mxu0
      %v953 = vadd.f32 0.0, %v952
      %v954 = vpop.f32.mrb[0].mxu0
      %v955 = vpop.f32.mrb[0].mxu0
      %v956 = vadd.f32 0.0, %v955
      %v957 = vpop.f32.mrb[0].mxu0
      %958 = vmatprep.mubr.bf16.mxu0 0
      %959 = vmatmul.mubr.bf16.gmra.mrb[0].mxu0 %v721
      %v960 = vpop.f32.mrb[0].mxu0
      %v961 = vadd.f32 0.0, %v960
      %v962 = vpop.f32.mrb[0].mxu0
      %v963 = vpop.f32.mrb[0].mxu0
      %v964 = vadd.f32 0.0, %v963
      %v965 = vpop.f32.mrb[0].mxu0
      %966 = vmatprep.mubr.bf16.mxu0 0
      %967 = vmatmul.mubr.bf16.gmra.mrb[0].mxu0 %v724
      %v968 = vpop.f32.mrb[0].mxu0
      %v969 = vadd.f32 0.0, %v968
      %v970 = vpop.f32.mrb[0].mxu0
      %v971 = vpop.f32.mrb[0].mxu0
      %v972 = vadd.f32 0.0, %v971
      %v973 = vpop.f32.mrb[0].mxu0
      %974 = vmatprep.mubr.bf16.mxu0 0
      %975 = vmatmul.mubr.bf16.gmra.mrb[0].mxu0 %v727
      %v976 = vpop.f32.mrb[0].mxu0
      %v977 = vadd.f32 0.0, %v976
      %v978 = vpop.f32.mrb[0].mxu0
      %v979 = vpop.f32.mrb[0].mxu0
      %v980 = vadd.f32 0.0, %v979
      %v981 = vpop.f32.mrb[0].mxu0
      %982 = vmatprep.mubr.bf16.mxu0 0
      %983 = vmatmul.mubr.bf16.gmra.mrb[0].mxu0 %v730
      %v984 = vpop.f32.mrb[0].mxu0
      %v985 = vadd.f32 0.0, %v984
      %v986 = vpop.f32.mrb[0].mxu0
      %v987 = vpop.f32.mrb[0].mxu0
      %v988 = vadd.f32 0.0, %v987
      %v989 = vpop.f32.mrb[0].mxu0
      %990 = vmatprep.mubr.bf16.mxu0 0
      %991 = vmatmul.mubr.bf16.gmra.mrb[0].mxu0 %v733
      %v992 = vpop.f32.mrb[0].mxu0
      %v993 = vadd.f32 0.0, %v992
      %v994 = vpop.f32.mrb[0].mxu0
      %v995 = vpop.f32.mrb[0].mxu0
      %v996 = vadd.f32 0.0, %v995
      %v997 = vpop.f32.mrb[0].mxu0
      %998 = vmatprep.mubr.bf16.mxu0 0
      %999 = vmatmul.mubr.bf16.gmra.mrb[0].mxu0 %v736
      %v1000 = vpop.f32.mrb[0].mxu0
      %v1001 = vadd.f32 0.0, %v1000
      %v1002 = vpop.f32.mrb[0].mxu0
      %v1003 = vpop.f32.mrb[0].mxu0
      %v1004 = vadd.f32 0.0, %v1003
      %v1005 = vpop.f32.mrb[0].mxu0
      %1006 = vmatprep.mubr.bf16.mxu0 0
      %1007 = vmatmul.mubr.bf16.gmra.mrb[0].mxu0 %v739
      %v1008 = vpop.f32.mrb[0].mxu0
      %v1009 = vadd.f32 0.0, %v1008
      %v1010 = vpop.f32.mrb[0].mxu0
      %v1011 = vpop.f32.mrb[0].mxu0
      %v1012 = vadd.f32 0.0, %v1011
      %v1013 = vpop.f32.mrb[0].mxu0
      %1014 = vmatprep.mubr.bf16.mxu0 0
      %1015 = vmatmul.mubr.bf16.gmra.mrb[0].mxu0 %v742
      %v1016 = vpop.f32.mrb[0].mxu0
      %v1017 = vadd.f32 0.0, %v1016
      %v1018 = vpop.f32.mrb[0].mxu0
      %v1019 = vpop.f32.mrb[0].mxu0
      %v1020 = vadd.f32 0.0, %v1019
      %v1021 = vpop.f32.mrb[0].mxu0
      %1022 = vmatprep.mubr.bf16.mxu0 0
      %1023 = vmatmul.mubr.bf16.gmra.mrb[0].mxu0 %v745
      %v1024 = vpop.f32.mrb[0].mxu0
      %v1025 = vadd.f32 0.0, %v1024
      %v1026 = vpop.f32.mrb[0].mxu0
      %v1027 = vpop.f32.mrb[0].mxu0
      %v1028 = vadd.f32 0.0, %v1027
      %v1029 = vpop.f32.mrb[0].mxu0
      %1030 = vmatprep.mubr.bf16.mxu0 0
      %1031 = vmatmul.mubr.bf16.gmra.mrb[0].mxu0 %v748
      %v1032 = vpop.f32.mrb[0].mxu0
      %v1033 = vadd.f32 0.0, %v1032
      %v1034 = vpop.f32.mrb[0].mxu0
      %v1035 = vpop.f32.mrb[0].mxu0
      %v1036 = vadd.f32 0.0, %v1035
      %v1037 = vpop.f32.mrb[0].mxu0
      %1038 = vdwg.mxu0
      %v1039 = vadd.f32 %v333, %v785
      %v1040 = vadd.f32 %v334, %v788
      %v1041 = vadd.f32 %v335, %v793
      %v1042 = vadd.f32 %v336, %v796
      %v1043 = vadd.f32 %v337, %v801
      %v1044 = vadd.f32 %v338, %v804
      %v1045 = vadd.f32 %v339, %v809
      %v1046 = vadd.f32 %v340, %v812
      %v1047 = vadd.f32 %v341, %v817
      %v1048 = vadd.f32 %v342, %v820
      %v1049 = vadd.f32 %v343, %v825
      %v1050 = vadd.f32 %v344, %v828
      %v1051 = vadd.f32 %v345, %v833
      %v1052 = vadd.f32 %v346, %v836
      %v1053 = vadd.f32 %v347, %v841
      %v1054 = vadd.f32 %v348, %v844
      %v1055 = vadd.f32 %v349, %v849
      %v1056 = vadd.f32 %v350, %v852
      %v1057 = vadd.f32 %v351, %v857
      %v1058 = vadd.f32 %v352, %v860
      %v1059 = vadd.f32 %v353, %v865
      %v1060 = vadd.f32 %v354, %v868
      %v1061 = vadd.f32 %v355, %v873
      %v1062 = vadd.f32 %v356, %v876
      %v1063 = vadd.f32 %v357, %v881
      %v1064 = vadd.f32 %v358, %v884
      %v1065 = vadd.f32 %v359, %v889
      %v1066 = vadd.f32 %v360, %v892
      %v1067 = vadd.f32 %v361, %v897
      %v1068 = vadd.f32 %v362, %v900
      %v1069 = vadd.f32 %v363, %v905
      %v1070 = vadd.f32 %v364, %v908
      %v1071 = vadd.f32 %v365, %v913
      %v1072 = vadd.f32 %v366, %v916
      %v1073 = vadd.f32 %v367, %v921
      %v1074 = vadd.f32 %v368, %v924
      %v1075 = vadd.f32 %v369, %v929
      %v1076 = vadd.f32 %v370, %v932
      %v1077 = vadd.f32 %v371, %v937
      %v1078 = vadd.f32 %v372, %v940
      %v1079 = vadd.f32 %v373, %v945
      %v1080 = vadd.f32 %v374, %v948
      %v1081 = vadd.f32 %v375, %v953
      %v1082 = vadd.f32 %v376, %v956
      %v1083 = vadd.f32 %v377, %v961
      %v1084 = vadd.f32 %v378, %v964
      %v1085 = vadd.f32 %v379, %v969
      %v1086 = vadd.f32 %v380, %v972
      %v1087 = vadd.f32 %v381, %v977
      %v1088 = vadd.f32 %v382, %v980
      %v1089 = vadd.f32 %v383, %v985
      %v1090 = vadd.f32 %v384, %v988
      %v1091 = vadd.f32 %v385, %v993
      %v1092 = vadd.f32 %v386, %v996
      %v1093 = vadd.f32 %v387, %v1001
      %v1094 = vadd.f32 %v388, %v1004
      %v1095 = vadd.f32 %v389, %v1009
      %v1096 = vadd.f32 %v390, %v1012
      %v1097 = vadd.f32 %v391, %v1017
      %v1098 = vadd.f32 %v392, %v1020
      %v1099 = vadd.f32 %v393, %v1025
      %v1100 = vadd.f32 %v394, %v1028
      %v1101 = vadd.f32 %v395, %v1033
      %v1102 = vadd.f32 %v396, %v1036
      %1103 = vst [vmem:[#allocation2] sm:$0xff] %v1039
      %1104 = vst [vmem:[#allocation2 + $0x8] sm:$0xff] %v1040
      %1105 = vst [vmem:[#allocation2 + $0x10] sm:$0xff] %v1041
      %1106 = vst [vmem:[#allocation2 + $0x18] sm:$0xff] %v1042
      %1107 = vst [vmem:[#allocation2 + $0x20] sm:$0xff] %v1043
      %1108 = vst [vmem:[#allocation2 + $0x28] sm:$0xff] %v1044
      %1109 = vst [vmem:[#allocation2 + $0x30] sm:$0xff] %v1045
      %1110 = vst [vmem:[#allocation2 + $0x38] sm:$0xff] %v1046
      %1111 = vst [vmem:[#allocation2 + $0x40] sm:$0xff] %v1047
      %1112 = vst [vmem:[#allocation2 + $0x48] sm:$0xff] %v1048
      %1113 = vst [vmem:[#allocation2 + $0x50] sm:$0xff] %v1049
      %1114 = vst [vmem:[#allocation2 + $0x58] sm:$0xff] %v1050
      %1115 = vst [vmem:[#allocation2 + $0x60] sm:$0xff] %v1051
      %1116 = vst [vmem:[#allocation2 + $0x68] sm:$0xff] %v1052
      %1117 = vst [vmem:[#allocation2 + $0x70] sm:$0xff] %v1053
      %1118 = vst [vmem:[#allocation2 + $0x78] sm:$0xff] %v1054
      %1119 = vst [vmem:[#allocation2 + $0x80] sm:$0xff] %v1055
      %1120 = vst [vmem:[#allocation2 + $0x88] sm:$0xff] %v1056
      %1121 = vst [vmem:[#allocation2 + $0x90] sm:$0xff] %v1057
      %1122 = vst [vmem:[#allocation2 + $0x98] sm:$0xff] %v1058
      %1123 = vst [vmem:[#allocation2 + $0xa0] sm:$0xff] %v1059
      %1124 = vst [vmem:[#allocation2 + $0xa8] sm:$0xff] %v1060
      %1125 = vst [vmem:[#allocation2 + $0xb0] sm:$0xff] %v1061
      %1126 = vst [vmem:[#allocation2 + $0xb8] sm:$0xff] %v1062
      %1127 = vst [vmem:[#allocation2 + $0xc0] sm:$0xff] %v1063
      %1128 = vst [vmem:[#allocation2 + $0xc8] sm:$0xff] %v1064
      %1129 = vst [vmem:[#allocation2 + $0xd0] sm:$0xff] %v1065
      %1130 = vst [vmem:[#allocation2 + $0xd8] sm:$0xff] %v1066
      %1131 = vst [vmem:[#allocation2 + $0xe0] sm:$0xff] %v1067
      %1132 = vst [vmem:[#allocation2 + $0xe8] sm:$0xff] %v1068
      %1133 = vst [vmem:[#allocation2 + $0xf0] sm:$0xff] %v1069
      %1134 = vst [vmem:[#allocation2 + $0xf8] sm:$0xff] %v1070
      %1135 = vst [vmem:[#allocation2 + $0x100] sm:$0xff] %v1071
      %1136 = vst [vmem:[#allocation2 + $0x108] sm:$0xff] %v1072
      %1137 = vst [vmem:[#allocation2 + $0x110] sm:$0xff] %v1073
      %1138 = vst [vmem:[#allocation2 + $0x118] sm:$0xff] %v1074
      %1139 = vst [vmem:[#allocation2 + $0x120] sm:$0xff] %v1075
      %1140 = vst [vmem:[#allocation2 + $0x128] sm:$0xff] %v1076
      %1141 = vst [vmem:[#allocation2 + $0x130] sm:$0xff] %v1077
      %1142 = vst [vmem:[#allocation2 + $0x138] sm:$0xff] %v1078
      %1143 = vst [vmem:[#allocation2 + $0x140] sm:$0xff] %v1079
      %1144 = vst [vmem:[#allocation2 + $0x148] sm:$0xff] %v1080
      %1145 = vst [vmem:[#allocation2 + $0x150] sm:$0xff] %v1081
      %1146 = vst [vmem:[#allocation2 + $0x158] sm:$0xff] %v1082
      %1147 = vst [vmem:[#allocation2 + $0x160] sm:$0xff] %v1083
      %1148 = vst [vmem:[#allocation2 + $0x168] sm:$0xff] %v1084
      %1149 = vst [vmem:[#allocation2 + $0x170] sm:$0xff] %v1085
      %1150 = vst [vmem:[#allocation2 + $0x178] sm:$0xff] %v1086
      %1151 = vst [vmem:[#allocation2 + $0x180] sm:$0xff] %v1087
      %1152 = vst [vmem:[#allocation2 + $0x188] sm:$0xff] %v1088
      %1153 = vst [vmem:[#allocation2 + $0x190] sm:$0xff] %v1089
      %1154 = vst [vmem:[#allocation2 + $0x198] sm:$0xff] %v1090
      %1155 = vst [vmem:[#allocation2 + $0x1a0] sm:$0xff] %v1091
      %1156 = vst [vmem:[#allocation2 + $0x1a8] sm:$0xff] %v1092
      %1157 = vst [vmem:[#allocation2 + $0x1b0] sm:$0xff] %v1093
      %1158 = vst [vmem:[#allocation2 + $0x1b8] sm:$0xff] %v1094
      %1159 = vst [vmem:[#allocation2 + $0x1c0] sm:$0xff] %v1095
      %1160 = vst [vmem:[#allocation2 + $0x1c8] sm:$0xff] %v1096
      %1161 = vst [vmem:[#allocation2 + $0x1d0] sm:$0xff] %v1097
      %1162 = vst [vmem:[#allocation2 + $0x1d8] sm:$0xff] %v1098
      %1163 = vst [vmem:[#allocation2 + $0x1e0] sm:$0xff] %v1099
      %1164 = vst [vmem:[#allocation2 + $0x1e8] sm:$0xff] %v1100
      %1165 = vst [vmem:[#allocation2 + $0x1f0] sm:$0xff] %v1101
      %1166 = vst [vmem:[#allocation2 + $0x1f8] sm:$0xff] %v1102
      // Predicated region
      $region37: #{_lambda_.47} parent=31 // pred_check
        %p1167 = pneg %p265
      $region38: #{_lambda_.47} parent=31 // pred_check_branch
        %1169 = sbr.rel (%p1167) target = $region40
      $region39: #{_lambda_.47} parent=31 // pred_region
        %v1170 = vld [vmem:[#allocation2] sm:$0xff]
        %v1171 = vld [vmem:[#allocation2 + $0x8] sm:$0xff]
        %v1172 = vld [vmem:[#allocation2 + $0x10] sm:$0xff]
        %v1173 = vld [vmem:[#allocation2 + $0x18] sm:$0xff]
        %v1174 = vld [vmem:[#allocation2 + $0x20] sm:$0xff]
        %v1175 = vld [vmem:[#allocation2 + $0x28] sm:$0xff]
        %v1176 = vld [vmem:[#allocation2 + $0x30] sm:$0xff]
        %v1177 = vld [vmem:[#allocation2 + $0x38] sm:$0xff]
        %v1178 = vld [vmem:[#allocation2 + $0x40] sm:$0xff]
        %v1179 = vld [vmem:[#allocation2 + $0x48] sm:$0xff]
        %v1180 = vld [vmem:[#allocation2 + $0x50] sm:$0xff]
        %v1181 = vld [vmem:[#allocation2 + $0x58] sm:$0xff]
        %v1182 = vld [vmem:[#allocation2 + $0x60] sm:$0xff]
        %v1183 = vld [vmem:[#allocation2 + $0x68] sm:$0xff]
        %v1184 = vld [vmem:[#allocation2 + $0x70] sm:$0xff]
        %v1185 = vld [vmem:[#allocation2 + $0x78] sm:$0xff]
        %v1186 = vld [vmem:[#allocation2 + $0x80] sm:$0xff]
        %v1187 = vld [vmem:[#allocation2 + $0x88] sm:$0xff]
        %v1188 = vld [vmem:[#allocation2 + $0x90] sm:$0xff]
        %v1189 = vld [vmem:[#allocation2 + $0x98] sm:$0xff]
        %v1190 = vld [vmem:[#allocation2 + $0xa0] sm:$0xff]
        %v1191 = vld [vmem:[#allocation2 + $0xa8] sm:$0xff]
        %v1192 = vld [vmem:[#allocation2 + $0xb0] sm:$0xff]
        %v1193 = vld [vmem:[#allocation2 + $0xb8] sm:$0xff]
        %v1194 = vld [vmem:[#allocation2 + $0xc0] sm:$0xff]
        %v1195 = vld [vmem:[#allocation2 + $0xc8] sm:$0xff]
        %v1196 = vld [vmem:[#allocation2 + $0xd0] sm:$0xff]
        %v1197 = vld [vmem:[#allocation2 + $0xd8] sm:$0xff]
        %v1198 = vld [vmem:[#allocation2 + $0xe0] sm:$0xff]
        %v1199 = vld [vmem:[#allocation2 + $0xe8] sm:$0xff]
        %v1200 = vld [vmem:[#allocation2 + $0xf0] sm:$0xff]
        %v1201 = vld [vmem:[#allocation2 + $0xf8] sm:$0xff]
        %v1202 = vld [vmem:[#allocation2 + $0x100] sm:$0xff]
        %v1203 = vld [vmem:[#allocation2 + $0x108] sm:$0xff]
        %v1204 = vld [vmem:[#allocation2 + $0x110] sm:$0xff]
        %v1205 = vld [vmem:[#allocation2 + $0x118] sm:$0xff]
        %v1206 = vld [vmem:[#allocation2 + $0x120] sm:$0xff]
        %v1207 = vld [vmem:[#allocation2 + $0x128] sm:$0xff]
        %v1208 = vld [vmem:[#allocation2 + $0x130] sm:$0xff]
        %v1209 = vld [vmem:[#allocation2 + $0x138] sm:$0xff]
        %v1210 = vld [vmem:[#allocation2 + $0x140] sm:$0xff]
        %v1211 = vld [vmem:[#allocation2 + $0x148] sm:$0xff]
        %v1212 = vld [vmem:[#allocation2 + $0x150] sm:$0xff]
        %v1213 = vld [vmem:[#allocation2 + $0x158] sm:$0xff]
        %v1214 = vld [vmem:[#allocation2 + $0x160] sm:$0xff]
        %v1215 = vld [vmem:[#allocation2 + $0x168] sm:$0xff]
        %v1216 = vld [vmem:[#allocation2 + $0x170] sm:$0xff]
        %v1217 = vld [vmem:[#allocation2 + $0x178] sm:$0xff]
        %v1218 = vld [vmem:[#allocation2 + $0x180] sm:$0xff]
        %v1219 = vld [vmem:[#allocation2 + $0x188] sm:$0xff]
        %v1220 = vld [vmem:[#allocation2 + $0x190] sm:$0xff]
        %v1221 = vld [vmem:[#allocation2 + $0x198] sm:$0xff]
        %v1222 = vld [vmem:[#allocation2 + $0x1a0] sm:$0xff]
        %v1223 = vld [vmem:[#allocation2 + $0x1a8] sm:$0xff]
        %v1224 = vld [vmem:[#allocation2 + $0x1b0] sm:$0xff]
        %v1225 = vld [vmem:[#allocation2 + $0x1b8] sm:$0xff]
        %v1226 = vld [vmem:[#allocation2 + $0x1c0] sm:$0xff]
        %v1227 = vld [vmem:[#allocation2 + $0x1c8] sm:$0xff]
        %v1228 = vld [vmem:[#allocation2 + $0x1d0] sm:$0xff]
        %v1229 = vld [vmem:[#allocation2 + $0x1d8] sm:$0xff]
        %v1230 = vld [vmem:[#allocation2 + $0x1e0] sm:$0xff]
        %v1231 = vld [vmem:[#allocation2 + $0x1e8] sm:$0xff]
        %v1232 = vld [vmem:[#allocation2 + $0x1f0] sm:$0xff]
        %v1233 = vld [vmem:[#allocation2 + $0x1f8] sm:$0xff]
        %v1234 = vld [vmem:[%s2] sm:$0x1]
        %v1236 = vlaneseq
        %v1237 = vshrl.u32 %v1236, 7
        %v1238 = vsub.s32 0, %v1237
        %v1239 = vrot.slane %v1234, %v1238
        %v1241 = vadd.f32 %v1170, %v1239
        %v1242 = vadd.f32 %v1171, %v1239
        %v1243 = vadd.f32 %v1172, %v1239
        %v1244 = vadd.f32 %v1173, %v1239
        %v1245 = vadd.f32 %v1174, %v1239
        %v1246 = vadd.f32 %v1175, %v1239
        %v1247 = vadd.f32 %v1176, %v1239
        %v1248 = vadd.f32 %v1177, %v1239
        %v1249 = vadd.f32 %v1178, %v1239
        %v1250 = vadd.f32 %v1179, %v1239
        %v1251 = vadd.f32 %v1180, %v1239
        %v1252 = vadd.f32 %v1181, %v1239
        %v1253 = vadd.f32 %v1182, %v1239
        %v1254 = vadd.f32 %v1183, %v1239
        %v1255 = vadd.f32 %v1184, %v1239
        %v1256 = vadd.f32 %v1185, %v1239
        %v1257 = vadd.f32 %v1186, %v1239
        %v1258 = vadd.f32 %v1187, %v1239
        %v1259 = vadd.f32 %v1188, %v1239
        %v1260 = vadd.f32 %v1189, %v1239
        %v1261 = vadd.f32 %v1190, %v1239
        %v1262 = vadd.f32 %v1191, %v1239
        %v1263 = vadd.f32 %v1192, %v1239
        %v1264 = vadd.f32 %v1193, %v1239
        %v1265 = vadd.f32 %v1194, %v1239
        %v1266 = vadd.f32 %v1195, %v1239
        %v1267 = vadd.f32 %v1196, %v1239
        %v1268 = vadd.f32 %v1197, %v1239
        %v1269 = vadd.f32 %v1198, %v1239
        %v1270 = vadd.f32 %v1199, %v1239
        %v1271 = vadd.f32 %v1200, %v1239
        %v1272 = vadd.f32 %v1201, %v1239
        %v1273 = vadd.f32 %v1202, %v1239
        %v1274 = vadd.f32 %v1203, %v1239
        %v1275 = vadd.f32 %v1204, %v1239
        %v1276 = vadd.f32 %v1205, %v1239
        %v1277 = vadd.f32 %v1206, %v1239
        %v1278 = vadd.f32 %v1207, %v1239
        %v1279 = vadd.f32 %v1208, %v1239
        %v1280 = vadd.f32 %v1209, %v1239
        %v1281 = vadd.f32 %v1210, %v1239
        %v1282 = vadd.f32 %v1211, %v1239
        %v1283 = vadd.f32 %v1212, %v1239
        %v1284 = vadd.f32 %v1213, %v1239
        %v1285 = vadd.f32 %v1214, %v1239
        %v1286 = vadd.f32 %v1215, %v1239
        %v1287 = vadd.f32 %v1216, %v1239
        %v1288 = vadd.f32 %v1217, %v1239
        %v1289 = vadd.f32 %v1218, %v1239
        %v1290 = vadd.f32 %v1219, %v1239
        %v1291 = vadd.f32 %v1220, %v1239
        %v1292 = vadd.f32 %v1221, %v1239
        %v1293 = vadd.f32 %v1222, %v1239
        %v1294 = vadd.f32 %v1223, %v1239
        %v1295 = vadd.f32 %v1224, %v1239
        %v1296 = vadd.f32 %v1225, %v1239
        %v1297 = vadd.f32 %v1226, %v1239
        %v1298 = vadd.f32 %v1227, %v1239
        %v1299 = vadd.f32 %v1228, %v1239
        %v1300 = vadd.f32 %v1229, %v1239
        %v1301 = vadd.f32 %v1230, %v1239
        %v1302 = vadd.f32 %v1231, %v1239
        %v1303 = vadd.f32 %v1232, %v1239
        %v1304 = vadd.f32 %v1233, %v1239
        %v1305 = vtanh.pop %v1241
        %v1306 = vtanh.pop %v1242
        %v1307 = vtanh.pop %v1243
        %v1308 = vtanh.pop %v1244
        %v1309 = vtanh.pop %v1245
        %v1310 = vtanh.pop %v1246
        %v1311 = vtanh.pop %v1247
        %v1312 = vtanh.pop %v1248
        %v1313 = vtanh.pop %v1249
        %v1314 = vtanh.pop %v1250
        %v1315 = vtanh.pop %v1251
        %v1316 = vtanh.pop %v1252
        %v1317 = vtanh.pop %v1253
        %v1318 = vtanh.pop %v1254
        %v1319 = vtanh.pop %v1255
        %v1320 = vtanh.pop %v1256
        %v1321 = vtanh.pop %v1257
        %v1322 = vtanh.pop %v1258
        %v1323 = vtanh.pop %v1259
        %v1324 = vtanh.pop %v1260
        %v1325 = vtanh.pop %v1261
        %v1326 = vtanh.pop %v1262
        %v1327 = vtanh.pop %v1263
        %v1328 = vtanh.pop %v1264
        %v1329 = vtanh.pop %v1265
        %v1330 = vtanh.pop %v1266
        %v1331 = vtanh.pop %v1267
        %v1332 = vtanh.pop %v1268
        %v1333 = vtanh.pop %v1269
        %v1334 = vtanh.pop %v1270
        %v1335 = vtanh.pop %v1271
        %v1336 = vtanh.pop %v1272
        %v1337 = vtanh.pop %v1273
        %v1338 = vtanh.pop %v1274
        %v1339 = vtanh.pop %v1275
        %v1340 = vtanh.pop %v1276
        %v1341 = vtanh.pop %v1277
        %v1342 = vtanh.pop %v1278
        %v1343 = vtanh.pop %v1279
        %v1344 = vtanh.pop %v1280
        %v1345 = vtanh.pop %v1281
        %v1346 = vtanh.pop %v1282
        %v1347 = vtanh.pop %v1283
        %v1348 = vtanh.pop %v1284
        %v1349 = vtanh.pop %v1285
        %v1350 = vtanh.pop %v1286
        %v1351 = vtanh.pop %v1287
        %v1352 = vtanh.pop %v1288
        %v1353 = vtanh.pop %v1289
        %v1354 = vtanh.pop %v1290
        %v1355 = vtanh.pop %v1291
        %v1356 = vtanh.pop %v1292
        %v1357 = vtanh.pop %v1293
        %v1358 = vtanh.pop %v1294
        %v1359 = vtanh.pop %v1295
        %v1360 = vtanh.pop %v1296
        %v1361 = vtanh.pop %v1297
        %v1362 = vtanh.pop %v1298
        %v1363 = vtanh.pop %v1299
        %v1364 = vtanh.pop %v1300
        %v1365 = vtanh.pop %v1301
        %v1366 = vtanh.pop %v1302
        %v1367 = vtanh.pop %v1303
        %v1368 = vtanh.pop %v1304
        %1369 = vst [vmem:[%s262] sm:$0xff] %v1305
        %1370 = vst [vmem:[%s262 + $0x8] sm:$0xff] %v1306
        %1371 = vst [vmem:[%s262 + $0x10] sm:$0xff] %v1307
        %1372 = vst [vmem:[%s262 + $0x18] sm:$0xff] %v1308
        %1373 = vst [vmem:[%s262 + $0x20] sm:$0xff] %v1309
        %1374 = vst [vmem:[%s262 + $0x28] sm:$0xff] %v1310
        %1375 = vst [vmem:[%s262 + $0x30] sm:$0xff] %v1311
        %1376 = vst [vmem:[%s262 + $0x38] sm:$0xff] %v1312
        %1377 = vst [vmem:[%s262 + $0x40] sm:$0xff] %v1313
        %1378 = vst [vmem:[%s262 + $0x48] sm:$0xff] %v1314
        %1379 = vst [vmem:[%s262 + $0x50] sm:$0xff] %v1315
        %1380 = vst [vmem:[%s262 + $0x58] sm:$0xff] %v1316
        %1381 = vst [vmem:[%s262 + $0x60] sm:$0xff] %v1317
        %1382 = vst [vmem:[%s262 + $0x68] sm:$0xff] %v1318
        %1383 = vst [vmem:[%s262 + $0x70] sm:$0xff] %v1319
        %1384 = vst [vmem:[%s262 + $0x78] sm:$0xff] %v1320
        %1385 = vst [vmem:[%s262 + $0x80] sm:$0xff] %v1321
        %1386 = vst [vmem:[%s262 + $0x88] sm:$0xff] %v1322
        %1387 = vst [vmem:[%s262 + $0x90] sm:$0xff] %v1323
        %1388 = vst [vmem:[%s262 + $0x98] sm:$0xff] %v1324
        %1389 = vst [vmem:[%s262 + $0xa0] sm:$0xff] %v1325
        %1390 = vst [vmem:[%s262 + $0xa8] sm:$0xff] %v1326
        %1391 = vst [vmem:[%s262 + $0xb0] sm:$0xff] %v1327
        %1392 = vst [vmem:[%s262 + $0xb8] sm:$0xff] %v1328
        %1393 = vst [vmem:[%s262 + $0xc0] sm:$0xff] %v1329
        %1394 = vst [vmem:[%s262 + $0xc8] sm:$0xff] %v1330
        %1395 = vst [vmem:[%s262 + $0xd0] sm:$0xff] %v1331
        %1396 = vst [vmem:[%s262 + $0xd8] sm:$0xff] %v1332
        %1397 = vst [vmem:[%s262 + $0xe0] sm:$0xff] %v1333
        %1398 = vst [vmem:[%s262 + $0xe8] sm:$0xff] %v1334
        %1399 = vst [vmem:[%s262 + $0xf0] sm:$0xff] %v1335
        %1400 = vst [vmem:[%s262 + $0xf8] sm:$0xff] %v1336
        %1401 = vst [vmem:[%s262 + $0x100] sm:$0xff] %v1337
        %1402 = vst [vmem:[%s262 + $0x108] sm:$0xff] %v1338
        %1403 = vst [vmem:[%s262 + $0x110] sm:$0xff] %v1339
        %1404 = vst [vmem:[%s262 + $0x118] sm:$0xff] %v1340
        %1405 = vst [vmem:[%s262 + $0x120] sm:$0xff] %v1341
        %1406 = vst [vmem:[%s262 + $0x128] sm:$0xff] %v1342
        %1407 = vst [vmem:[%s262 + $0x130] sm:$0xff] %v1343
        %1408 = vst [vmem:[%s262 + $0x138] sm:$0xff] %v1344
        %1409 = vst [vmem:[%s262 + $0x140] sm:$0xff] %v1345
        %1410 = vst [vmem:[%s262 + $0x148] sm:$0xff] %v1346
        %1411 = vst [vmem:[%s262 + $0x150] sm:$0xff] %v1347
        %1412 = vst [vmem:[%s262 + $0x158] sm:$0xff] %v1348
        %1413 = vst [vmem:[%s262 + $0x160] sm:$0xff] %v1349
        %1414 = vst [vmem:[%s262 + $0x168] sm:$0xff] %v1350
        %1415 = vst [vmem:[%s262 + $0x170] sm:$0xff] %v1351
        %1416 = vst [vmem:[%s262 + $0x178] sm:$0xff] %v1352
        %1417 = vst [vmem:[%s262 + $0x180] sm:$0xff] %v1353
        %1418 = vst [vmem:[%s262 + $0x188] sm:$0xff] %v1354
        %1419 = vst [vmem:[%s262 + $0x190] sm:$0xff] %v1355
        %1420 = vst [vmem:[%s262 + $0x198] sm:$0xff] %v1356
        %1421 = vst [vmem:[%s262 + $0x1a0] sm:$0xff] %v1357
        %1422 = vst [vmem:[%s262 + $0x1a8] sm:$0xff] %v1358
        %1423 = vst [vmem:[%s262 + $0x1b0] sm:$0xff] %v1359
        %1424 = vst [vmem:[%s262 + $0x1b8] sm:$0xff] %v1360
        %1425 = vst [vmem:[%s262 + $0x1c0] sm:$0xff] %v1361
        %1426 = vst [vmem:[%s262 + $0x1c8] sm:$0xff] %v1362
        %1427 = vst [vmem:[%s262 + $0x1d0] sm:$0xff] %v1363
        %1428 = vst [vmem:[%s262 + $0x1d8] sm:$0xff] %v1364
        %1429 = vst [vmem:[%s262 + $0x1e0] sm:$0xff] %v1365
        %1430 = vst [vmem:[%s262 + $0x1e8] sm:$0xff] %v1366
        %1431 = vst [vmem:[%s262 + $0x1f0] sm:$0xff] %v1367
        %1432 = vst [vmem:[%s262 + $0x1f8] sm:$0xff] %v1368
      $region40: #{_lambda_.47} parent=31 // pred_fallthru
        _
      %s1433 = smul.u32 64, %s20
      %p1434 = scmp.lt.s32.totalorder %s19, 3
      %s1435 = scalar_select %p1434, %s19, 3
      %p1436 = scmp.lt.s32.totalorder %s1433, 63
      %s1437 = scalar_select %p1436, %s1433, 63
      %s1438 = smul.addr %s1435, 64
      %s1439 = sadd.s32 %s1437, %s1438
      %s1440 = smul.addr %s1439, 8
      %s1441 = scalar_lea.vmem %s3, %s1440
      // Predicated region
      $region41: #{_lambda_.47} parent=31 // pred_check
        %p1442 = pneg %p132
      $region42: #{_lambda_.47} parent=31 // pred_check_branch
        %1444 = sbr.rel (%p1442) target = $region44
      $region43: #{_lambda_.47} parent=31 // pred_region
        %s1445 = smul.u32 64, %s20
      $region44: #{_lambda_.47} parent=31 // pred_fallthru
        _
    $region32: #{_lambda_.47} parent=5 // pred_fallthru
      _
    %p1446 = scmp.le.s32.totalorder 2, %s9
    // Predicated region
    $region45: #{_lambda_.47} parent=5 // pred_check
      %p1447 = pneg %p1446
    $region46: #{_lambda_.47} parent=5 // pred_check_branch
      %1449 = sbr.rel (%p1447) target = $region48
    $region47: #{_lambda_.47} parent=5 // pred_region
      %s1450 = ssub.s32 %s9, 2
      // Predicated region
      $region49: #{_lambda_.47} parent=47 // pred_check
        %p1451 = pneg %p138
      $region50: #{_lambda_.47} parent=47 // pred_check_branch
        %1453 = sbr.rel (%p1451) target = $region52
      $region51: #{_lambda_.47} parent=47 // pred_region
        %s1454 = smul.u32 64, %s23
        %p1455 = scmp.lt.s32.totalorder %s22, 3
        %s1456 = scalar_select %p1455, %s22, 3
        %p1457 = scmp.lt.s32.totalorder %s1454, 63
        %s1458 = scalar_select %p1457, %s1454, 63
        %s1459 = smul.addr %s1456, 64
        %s1460 = sadd.s32 %s1458, %s1459
        %s1461 = smul.addr %s1460, 8
        %s1462 = scalar_lea.vmem %s3, %s1461
      $region52: #{_lambda_.47} parent=47 // pred_fallthru
        _
    $region48: #{_lambda_.47} parent=5 // pred_fallthru
      _
  $region6: #{_lambda_.47} parent=0 // loop_footer
    %s13 = sadd.s32 1, %s9
  $region7: #{_lambda_.47} parent=0 // loop_footer_branch
    %8 = sbr.rel target = $region3
  $region8: #{_lambda_.47} parent=0 // loop_exit
    _

</llo_original>
